<compile_context>
chip_gen: v7x
topology: tpu7x:2x2x1
jax: 0.10.0
libtpu: 0.0.40
codegen_flags: <defaults>
</compile_context>

<pallas_src>
import jax
import jax.numpy as jnp
from jax import lax
from jax.experimental import pallas as pl
from jax.experimental.pallas import tpu as pltpu

NEG_SLOPE = 0.2
BN_EPS = 1e-5


def _leaky_relu(x):
    return jnp.where(x >= 0, x, NEG_SLOPE * x)


def discriminator_kernel(x_ref, w1_ref, b1_ref, w2_ref, b2_ref,
                         gamma_ref, beta_ref, w3_ref, b3_ref,
                         o_ref,
                         xpad_ref, p1_ref, apad_ref, p2_ref):
    # x_ref:    (N, H, W, 1)   input (Cin == 1)
    # w1_ref:   (16, 16)       conv1 im2col weights (rows 0..8 = 3x3 taps, 9..15 zero)
    # w2_ref:   (144, 16)      conv2 im2col weights (row = di*48 + dj*16 + cin)
    # b1/b2/gamma/beta: (1,16) w3_ref: (16,1)  b3_ref: (1,1)  o_ref: (N, 1)
    # scratch:  xpad (N,H+2,W+2,1), p1 (NHW,16), apad (N,H+2,W+2,16), p2 (NHW,144)
    N, H, W, _ = x_ref.shape
    C = 16
    NHW = N * H * W

    # ---- in-VMEM zero padding of the input (replaces XLA pad glue) ----
    xpad_ref[...] = jnp.zeros_like(xpad_ref)
    xpad_ref[:, 1:H + 1, 1:W + 1, :] = x_ref[...]

    # ---- conv1 as one im2col matmul: (NHW, 16) @ (16, 16) on the MXU ----
    p1_ref[...] = jnp.zeros_like(p1_ref)          # cols 9..15 stay zero (padded K)
    for di in range(3):
        for dj in range(3):
            t = di * 3 + dj
            p1_ref[:, t:t + 1] = xpad_ref[:, di:di + H, dj:dj + W, :].reshape(NHW, 1)
    a1 = jnp.dot(p1_ref[...], w1_ref[...],
                 preferred_element_type=jnp.float32) + b1_ref[...]
    a1 = _leaky_relu(a1)                          # (NHW, 16)

    # ---- in-VMEM zero padding of act1 (no HBM round trip between convs) ----
    apad_ref[...] = jnp.zeros_like(apad_ref)
    apad_ref[:, 1:H + 1, 1:W + 1, :] = a1.reshape(N, H, W, C)

    # ---- conv2 as one im2col matmul: (NHW, 144) @ (144, 16) on the MXU ----
    for di in range(3):
        for dj in range(3):
            t = di * 3 + dj
            p2_ref[:, t * C:(t + 1) * C] = \
                apad_ref[:, di:di + H, dj:dj + W, :].reshape(NHW, C)
    a2 = jnp.dot(p2_ref[...], w2_ref[...],
                 preferred_element_type=jnp.float32) + b2_ref[...]     # (NHW, 16)

    # ---- BatchNorm2d(16): training-mode batch stats, biased variance ----
    # Column reductions done as MXU dots with a constant row instead of a long
    # cross-sublane reduce; normalization uses rsqrt (EUP slot).
    # TODO(synk): running_mean/running_var updates (training side effect) not modeled.
    ones_row = jnp.full((1, NHW), 1.0 / NHW, jnp.float32)
    mean = jnp.dot(ones_row, a2, preferred_element_type=jnp.float32)   # (1, 16)
    d = a2 - mean
    var = jnp.dot(ones_row, d * d, preferred_element_type=jnp.float32) # (1, 16)
    xhat = d * lax.rsqrt(var + BN_EPS)
    act = _leaky_relu(xhat * gamma_ref[...] + beta_ref[...])           # (NHW, 16)

    # ---- AdaptiveMaxPool2d(1): global spatial max per sample ----
    pooled = jnp.max(act.reshape(N, H * W, C), axis=1)                 # (N, 16)

    # ---- Conv2d(16, 1, kernel_size=1) == dense 16 -> 1 ----
    o_ref[...] = jnp.dot(pooled, w3_ref[...],
                         preferred_element_type=jnp.float32) + b3_ref[...]


def pack_params(params):
    """Reshape HWIO conv weights into the kernel's im2col matmul layouts (done once,
    outside the jitted forward, so no per-call XLA glue ops)."""
    w1 = params["w1"].reshape(9, 16)                   # (3,3,1,16) -> (9,16)
    w1 = jnp.pad(w1, ((0, 7), (0, 0)))                 # pad K: 9 -> 16 (zero rows)
    w2 = params["w2"].reshape(144, 16)                 # (3,3,16,16) -> (144,16)
    return {"w1": w1, "b1": params["b1"], "w2": w2, "b2": params["b2"],
            "gamma": params["gamma"], "beta": params["beta"],
            "w3": params["w3"], "b3": params["b3"]}


def discriminator_forward(x_nchw, packed):
    """x_nchw: (N, 1, H, W) float32 (PyTorch layout). Returns (N, 1)."""
    N, Cin, H, W = x_nchw.shape
    assert Cin == 1
    # For Cin == 1, NCHW -> NHWC is a pure reshape (no data movement).
    x = x_nchw.reshape(N, H, W, 1)
    NHW = N * H * W
    # TODO(synk): for large N/H/W, add a batch/spatial grid (two-phase BN accumulate)
    # and tile within the v7x 64 MiB VMEM budget; at these sizes one program is best.
    return pl.pallas_call(
        discriminator_kernel,
        out_shape=jax.ShapeDtypeStruct((N, 1), jnp.float32),
        in_specs=[pl.BlockSpec(memory_space=pltpu.MemorySpace.VMEM)] * 9,
        out_specs=pl.BlockSpec(memory_space=pltpu.MemorySpace.VMEM),
        scratch_shapes=[
            pltpu.VMEM((N, H + 2, W + 2, 1), jnp.float32),    # padded input
            pltpu.VMEM((NHW, 16), jnp.float32),               # conv1 im2col patches
            pltpu.VMEM((N, H + 2, W + 2, 16), jnp.float32),   # padded act1
            pltpu.VMEM((NHW, 144), jnp.float32),              # conv2 im2col patches
        ],
    )(x, packed["w1"], packed["b1"], packed["w2"], packed["b2"],
      packed["gamma"], packed["beta"], packed["w3"], packed["b3"])


def reference_forward(x_nchw, params):
    """Pure-JAX reference (no Pallas), same semantics as the PyTorch module."""
    x = jnp.transpose(x_nchw, (0, 2, 3, 1))
    dn = ("NHWC", "HWIO", "NHWC")
    y = lax.conv_general_dilated(x, params["w1"], (1, 1), "SAME",
                                 dimension_numbers=dn)
    y = y + params["b1"].reshape(1, 1, 1, 16)
    y = jnp.where(y >= 0, y, NEG_SLOPE * y)
    y = lax.conv_general_dilated(y, params["w2"], (1, 1), "SAME",
                                 dimension_numbers=dn)
    y = y + params["b2"].reshape(1, 1, 1, 16)
    mean = jnp.mean(y, axis=(0, 1, 2), keepdims=True)
    var = jnp.mean((y - mean) ** 2, axis=(0, 1, 2), keepdims=True)
    y = (y - mean) / jnp.sqrt(var + BN_EPS)
    y = y * params["gamma"].reshape(1, 1, 1, 16) + params["beta"].reshape(1, 1, 1, 16)
    y = jnp.where(y >= 0, y, NEG_SLOPE * y)
    y = jnp.max(y, axis=(1, 2))                                   # (N, 16)
    return y @ params["w3"] + params["b3"]                        # (N, 1)


if __name__ == "__main__":
    key = jax.random.PRNGKey(0)
    kx, k1, k2, k3, k4, k5, k6, k7, k8 = jax.random.split(key, 9)
    N, H, W = 2, 16, 16

    x = jax.random.normal(kx, (N, 1, H, W), jnp.float32)          # NCHW like PyTorch

    params = {
        "w1": 0.1 * jax.random.normal(k1, (3, 3, 1, 16), jnp.float32),
        "b1": 0.1 * jax.random.normal(k2, (1, 16), jnp.float32),
        "w2": 0.1 * jax.random.normal(k3, (3, 3, 16, 16), jnp.float32),
        "b2": 0.1 * jax.random.normal(k4, (1, 16), jnp.float32),
        "gamma": 1.0 + 0.1 * jax.random.normal(k5, (1, 16), jnp.float32),
        "beta": 0.1 * jax.random.normal(k6, (1, 16), jnp.float32),
        "w3": 0.1 * jax.random.normal(k7, (16, 1), jnp.float32),
        "b3": 0.1 * jax.random.normal(k8, (1, 1), jnp.float32),
    }

    packed = jax.tree_util.tree_map(lambda a: a, pack_params(params))

    out = jax.jit(discriminator_forward)(x, packed)
    out = jax.block_until_ready(out)
    assert out.shape == (N, 1), out.shape

    ref = reference_forward(x, params)
    max_err = float(jnp.max(jnp.abs(out - ref)))
    if max_err > 1e-2:
        raise AssertionError(f"Pallas output mismatch vs reference: max|err|={max_err}")

    print("KERNEL_OK")
</pallas_src>

<mosaic_0001>
module attributes {stable_mosaic.version = 11 : i64} {
  func.func @discriminator_kernel(%arg0: memref<2x16x16x1xf32, #tpu.memory_space<vmem>>, %arg1: memref<16x16xf32, #tpu.memory_space<vmem>>, %arg2: memref<1x16xf32, #tpu.memory_space<vmem>>, %arg3: memref<144x16xf32, #tpu.memory_space<vmem>>, %arg4: memref<1x16xf32, #tpu.memory_space<vmem>>, %arg5: memref<1x16xf32, #tpu.memory_space<vmem>>, %arg6: memref<1x16xf32, #tpu.memory_space<vmem>>, %arg7: memref<16x1xf32, #tpu.memory_space<vmem>>, %arg8: memref<1x1xf32, #tpu.memory_space<vmem>>, %arg9: memref<2x1xf32, #tpu.memory_space<vmem>>, %arg10: memref<2x18x18x1xf32, #tpu.memory_space<vmem>>, %arg11: memref<512x16xf32, #tpu.memory_space<vmem>>, %arg12: memref<2x18x18x16xf32, #tpu.memory_space<vmem>>, %arg13: memref<512x144xf32, #tpu.memory_space<vmem>>) attributes {dimension_semantics = [], scalar_prefetch = 0 : i64, scratch_operands = 4 : i64, tpu.core_type = #tpu.core_type<tc>} {
    %cst = arith.constant 0.000000e+00 : f32
    %0 = vector.broadcast %cst : f32 to vector<2x18x18x1xf32>
    %c0 = arith.constant 0 : index
    %c0_0 = arith.constant 0 : index
    %c0_1 = arith.constant 0 : index
    %c0_2 = arith.constant 0 : index
    %1 = vector.load %arg10[%c0, %c0_0, %c0_1, %c0_2] : memref<2x18x18x1xf32, #tpu.memory_space<vmem>>, vector<2x18x18x1xf32>
    tpu.vector_store %arg10[%c0, %c0_0, %c0_1, %c0_2], %0 {strides = array<i32>} : memref<2x18x18x1xf32, #tpu.memory_space<vmem>>, vector<2x18x18x1xf32>,
    %c0_3 = arith.constant 0 : index
    %c0_4 = arith.constant 0 : index
    %c0_5 = arith.constant 0 : index
    %c0_6 = arith.constant 0 : index
    %2 = vector.load %arg0[%c0_3, %c0_4, %c0_5, %c0_6] : memref<2x16x16x1xf32, #tpu.memory_space<vmem>>, vector<2x16x16x1xf32>
    %c0_7 = arith.constant 0 : index
    %c1 = arith.constant 1 : index
    %c1_8 = arith.constant 1 : index
    %c0_9 = arith.constant 0 : index
    %3 = vector.load %arg10[%c0_7, %c1, %c1_8, %c0_9] : memref<2x18x18x1xf32, #tpu.memory_space<vmem>>, vector<2x16x16x1xf32>
    tpu.vector_store %arg10[%c0_7, %c1, %c1_8, %c0_9], %2 {strides = array<i32>} : memref<2x18x18x1xf32, #tpu.memory_space<vmem>>, vector<2x16x16x1xf32>,
    %cst_10 = arith.constant 0.000000e+00 : f32
    %4 = vector.broadcast %cst_10 : f32 to vector<512x16xf32>
    %c0_11 = arith.constant 0 : index
    %c0_12 = arith.constant 0 : index
    %5 = vector.load %arg11[%c0_11, %c0_12] : memref<512x16xf32, #tpu.memory_space<vmem>>, vector<512x16xf32>
    tpu.vector_store %arg11[%c0_11, %c0_12], %4 {strides = array<i32>} : memref<512x16xf32, #tpu.memory_space<vmem>>, vector<512x16xf32>,
    %c0_13 = arith.constant 0 : index
    %c0_14 = arith.constant 0 : index
    %c0_15 = arith.constant 0 : index
    %c0_16 = arith.constant 0 : index
    %6 = vector.load %arg10[%c0_13, %c0_14, %c0_15, %c0_16] : memref<2x18x18x1xf32, #tpu.memory_space<vmem>>, vector<2x16x16x1xf32>
    %7 = vector.shape_cast %6 : vector<2x16x16x1xf32> to vector<512x1xf32>
    %c0_17 = arith.constant 0 : index
    %c0_18 = arith.constant 0 : index
    %8 = vector.load %arg11[%c0_17, %c0_18] : memref<512x16xf32, #tpu.memory_space<vmem>>, vector<512x1xf32>
    tpu.vector_store %arg11[%c0_17, %c0_18], %7 {strides = array<i32>} : memref<512x16xf32, #tpu.memory_space<vmem>>, vector<512x1xf32>,
    %c0_19 = arith.constant 0 : index
    %c0_20 = arith.constant 0 : index
    %c1_21 = arith.constant 1 : index
    %c0_22 = arith.constant 0 : index
    %9 = vector.load %arg10[%c0_19, %c0_20, %c1_21, %c0_22] : memref<2x18x18x1xf32, #tpu.memory_space<vmem>>, vector<2x16x16x1xf32>
    %10 = vector.shape_cast %9 : vector<2x16x16x1xf32> to vector<512x1xf32>
    %c0_23 = arith.constant 0 : index
    %c1_24 = arith.constant 1 : index
    %11 = vector.load %arg11[%c0_23, %c1_24] : memref<512x16xf32, #tpu.memory_space<vmem>>, vector<512x1xf32>
    tpu.vector_store %arg11[%c0_23, %c1_24], %10 {strides = array<i32>} : memref<512x16xf32, #tpu.memory_space<vmem>>, vector<512x1xf32>,
    %c0_25 = arith.constant 0 : index
    %c0_26 = arith.constant 0 : index
    %c2 = arith.constant 2 : index
    %c0_27 = arith.constant 0 : index
    %12 = vector.load %arg10[%c0_25, %c0_26, %c2, %c0_27] : memref<2x18x18x1xf32, #tpu.memory_space<vmem>>, vector<2x16x16x1xf32>
    %13 = vector.shape_cast %12 : vector<2x16x16x1xf32> to vector<512x1xf32>
    %c0_28 = arith.constant 0 : index
    %c2_29 = arith.constant 2 : index
    %14 = vector.load %arg11[%c0_28, %c2_29] : memref<512x16xf32, #tpu.memory_space<vmem>>, vector<512x1xf32>
    tpu.vector_store %arg11[%c0_28, %c2_29], %13 {strides = array<i32>} : memref<512x16xf32, #tpu.memory_space<vmem>>, vector<512x1xf32>,
    %c0_30 = arith.constant 0 : index
    %c1_31 = arith.constant 1 : index
    %c0_32 = arith.constant 0 : index
    %c0_33 = arith.constant 0 : index
    %15 = vector.load %arg10[%c0_30, %c1_31, %c0_32, %c0_33] : memref<2x18x18x1xf32, #tpu.memory_space<vmem>>, vector<2x16x16x1xf32>
    %16 = vector.shape_cast %15 : vector<2x16x16x1xf32> to vector<512x1xf32>
    %c0_34 = arith.constant 0 : index
    %c3 = arith.constant 3 : index
    %17 = vector.load %arg11[%c0_34, %c3] : memref<512x16xf32, #tpu.memory_space<vmem>>, vector<512x1xf32>
    tpu.vector_store %arg11[%c0_34, %c3], %16 {strides = array<i32>} : memref<512x16xf32, #tpu.memory_space<vmem>>, vector<512x1xf32>,
    %c0_35 = arith.constant 0 : index
    %c1_36 = arith.constant 1 : index
    %c1_37 = arith.constant 1 : index
    %c0_38 = arith.constant 0 : index
    %18 = vector.load %arg10[%c0_35, %c1_36, %c1_37, %c0_38] : memref<2x18x18x1xf32, #tpu.memory_space<vmem>>, vector<2x16x16x1xf32>
    %19 = vector.shape_cast %18 : vector<2x16x16x1xf32> to vector<512x1xf32>
    %c0_39 = arith.constant 0 : index
    %c4 = arith.constant 4 : index
    %20 = vector.load %arg11[%c0_39, %c4] : memref<512x16xf32, #tpu.memory_space<vmem>>, vector<512x1xf32>
    tpu.vector_store %arg11[%c0_39, %c4], %19 {strides = array<i32>} : memref<512x16xf32, #tpu.memory_space<vmem>>, vector<512x1xf32>,
    %c0_40 = arith.constant 0 : index
    %c1_41 = arith.constant 1 : index
    %c2_42 = arith.constant 2 : index
    %c0_43 = arith.constant 0 : index
    %21 = vector.load %arg10[%c0_40, %c1_41, %c2_42, %c0_43] : memref<2x18x18x1xf32, #tpu.memory_space<vmem>>, vector<2x16x16x1xf32>
    %22 = vector.shape_cast %21 : vector<2x16x16x1xf32> to vector<512x1xf32>
    %c0_44 = arith.constant 0 : index
    %c5 = arith.constant 5 : index
    %23 = vector.load %arg11[%c0_44, %c5] : memref<512x16xf32, #tpu.memory_space<vmem>>, vector<512x1xf32>
    tpu.vector_store %arg11[%c0_44, %c5], %22 {strides = array<i32>} : memref<512x16xf32, #tpu.memory_space<vmem>>, vector<512x1xf32>,
    %c0_45 = arith.constant 0 : index
    %c2_46 = arith.constant 2 : index
    %c0_47 = arith.constant 0 : index
    %c0_48 = arith.constant 0 : index
    %24 = vector.load %arg10[%c0_45, %c2_46, %c0_47, %c0_48] : memref<2x18x18x1xf32, #tpu.memory_space<vmem>>, vector<2x16x16x1xf32>
    %25 = vector.shape_cast %24 : vector<2x16x16x1xf32> to vector<512x1xf32>
    %c0_49 = arith.constant 0 : index
    %c6 = arith.constant 6 : index
    %26 = vector.load %arg11[%c0_49, %c6] : memref<512x16xf32, #tpu.memory_space<vmem>>, vector<512x1xf32>
    tpu.vector_store %arg11[%c0_49, %c6], %25 {strides = array<i32>} : memref<512x16xf32, #tpu.memory_space<vmem>>, vector<512x1xf32>,
    %c0_50 = arith.constant 0 : index
    %c2_51 = arith.constant 2 : index
    %c1_52 = arith.constant 1 : index
    %c0_53 = arith.constant 0 : index
    %27 = vector.load %arg10[%c0_50, %c2_51, %c1_52, %c0_53] : memref<2x18x18x1xf32, #tpu.memory_space<vmem>>, vector<2x16x16x1xf32>
    %28 = vector.shape_cast %27 : vector<2x16x16x1xf32> to vector<512x1xf32>
    %c0_54 = arith.constant 0 : index
    %c7 = arith.constant 7 : index
    %29 = vector.load %arg11[%c0_54, %c7] : memref<512x16xf32, #tpu.memory_space<vmem>>, vector<512x1xf32>
    tpu.vector_store %arg11[%c0_54, %c7], %28 {strides = array<i32>} : memref<512x16xf32, #tpu.memory_space<vmem>>, vector<512x1xf32>,
    %c0_55 = arith.constant 0 : index
    %c2_56 = arith.constant 2 : index
    %c2_57 = arith.constant 2 : index
    %c0_58 = arith.constant 0 : index
    %30 = vector.load %arg10[%c0_55, %c2_56, %c2_57, %c0_58] : memref<2x18x18x1xf32, #tpu.memory_space<vmem>>, vector<2x16x16x1xf32>
    %31 = vector.shape_cast %30 : vector<2x16x16x1xf32> to vector<512x1xf32>
    %c0_59 = arith.constant 0 : index
    %c8 = arith.constant 8 : index
    %32 = vector.load %arg11[%c0_59, %c8] : memref<512x16xf32, #tpu.memory_space<vmem>>, vector<512x1xf32>
    tpu.vector_store %arg11[%c0_59, %c8], %31 {strides = array<i32>} : memref<512x16xf32, #tpu.memory_space<vmem>>, vector<512x1xf32>,
    %c0_60 = arith.constant 0 : index
    %c0_61 = arith.constant 0 : index
    %33 = vector.load %arg11[%c0_60, %c0_61] : memref<512x16xf32, #tpu.memory_space<vmem>>, vector<512x16xf32>
    %c0_62 = arith.constant 0 : index
    %c0_63 = arith.constant 0 : index
    %34 = vector.load %arg1[%c0_62, %c0_63] : memref<16x16xf32, #tpu.memory_space<vmem>>, vector<16x16xf32>
    %cst_64 = arith.constant dense<0.000000e+00> : vector<512x16xf32>
    %35 = tpu.matmul %33, %34, %cst_64 {dimension_numbers = #tpu.dot_dimension_numbers<[1], [0], [0], [1], [0, 0, 1, 1], [], []>} : vector<512x16xf32>, vector<16x16xf32>, vector<512x16xf32> -> vector<512x16xf32>
    %c0_65 = arith.constant 0 : index
    %c0_66 = arith.constant 0 : index
    %36 = vector.load %arg2[%c0_65, %c0_66] : memref<1x16xf32, #tpu.memory_space<vmem>>, vector<1x16xf32>
    %37 = vector.broadcast %36 : vector<1x16xf32> to vector<512x16xf32>
    %38 = arith.addf %35, %37 : vector<512x16xf32>
    %cst_67 = arith.constant 0.000000e+00 : f32
    %39 = vector.broadcast %cst_67 : f32 to vector<512x16xf32>
    %40 = arith.cmpf oge, %38, %39 : vector<512x16xf32>
    %cst_68 = arith.constant 2.000000e-01 : f32
    %41 = vector.broadcast %cst_68 : f32 to vector<512x16xf32>
    %42 = arith.mulf %41, %38 : vector<512x16xf32>
    %43 = arith.select %40, %38, %42 : vector<512x16xi1>, vector<512x16xf32>
    %cst_69 = arith.constant 0.000000e+00 : f32
    %44 = vector.broadcast %cst_69 : f32 to vector<2x18x18x16xf32>
    %c0_70 = arith.constant 0 : index
    %c0_71 = arith.constant 0 : index
    %c0_72 = arith.constant 0 : index
    %c0_73 = arith.constant 0 : index
    %45 = vector.load %arg12[%c0_70, %c0_71, %c0_72, %c0_73] : memref<2x18x18x16xf32, #tpu.memory_space<vmem>>, vector<2x18x18x16xf32>
    tpu.vector_store %arg12[%c0_70, %c0_71, %c0_72, %c0_73], %44 {strides = array<i32>} : memref<2x18x18x16xf32, #tpu.memory_space<vmem>>, vector<2x18x18x16xf32>,
    %46 = vector.shape_cast %43 : vector<512x16xf32> to vector<2x16x16x16xf32>
    %c0_74 = arith.constant 0 : index
    %c1_75 = arith.constant 1 : index
    %c1_76 = arith.constant 1 : index
    %c0_77 = arith.constant 0 : index
    %47 = vector.load %arg12[%c0_74, %c1_75, %c1_76, %c0_77] : memref<2x18x18x16xf32, #tpu.memory_space<vmem>>, vector<2x16x16x16xf32>
    tpu.vector_store %arg12[%c0_74, %c1_75, %c1_76, %c0_77], %46 {strides = array<i32>} : memref<2x18x18x16xf32, #tpu.memory_space<vmem>>, vector<2x16x16x16xf32>,
    %c0_78 = arith.constant 0 : index
    %c0_79 = arith.constant 0 : index
    %c0_80 = arith.constant 0 : index
    %c0_81 = arith.constant 0 : index
    %48 = vector.load %arg12[%c0_78, %c0_79, %c0_80, %c0_81] : memref<2x18x18x16xf32, #tpu.memory_space<vmem>>, vector<2x16x16x16xf32>
    %49 = vector.shape_cast %48 : vector<2x16x16x16xf32> to vector<512x16xf32>
    %c0_82 = arith.constant 0 : index
    %c0_83 = arith.constant 0 : index
    %50 = vector.load %arg13[%c0_82, %c0_83] : memref<512x144xf32, #tpu.memory_space<vmem>>, vector<512x16xf32>
    tpu.vector_store %arg13[%c0_82, %c0_83], %49 {strides = array<i32>} : memref<512x144xf32, #tpu.memory_space<vmem>>, vector<512x16xf32>,
    %c0_84 = arith.constant 0 : index
    %c0_85 = arith.constant 0 : index
    %c1_86 = arith.constant 1 : index
    %c0_87 = arith.constant 0 : index
    %51 = vector.load %arg12[%c0_84, %c0_85, %c1_86, %c0_87] : memref<2x18x18x16xf32, #tpu.memory_space<vmem>>, vector<2x16x16x16xf32>
    %52 = vector.shape_cast %51 : vector<2x16x16x16xf32> to vector<512x16xf32>
    %c0_88 = arith.constant 0 : index
    %c16 = arith.constant 16 : index
    %53 = vector.load %arg13[%c0_88, %c16] : memref<512x144xf32, #tpu.memory_space<vmem>>, vector<512x16xf32>
    tpu.vector_store %arg13[%c0_88, %c16], %52 {strides = array<i32>} : memref<512x144xf32, #tpu.memory_space<vmem>>, vector<512x16xf32>,
    %c0_89 = arith.constant 0 : index
    %c0_90 = arith.constant 0 : index
    %c2_91 = arith.constant 2 : index
    %c0_92 = arith.constant 0 : index
    %54 = vector.load %arg12[%c0_89, %c0_90, %c2_91, %c0_92] : memref<2x18x18x16xf32, #tpu.memory_space<vmem>>, vector<2x16x16x16xf32>
    %55 = vector.shape_cast %54 : vector<2x16x16x16xf32> to vector<512x16xf32>
    %c0_93 = arith.constant 0 : index
    %c32 = arith.constant 32 : index
    %56 = vector.load %arg13[%c0_93, %c32] : memref<512x144xf32, #tpu.memory_space<vmem>>, vector<512x16xf32>
    tpu.vector_store %arg13[%c0_93, %c32], %55 {strides = array<i32>} : memref<512x144xf32, #tpu.memory_space<vmem>>, vector<512x16xf32>,
    %c0_94 = arith.constant 0 : index
    %c1_95 = arith.constant 1 : index
    %c0_96 = arith.constant 0 : index
    %c0_97 = arith.constant 0 : index
    %57 = vector.load %arg12[%c0_94, %c1_95, %c0_96, %c0_97] : memref<2x18x18x16xf32, #tpu.memory_space<vmem>>, vector<2x16x16x16xf32>
    %58 = vector.shape_cast %57 : vector<2x16x16x16xf32> to vector<512x16xf32>
    %c0_98 = arith.constant 0 : index
    %c48 = arith.constant 48 : index
    %59 = vector.load %arg13[%c0_98, %c48] : memref<512x144xf32, #tpu.memory_space<vmem>>, vector<512x16xf32>
    tpu.vector_store %arg13[%c0_98, %c48], %58 {strides = array<i32>} : memref<512x144xf32, #tpu.memory_space<vmem>>, vector<512x16xf32>,
    %c0_99 = arith.constant 0 : index
    %c1_100 = arith.constant 1 : index
    %c1_101 = arith.constant 1 : index
    %c0_102 = arith.constant 0 : index
    %60 = vector.load %arg12[%c0_99, %c1_100, %c1_101, %c0_102] : memref<2x18x18x16xf32, #tpu.memory_space<vmem>>, vector<2x16x16x16xf32>
    %61 = vector.shape_cast %60 : vector<2x16x16x16xf32> to vector<512x16xf32>
    %c0_103 = arith.constant 0 : index
    %c64 = arith.constant 64 : index
    %62 = vector.load %arg13[%c0_103, %c64] : memref<512x144xf32, #tpu.memory_space<vmem>>, vector<512x16xf32>
    tpu.vector_store %arg13[%c0_103, %c64], %61 {strides = array<i32>} : memref<512x144xf32, #tpu.memory_space<vmem>>, vector<512x16xf32>,
    %c0_104 = arith.constant 0 : index
    %c1_105 = arith.constant 1 : index
    %c2_106 = arith.constant 2 : index
    %c0_107 = arith.constant 0 : index
    %63 = vector.load %arg12[%c0_104, %c1_105, %c2_106, %c0_107] : memref<2x18x18x16xf32, #tpu.memory_space<vmem>>, vector<2x16x16x16xf32>
    %64 = vector.shape_cast %63 : vector<2x16x16x16xf32> to vector<512x16xf32>
    %c0_108 = arith.constant 0 : index
    %c80 = arith.constant 80 : index
    %65 = vector.load %arg13[%c0_108, %c80] : memref<512x144xf32, #tpu.memory_space<vmem>>, vector<512x16xf32>
    tpu.vector_store %arg13[%c0_108, %c80], %64 {strides = array<i32>} : memref<512x144xf32, #tpu.memory_space<vmem>>, vector<512x16xf32>,
    %c0_109 = arith.constant 0 : index
    %c2_110 = arith.constant 2 : index
    %c0_111 = arith.constant 0 : index
    %c0_112 = arith.constant 0 : index
    %66 = vector.load %arg12[%c0_109, %c2_110, %c0_111, %c0_112] : memref<2x18x18x16xf32, #tpu.memory_space<vmem>>, vector<2x16x16x16xf32>
    %67 = vector.shape_cast %66 : vector<2x16x16x16xf32> to vector<512x16xf32>
    %c0_113 = arith.constant 0 : index
    %c96 = arith.constant 96 : index
    %68 = vector.load %arg13[%c0_113, %c96] : memref<512x144xf32, #tpu.memory_space<vmem>>, vector<512x16xf32>
    tpu.vector_store %arg13[%c0_113, %c96], %67 {strides = array<i32>} : memref<512x144xf32, #tpu.memory_space<vmem>>, vector<512x16xf32>,
    %c0_114 = arith.constant 0 : index
    %c2_115 = arith.constant 2 : index
    %c1_116 = arith.constant 1 : index
    %c0_117 = arith.constant 0 : index
    %69 = vector.load %arg12[%c0_114, %c2_115, %c1_116, %c0_117] : memref<2x18x18x16xf32, #tpu.memory_space<vmem>>, vector<2x16x16x16xf32>
    %70 = vector.shape_cast %69 : vector<2x16x16x16xf32> to vector<512x16xf32>
    %c0_118 = arith.constant 0 : index
    %c112 = arith.constant 112 : index
    %71 = vector.load %arg13[%c0_118, %c112] : memref<512x144xf32, #tpu.memory_space<vmem>>, vector<512x16xf32>
    tpu.vector_store %arg13[%c0_118, %c112], %70 {strides = array<i32>} : memref<512x144xf32, #tpu.memory_space<vmem>>, vector<512x16xf32>,
    %c0_119 = arith.constant 0 : index
    %c2_120 = arith.constant 2 : index
    %c2_121 = arith.constant 2 : index
    %c0_122 = arith.constant 0 : index
    %72 = vector.load %arg12[%c0_119, %c2_120, %c2_121, %c0_122] : memref<2x18x18x16xf32, #tpu.memory_space<vmem>>, vector<2x16x16x16xf32>
    %73 = vector.shape_cast %72 : vector<2x16x16x16xf32> to vector<512x16xf32>
    %c0_123 = arith.constant 0 : index
    %c128 = arith.constant 128 : index
    %74 = vector.load %arg13[%c0_123, %c128] : memref<512x144xf32, #tpu.memory_space<vmem>>, vector<512x16xf32>
    tpu.vector_store %arg13[%c0_123, %c128], %73 {strides = array<i32>} : memref<512x144xf32, #tpu.memory_space<vmem>>, vector<512x16xf32>,
    %c0_124 = arith.constant 0 : index
    %c0_125 = arith.constant 0 : index
    %75 = vector.load %arg13[%c0_124, %c0_125] : memref<512x144xf32, #tpu.memory_space<vmem>>, vector<512x144xf32>
    %c0_126 = arith.constant 0 : index
    %c0_127 = arith.constant 0 : index
    %76 = vector.load %arg3[%c0_126, %c0_127] : memref<144x16xf32, #tpu.memory_space<vmem>>, vector<144x16xf32>
    %cst_128 = arith.constant dense<0.000000e+00> : vector<512x16xf32>
    %77 = tpu.matmul %75, %76, %cst_128 {dimension_numbers = #tpu.dot_dimension_numbers<[1], [0], [0], [1], [0, 0, 1, 1], [], []>} : vector<512x144xf32>, vector<144x16xf32>, vector<512x16xf32> -> vector<512x16xf32>
    %c0_129 = arith.constant 0 : index
    %c0_130 = arith.constant 0 : index
    %78 = vector.load %arg4[%c0_129, %c0_130] : memref<1x16xf32, #tpu.memory_space<vmem>>, vector<1x16xf32>
    %79 = vector.broadcast %78 : vector<1x16xf32> to vector<512x16xf32>
    %80 = arith.addf %77, %79 : vector<512x16xf32>
    %cst_131 = arith.constant 0.001953125 : f32
    %81 = vector.broadcast %cst_131 : f32 to vector<1x512xf32>
    %cst_132 = arith.constant dense<0.000000e+00> : vector<1x16xf32>
    %82 = tpu.matmul %81, %80, %cst_132 {dimension_numbers = #tpu.dot_dimension_numbers<[1], [0], [0], [1], [0, 0, 1, 1], [], []>} : vector<1x512xf32>, vector<512x16xf32>, vector<1x16xf32> -> vector<1x16xf32>
    %83 = vector.broadcast %82 : vector<1x16xf32> to vector<512x16xf32>
    %84 = arith.subf %80, %83 : vector<512x16xf32>
    %85 = arith.mulf %84, %84 : vector<512x16xf32>
    %cst_133 = arith.constant dense<0.000000e+00> : vector<1x16xf32>
    %86 = tpu.matmul %81, %85, %cst_133 {dimension_numbers = #tpu.dot_dimension_numbers<[1], [0], [0], [1], [0, 0, 1, 1], [], []>} : vector<1x512xf32>, vector<512x16xf32>, vector<1x16xf32> -> vector<1x16xf32>
    %cst_134 = arith.constant 9.99999974E-6 : f32
    %87 = vector.broadcast %cst_134 : f32 to vector<1x16xf32>
    %88 = arith.addf %86, %87 : vector<1x16xf32>
    %89 = math.rsqrt %88 : vector<1x16xf32>
    %90 = vector.broadcast %89 : vector<1x16xf32> to vector<512x16xf32>
    %91 = arith.mulf %84, %90 : vector<512x16xf32>
    %c0_135 = arith.constant 0 : index
    %c0_136 = arith.constant 0 : index
    %92 = vector.load %arg5[%c0_135, %c0_136] : memref<1x16xf32, #tpu.memory_space<vmem>>, vector<1x16xf32>
    %93 = vector.broadcast %92 : vector<1x16xf32> to vector<512x16xf32>
    %94 = arith.mulf %91, %93 : vector<512x16xf32>
    %c0_137 = arith.constant 0 : index
    %c0_138 = arith.constant 0 : index
    %95 = vector.load %arg6[%c0_137, %c0_138] : memref<1x16xf32, #tpu.memory_space<vmem>>, vector<1x16xf32>
    %96 = vector.broadcast %95 : vector<1x16xf32> to vector<512x16xf32>
    %97 = arith.addf %94, %96 : vector<512x16xf32>
    %cst_139 = arith.constant 0.000000e+00 : f32
    %98 = vector.broadcast %cst_139 : f32 to vector<512x16xf32>
    %99 = arith.cmpf oge, %97, %98 : vector<512x16xf32>
    %cst_140 = arith.constant 2.000000e-01 : f32
    %100 = vector.broadcast %cst_140 : f32 to vector<512x16xf32>
    %101 = arith.mulf %100, %97 : vector<512x16xf32>
    %102 = arith.select %99, %97, %101 : vector<512x16xi1>, vector<512x16xf32>
    %103 = vector.shape_cast %102 : vector<512x16xf32> to vector<2x256x16xf32>
    %cst_141 = arith.constant dense<0xFF800000> : vector<2x16xf32>
    %104 = vector.multi_reduction <maximumf>, %103, %cst_141 [1] : vector<2x256x16xf32> to vector<2x16xf32>
    %c0_142 = arith.constant 0 : index
    %c0_143 = arith.constant 0 : index
    %105 = vector.load %arg7[%c0_142, %c0_143] : memref<16x1xf32, #tpu.memory_space<vmem>>, vector<16x1xf32>
    %cst_144 = arith.constant dense<0.000000e+00> : vector<2x1xf32>
    %106 = tpu.matmul %104, %105, %cst_144 {dimension_numbers = #tpu.dot_dimension_numbers<[1], [0], [0], [1], [0, 0, 1, 1], [], []>} : vector<2x16xf32>, vector<16x1xf32>, vector<2x1xf32> -> vector<2x1xf32>
    %c0_145 = arith.constant 0 : index
    %c0_146 = arith.constant 0 : index
    %107 = vector.load %arg8[%c0_145, %c0_146] : memref<1x1xf32, #tpu.memory_space<vmem>>, vector<1x1xf32>
    %108 = vector.broadcast %107 : vector<1x1xf32> to vector<2x1xf32>
    %109 = arith.addf %106, %108 : vector<2x1xf32>
    %c0_147 = arith.constant 0 : index
    %c0_148 = arith.constant 0 : index
    %110 = vector.load %arg9[%c0_147, %c0_148] : memref<2x1xf32, #tpu.memory_space<vmem>>, vector<2x1xf32>
    tpu.vector_store %arg9[%c0_147, %c0_148], %109 {strides = array<i32>} : memref<2x1xf32, #tpu.memory_space<vmem>>, vector<2x1xf32>,
    return
  }
}

</mosaic_0001>

<llo_original>
// kernel: discriminator_forward.1
$region0: #{discriminator_forward.1}
  #allocation0 [shape = 'u32[]', space=smem, size = 0x4, offset = 0x4, fixed_abs, tag = 'smem constant byte address 0x4 - core index']
  #allocation1 [shape = 'u32[144,128]{1,0:T(1,128)}', space=vmem, size = 0x12000, scoped, tag = 'internal scratch']
  #allocation2 [shape = 'f32[2,18,18,1]{3,2,1,0:T(8,128)}', space=vmem, size = 0x6c000, scoped, tag = 'scratch operand']
  #allocation3 [shape = 'f32[512,16]{1,0:T(8,128)}', space=vmem, size = 0x40000, scoped, tag = 'scratch operand']
  #allocation4 [shape = 'f32[2,18,18,16]{3,2,1,0:T(8,128)}', space=vmem, size = 0x6c000, scoped, tag = 'scratch operand']
  #allocation5 [shape = 'f32[512,144]{1,0:T(8,128)}', space=vmem, size = 0x80000, scoped, tag = 'scratch operand']
  #allocation6 [shape = 'f32[1,1]{1,0:T(1,128)S(1)}', space=vmem, size = 0x200, scoped, tag = 'scoped memory for discriminator_forward.1']
  %s0 = inlined_call_operand.vmem [shape: f32[2,16,16,1], index: 0, kind: input, shape index: {}]
  %s1 = inlined_call_operand.vmem [shape: f32[16,16], index: 1, kind: input, shape index: {}]
  %s2 = inlined_call_operand.vmem [shape: f32[1,16], index: 2, kind: input, shape index: {}]
  %s3 = inlined_call_operand.vmem [shape: f32[144,16], index: 3, kind: input, shape index: {}]
  %s4 = inlined_call_operand.vmem [shape: f32[1,16], index: 4, kind: input, shape index: {}]
  %s5 = inlined_call_operand.vmem [shape: f32[1,16], index: 5, kind: input, shape index: {}]
  %s6 = inlined_call_operand.vmem [shape: f32[1,16], index: 6, kind: input, shape index: {}]
  %s7 = inlined_call_operand.vmem [shape: f32[16,1], index: 7, kind: input, shape index: {}]
  %s8 = inlined_call_operand.<no memory space> [shape: f32[1,1], index: 8, kind: input, shape index: {}]
  %s9 = inlined_call_operand.vmem [shape: f32[2,1], index: 9, kind: output, shape index: {}]
  %s10 = sld [smem:[#allocation0]]
  $region46: #{discriminator_forward.1} parent=0
    _
  %s12 = ssub.s32 1, %s10
  %s13 = scalar_select 0, %s12, %s10
  %v14 = vstv %s8
  %15 = vst [vmem:[#allocation6] sm:$0x1] %v14
  // Predicated region
  $region2: #{discriminator_forward.1} parent=0 // pred_check
    _
  $region3: #{discriminator_forward.1} parent=0 // pred_check_branch
    %17 = sbr.rel (0) target = $region5
  $region4: #{discriminator_forward.1} parent=0 // pred_region
    _
  $region5: #{discriminator_forward.1} parent=0 // pred_fallthru
    _
  // Predicated region
  $region6: #{discriminator_forward.1} parent=0 // pred_check
    _
  $region7: #{discriminator_forward.1} parent=0 // pred_check_branch
    %19 = sbr.rel (0) target = $region9
  $region8: #{discriminator_forward.1} parent=0 // pred_region
    _
  $region9: #{discriminator_forward.1} parent=0 // pred_fallthru
    _
  // Predicated region
  $region10: #{discriminator_forward.1} parent=0 // pred_check
    _
  $region11: #{discriminator_forward.1} parent=0 // pred_check_branch
    %21 = sbr.rel (0) target = $region13
  $region12: #{discriminator_forward.1} parent=0 // pred_region
    _
  $region13: #{discriminator_forward.1} parent=0 // pred_fallthru
    _
  // Predicated region
  $region14: #{discriminator_forward.1} parent=0 // pred_check
    _
  $region15: #{discriminator_forward.1} parent=0 // pred_check_branch
    %23 = sbr.rel (0) target = $region17
  $region16: #{discriminator_forward.1} parent=0 // pred_region
    _
  $region17: #{discriminator_forward.1} parent=0 // pred_fallthru
    _
  // Predicated region
  $region18: #{discriminator_forward.1} parent=0 // pred_check
    _
  $region19: #{discriminator_forward.1} parent=0 // pred_check_branch
    %25 = sbr.rel (0) target = $region21
  $region20: #{discriminator_forward.1} parent=0 // pred_region
    _
  $region21: #{discriminator_forward.1} parent=0 // pred_fallthru
    _
  // Predicated region
  $region22: #{discriminator_forward.1} parent=0 // pred_check
    _
  $region23: #{discriminator_forward.1} parent=0 // pred_check_branch
    %27 = sbr.rel (0) target = $region25
  $region24: #{discriminator_forward.1} parent=0 // pred_region
    _
  $region25: #{discriminator_forward.1} parent=0 // pred_fallthru
    _
  // Predicated region
  $region26: #{discriminator_forward.1} parent=0 // pred_check
    _
  $region27: #{discriminator_forward.1} parent=0 // pred_check_branch
    %29 = sbr.rel (0) target = $region29
  $region28: #{discriminator_forward.1} parent=0 // pred_region
    _
  $region29: #{discriminator_forward.1} parent=0 // pred_fallthru
    _
  // Predicated region
  $region30: #{discriminator_forward.1} parent=0 // pred_check
    _
  $region31: #{discriminator_forward.1} parent=0 // pred_check_branch
    %31 = sbr.rel (0) target = $region33
  $region32: #{discriminator_forward.1} parent=0 // pred_region
    _
  $region33: #{discriminator_forward.1} parent=0 // pred_fallthru
    _
  // Predicated region
  $region34: #{discriminator_forward.1} parent=0 // pred_check
    _
  $region35: #{discriminator_forward.1} parent=0 // pred_check_branch
    %33 = sbr.rel (0) target = $region37
  $region36: #{discriminator_forward.1} parent=0 // pred_region
    _
  $region37: #{discriminator_forward.1} parent=0 // pred_fallthru
    _
  %vm34 = vcmask 7168
  %35 = vst.msk [vmem:[#allocation2] sm:$0xff] %vm34, 0.0
  %36 = vst.msk [vmem:[#allocation2 + $0x8] sm:$0xff] %vm34, 0.0
  %vm37 = vcmask 1024
  %38 = vst.msk [vmem:[#allocation2 + $0x10] sm:$0x3] %vm37, 0.0
  %39 = vst.msk [vmem:[#allocation2 + $0x18] sm:$0xff] %vm34, 0.0
  %40 = vst.msk [vmem:[#allocation2 + $0x20] sm:$0xff] %vm34, 0.0
  %41 = vst.msk [vmem:[#allocation2 + $0x28] sm:$0x3] %vm37, 0.0
  %42 = vst.msk [vmem:[#allocation2 + $0x30] sm:$0xff] %vm34, 0.0
  %43 = vst.msk [vmem:[#allocation2 + $0x38] sm:$0xff] %vm34, 0.0
  %44 = vst.msk [vmem:[#allocation2 + $0x40] sm:$0x3] %vm37, 0.0
  %45 = vst.msk [vmem:[#allocation2 + $0x48] sm:$0xff] %vm34, 0.0
  %46 = vst.msk [vmem:[#allocation2 + $0x50] sm:$0xff] %vm34, 0.0
  %47 = vst.msk [vmem:[#allocation2 + $0x58] sm:$0x3] %vm37, 0.0
  %48 = vst.msk [vmem:[#allocation2 + $0x60] sm:$0xff] %vm34, 0.0
  %49 = vst.msk [vmem:[#allocation2 + $0x68] sm:$0xff] %vm34, 0.0
  %50 = vst.msk [vmem:[#allocation2 + $0x70] sm:$0x3] %vm37, 0.0
  %51 = vst.msk [vmem:[#allocation2 + $0x78] sm:$0xff] %vm34, 0.0
  %52 = vst.msk [vmem:[#allocation2 + $0x80] sm:$0xff] %vm34, 0.0
  %53 = vst.msk [vmem:[#allocation2 + $0x88] sm:$0x3] %vm37, 0.0
  %54 = vst.msk [vmem:[#allocation2 + $0x90] sm:$0xff] %vm34, 0.0
  %55 = vst.msk [vmem:[#allocation2 + $0x98] sm:$0xff] %vm34, 0.0
  %56 = vst.msk [vmem:[#allocation2 + $0xa0] sm:$0x3] %vm37, 0.0
  %57 = vst.msk [vmem:[#allocation2 + $0xa8] sm:$0xff] %vm34, 0.0
  %58 = vst.msk [vmem:[#allocation2 + $0xb0] sm:$0xff] %vm34, 0.0
  %59 = vst.msk [vmem:[#allocation2 + $0xb8] sm:$0x3] %vm37, 0.0
  %60 = vst.msk [vmem:[#allocation2 + $0xc0] sm:$0xff] %vm34, 0.0
  %61 = vst.msk [vmem:[#allocation2 + $0xc8] sm:$0xff] %vm34, 0.0
  %62 = vst.msk [vmem:[#allocation2 + $0xd0] sm:$0x3] %vm37, 0.0
  %63 = vst.msk [vmem:[#allocation2 + $0xd8] sm:$0xff] %vm34, 0.0
  %64 = vst.msk [vmem:[#allocation2 + $0xe0] sm:$0xff] %vm34, 0.0
  %65 = vst.msk [vmem:[#allocation2 + $0xe8] sm:$0x3] %vm37, 0.0
  %66 = vst.msk [vmem:[#allocation2 + $0xf0] sm:$0xff] %vm34, 0.0
  %67 = vst.msk [vmem:[#allocation2 + $0xf8] sm:$0xff] %vm34, 0.0
  %68 = vst.msk [vmem:[#allocation2 + $0x100] sm:$0x3] %vm37, 0.0
  %69 = vst.msk [vmem:[#allocation2 + $0x108] sm:$0xff] %vm34, 0.0
  %70 = vst.msk [vmem:[#allocation2 + $0x110] sm:$0xff] %vm34, 0.0
  %71 = vst.msk [vmem:[#allocation2 + $0x118] sm:$0x3] %vm37, 0.0
  %72 = vst.msk [vmem:[#allocation2 + $0x120] sm:$0xff] %vm34, 0.0
  %73 = vst.msk [vmem:[#allocation2 + $0x128] sm:$0xff] %vm34, 0.0
  %74 = vst.msk [vmem:[#allocation2 + $0x130] sm:$0x3] %vm37, 0.0
  %75 = vst.msk [vmem:[#allocation2 + $0x138] sm:$0xff] %vm34, 0.0
  %76 = vst.msk [vmem:[#allocation2 + $0x140] sm:$0xff] %vm34, 0.0
  %77 = vst.msk [vmem:[#allocation2 + $0x148] sm:$0x3] %vm37, 0.0
  %78 = vst.msk [vmem:[#allocation2 + $0x150] sm:$0xff] %vm34, 0.0
  %79 = vst.msk [vmem:[#allocation2 + $0x158] sm:$0xff] %vm34, 0.0
  %80 = vst.msk [vmem:[#allocation2 + $0x160] sm:$0x3] %vm37, 0.0
  %81 = vst.msk [vmem:[#allocation2 + $0x168] sm:$0xff] %vm34, 0.0
  %82 = vst.msk [vmem:[#allocation2 + $0x170] sm:$0xff] %vm34, 0.0
  %83 = vst.msk [vmem:[#allocation2 + $0x178] sm:$0x3] %vm37, 0.0
  %84 = vst.msk [vmem:[#allocation2 + $0x180] sm:$0xff] %vm34, 0.0
  %85 = vst.msk [vmem:[#allocation2 + $0x188] sm:$0xff] %vm34, 0.0
  %86 = vst.msk [vmem:[#allocation2 + $0x190] sm:$0x3] %vm37, 0.0
  %87 = vst.msk [vmem:[#allocation2 + $0x198] sm:$0xff] %vm34, 0.0
  %88 = vst.msk [vmem:[#allocation2 + $0x1a0] sm:$0xff] %vm34, 0.0
  %89 = vst.msk [vmem:[#allocation2 + $0x1a8] sm:$0x3] %vm37, 0.0
  %90 = vst.msk [vmem:[#allocation2 + $0x1b0] sm:$0xff] %vm34, 0.0
  %91 = vst.msk [vmem:[#allocation2 + $0x1b8] sm:$0xff] %vm34, 0.0
  %92 = vst.msk [vmem:[#allocation2 + $0x1c0] sm:$0x3] %vm37, 0.0
  %93 = vst.msk [vmem:[#allocation2 + $0x1c8] sm:$0xff] %vm34, 0.0
  %94 = vst.msk [vmem:[#allocation2 + $0x1d0] sm:$0xff] %vm34, 0.0
  %95 = vst.msk [vmem:[#allocation2 + $0x1d8] sm:$0x3] %vm37, 0.0
  %96 = vst.msk [vmem:[#allocation2 + $0x1e0] sm:$0xff] %vm34, 0.0
  %97 = vst.msk [vmem:[#allocation2 + $0x1e8] sm:$0xff] %vm34, 0.0
  %98 = vst.msk [vmem:[#allocation2 + $0x1f0] sm:$0x3] %vm37, 0.0
  %99 = vst.msk [vmem:[#allocation2 + $0x1f8] sm:$0xff] %vm34, 0.0
  %100 = vst.msk [vmem:[#allocation2 + $0x200] sm:$0xff] %vm34, 0.0
  %101 = vst.msk [vmem:[#allocation2 + $0x208] sm:$0x3] %vm37, 0.0
  %102 = vst.msk [vmem:[#allocation2 + $0x210] sm:$0xff] %vm34, 0.0
  %103 = vst.msk [vmem:[#allocation2 + $0x218] sm:$0xff] %vm34, 0.0
  %104 = vst.msk [vmem:[#allocation2 + $0x220] sm:$0x3] %vm37, 0.0
  %105 = vst.msk [vmem:[#allocation2 + $0x228] sm:$0xff] %vm34, 0.0
  %106 = vst.msk [vmem:[#allocation2 + $0x230] sm:$0xff] %vm34, 0.0
  %107 = vst.msk [vmem:[#allocation2 + $0x238] sm:$0x3] %vm37, 0.0
  %108 = vst.msk [vmem:[#allocation2 + $0x240] sm:$0xff] %vm34, 0.0
  %109 = vst.msk [vmem:[#allocation2 + $0x248] sm:$0xff] %vm34, 0.0
  %110 = vst.msk [vmem:[#allocation2 + $0x250] sm:$0x3] %vm37, 0.0
  %111 = vst.msk [vmem:[#allocation2 + $0x258] sm:$0xff] %vm34, 0.0
  %112 = vst.msk [vmem:[#allocation2 + $0x260] sm:$0xff] %vm34, 0.0
  %113 = vst.msk [vmem:[#allocation2 + $0x268] sm:$0x3] %vm37, 0.0
  %114 = vst.msk [vmem:[#allocation2 + $0x270] sm:$0xff] %vm34, 0.0
  %115 = vst.msk [vmem:[#allocation2 + $0x278] sm:$0xff] %vm34, 0.0
  %116 = vst.msk [vmem:[#allocation2 + $0x280] sm:$0x3] %vm37, 0.0
  %117 = vst.msk [vmem:[#allocation2 + $0x288] sm:$0xff] %vm34, 0.0
  %118 = vst.msk [vmem:[#allocation2 + $0x290] sm:$0xff] %vm34, 0.0
  %119 = vst.msk [vmem:[#allocation2 + $0x298] sm:$0x3] %vm37, 0.0
  %120 = vst.msk [vmem:[#allocation2 + $0x2a0] sm:$0xff] %vm34, 0.0
  %121 = vst.msk [vmem:[#allocation2 + $0x2a8] sm:$0xff] %vm34, 0.0
  %122 = vst.msk [vmem:[#allocation2 + $0x2b0] sm:$0x3] %vm37, 0.0
  %123 = vst.msk [vmem:[#allocation2 + $0x2b8] sm:$0xff] %vm34, 0.0
  %124 = vst.msk [vmem:[#allocation2 + $0x2c0] sm:$0xff] %vm34, 0.0
  %125 = vst.msk [vmem:[#allocation2 + $0x2c8] sm:$0x3] %vm37, 0.0
  %126 = vst.msk [vmem:[#allocation2 + $0x2d0] sm:$0xff] %vm34, 0.0
  %127 = vst.msk [vmem:[#allocation2 + $0x2d8] sm:$0xff] %vm34, 0.0
  %128 = vst.msk [vmem:[#allocation2 + $0x2e0] sm:$0x3] %vm37, 0.0
  %129 = vst.msk [vmem:[#allocation2 + $0x2e8] sm:$0xff] %vm34, 0.0
  %130 = vst.msk [vmem:[#allocation2 + $0x2f0] sm:$0xff] %vm34, 0.0
  %131 = vst.msk [vmem:[#allocation2 + $0x2f8] sm:$0x3] %vm37, 0.0
  %132 = vst.msk [vmem:[#allocation2 + $0x300] sm:$0xff] %vm34, 0.0
  %133 = vst.msk [vmem:[#allocation2 + $0x308] sm:$0xff] %vm34, 0.0
  %134 = vst.msk [vmem:[#allocation2 + $0x310] sm:$0x3] %vm37, 0.0
  %135 = vst.msk [vmem:[#allocation2 + $0x318] sm:$0xff] %vm34, 0.0
  %136 = vst.msk [vmem:[#allocation2 + $0x320] sm:$0xff] %vm34, 0.0
  %137 = vst.msk [vmem:[#allocation2 + $0x328] sm:$0x3] %vm37, 0.0
  %138 = vst.msk [vmem:[#allocation2 + $0x330] sm:$0xff] %vm34, 0.0
  %139 = vst.msk [vmem:[#allocation2 + $0x338] sm:$0xff] %vm34, 0.0
  %140 = vst.msk [vmem:[#allocation2 + $0x340] sm:$0x3] %vm37, 0.0
  %141 = vst.msk [vmem:[#allocation2 + $0x348] sm:$0xff] %vm34, 0.0
  %142 = vst.msk [vmem:[#allocation2 + $0x350] sm:$0xff] %vm34, 0.0
  %143 = vst.msk [vmem:[#allocation2 + $0x358] sm:$0x3] %vm37, 0.0
  %v144 = vld [vmem:[%s0] sm:$0xff]
  %v145 = vld [vmem:[%s0 + $0x8] sm:$0xff]
  %v146 = vld [vmem:[%s0 + $0x10] sm:$0xff]
  %v147 = vld [vmem:[%s0 + $0x18] sm:$0xff]
  %v148 = vld [vmem:[%s0 + $0x20] sm:$0xff]
  %v149 = vld [vmem:[%s0 + $0x28] sm:$0xff]
  %v150 = vld [vmem:[%s0 + $0x30] sm:$0xff]
  %v151 = vld [vmem:[%s0 + $0x38] sm:$0xff]
  %v152 = vld [vmem:[%s0 + $0x40] sm:$0xff]
  %v153 = vld [vmem:[%s0 + $0x48] sm:$0xff]
  %v154 = vld [vmem:[%s0 + $0x50] sm:$0xff]
  %v155 = vld [vmem:[%s0 + $0x58] sm:$0xff]
  %v156 = vld [vmem:[%s0 + $0x60] sm:$0xff]
  %v157 = vld [vmem:[%s0 + $0x68] sm:$0xff]
  %v158 = vld [vmem:[%s0 + $0x70] sm:$0xff]
  %v159 = vld [vmem:[%s0 + $0x78] sm:$0xff]
  %v160 = vld [vmem:[%s0 + $0x80] sm:$0xff]
  %v161 = vld [vmem:[%s0 + $0x88] sm:$0xff]
  %v162 = vld [vmem:[%s0 + $0x90] sm:$0xff]
  %v163 = vld [vmem:[%s0 + $0x98] sm:$0xff]
  %v164 = vld [vmem:[%s0 + $0xa0] sm:$0xff]
  %v165 = vld [vmem:[%s0 + $0xa8] sm:$0xff]
  %v166 = vld [vmem:[%s0 + $0xb0] sm:$0xff]
  %v167 = vld [vmem:[%s0 + $0xb8] sm:$0xff]
  %v168 = vld [vmem:[%s0 + $0xc0] sm:$0xff]
  %v169 = vld [vmem:[%s0 + $0xc8] sm:$0xff]
  %v170 = vld [vmem:[%s0 + $0xd0] sm:$0xff]
  %v171 = vld [vmem:[%s0 + $0xd8] sm:$0xff]
  %v172 = vld [vmem:[%s0 + $0xe0] sm:$0xff]
  %v173 = vld [vmem:[%s0 + $0xe8] sm:$0xff]
  %v174 = vld [vmem:[%s0 + $0xf0] sm:$0xff]
  %v175 = vld [vmem:[%s0 + $0xf8] sm:$0xff]
  %v176 = vld [vmem:[%s0 + $0x100] sm:$0xff]
  %v177 = vld [vmem:[%s0 + $0x108] sm:$0xff]
  %v178 = vld [vmem:[%s0 + $0x110] sm:$0xff]
  %v179 = vld [vmem:[%s0 + $0x118] sm:$0xff]
  %v180 = vld [vmem:[%s0 + $0x120] sm:$0xff]
  %v181 = vld [vmem:[%s0 + $0x128] sm:$0xff]
  %v182 = vld [vmem:[%s0 + $0x130] sm:$0xff]
  %v183 = vld [vmem:[%s0 + $0x138] sm:$0xff]
  %v184 = vld [vmem:[%s0 + $0x140] sm:$0xff]
  %v185 = vld [vmem:[%s0 + $0x148] sm:$0xff]
  %v186 = vld [vmem:[%s0 + $0x150] sm:$0xff]
  %v187 = vld [vmem:[%s0 + $0x158] sm:$0xff]
  %v188 = vld [vmem:[%s0 + $0x160] sm:$0xff]
  %v189 = vld [vmem:[%s0 + $0x168] sm:$0xff]
  %v190 = vld [vmem:[%s0 + $0x170] sm:$0xff]
  %v191 = vld [vmem:[%s0 + $0x178] sm:$0xff]
  %v192 = vld [vmem:[%s0 + $0x180] sm:$0xff]
  %v193 = vld [vmem:[%s0 + $0x188] sm:$0xff]
  %v194 = vld [vmem:[%s0 + $0x190] sm:$0xff]
  %v195 = vld [vmem:[%s0 + $0x198] sm:$0xff]
  %v196 = vld [vmem:[%s0 + $0x1a0] sm:$0xff]
  %v197 = vld [vmem:[%s0 + $0x1a8] sm:$0xff]
  %v198 = vld [vmem:[%s0 + $0x1b0] sm:$0xff]
  %v199 = vld [vmem:[%s0 + $0x1b8] sm:$0xff]
  %v200 = vld [vmem:[%s0 + $0x1c0] sm:$0xff]
  %v201 = vld [vmem:[%s0 + $0x1c8] sm:$0xff]
  %v202 = vld [vmem:[%s0 + $0x1d0] sm:$0xff]
  %v203 = vld [vmem:[%s0 + $0x1d8] sm:$0xff]
  %v204 = vld [vmem:[%s0 + $0x1e0] sm:$0xff]
  %v205 = vld [vmem:[%s0 + $0x1e8] sm:$0xff]
  %v206 = vld [vmem:[%s0 + $0x1f0] sm:$0xff]
  %v207 = vld [vmem:[%s0 + $0x1f8] sm:$0xff]
  %s208 = scalar_lea.vmem [#allocation2], 24
  %209 = vst.msk [vmem:[%s208 + $0x1] sm:$0xff] %vm34, %v144
  %210 = vst.msk [vmem:[%s208 + $0x9] sm:$0xff] %vm34, %v145
  %211 = vst.msk [vmem:[%s208 + $0x19] sm:$0xff] %vm34, %v146
  %212 = vst.msk [vmem:[%s208 + $0x21] sm:$0xff] %vm34, %v147
  %213 = vst.msk [vmem:[%s208 + $0x31] sm:$0xff] %vm34, %v148
  %214 = vst.msk [vmem:[%s208 + $0x39] sm:$0xff] %vm34, %v149
  %215 = vst.msk [vmem:[%s208 + $0x49] sm:$0xff] %vm34, %v150
  %216 = vst.msk [vmem:[%s208 + $0x51] sm:$0xff] %vm34, %v151
  %217 = vst.msk [vmem:[%s208 + $0x61] sm:$0xff] %vm34, %v152
  %218 = vst.msk [vmem:[%s208 + $0x69] sm:$0xff] %vm34, %v153
  %219 = vst.msk [vmem:[%s208 + $0x79] sm:$0xff] %vm34, %v154
  %220 = vst.msk [vmem:[%s208 + $0x81] sm:$0xff] %vm34, %v155
  %221 = vst.msk [vmem:[%s208 + $0x91] sm:$0xff] %vm34, %v156
  %222 = vst.msk [vmem:[%s208 + $0x99] sm:$0xff] %vm34, %v157
  %223 = vst.msk [vmem:[%s208 + $0xa9] sm:$0xff] %vm34, %v158
  %224 = vst.msk [vmem:[%s208 + $0xb1] sm:$0xff] %vm34, %v159
  %225 = vst.msk [vmem:[%s208 + $0xc1] sm:$0xff] %vm34, %v160
  %226 = vst.msk [vmem:[%s208 + $0xc9] sm:$0xff] %vm34, %v161
  %227 = vst.msk [vmem:[%s208 + $0xd9] sm:$0xff] %vm34, %v162
  %228 = vst.msk [vmem:[%s208 + $0xe1] sm:$0xff] %vm34, %v163
  %229 = vst.msk [vmem:[%s208 + $0xf1] sm:$0xff] %vm34, %v164
  %230 = vst.msk [vmem:[%s208 + $0xf9] sm:$0xff] %vm34, %v165
  %231 = vst.msk [vmem:[%s208 + $0x109] sm:$0xff] %vm34, %v166
  %232 = vst.msk [vmem:[%s208 + $0x111] sm:$0xff] %vm34, %v167
  %233 = vst.msk [vmem:[%s208 + $0x121] sm:$0xff] %vm34, %v168
  %234 = vst.msk [vmem:[%s208 + $0x129] sm:$0xff] %vm34, %v169
  %235 = vst.msk [vmem:[%s208 + $0x139] sm:$0xff] %vm34, %v170
  %236 = vst.msk [vmem:[%s208 + $0x141] sm:$0xff] %vm34, %v171
  %237 = vst.msk [vmem:[%s208 + $0x151] sm:$0xff] %vm34, %v172
  %238 = vst.msk [vmem:[%s208 + $0x159] sm:$0xff] %vm34, %v173
  %239 = vst.msk [vmem:[%s208 + $0x169] sm:$0xff] %vm34, %v174
  %240 = vst.msk [vmem:[%s208 + $0x171] sm:$0xff] %vm34, %v175
  %241 = vst.msk [vmem:[%s208 + $0x1b1] sm:$0xff] %vm34, %v176
  %242 = vst.msk [vmem:[%s208 + $0x1b9] sm:$0xff] %vm34, %v177
  %243 = vst.msk [vmem:[%s208 + $0x1c9] sm:$0xff] %vm34, %v178
  %244 = vst.msk [vmem:[%s208 + $0x1d1] sm:$0xff] %vm34, %v179
  %245 = vst.msk [vmem:[%s208 + $0x1e1] sm:$0xff] %vm34, %v180
  %246 = vst.msk [vmem:[%s208 + $0x1e9] sm:$0xff] %vm34, %v181
  %247 = vst.msk [vmem:[%s208 + $0x1f9] sm:$0xff] %vm34, %v182
  %248 = vst.msk [vmem:[%s208 + $0x201] sm:$0xff] %vm34, %v183
  %249 = vst.msk [vmem:[%s208 + $0x211] sm:$0xff] %vm34, %v184
  %250 = vst.msk [vmem:[%s208 + $0x219] sm:$0xff] %vm34, %v185
  %251 = vst.msk [vmem:[%s208 + $0x229] sm:$0xff] %vm34, %v186
  %252 = vst.msk [vmem:[%s208 + $0x231] sm:$0xff] %vm34, %v187
  %253 = vst.msk [vmem:[%s208 + $0x241] sm:$0xff] %vm34, %v188
  %254 = vst.msk [vmem:[%s208 + $0x249] sm:$0xff] %vm34, %v189
  %255 = vst.msk [vmem:[%s208 + $0x259] sm:$0xff] %vm34, %v190
  %256 = vst.msk [vmem:[%s208 + $0x261] sm:$0xff] %vm34, %v191
  %257 = vst.msk [vmem:[%s208 + $0x271] sm:$0xff] %vm34, %v192
  %258 = vst.msk [vmem:[%s208 + $0x279] sm:$0xff] %vm34, %v193
  %259 = vst.msk [vmem:[%s208 + $0x289] sm:$0xff] %vm34, %v194
  %260 = vst.msk [vmem:[%s208 + $0x291] sm:$0xff] %vm34, %v195
  %261 = vst.msk [vmem:[%s208 + $0x2a1] sm:$0xff] %vm34, %v196
  %262 = vst.msk [vmem:[%s208 + $0x2a9] sm:$0xff] %vm34, %v197
  %263 = vst.msk [vmem:[%s208 + $0x2b9] sm:$0xff] %vm34, %v198
  %264 = vst.msk [vmem:[%s208 + $0x2c1] sm:$0xff] %vm34, %v199
  %265 = vst.msk [vmem:[%s208 + $0x2d1] sm:$0xff] %vm34, %v200
  %266 = vst.msk [vmem:[%s208 + $0x2d9] sm:$0xff] %vm34, %v201
  %267 = vst.msk [vmem:[%s208 + $0x2e9] sm:$0xff] %vm34, %v202
  %268 = vst.msk [vmem:[%s208 + $0x2f1] sm:$0xff] %vm34, %v203
  %269 = vst.msk [vmem:[%s208 + $0x301] sm:$0xff] %vm34, %v204
  %270 = vst.msk [vmem:[%s208 + $0x309] sm:$0xff] %vm34, %v205
  %271 = vst.msk [vmem:[%s208 + $0x319] sm:$0xff] %vm34, %v206
  %272 = vst.msk [vmem:[%s208 + $0x321] sm:$0xff] %vm34, %v207
  %vm273 = vcmask 130048
  %274 = vst.msk [vmem:[#allocation3] sm:$0xff] %vm273, 0.0
  %275 = vst.msk [vmem:[#allocation3 + $0x8] sm:$0xff] %vm273, 0.0
  %276 = vst.msk [vmem:[#allocation3 + $0x10] sm:$0xff] %vm273, 0.0
  %277 = vst.msk [vmem:[#allocation3 + $0x18] sm:$0xff] %vm273, 0.0
  %278 = vst.msk [vmem:[#allocation3 + $0x20] sm:$0xff] %vm273, 0.0
  %279 = vst.msk [vmem:[#allocation3 + $0x28] sm:$0xff] %vm273, 0.0
  %280 = vst.msk [vmem:[#allocation3 + $0x30] sm:$0xff] %vm273, 0.0
  %281 = vst.msk [vmem:[#allocation3 + $0x38] sm:$0xff] %vm273, 0.0
  %282 = vst.msk [vmem:[#allocation3 + $0x40] sm:$0xff] %vm273, 0.0
  %283 = vst.msk [vmem:[#allocation3 + $0x48] sm:$0xff] %vm273, 0.0
  %284 = vst.msk [vmem:[#allocation3 + $0x50] sm:$0xff] %vm273, 0.0
  %285 = vst.msk [vmem:[#allocation3 + $0x58] sm:$0xff] %vm273, 0.0
  %286 = vst.msk [vmem:[#allocation3 + $0x60] sm:$0xff] %vm273, 0.0
  %287 = vst.msk [vmem:[#allocation3 + $0x68] sm:$0xff] %vm273, 0.0
  %288 = vst.msk [vmem:[#allocation3 + $0x70] sm:$0xff] %vm273, 0.0
  %289 = vst.msk [vmem:[#allocation3 + $0x78] sm:$0xff] %vm273, 0.0
  %290 = vst.msk [vmem:[#allocation3 + $0x80] sm:$0xff] %vm273, 0.0
  %291 = vst.msk [vmem:[#allocation3 + $0x88] sm:$0xff] %vm273, 0.0
  %292 = vst.msk [vmem:[#allocation3 + $0x90] sm:$0xff] %vm273, 0.0
  %293 = vst.msk [vmem:[#allocation3 + $0x98] sm:$0xff] %vm273, 0.0
  %294 = vst.msk [vmem:[#allocation3 + $0xa0] sm:$0xff] %vm273, 0.0
  %295 = vst.msk [vmem:[#allocation3 + $0xa8] sm:$0xff] %vm273, 0.0
  %296 = vst.msk [vmem:[#allocation3 + $0xb0] sm:$0xff] %vm273, 0.0
  %297 = vst.msk [vmem:[#allocation3 + $0xb8] sm:$0xff] %vm273, 0.0
  %298 = vst.msk [vmem:[#allocation3 + $0xc0] sm:$0xff] %vm273, 0.0
  %299 = vst.msk [vmem:[#allocation3 + $0xc8] sm:$0xff] %vm273, 0.0
  %300 = vst.msk [vmem:[#allocation3 + $0xd0] sm:$0xff] %vm273, 0.0
  %301 = vst.msk [vmem:[#allocation3 + $0xd8] sm:$0xff] %vm273, 0.0
  %302 = vst.msk [vmem:[#allocation3 + $0xe0] sm:$0xff] %vm273, 0.0
  %303 = vst.msk [vmem:[#allocation3 + $0xe8] sm:$0xff] %vm273, 0.0
  %304 = vst.msk [vmem:[#allocation3 + $0xf0] sm:$0xff] %vm273, 0.0
  %305 = vst.msk [vmem:[#allocation3 + $0xf8] sm:$0xff] %vm273, 0.0
  %306 = vst.msk [vmem:[#allocation3 + $0x100] sm:$0xff] %vm273, 0.0
  %307 = vst.msk [vmem:[#allocation3 + $0x108] sm:$0xff] %vm273, 0.0
  %308 = vst.msk [vmem:[#allocation3 + $0x110] sm:$0xff] %vm273, 0.0
  %309 = vst.msk [vmem:[#allocation3 + $0x118] sm:$0xff] %vm273, 0.0
  %310 = vst.msk [vmem:[#allocation3 + $0x120] sm:$0xff] %vm273, 0.0
  %311 = vst.msk [vmem:[#allocation3 + $0x128] sm:$0xff] %vm273, 0.0
  %312 = vst.msk [vmem:[#allocation3 + $0x130] sm:$0xff] %vm273, 0.0
  %313 = vst.msk [vmem:[#allocation3 + $0x138] sm:$0xff] %vm273, 0.0
  %314 = vst.msk [vmem:[#allocation3 + $0x140] sm:$0xff] %vm273, 0.0
  %315 = vst.msk [vmem:[#allocation3 + $0x148] sm:$0xff] %vm273, 0.0
  %316 = vst.msk [vmem:[#allocation3 + $0x150] sm:$0xff] %vm273, 0.0
  %317 = vst.msk [vmem:[#allocation3 + $0x158] sm:$0xff] %vm273, 0.0
  %318 = vst.msk [vmem:[#allocation3 + $0x160] sm:$0xff] %vm273, 0.0
  %319 = vst.msk [vmem:[#allocation3 + $0x168] sm:$0xff] %vm273, 0.0
  %320 = vst.msk [vmem:[#allocation3 + $0x170] sm:$0xff] %vm273, 0.0
  %321 = vst.msk [vmem:[#allocation3 + $0x178] sm:$0xff] %vm273, 0.0
  %322 = vst.msk [vmem:[#allocation3 + $0x180] sm:$0xff] %vm273, 0.0
  %323 = vst.msk [vmem:[#allocation3 + $0x188] sm:$0xff] %vm273, 0.0
  %324 = vst.msk [vmem:[#allocation3 + $0x190] sm:$0xff] %vm273, 0.0
  %325 = vst.msk [vmem:[#allocation3 + $0x198] sm:$0xff] %vm273, 0.0
  %326 = vst.msk [vmem:[#allocation3 + $0x1a0] sm:$0xff] %vm273, 0.0
  %327 = vst.msk [vmem:[#allocation3 + $0x1a8] sm:$0xff] %vm273, 0.0
  %328 = vst.msk [vmem:[#allocation3 + $0x1b0] sm:$0xff] %vm273, 0.0
  %329 = vst.msk [vmem:[#allocation3 + $0x1b8] sm:$0xff] %vm273, 0.0
  %330 = vst.msk [vmem:[#allocation3 + $0x1c0] sm:$0xff] %vm273, 0.0
  %331 = vst.msk [vmem:[#allocation3 + $0x1c8] sm:$0xff] %vm273, 0.0
  %332 = vst.msk [vmem:[#allocation3 + $0x1d0] sm:$0xff] %vm273, 0.0
  %333 = vst.msk [vmem:[#allocation3 + $0x1d8] sm:$0xff] %vm273, 0.0
  %334 = vst.msk [vmem:[#allocation3 + $0x1e0] sm:$0xff] %vm273, 0.0
  %335 = vst.msk [vmem:[#allocation3 + $0x1e8] sm:$0xff] %vm273, 0.0
  %336 = vst.msk [vmem:[#allocation3 + $0x1f0] sm:$0xff] %vm273, 0.0
  %337 = vst.msk [vmem:[#allocation3 + $0x1f8] sm:$0xff] %vm273, 0.0
  %v338 = vld [vmem:[#allocation2] sm:$0xff]
  %v339 = vld [vmem:[#allocation2 + $0x8] sm:$0xff]
  %v340 = vld [vmem:[#allocation2 + $0x18] sm:$0xff]
  %v341 = vld [vmem:[#allocation2 + $0x20] sm:$0xff]
  %v342 = vld [vmem:[#allocation2 + $0x30] sm:$0xff]
  %v343 = vld [vmem:[#allocation2 + $0x38] sm:$0xff]
  %v344 = vld [vmem:[#allocation2 + $0x48] sm:$0xff]
  %v345 = vld [vmem:[#allocation2 + $0x50] sm:$0xff]
  %v346 = vld [vmem:[#allocation2 + $0x60] sm:$0xff]
  %v347 = vld [vmem:[#allocation2 + $0x68] sm:$0xff]
  %v348 = vld [vmem:[#allocation2 + $0x78] sm:$0xff]
  %v349 = vld [vmem:[#allocation2 + $0x80] sm:$0xff]
  %v350 = vld [vmem:[#allocation2 + $0x90] sm:$0xff]
  %v351 = vld [vmem:[#allocation2 + $0x98] sm:$0xff]
  %v352 = vld [vmem:[#allocation2 + $0xa8] sm:$0xff]
  %v353 = vld [vmem:[#allocation2 + $0xb0] sm:$0xff]
  %v354 = vld [vmem:[#allocation2 + $0xc0] sm:$0xff]
  %v355 = vld [vmem:[#allocation2 + $0xc8] sm:$0xff]
  %v356 = vld [vmem:[#allocation2 + $0xd8] sm:$0xff]
  %v357 = vld [vmem:[#allocation2 + $0xe0] sm:$0xff]
  %v358 = vld [vmem:[#allocation2 + $0xf0] sm:$0xff]
  %v359 = vld [vmem:[#allocation2 + $0xf8] sm:$0xff]
  %v360 = vld [vmem:[#allocation2 + $0x108] sm:$0xff]
  %v361 = vld [vmem:[#allocation2 + $0x110] sm:$0xff]
  %v362 = vld [vmem:[#allocation2 + $0x120] sm:$0xff]
  %v363 = vld [vmem:[#allocation2 + $0x128] sm:$0xff]
  %v364 = vld [vmem:[#allocation2 + $0x138] sm:$0xff]
  %v365 = vld [vmem:[#allocation2 + $0x140] sm:$0xff]
  %v366 = vld [vmem:[#allocation2 + $0x150] sm:$0xff]
  %v367 = vld [vmem:[#allocation2 + $0x158] sm:$0xff]
  %v368 = vld [vmem:[#allocation2 + $0x168] sm:$0xff]
  %v369 = vld [vmem:[#allocation2 + $0x170] sm:$0xff]
  %v370 = vld [vmem:[#allocation2 + $0x1b0] sm:$0xff]
  %v371 = vld [vmem:[#allocation2 + $0x1b8] sm:$0xff]
  %v372 = vld [vmem:[#allocation2 + $0x1c8] sm:$0xff]
  %v373 = vld [vmem:[#allocation2 + $0x1d0] sm:$0xff]
  %v374 = vld [vmem:[#allocation2 + $0x1e0] sm:$0xff]
  %v375 = vld [vmem:[#allocation2 + $0x1e8] sm:$0xff]
  %v376 = vld [vmem:[#allocation2 + $0x1f8] sm:$0xff]
  %v377 = vld [vmem:[#allocation2 + $0x200] sm:$0xff]
  %v378 = vld [vmem:[#allocation2 + $0x210] sm:$0xff]
  %v379 = vld [vmem:[#allocation2 + $0x218] sm:$0xff]
  %v380 = vld [vmem:[#allocation2 + $0x228] sm:$0xff]
  %v381 = vld [vmem:[#allocation2 + $0x230] sm:$0xff]
  %v382 = vld [vmem:[#allocation2 + $0x240] sm:$0xff]
  %v383 = vld [vmem:[#allocation2 + $0x248] sm:$0xff]
  %v384 = vld [vmem:[#allocation2 + $0x258] sm:$0xff]
  %v385 = vld [vmem:[#allocation2 + $0x260] sm:$0xff]
  %v386 = vld [vmem:[#allocation2 + $0x270] sm:$0xff]
  %v387 = vld [vmem:[#allocation2 + $0x278] sm:$0xff]
  %v388 = vld [vmem:[#allocation2 + $0x288] sm:$0xff]
  %v389 = vld [vmem:[#allocation2 + $0x290] sm:$0xff]
  %v390 = vld [vmem:[#allocation2 + $0x2a0] sm:$0xff]
  %v391 = vld [vmem:[#allocation2 + $0x2a8] sm:$0xff]
  %v392 = vld [vmem:[#allocation2 + $0x2b8] sm:$0xff]
  %v393 = vld [vmem:[#allocation2 + $0x2c0] sm:$0xff]
  %v394 = vld [vmem:[#allocation2 + $0x2d0] sm:$0xff]
  %v395 = vld [vmem:[#allocation2 + $0x2d8] sm:$0xff]
  %v396 = vld [vmem:[#allocation2 + $0x2e8] sm:$0xff]
  %v397 = vld [vmem:[#allocation2 + $0x2f0] sm:$0xff]
  %v398 = vld [vmem:[#allocation2 + $0x300] sm:$0xff]
  %v399 = vld [vmem:[#allocation2 + $0x308] sm:$0xff]
  %v400 = vld [vmem:[#allocation2 + $0x318] sm:$0xff]
  %v401 = vld [vmem:[#allocation2 + $0x320] sm:$0xff]
  %402 = vst.msk [vmem:[#allocation3] sm:$0xff] %vm34, %v338
  %403 = vst.msk [vmem:[#allocation3 + $0x8] sm:$0xff] %vm34, %v339
  %404 = vst.msk [vmem:[#allocation3 + $0x10] sm:$0xff] %vm34, %v340
  %405 = vst.msk [vmem:[#allocation3 + $0x18] sm:$0xff] %vm34, %v341
  %406 = vst.msk [vmem:[#allocation3 + $0x20] sm:$0xff] %vm34, %v342
  %407 = vst.msk [vmem:[#allocation3 + $0x28] sm:$0xff] %vm34, %v343
  %408 = vst.msk [vmem:[#allocation3 + $0x30] sm:$0xff] %vm34, %v344
  %409 = vst.msk [vmem:[#allocation3 + $0x38] sm:$0xff] %vm34, %v345
  %410 = vst.msk [vmem:[#allocation3 + $0x40] sm:$0xff] %vm34, %v346
  %411 = vst.msk [vmem:[#allocation3 + $0x48] sm:$0xff] %vm34, %v347
  %412 = vst.msk [vmem:[#allocation3 + $0x50] sm:$0xff] %vm34, %v348
  %413 = vst.msk [vmem:[#allocation3 + $0x58] sm:$0xff] %vm34, %v349
  %414 = vst.msk [vmem:[#allocation3 + $0x60] sm:$0xff] %vm34, %v350
  %415 = vst.msk [vmem:[#allocation3 + $0x68] sm:$0xff] %vm34, %v351
  %416 = vst.msk [vmem:[#allocation3 + $0x70] sm:$0xff] %vm34, %v352
  %417 = vst.msk [vmem:[#allocation3 + $0x78] sm:$0xff] %vm34, %v353
  %418 = vst.msk [vmem:[#allocation3 + $0x80] sm:$0xff] %vm34, %v354
  %419 = vst.msk [vmem:[#allocation3 + $0x88] sm:$0xff] %vm34, %v355
  %420 = vst.msk [vmem:[#allocation3 + $0x90] sm:$0xff] %vm34, %v356
  %421 = vst.msk [vmem:[#allocation3 + $0x98] sm:$0xff] %vm34, %v357
  %422 = vst.msk [vmem:[#allocation3 + $0xa0] sm:$0xff] %vm34, %v358
  %423 = vst.msk [vmem:[#allocation3 + $0xa8] sm:$0xff] %vm34, %v359
  %424 = vst.msk [vmem:[#allocation3 + $0xb0] sm:$0xff] %vm34, %v360
  %425 = vst.msk [vmem:[#allocation3 + $0xb8] sm:$0xff] %vm34, %v361
  %426 = vst.msk [vmem:[#allocation3 + $0xc0] sm:$0xff] %vm34, %v362
  %427 = vst.msk [vmem:[#allocation3 + $0xc8] sm:$0xff] %vm34, %v363
  %428 = vst.msk [vmem:[#allocation3 + $0xd0] sm:$0xff] %vm34, %v364
  %429 = vst.msk [vmem:[#allocation3 + $0xd8] sm:$0xff] %vm34, %v365
  %430 = vst.msk [vmem:[#allocation3 + $0xe0] sm:$0xff] %vm34, %v366
  %431 = vst.msk [vmem:[#allocation3 + $0xe8] sm:$0xff] %vm34, %v367
  %432 = vst.msk [vmem:[#allocation3 + $0xf0] sm:$0xff] %vm34, %v368
  %433 = vst.msk [vmem:[#allocation3 + $0xf8] sm:$0xff] %vm34, %v369
  %434 = vst.msk [vmem:[#allocation3 + $0x100] sm:$0xff] %vm34, %v370
  %435 = vst.msk [vmem:[#allocation3 + $0x108] sm:$0xff] %vm34, %v371
  %436 = vst.msk [vmem:[#allocation3 + $0x110] sm:$0xff] %vm34, %v372
  %437 = vst.msk [vmem:[#allocation3 + $0x118] sm:$0xff] %vm34, %v373
  %438 = vst.msk [vmem:[#allocation3 + $0x120] sm:$0xff] %vm34, %v374
  %439 = vst.msk [vmem:[#allocation3 + $0x128] sm:$0xff] %vm34, %v375
  %440 = vst.msk [vmem:[#allocation3 + $0x130] sm:$0xff] %vm34, %v376
  %441 = vst.msk [vmem:[#allocation3 + $0x138] sm:$0xff] %vm34, %v377
  %442 = vst.msk [vmem:[#allocation3 + $0x140] sm:$0xff] %vm34, %v378
  %443 = vst.msk [vmem:[#allocation3 + $0x148] sm:$0xff] %vm34, %v379
  %444 = vst.msk [vmem:[#allocation3 + $0x150] sm:$0xff] %vm34, %v380
  %445 = vst.msk [vmem:[#allocation3 + $0x158] sm:$0xff] %vm34, %v381
  %446 = vst.msk [vmem:[#allocation3 + $0x160] sm:$0xff] %vm34, %v382
  %447 = vst.msk [vmem:[#allocation3 + $0x168] sm:$0xff] %vm34, %v383
  %448 = vst.msk [vmem:[#allocation3 + $0x170] sm:$0xff] %vm34, %v384
  %449 = vst.msk [vmem:[#allocation3 + $0x178] sm:$0xff] %vm34, %v385
  %450 = vst.msk [vmem:[#allocation3 + $0x180] sm:$0xff] %vm34, %v386
  %451 = vst.msk [vmem:[#allocation3 + $0x188] sm:$0xff] %vm34, %v387
  %452 = vst.msk [vmem:[#allocation3 + $0x190] sm:$0xff] %vm34, %v388
  %453 = vst.msk [vmem:[#allocation3 + $0x198] sm:$0xff] %vm34, %v389
  %454 = vst.msk [vmem:[#allocation3 + $0x1a0] sm:$0xff] %vm34, %v390
  %455 = vst.msk [vmem:[#allocation3 + $0x1a8] sm:$0xff] %vm34, %v391
  %456 = vst.msk [vmem:[#allocation3 + $0x1b0] sm:$0xff] %vm34, %v392
  %457 = vst.msk [vmem:[#allocation3 + $0x1b8] sm:$0xff] %vm34, %v393
  %458 = vst.msk [vmem:[#allocation3 + $0x1c0] sm:$0xff] %vm34, %v394
  %459 = vst.msk [vmem:[#allocation3 + $0x1c8] sm:$0xff] %vm34, %v395
  %460 = vst.msk [vmem:[#allocation3 + $0x1d0] sm:$0xff] %vm34, %v396
  %461 = vst.msk [vmem:[#allocation3 + $0x1d8] sm:$0xff] %vm34, %v397
  %462 = vst.msk [vmem:[#allocation3 + $0x1e0] sm:$0xff] %vm34, %v398
  %463 = vst.msk [vmem:[#allocation3 + $0x1e8] sm:$0xff] %vm34, %v399
  %464 = vst.msk [vmem:[#allocation3 + $0x1f0] sm:$0xff] %vm34, %v400
  %465 = vst.msk [vmem:[#allocation3 + $0x1f8] sm:$0xff] %vm34, %v401
  %v466 = vld [vmem:[#allocation2 + $0x1] sm:$0xff]
  %v467 = vld [vmem:[#allocation2 + $0x9] sm:$0xff]
  %v468 = vld [vmem:[#allocation2 + $0x19] sm:$0xff]
  %v469 = vld [vmem:[#allocation2 + $0x21] sm:$0xff]
  %v470 = vld [vmem:[#allocation2 + $0x31] sm:$0xff]
  %v471 = vld [vmem:[#allocation2 + $0x39] sm:$0xff]
  %v472 = vld [vmem:[#allocation2 + $0x49] sm:$0xff]
  %v473 = vld [vmem:[#allocation2 + $0x51] sm:$0xff]
  %v474 = vld [vmem:[#allocation2 + $0x61] sm:$0xff]
  %v475 = vld [vmem:[#allocation2 + $0x69] sm:$0xff]
  %v476 = vld [vmem:[#allocation2 + $0x79] sm:$0xff]
  %v477 = vld [vmem:[#allocation2 + $0x81] sm:$0xff]
  %v478 = vld [vmem:[#allocation2 + $0x91] sm:$0xff]
  %v479 = vld [vmem:[#allocation2 + $0x99] sm:$0xff]
  %v480 = vld [vmem:[#allocation2 + $0xa9] sm:$0xff]
  %v481 = vld [vmem:[#allocation2 + $0xb1] sm:$0xff]
  %v482 = vld [vmem:[#allocation2 + $0xc1] sm:$0xff]
  %v483 = vld [vmem:[#allocation2 + $0xc9] sm:$0xff]
  %v484 = vld [vmem:[#allocation2 + $0xd9] sm:$0xff]
  %v485 = vld [vmem:[#allocation2 + $0xe1] sm:$0xff]
  %v486 = vld [vmem:[#allocation2 + $0xf1] sm:$0xff]
  %v487 = vld [vmem:[#allocation2 + $0xf9] sm:$0xff]
  %v488 = vld [vmem:[#allocation2 + $0x109] sm:$0xff]
  %v489 = vld [vmem:[#allocation2 + $0x111] sm:$0xff]
  %v490 = vld [vmem:[#allocation2 + $0x121] sm:$0xff]
  %v491 = vld [vmem:[#allocation2 + $0x129] sm:$0xff]
  %v492 = vld [vmem:[#allocation2 + $0x139] sm:$0xff]
  %v493 = vld [vmem:[#allocation2 + $0x141] sm:$0xff]
  %v494 = vld [vmem:[#allocation2 + $0x151] sm:$0xff]
  %v495 = vld [vmem:[#allocation2 + $0x159] sm:$0xff]
  %v496 = vld [vmem:[#allocation2 + $0x169] sm:$0xff]
  %v497 = vld [vmem:[#allocation2 + $0x171] sm:$0xff]
  %v498 = vld [vmem:[#allocation2 + $0x1b1] sm:$0xff]
  %v499 = vld [vmem:[#allocation2 + $0x1b9] sm:$0xff]
  %v500 = vld [vmem:[#allocation2 + $0x1c9] sm:$0xff]
  %v501 = vld [vmem:[#allocation2 + $0x1d1] sm:$0xff]
  %v502 = vld [vmem:[#allocation2 + $0x1e1] sm:$0xff]
  %v503 = vld [vmem:[#allocation2 + $0x1e9] sm:$0xff]
  %v504 = vld [vmem:[#allocation2 + $0x1f9] sm:$0xff]
  %v505 = vld [vmem:[#allocation2 + $0x201] sm:$0xff]
  %v506 = vld [vmem:[#allocation2 + $0x211] sm:$0xff]
  %v507 = vld [vmem:[#allocation2 + $0x219] sm:$0xff]
  %v508 = vld [vmem:[#allocation2 + $0x229] sm:$0xff]
  %v509 = vld [vmem:[#allocation2 + $0x231] sm:$0xff]
  %v510 = vld [vmem:[#allocation2 + $0x241] sm:$0xff]
  %v511 = vld [vmem:[#allocation2 + $0x249] sm:$0xff]
  %v512 = vld [vmem:[#allocation2 + $0x259] sm:$0xff]
  %v513 = vld [vmem:[#allocation2 + $0x261] sm:$0xff]
  %v514 = vld [vmem:[#allocation2 + $0x271] sm:$0xff]
  %v515 = vld [vmem:[#allocation2 + $0x279] sm:$0xff]
  %v516 = vld [vmem:[#allocation2 + $0x289] sm:$0xff]
  %v517 = vld [vmem:[#allocation2 + $0x291] sm:$0xff]
  %v518 = vld [vmem:[#allocation2 + $0x2a1] sm:$0xff]
  %v519 = vld [vmem:[#allocation2 + $0x2a9] sm:$0xff]
  %v520 = vld [vmem:[#allocation2 + $0x2b9] sm:$0xff]
  %v521 = vld [vmem:[#allocation2 + $0x2c1] sm:$0xff]
  %v522 = vld [vmem:[#allocation2 + $0x2d1] sm:$0xff]
  %v523 = vld [vmem:[#allocation2 + $0x2d9] sm:$0xff]
  %v524 = vld [vmem:[#allocation2 + $0x2e9] sm:$0xff]
  %v525 = vld [vmem:[#allocation2 + $0x2f1] sm:$0xff]
  %v526 = vld [vmem:[#allocation2 + $0x301] sm:$0xff]
  %v527 = vld [vmem:[#allocation2 + $0x309] sm:$0xff]
  %v528 = vld [vmem:[#allocation2 + $0x319] sm:$0xff]
  %v529 = vld [vmem:[#allocation2 + $0x321] sm:$0xff]
  %594 = vrot.lane.b32.xlu0 %v466, 1
  %v595 = vpop.permute.xlu0 %594
  %596 = vrot.lane.b32.xlu0 %v467, 1
  %v597 = vpop.permute.xlu0 %596
  %598 = vrot.lane.b32.xlu0 %v468, 1
  %v599 = vpop.permute.xlu0 %598
  %600 = vrot.lane.b32.xlu0 %v469, 1
  %v601 = vpop.permute.xlu0 %600
  %602 = vrot.lane.b32.xlu0 %v470, 1
  %v603 = vpop.permute.xlu0 %602
  %604 = vrot.lane.b32.xlu0 %v471, 1
  %v605 = vpop.permute.xlu0 %604
  %606 = vrot.lane.b32.xlu0 %v472, 1
  %v607 = vpop.permute.xlu0 %606
  %608 = vrot.lane.b32.xlu0 %v473, 1
  %v609 = vpop.permute.xlu0 %608
  %610 = vrot.lane.b32.xlu0 %v474, 1
  %v611 = vpop.permute.xlu0 %610
  %612 = vrot.lane.b32.xlu0 %v475, 1
  %v613 = vpop.permute.xlu0 %612
  %614 = vrot.lane.b32.xlu0 %v476, 1
  %v615 = vpop.permute.xlu0 %614
  %616 = vrot.lane.b32.xlu0 %v477, 1
  %v617 = vpop.permute.xlu0 %616
  %618 = vrot.lane.b32.xlu0 %v478, 1
  %v619 = vpop.permute.xlu0 %618
  %620 = vrot.lane.b32.xlu0 %v479, 1
  %v621 = vpop.permute.xlu0 %620
  %622 = vrot.lane.b32.xlu0 %v480, 1
  %v623 = vpop.permute.xlu0 %622
  %624 = vrot.lane.b32.xlu0 %v481, 1
  %v625 = vpop.permute.xlu0 %624
  %626 = vrot.lane.b32.xlu0 %v482, 1
  %v627 = vpop.permute.xlu0 %626
  %628 = vrot.lane.b32.xlu0 %v483, 1
  %v629 = vpop.permute.xlu0 %628
  %630 = vrot.lane.b32.xlu0 %v484, 1
  %v631 = vpop.permute.xlu0 %630
  %632 = vrot.lane.b32.xlu0 %v485, 1
  %v633 = vpop.permute.xlu0 %632
  %634 = vrot.lane.b32.xlu0 %v486, 1
  %v635 = vpop.permute.xlu0 %634
  %636 = vrot.lane.b32.xlu0 %v487, 1
  %v637 = vpop.permute.xlu0 %636
  %638 = vrot.lane.b32.xlu0 %v488, 1
  %v639 = vpop.permute.xlu0 %638
  %640 = vrot.lane.b32.xlu0 %v489, 1
  %v641 = vpop.permute.xlu0 %640
  %642 = vrot.lane.b32.xlu0 %v490, 1
  %v643 = vpop.permute.xlu0 %642
  %644 = vrot.lane.b32.xlu0 %v491, 1
  %v645 = vpop.permute.xlu0 %644
  %646 = vrot.lane.b32.xlu0 %v492, 1
  %v647 = vpop.permute.xlu0 %646
  %648 = vrot.lane.b32.xlu0 %v493, 1
  %v649 = vpop.permute.xlu0 %648
  %650 = vrot.lane.b32.xlu0 %v494, 1
  %v651 = vpop.permute.xlu0 %650
  %652 = vrot.lane.b32.xlu0 %v495, 1
  %v653 = vpop.permute.xlu0 %652
  %654 = vrot.lane.b32.xlu0 %v496, 1
  %v655 = vpop.permute.xlu0 %654
  %656 = vrot.lane.b32.xlu0 %v497, 1
  %v657 = vpop.permute.xlu0 %656
  %658 = vrot.lane.b32.xlu0 %v498, 1
  %v659 = vpop.permute.xlu0 %658
  %660 = vrot.lane.b32.xlu0 %v499, 1
  %v661 = vpop.permute.xlu0 %660
  %662 = vrot.lane.b32.xlu0 %v500, 1
  %v663 = vpop.permute.xlu0 %662
  %664 = vrot.lane.b32.xlu0 %v501, 1
  %v665 = vpop.permute.xlu0 %664
  %666 = vrot.lane.b32.xlu0 %v502, 1
  %v667 = vpop.permute.xlu0 %666
  %668 = vrot.lane.b32.xlu0 %v503, 1
  %v669 = vpop.permute.xlu0 %668
  %670 = vrot.lane.b32.xlu0 %v504, 1
  %v671 = vpop.permute.xlu0 %670
  %672 = vrot.lane.b32.xlu0 %v505, 1
  %v673 = vpop.permute.xlu0 %672
  %674 = vrot.lane.b32.xlu0 %v506, 1
  %v675 = vpop.permute.xlu0 %674
  %676 = vrot.lane.b32.xlu0 %v507, 1
  %v677 = vpop.permute.xlu0 %676
  %678 = vrot.lane.b32.xlu0 %v508, 1
  %v679 = vpop.permute.xlu0 %678
  %680 = vrot.lane.b32.xlu0 %v509, 1
  %v681 = vpop.permute.xlu0 %680
  %682 = vrot.lane.b32.xlu0 %v510, 1
  %v683 = vpop.permute.xlu0 %682
  %684 = vrot.lane.b32.xlu0 %v511, 1
  %v685 = vpop.permute.xlu0 %684
  %686 = vrot.lane.b32.xlu0 %v512, 1
  %v687 = vpop.permute.xlu0 %686
  %688 = vrot.lane.b32.xlu0 %v513, 1
  %v689 = vpop.permute.xlu0 %688
  %690 = vrot.lane.b32.xlu0 %v514, 1
  %v691 = vpop.permute.xlu0 %690
  %692 = vrot.lane.b32.xlu0 %v515, 1
  %v693 = vpop.permute.xlu0 %692
  %694 = vrot.lane.b32.xlu0 %v516, 1
  %v695 = vpop.permute.xlu0 %694
  %696 = vrot.lane.b32.xlu0 %v517, 1
  %v697 = vpop.permute.xlu0 %696
  %698 = vrot.lane.b32.xlu0 %v518, 1
  %v699 = vpop.permute.xlu0 %698
  %700 = vrot.lane.b32.xlu0 %v519, 1
  %v701 = vpop.permute.xlu0 %700
  %702 = vrot.lane.b32.xlu0 %v520, 1
  %v703 = vpop.permute.xlu0 %702
  %704 = vrot.lane.b32.xlu0 %v521, 1
  %v705 = vpop.permute.xlu0 %704
  %706 = vrot.lane.b32.xlu0 %v522, 1
  %v707 = vpop.permute.xlu0 %706
  %708 = vrot.lane.b32.xlu0 %v523, 1
  %v709 = vpop.permute.xlu0 %708
  %710 = vrot.lane.b32.xlu0 %v524, 1
  %v711 = vpop.permute.xlu0 %710
  %712 = vrot.lane.b32.xlu0 %v525, 1
  %v713 = vpop.permute.xlu0 %712
  %714 = vrot.lane.b32.xlu0 %v526, 1
  %v715 = vpop.permute.xlu0 %714
  %716 = vrot.lane.b32.xlu0 %v527, 1
  %v717 = vpop.permute.xlu0 %716
  %718 = vrot.lane.b32.xlu0 %v528, 1
  %v719 = vpop.permute.xlu0 %718
  %720 = vrot.lane.b32.xlu0 %v529, 1
  %v721 = vpop.permute.xlu0 %720
  %vm786 = vcmask 15368
  %787 = vst.msk [vmem:[#allocation3] sm:$0xff] %vm786, %v595
  %788 = vst.msk [vmem:[#allocation3 + $0x8] sm:$0xff] %vm786, %v597
  %789 = vst.msk [vmem:[#allocation3 + $0x10] sm:$0xff] %vm786, %v599
  %790 = vst.msk [vmem:[#allocation3 + $0x18] sm:$0xff] %vm786, %v601
  %791 = vst.msk [vmem:[#allocation3 + $0x20] sm:$0xff] %vm786, %v603
  %792 = vst.msk [vmem:[#allocation3 + $0x28] sm:$0xff] %vm786, %v605
  %793 = vst.msk [vmem:[#allocation3 + $0x30] sm:$0xff] %vm786, %v607
  %794 = vst.msk [vmem:[#allocation3 + $0x38] sm:$0xff] %vm786, %v609
  %795 = vst.msk [vmem:[#allocation3 + $0x40] sm:$0xff] %vm786, %v611
  %796 = vst.msk [vmem:[#allocation3 + $0x48] sm:$0xff] %vm786, %v613
  %797 = vst.msk [vmem:[#allocation3 + $0x50] sm:$0xff] %vm786, %v615
  %798 = vst.msk [vmem:[#allocation3 + $0x58] sm:$0xff] %vm786, %v617
  %799 = vst.msk [vmem:[#allocation3 + $0x60] sm:$0xff] %vm786, %v619
  %800 = vst.msk [vmem:[#allocation3 + $0x68] sm:$0xff] %vm786, %v621
  %801 = vst.msk [vmem:[#allocation3 + $0x70] sm:$0xff] %vm786, %v623
  %802 = vst.msk [vmem:[#allocation3 + $0x78] sm:$0xff] %vm786, %v625
  %803 = vst.msk [vmem:[#allocation3 + $0x80] sm:$0xff] %vm786, %v627
  %804 = vst.msk [vmem:[#allocation3 + $0x88] sm:$0xff] %vm786, %v629
  %805 = vst.msk [vmem:[#allocation3 + $0x90] sm:$0xff] %vm786, %v631
  %806 = vst.msk [vmem:[#allocation3 + $0x98] sm:$0xff] %vm786, %v633
  %807 = vst.msk [vmem:[#allocation3 + $0xa0] sm:$0xff] %vm786, %v635
  %808 = vst.msk [vmem:[#allocation3 + $0xa8] sm:$0xff] %vm786, %v637
  %809 = vst.msk [vmem:[#allocation3 + $0xb0] sm:$0xff] %vm786, %v639
  %810 = vst.msk [vmem:[#allocation3 + $0xb8] sm:$0xff] %vm786, %v641
  %811 = vst.msk [vmem:[#allocation3 + $0xc0] sm:$0xff] %vm786, %v643
  %812 = vst.msk [vmem:[#allocation3 + $0xc8] sm:$0xff] %vm786, %v645
  %813 = vst.msk [vmem:[#allocation3 + $0xd0] sm:$0xff] %vm786, %v647
  %814 = vst.msk [vmem:[#allocation3 + $0xd8] sm:$0xff] %vm786, %v649
  %815 = vst.msk [vmem:[#allocation3 + $0xe0] sm:$0xff] %vm786, %v651
  %816 = vst.msk [vmem:[#allocation3 + $0xe8] sm:$0xff] %vm786, %v653
  %817 = vst.msk [vmem:[#allocation3 + $0xf0] sm:$0xff] %vm786, %v655
  %818 = vst.msk [vmem:[#allocation3 + $0xf8] sm:$0xff] %vm786, %v657
  %819 = vst.msk [vmem:[#allocation3 + $0x100] sm:$0xff] %vm786, %v659
  %820 = vst.msk [vmem:[#allocation3 + $0x108] sm:$0xff] %vm786, %v661
  %821 = vst.msk [vmem:[#allocation3 + $0x110] sm:$0xff] %vm786, %v663
  %822 = vst.msk [vmem:[#allocation3 + $0x118] sm:$0xff] %vm786, %v665
  %823 = vst.msk [vmem:[#allocation3 + $0x120] sm:$0xff] %vm786, %v667
  %824 = vst.msk [vmem:[#allocation3 + $0x128] sm:$0xff] %vm786, %v669
  %825 = vst.msk [vmem:[#allocation3 + $0x130] sm:$0xff] %vm786, %v671
  %826 = vst.msk [vmem:[#allocation3 + $0x138] sm:$0xff] %vm786, %v673
  %827 = vst.msk [vmem:[#allocation3 + $0x140] sm:$0xff] %vm786, %v675
  %828 = vst.msk [vmem:[#allocation3 + $0x148] sm:$0xff] %vm786, %v677
  %829 = vst.msk [vmem:[#allocation3 + $0x150] sm:$0xff] %vm786, %v679
  %830 = vst.msk [vmem:[#allocation3 + $0x158] sm:$0xff] %vm786, %v681
  %831 = vst.msk [vmem:[#allocation3 + $0x160] sm:$0xff] %vm786, %v683
  %832 = vst.msk [vmem:[#allocation3 + $0x168] sm:$0xff] %vm786, %v685
  %833 = vst.msk [vmem:[#allocation3 + $0x170] sm:$0xff] %vm786, %v687
  %834 = vst.msk [vmem:[#allocation3 + $0x178] sm:$0xff] %vm786, %v689
  %835 = vst.msk [vmem:[#allocation3 + $0x180] sm:$0xff] %vm786, %v691
  %836 = vst.msk [vmem:[#allocation3 + $0x188] sm:$0xff] %vm786, %v693
  %837 = vst.msk [vmem:[#allocation3 + $0x190] sm:$0xff] %vm786, %v695
  %838 = vst.msk [vmem:[#allocation3 + $0x198] sm:$0xff] %vm786, %v697
  %839 = vst.msk [vmem:[#allocation3 + $0x1a0] sm:$0xff] %vm786, %v699
  %840 = vst.msk [vmem:[#allocation3 + $0x1a8] sm:$0xff] %vm786, %v701
  %841 = vst.msk [vmem:[#allocation3 + $0x1b0] sm:$0xff] %vm786, %v703
  %842 = vst.msk [vmem:[#allocation3 + $0x1b8] sm:$0xff] %vm786, %v705
  %843 = vst.msk [vmem:[#allocation3 + $0x1c0] sm:$0xff] %vm786, %v707
  %844 = vst.msk [vmem:[#allocation3 + $0x1c8] sm:$0xff] %vm786, %v709
  %845 = vst.msk [vmem:[#allocation3 + $0x1d0] sm:$0xff] %vm786, %v711
  %846 = vst.msk [vmem:[#allocation3 + $0x1d8] sm:$0xff] %vm786, %v713
  %847 = vst.msk [vmem:[#allocation3 + $0x1e0] sm:$0xff] %vm786, %v715
  %848 = vst.msk [vmem:[#allocation3 + $0x1e8] sm:$0xff] %vm786, %v717
  %849 = vst.msk [vmem:[#allocation3 + $0x1f0] sm:$0xff] %vm786, %v719
  %850 = vst.msk [vmem:[#allocation3 + $0x1f8] sm:$0xff] %vm786, %v721
  %v851 = vld [vmem:[#allocation2 + $0x2] sm:$0xff]
  %v852 = vld [vmem:[#allocation2 + $0xa] sm:$0xff]
  %v853 = vld [vmem:[#allocation2 + $0x1a] sm:$0xff]
  %v854 = vld [vmem:[#allocation2 + $0x22] sm:$0xff]
  %v855 = vld [vmem:[#allocation2 + $0x32] sm:$0xff]
  %v856 = vld [vmem:[#allocation2 + $0x3a] sm:$0xff]
  %v857 = vld [vmem:[#allocation2 + $0x4a] sm:$0xff]
  %v858 = vld [vmem:[#allocation2 + $0x52] sm:$0xff]
  %v859 = vld [vmem:[#allocation2 + $0x62] sm:$0xff]
  %v860 = vld [vmem:[#allocation2 + $0x6a] sm:$0xff]
  %v861 = vld [vmem:[#allocation2 + $0x7a] sm:$0xff]
  %v862 = vld [vmem:[#allocation2 + $0x82] sm:$0xff]
  %v863 = vld [vmem:[#allocation2 + $0x92] sm:$0xff]
  %v864 = vld [vmem:[#allocation2 + $0x9a] sm:$0xff]
  %v865 = vld [vmem:[#allocation2 + $0xaa] sm:$0xff]
  %v866 = vld [vmem:[#allocation2 + $0xb2] sm:$0xff]
  %v867 = vld [vmem:[#allocation2 + $0xc2] sm:$0xff]
  %v868 = vld [vmem:[#allocation2 + $0xca] sm:$0xff]
  %v869 = vld [vmem:[#allocation2 + $0xda] sm:$0xff]
  %v870 = vld [vmem:[#allocation2 + $0xe2] sm:$0xff]
  %v871 = vld [vmem:[#allocation2 + $0xf2] sm:$0xff]
  %v872 = vld [vmem:[#allocation2 + $0xfa] sm:$0xff]
  %v873 = vld [vmem:[#allocation2 + $0x10a] sm:$0xff]
  %v874 = vld [vmem:[#allocation2 + $0x112] sm:$0xff]
  %v875 = vld [vmem:[#allocation2 + $0x122] sm:$0xff]
  %v876 = vld [vmem:[#allocation2 + $0x12a] sm:$0xff]
  %v877 = vld [vmem:[#allocation2 + $0x13a] sm:$0xff]
  %v878 = vld [vmem:[#allocation2 + $0x142] sm:$0xff]
  %v879 = vld [vmem:[#allocation2 + $0x152] sm:$0xff]
  %v880 = vld [vmem:[#allocation2 + $0x15a] sm:$0xff]
  %v881 = vld [vmem:[#allocation2 + $0x16a] sm:$0xff]
  %v882 = vld [vmem:[#allocation2 + $0x172] sm:$0xff]
  %v883 = vld [vmem:[#allocation2 + $0x1b2] sm:$0xff]
  %v884 = vld [vmem:[#allocation2 + $0x1ba] sm:$0xff]
  %v885 = vld [vmem:[#allocation2 + $0x1ca] sm:$0xff]
  %v886 = vld [vmem:[#allocation2 + $0x1d2] sm:$0xff]
  %v887 = vld [vmem:[#allocation2 + $0x1e2] sm:$0xff]
  %v888 = vld [vmem:[#allocation2 + $0x1ea] sm:$0xff]
  %v889 = vld [vmem:[#allocation2 + $0x1fa] sm:$0xff]
  %v890 = vld [vmem:[#allocation2 + $0x202] sm:$0xff]
  %v891 = vld [vmem:[#allocation2 + $0x212] sm:$0xff]
  %v892 = vld [vmem:[#allocation2 + $0x21a] sm:$0xff]
  %v893 = vld [vmem:[#allocation2 + $0x22a] sm:$0xff]
  %v894 = vld [vmem:[#allocation2 + $0x232] sm:$0xff]
  %v895 = vld [vmem:[#allocation2 + $0x242] sm:$0xff]
  %v896 = vld [vmem:[#allocation2 + $0x24a] sm:$0xff]
  %v897 = vld [vmem:[#allocation2 + $0x25a] sm:$0xff]
  %v898 = vld [vmem:[#allocation2 + $0x262] sm:$0xff]
  %v899 = vld [vmem:[#allocation2 + $0x272] sm:$0xff]
  %v900 = vld [vmem:[#allocation2 + $0x27a] sm:$0xff]
  %v901 = vld [vmem:[#allocation2 + $0x28a] sm:$0xff]
  %v902 = vld [vmem:[#allocation2 + $0x292] sm:$0xff]
  %v903 = vld [vmem:[#allocation2 + $0x2a2] sm:$0xff]
  %v904 = vld [vmem:[#allocation2 + $0x2aa] sm:$0xff]
  %v905 = vld [vmem:[#allocation2 + $0x2ba] sm:$0xff]
  %v906 = vld [vmem:[#allocation2 + $0x2c2] sm:$0xff]
  %v907 = vld [vmem:[#allocation2 + $0x2d2] sm:$0xff]
  %v908 = vld [vmem:[#allocation2 + $0x2da] sm:$0xff]
  %v909 = vld [vmem:[#allocation2 + $0x2ea] sm:$0xff]
  %v910 = vld [vmem:[#allocation2 + $0x2f2] sm:$0xff]
  %v911 = vld [vmem:[#allocation2 + $0x302] sm:$0xff]
  %v912 = vld [vmem:[#allocation2 + $0x30a] sm:$0xff]
  %v913 = vld [vmem:[#allocation2 + $0x31a] sm:$0xff]
  %v914 = vld [vmem:[#allocation2 + $0x322] sm:$0xff]
  %979 = vrot.lane.b32.xlu0 %v851, 2
  %v980 = vpop.permute.xlu0 %979
  %981 = vrot.lane.b32.xlu0 %v852, 2
  %v982 = vpop.permute.xlu0 %981
  %983 = vrot.lane.b32.xlu0 %v853, 2
  %v984 = vpop.permute.xlu0 %983
  %985 = vrot.lane.b32.xlu0 %v854, 2
  %v986 = vpop.permute.xlu0 %985
  %987 = vrot.lane.b32.xlu0 %v855, 2
  %v988 = vpop.permute.xlu0 %987
  %989 = vrot.lane.b32.xlu0 %v856, 2
  %v990 = vpop.permute.xlu0 %989
  %991 = vrot.lane.b32.xlu0 %v857, 2
  %v992 = vpop.permute.xlu0 %991
  %993 = vrot.lane.b32.xlu0 %v858, 2
  %v994 = vpop.permute.xlu0 %993
  %995 = vrot.lane.b32.xlu0 %v859, 2
  %v996 = vpop.permute.xlu0 %995
  %997 = vrot.lane.b32.xlu0 %v860, 2
  %v998 = vpop.permute.xlu0 %997
  %999 = vrot.lane.b32.xlu0 %v861, 2
  %v1000 = vpop.permute.xlu0 %999
  %1001 = vrot.lane.b32.xlu0 %v862, 2
  %v1002 = vpop.permute.xlu0 %1001
  %1003 = vrot.lane.b32.xlu0 %v863, 2
  %v1004 = vpop.permute.xlu0 %1003
  %1005 = vrot.lane.b32.xlu0 %v864, 2
  %v1006 = vpop.permute.xlu0 %1005
  %1007 = vrot.lane.b32.xlu0 %v865, 2
  %v1008 = vpop.permute.xlu0 %1007
  %1009 = vrot.lane.b32.xlu0 %v866, 2
  %v1010 = vpop.permute.xlu0 %1009
  %1011 = vrot.lane.b32.xlu0 %v867, 2
  %v1012 = vpop.permute.xlu0 %1011
  %1013 = vrot.lane.b32.xlu0 %v868, 2
  %v1014 = vpop.permute.xlu0 %1013
  %1015 = vrot.lane.b32.xlu0 %v869, 2
  %v1016 = vpop.permute.xlu0 %1015
  %1017 = vrot.lane.b32.xlu0 %v870, 2
  %v1018 = vpop.permute.xlu0 %1017
  %1019 = vrot.lane.b32.xlu0 %v871, 2
  %v1020 = vpop.permute.xlu0 %1019
  %1021 = vrot.lane.b32.xlu0 %v872, 2
  %v1022 = vpop.permute.xlu0 %1021
  %1023 = vrot.lane.b32.xlu0 %v873, 2
  %v1024 = vpop.permute.xlu0 %1023
  %1025 = vrot.lane.b32.xlu0 %v874, 2
  %v1026 = vpop.permute.xlu0 %1025
  %1027 = vrot.lane.b32.xlu0 %v875, 2
  %v1028 = vpop.permute.xlu0 %1027
  %1029 = vrot.lane.b32.xlu0 %v876, 2
  %v1030 = vpop.permute.xlu0 %1029
  %1031 = vrot.lane.b32.xlu0 %v877, 2
  %v1032 = vpop.permute.xlu0 %1031
  %1033 = vrot.lane.b32.xlu0 %v878, 2
  %v1034 = vpop.permute.xlu0 %1033
  %1035 = vrot.lane.b32.xlu0 %v879, 2
  %v1036 = vpop.permute.xlu0 %1035
  %1037 = vrot.lane.b32.xlu0 %v880, 2
  %v1038 = vpop.permute.xlu0 %1037
  %1039 = vrot.lane.b32.xlu0 %v881, 2
  %v1040 = vpop.permute.xlu0 %1039
  %1041 = vrot.lane.b32.xlu0 %v882, 2
  %v1042 = vpop.permute.xlu0 %1041
  %1043 = vrot.lane.b32.xlu0 %v883, 2
  %v1044 = vpop.permute.xlu0 %1043
  %1045 = vrot.lane.b32.xlu0 %v884, 2
  %v1046 = vpop.permute.xlu0 %1045
  %1047 = vrot.lane.b32.xlu0 %v885, 2
  %v1048 = vpop.permute.xlu0 %1047
  %1049 = vrot.lane.b32.xlu0 %v886, 2
  %v1050 = vpop.permute.xlu0 %1049
  %1051 = vrot.lane.b32.xlu0 %v887, 2
  %v1052 = vpop.permute.xlu0 %1051
  %1053 = vrot.lane.b32.xlu0 %v888, 2
  %v1054 = vpop.permute.xlu0 %1053
  %1055 = vrot.lane.b32.xlu0 %v889, 2
  %v1056 = vpop.permute.xlu0 %1055
  %1057 = vrot.lane.b32.xlu0 %v890, 2
  %v1058 = vpop.permute.xlu0 %1057
  %1059 = vrot.lane.b32.xlu0 %v891, 2
  %v1060 = vpop.permute.xlu0 %1059
  %1061 = vrot.lane.b32.xlu0 %v892, 2
  %v1062 = vpop.permute.xlu0 %1061
  %1063 = vrot.lane.b32.xlu0 %v893, 2
  %v1064 = vpop.permute.xlu0 %1063
  %1065 = vrot.lane.b32.xlu0 %v894, 2
  %v1066 = vpop.permute.xlu0 %1065
  %1067 = vrot.lane.b32.xlu0 %v895, 2
  %v1068 = vpop.permute.xlu0 %1067
  %1069 = vrot.lane.b32.xlu0 %v896, 2
  %v1070 = vpop.permute.xlu0 %1069
  %1071 = vrot.lane.b32.xlu0 %v897, 2
  %v1072 = vpop.permute.xlu0 %1071
  %1073 = vrot.lane.b32.xlu0 %v898, 2
  %v1074 = vpop.permute.xlu0 %1073
  %1075 = vrot.lane.b32.xlu0 %v899, 2
  %v1076 = vpop.permute.xlu0 %1075
  %1077 = vrot.lane.b32.xlu0 %v900, 2
  %v1078 = vpop.permute.xlu0 %1077
  %1079 = vrot.lane.b32.xlu0 %v901, 2
  %v1080 = vpop.permute.xlu0 %1079
  %1081 = vrot.lane.b32.xlu0 %v902, 2
  %v1082 = vpop.permute.xlu0 %1081
  %1083 = vrot.lane.b32.xlu0 %v903, 2
  %v1084 = vpop.permute.xlu0 %1083
  %1085 = vrot.lane.b32.xlu0 %v904, 2
  %v1086 = vpop.permute.xlu0 %1085
  %1087 = vrot.lane.b32.xlu0 %v905, 2
  %v1088 = vpop.permute.xlu0 %1087
  %1089 = vrot.lane.b32.xlu0 %v906, 2
  %v1090 = vpop.permute.xlu0 %1089
  %1091 = vrot.lane.b32.xlu0 %v907, 2
  %v1092 = vpop.permute.xlu0 %1091
  %1093 = vrot.lane.b32.xlu0 %v908, 2
  %v1094 = vpop.permute.xlu0 %1093
  %1095 = vrot.lane.b32.xlu0 %v909, 2
  %v1096 = vpop.permute.xlu0 %1095
  %1097 = vrot.lane.b32.xlu0 %v910, 2
  %v1098 = vpop.permute.xlu0 %1097
  %1099 = vrot.lane.b32.xlu0 %v911, 2
  %v1100 = vpop.permute.xlu0 %1099
  %1101 = vrot.lane.b32.xlu0 %v912, 2
  %v1102 = vpop.permute.xlu0 %1101
  %1103 = vrot.lane.b32.xlu0 %v913, 2
  %v1104 = vpop.permute.xlu0 %1103
  %1105 = vrot.lane.b32.xlu0 %v914, 2
  %v1106 = vpop.permute.xlu0 %1105
  %vm1171 = vcmask 23568
  %1172 = vst.msk [vmem:[#allocation3] sm:$0xff] %vm1171, %v980
  %1173 = vst.msk [vmem:[#allocation3 + $0x8] sm:$0xff] %vm1171, %v982
  %1174 = vst.msk [vmem:[#allocation3 + $0x10] sm:$0xff] %vm1171, %v984
  %1175 = vst.msk [vmem:[#allocation3 + $0x18] sm:$0xff] %vm1171, %v986
  %1176 = vst.msk [vmem:[#allocation3 + $0x20] sm:$0xff] %vm1171, %v988
  %1177 = vst.msk [vmem:[#allocation3 + $0x28] sm:$0xff] %vm1171, %v990
  %1178 = vst.msk [vmem:[#allocation3 + $0x30] sm:$0xff] %vm1171, %v992
  %1179 = vst.msk [vmem:[#allocation3 + $0x38] sm:$0xff] %vm1171, %v994
  %1180 = vst.msk [vmem:[#allocation3 + $0x40] sm:$0xff] %vm1171, %v996
  %1181 = vst.msk [vmem:[#allocation3 + $0x48] sm:$0xff] %vm1171, %v998
  %1182 = vst.msk [vmem:[#allocation3 + $0x50] sm:$0xff] %vm1171, %v1000
  %1183 = vst.msk [vmem:[#allocation3 + $0x58] sm:$0xff] %vm1171, %v1002
  %1184 = vst.msk [vmem:[#allocation3 + $0x60] sm:$0xff] %vm1171, %v1004
  %1185 = vst.msk [vmem:[#allocation3 + $0x68] sm:$0xff] %vm1171, %v1006
  %1186 = vst.msk [vmem:[#allocation3 + $0x70] sm:$0xff] %vm1171, %v1008
  %1187 = vst.msk [vmem:[#allocation3 + $0x78] sm:$0xff] %vm1171, %v1010
  %1188 = vst.msk [vmem:[#allocation3 + $0x80] sm:$0xff] %vm1171, %v1012
  %1189 = vst.msk [vmem:[#allocation3 + $0x88] sm:$0xff] %vm1171, %v1014
  %1190 = vst.msk [vmem:[#allocation3 + $0x90] sm:$0xff] %vm1171, %v1016
  %1191 = vst.msk [vmem:[#allocation3 + $0x98] sm:$0xff] %vm1171, %v1018
  %1192 = vst.msk [vmem:[#allocation3 + $0xa0] sm:$0xff] %vm1171, %v1020
  %1193 = vst.msk [vmem:[#allocation3 + $0xa8] sm:$0xff] %vm1171, %v1022
  %1194 = vst.msk [vmem:[#allocation3 + $0xb0] sm:$0xff] %vm1171, %v1024
  %1195 = vst.msk [vmem:[#allocation3 + $0xb8] sm:$0xff] %vm1171, %v1026
  %1196 = vst.msk [vmem:[#allocation3 + $0xc0] sm:$0xff] %vm1171, %v1028
  %1197 = vst.msk [vmem:[#allocation3 + $0xc8] sm:$0xff] %vm1171, %v1030
  %1198 = vst.msk [vmem:[#allocation3 + $0xd0] sm:$0xff] %vm1171, %v1032
  %1199 = vst.msk [vmem:[#allocation3 + $0xd8] sm:$0xff] %vm1171, %v1034
  %1200 = vst.msk [vmem:[#allocation3 + $0xe0] sm:$0xff] %vm1171, %v1036
  %1201 = vst.msk [vmem:[#allocation3 + $0xe8] sm:$0xff] %vm1171, %v1038
  %1202 = vst.msk [vmem:[#allocation3 + $0xf0] sm:$0xff] %vm1171, %v1040
  %1203 = vst.msk [vmem:[#allocation3 + $0xf8] sm:$0xff] %vm1171, %v1042
  %1204 = vst.msk [vmem:[#allocation3 + $0x100] sm:$0xff] %vm1171, %v1044
  %1205 = vst.msk [vmem:[#allocation3 + $0x108] sm:$0xff] %vm1171, %v1046
  %1206 = vst.msk [vmem:[#allocation3 + $0x110] sm:$0xff] %vm1171, %v1048
  %1207 = vst.msk [vmem:[#allocation3 + $0x118] sm:$0xff] %vm1171, %v1050
  %1208 = vst.msk [vmem:[#allocation3 + $0x120] sm:$0xff] %vm1171, %v1052
  %1209 = vst.msk [vmem:[#allocation3 + $0x128] sm:$0xff] %vm1171, %v1054
  %1210 = vst.msk [vmem:[#allocation3 + $0x130] sm:$0xff] %vm1171, %v1056
  %1211 = vst.msk [vmem:[#allocation3 + $0x138] sm:$0xff] %vm1171, %v1058
  %1212 = vst.msk [vmem:[#allocation3 + $0x140] sm:$0xff] %vm1171, %v1060
  %1213 = vst.msk [vmem:[#allocation3 + $0x148] sm:$0xff] %vm1171, %v1062
  %1214 = vst.msk [vmem:[#allocation3 + $0x150] sm:$0xff] %vm1171, %v1064
  %1215 = vst.msk [vmem:[#allocation3 + $0x158] sm:$0xff] %vm1171, %v1066
  %1216 = vst.msk [vmem:[#allocation3 + $0x160] sm:$0xff] %vm1171, %v1068
  %1217 = vst.msk [vmem:[#allocation3 + $0x168] sm:$0xff] %vm1171, %v1070
  %1218 = vst.msk [vmem:[#allocation3 + $0x170] sm:$0xff] %vm1171, %v1072
  %1219 = vst.msk [vmem:[#allocation3 + $0x178] sm:$0xff] %vm1171, %v1074
  %1220 = vst.msk [vmem:[#allocation3 + $0x180] sm:$0xff] %vm1171, %v1076
  %1221 = vst.msk [vmem:[#allocation3 + $0x188] sm:$0xff] %vm1171, %v1078
  %1222 = vst.msk [vmem:[#allocation3 + $0x190] sm:$0xff] %vm1171, %v1080
  %1223 = vst.msk [vmem:[#allocation3 + $0x198] sm:$0xff] %vm1171, %v1082
  %1224 = vst.msk [vmem:[#allocation3 + $0x1a0] sm:$0xff] %vm1171, %v1084
  %1225 = vst.msk [vmem:[#allocation3 + $0x1a8] sm:$0xff] %vm1171, %v1086
  %1226 = vst.msk [vmem:[#allocation3 + $0x1b0] sm:$0xff] %vm1171, %v1088
  %1227 = vst.msk [vmem:[#allocation3 + $0x1b8] sm:$0xff] %vm1171, %v1090
  %1228 = vst.msk [vmem:[#allocation3 + $0x1c0] sm:$0xff] %vm1171, %v1092
  %1229 = vst.msk [vmem:[#allocation3 + $0x1c8] sm:$0xff] %vm1171, %v1094
  %1230 = vst.msk [vmem:[#allocation3 + $0x1d0] sm:$0xff] %vm1171, %v1096
  %1231 = vst.msk [vmem:[#allocation3 + $0x1d8] sm:$0xff] %vm1171, %v1098
  %1232 = vst.msk [vmem:[#allocation3 + $0x1e0] sm:$0xff] %vm1171, %v1100
  %1233 = vst.msk [vmem:[#allocation3 + $0x1e8] sm:$0xff] %vm1171, %v1102
  %1234 = vst.msk [vmem:[#allocation3 + $0x1f0] sm:$0xff] %vm1171, %v1104
  %1235 = vst.msk [vmem:[#allocation3 + $0x1f8] sm:$0xff] %vm1171, %v1106
  %v1236 = vld [vmem:[%s208] sm:$0xff]
  %v1237 = vld [vmem:[%s208 + $0x8] sm:$0xff]
  %v1238 = vld [vmem:[%s208 + $0x18] sm:$0xff]
  %v1239 = vld [vmem:[%s208 + $0x20] sm:$0xff]
  %v1240 = vld [vmem:[%s208 + $0x30] sm:$0xff]
  %v1241 = vld [vmem:[%s208 + $0x38] sm:$0xff]
  %v1242 = vld [vmem:[%s208 + $0x48] sm:$0xff]
  %v1243 = vld [vmem:[%s208 + $0x50] sm:$0xff]
  %v1244 = vld [vmem:[%s208 + $0x60] sm:$0xff]
  %v1245 = vld [vmem:[%s208 + $0x68] sm:$0xff]
  %v1246 = vld [vmem:[%s208 + $0x78] sm:$0xff]
  %v1247 = vld [vmem:[%s208 + $0x80] sm:$0xff]
  %v1248 = vld [vmem:[%s208 + $0x90] sm:$0xff]
  %v1249 = vld [vmem:[%s208 + $0x98] sm:$0xff]
  %v1250 = vld [vmem:[%s208 + $0xa8] sm:$0xff]
  %v1251 = vld [vmem:[%s208 + $0xb0] sm:$0xff]
  %v1252 = vld [vmem:[%s208 + $0xc0] sm:$0xff]
  %v1253 = vld [vmem:[%s208 + $0xc8] sm:$0xff]
  %v1254 = vld [vmem:[%s208 + $0xd8] sm:$0xff]
  %v1255 = vld [vmem:[%s208 + $0xe0] sm:$0xff]
  %v1256 = vld [vmem:[%s208 + $0xf0] sm:$0xff]
  %v1257 = vld [vmem:[%s208 + $0xf8] sm:$0xff]
  %v1258 = vld [vmem:[%s208 + $0x108] sm:$0xff]
  %v1259 = vld [vmem:[%s208 + $0x110] sm:$0xff]
  %v1260 = vld [vmem:[%s208 + $0x120] sm:$0xff]
  %v1261 = vld [vmem:[%s208 + $0x128] sm:$0xff]
  %v1262 = vld [vmem:[%s208 + $0x138] sm:$0xff]
  %v1263 = vld [vmem:[%s208 + $0x140] sm:$0xff]
  %v1264 = vld [vmem:[%s208 + $0x150] sm:$0xff]
  %v1265 = vld [vmem:[%s208 + $0x158] sm:$0xff]
  %v1266 = vld [vmem:[%s208 + $0x168] sm:$0xff]
  %v1267 = vld [vmem:[%s208 + $0x170] sm:$0xff]
  %v1268 = vld [vmem:[%s208 + $0x1b0] sm:$0xff]
  %v1269 = vld [vmem:[%s208 + $0x1b8] sm:$0xff]
  %v1270 = vld [vmem:[%s208 + $0x1c8] sm:$0xff]
  %v1271 = vld [vmem:[%s208 + $0x1d0] sm:$0xff]
  %v1272 = vld [vmem:[%s208 + $0x1e0] sm:$0xff]
  %v1273 = vld [vmem:[%s208 + $0x1e8] sm:$0xff]
  %v1274 = vld [vmem:[%s208 + $0x1f8] sm:$0xff]
  %v1275 = vld [vmem:[%s208 + $0x200] sm:$0xff]
  %v1276 = vld [vmem:[%s208 + $0x210] sm:$0xff]
  %v1277 = vld [vmem:[%s208 + $0x218] sm:$0xff]
  %v1278 = vld [vmem:[%s208 + $0x228] sm:$0xff]
  %v1279 = vld [vmem:[%s208 + $0x230] sm:$0xff]
  %v1280 = vld [vmem:[%s208 + $0x240] sm:$0xff]
  %v1281 = vld [vmem:[%s208 + $0x248] sm:$0xff]
  %v1282 = vld [vmem:[%s208 + $0x258] sm:$0xff]
  %v1283 = vld [vmem:[%s208 + $0x260] sm:$0xff]
  %v1284 = vld [vmem:[%s208 + $0x270] sm:$0xff]
  %v1285 = vld [vmem:[%s208 + $0x278] sm:$0xff]
  %v1286 = vld [vmem:[%s208 + $0x288] sm:$0xff]
  %v1287 = vld [vmem:[%s208 + $0x290] sm:$0xff]
  %v1288 = vld [vmem:[%s208 + $0x2a0] sm:$0xff]
  %v1289 = vld [vmem:[%s208 + $0x2a8] sm:$0xff]
  %v1290 = vld [vmem:[%s208 + $0x2b8] sm:$0xff]
  %v1291 = vld [vmem:[%s208 + $0x2c0] sm:$0xff]
  %v1292 = vld [vmem:[%s208 + $0x2d0] sm:$0xff]
  %v1293 = vld [vmem:[%s208 + $0x2d8] sm:$0xff]
  %v1294 = vld [vmem:[%s208 + $0x2e8] sm:$0xff]
  %v1295 = vld [vmem:[%s208 + $0x2f0] sm:$0xff]
  %v1296 = vld [vmem:[%s208 + $0x300] sm:$0xff]
  %v1297 = vld [vmem:[%s208 + $0x308] sm:$0xff]
  %v1298 = vld [vmem:[%s208 + $0x318] sm:$0xff]
  %v1299 = vld [vmem:[%s208 + $0x320] sm:$0xff]
  %1364 = vrot.lane.b32.xlu0 %v1236, 3
  %v1365 = vpop.permute.xlu0 %1364
  %1366 = vrot.lane.b32.xlu0 %v1237, 3
  %v1367 = vpop.permute.xlu0 %1366
  %1368 = vrot.lane.b32.xlu0 %v1238, 3
  %v1369 = vpop.permute.xlu0 %1368
  %1370 = vrot.lane.b32.xlu0 %v1239, 3
  %v1371 = vpop.permute.xlu0 %1370
  %1372 = vrot.lane.b32.xlu0 %v1240, 3
  %v1373 = vpop.permute.xlu0 %1372
  %1374 = vrot.lane.b32.xlu0 %v1241, 3
  %v1375 = vpop.permute.xlu0 %1374
  %1376 = vrot.lane.b32.xlu0 %v1242, 3
  %v1377 = vpop.permute.xlu0 %1376
  %1378 = vrot.lane.b32.xlu0 %v1243, 3
  %v1379 = vpop.permute.xlu0 %1378
  %1380 = vrot.lane.b32.xlu0 %v1244, 3
  %v1381 = vpop.permute.xlu0 %1380
  %1382 = vrot.lane.b32.xlu0 %v1245, 3
  %v1383 = vpop.permute.xlu0 %1382
  %1384 = vrot.lane.b32.xlu0 %v1246, 3
  %v1385 = vpop.permute.xlu0 %1384
  %1386 = vrot.lane.b32.xlu0 %v1247, 3
  %v1387 = vpop.permute.xlu0 %1386
  %1388 = vrot.lane.b32.xlu0 %v1248, 3
  %v1389 = vpop.permute.xlu0 %1388
  %1390 = vrot.lane.b32.xlu0 %v1249, 3
  %v1391 = vpop.permute.xlu0 %1390
  %1392 = vrot.lane.b32.xlu0 %v1250, 3
  %v1393 = vpop.permute.xlu0 %1392
  %1394 = vrot.lane.b32.xlu0 %v1251, 3
  %v1395 = vpop.permute.xlu0 %1394
  %1396 = vrot.lane.b32.xlu0 %v1252, 3
  %v1397 = vpop.permute.xlu0 %1396
  %1398 = vrot.lane.b32.xlu0 %v1253, 3
  %v1399 = vpop.permute.xlu0 %1398
  %1400 = vrot.lane.b32.xlu0 %v1254, 3
  %v1401 = vpop.permute.xlu0 %1400
  %1402 = vrot.lane.b32.xlu0 %v1255, 3
  %v1403 = vpop.permute.xlu0 %1402
  %1404 = vrot.lane.b32.xlu0 %v1256, 3
  %v1405 = vpop.permute.xlu0 %1404
  %1406 = vrot.lane.b32.xlu0 %v1257, 3
  %v1407 = vpop.permute.xlu0 %1406
  %1408 = vrot.lane.b32.xlu0 %v1258, 3
  %v1409 = vpop.permute.xlu0 %1408
  %1410 = vrot.lane.b32.xlu0 %v1259, 3
  %v1411 = vpop.permute.xlu0 %1410
  %1412 = vrot.lane.b32.xlu0 %v1260, 3
  %v1413 = vpop.permute.xlu0 %1412
  %1414 = vrot.lane.b32.xlu0 %v1261, 3
  %v1415 = vpop.permute.xlu0 %1414
  %1416 = vrot.lane.b32.xlu0 %v1262, 3
  %v1417 = vpop.permute.xlu0 %1416
  %1418 = vrot.lane.b32.xlu0 %v1263, 3
  %v1419 = vpop.permute.xlu0 %1418
  %1420 = vrot.lane.b32.xlu0 %v1264, 3
  %v1421 = vpop.permute.xlu0 %1420
  %1422 = vrot.lane.b32.xlu0 %v1265, 3
  %v1423 = vpop.permute.xlu0 %1422
  %1424 = vrot.lane.b32.xlu0 %v1266, 3
  %v1425 = vpop.permute.xlu0 %1424
  %1426 = vrot.lane.b32.xlu0 %v1267, 3
  %v1427 = vpop.permute.xlu0 %1426
  %1428 = vrot.lane.b32.xlu0 %v1268, 3
  %v1429 = vpop.permute.xlu0 %1428
  %1430 = vrot.lane.b32.xlu0 %v1269, 3
  %v1431 = vpop.permute.xlu0 %1430
  %1432 = vrot.lane.b32.xlu0 %v1270, 3
  %v1433 = vpop.permute.xlu0 %1432
  %1434 = vrot.lane.b32.xlu0 %v1271, 3
  %v1435 = vpop.permute.xlu0 %1434
  %1436 = vrot.lane.b32.xlu0 %v1272, 3
  %v1437 = vpop.permute.xlu0 %1436
  %1438 = vrot.lane.b32.xlu0 %v1273, 3
  %v1439 = vpop.permute.xlu0 %1438
  %1440 = vrot.lane.b32.xlu0 %v1274, 3
  %v1441 = vpop.permute.xlu0 %1440
  %1442 = vrot.lane.b32.xlu0 %v1275, 3
  %v1443 = vpop.permute.xlu0 %1442
  %1444 = vrot.lane.b32.xlu0 %v1276, 3
  %v1445 = vpop.permute.xlu0 %1444
  %1446 = vrot.lane.b32.xlu0 %v1277, 3
  %v1447 = vpop.permute.xlu0 %1446
  %1448 = vrot.lane.b32.xlu0 %v1278, 3
  %v1449 = vpop.permute.xlu0 %1448
  %1450 = vrot.lane.b32.xlu0 %v1279, 3
  %v1451 = vpop.permute.xlu0 %1450
  %1452 = vrot.lane.b32.xlu0 %v1280, 3
  %v1453 = vpop.permute.xlu0 %1452
  %1454 = vrot.lane.b32.xlu0 %v1281, 3
  %v1455 = vpop.permute.xlu0 %1454
  %1456 = vrot.lane.b32.xlu0 %v1282, 3
  %v1457 = vpop.permute.xlu0 %1456
  %1458 = vrot.lane.b32.xlu0 %v1283, 3
  %v1459 = vpop.permute.xlu0 %1458
  %1460 = vrot.lane.b32.xlu0 %v1284, 3
  %v1461 = vpop.permute.xlu0 %1460
  %1462 = vrot.lane.b32.xlu0 %v1285, 3
  %v1463 = vpop.permute.xlu0 %1462
  %1464 = vrot.lane.b32.xlu0 %v1286, 3
  %v1465 = vpop.permute.xlu0 %1464
  %1466 = vrot.lane.b32.xlu0 %v1287, 3
  %v1467 = vpop.permute.xlu0 %1466
  %1468 = vrot.lane.b32.xlu0 %v1288, 3
  %v1469 = vpop.permute.xlu0 %1468
  %1470 = vrot.lane.b32.xlu0 %v1289, 3
  %v1471 = vpop.permute.xlu0 %1470
  %1472 = vrot.lane.b32.xlu0 %v1290, 3
  %v1473 = vpop.permute.xlu0 %1472
  %1474 = vrot.lane.b32.xlu0 %v1291, 3
  %v1475 = vpop.permute.xlu0 %1474
  %1476 = vrot.lane.b32.xlu0 %v1292, 3
  %v1477 = vpop.permute.xlu0 %1476
  %1478 = vrot.lane.b32.xlu0 %v1293, 3
  %v1479 = vpop.permute.xlu0 %1478
  %1480 = vrot.lane.b32.xlu0 %v1294, 3
  %v1481 = vpop.permute.xlu0 %1480
  %1482 = vrot.lane.b32.xlu0 %v1295, 3
  %v1483 = vpop.permute.xlu0 %1482
  %1484 = vrot.lane.b32.xlu0 %v1296, 3
  %v1485 = vpop.permute.xlu0 %1484
  %1486 = vrot.lane.b32.xlu0 %v1297, 3
  %v1487 = vpop.permute.xlu0 %1486
  %1488 = vrot.lane.b32.xlu0 %v1298, 3
  %v1489 = vpop.permute.xlu0 %1488
  %1490 = vrot.lane.b32.xlu0 %v1299, 3
  %v1491 = vpop.permute.xlu0 %1490
  %vm1556 = vcmask 31768
  %1557 = vst.msk [vmem:[#allocation3] sm:$0xff] %vm1556, %v1365
  %1558 = vst.msk [vmem:[#allocation3 + $0x8] sm:$0xff] %vm1556, %v1367
  %1559 = vst.msk [vmem:[#allocation3 + $0x10] sm:$0xff] %vm1556, %v1369
  %1560 = vst.msk [vmem:[#allocation3 + $0x18] sm:$0xff] %vm1556, %v1371
  %1561 = vst.msk [vmem:[#allocation3 + $0x20] sm:$0xff] %vm1556, %v1373
  %1562 = vst.msk [vmem:[#allocation3 + $0x28] sm:$0xff] %vm1556, %v1375
  %1563 = vst.msk [vmem:[#allocation3 + $0x30] sm:$0xff] %vm1556, %v1377
  %1564 = vst.msk [vmem:[#allocation3 + $0x38] sm:$0xff] %vm1556, %v1379
  %1565 = vst.msk [vmem:[#allocation3 + $0x40] sm:$0xff] %vm1556, %v1381
  %1566 = vst.msk [vmem:[#allocation3 + $0x48] sm:$0xff] %vm1556, %v1383
  %1567 = vst.msk [vmem:[#allocation3 + $0x50] sm:$0xff] %vm1556, %v1385
  %1568 = vst.msk [vmem:[#allocation3 + $0x58] sm:$0xff] %vm1556, %v1387
  %1569 = vst.msk [vmem:[#allocation3 + $0x60] sm:$0xff] %vm1556, %v1389
  %1570 = vst.msk [vmem:[#allocation3 + $0x68] sm:$0xff] %vm1556, %v1391
  %1571 = vst.msk [vmem:[#allocation3 + $0x70] sm:$0xff] %vm1556, %v1393
  %1572 = vst.msk [vmem:[#allocation3 + $0x78] sm:$0xff] %vm1556, %v1395
  %1573 = vst.msk [vmem:[#allocation3 + $0x80] sm:$0xff] %vm1556, %v1397
  %1574 = vst.msk [vmem:[#allocation3 + $0x88] sm:$0xff] %vm1556, %v1399
  %1575 = vst.msk [vmem:[#allocation3 + $0x90] sm:$0xff] %vm1556, %v1401
  %1576 = vst.msk [vmem:[#allocation3 + $0x98] sm:$0xff] %vm1556, %v1403
  %1577 = vst.msk [vmem:[#allocation3 + $0xa0] sm:$0xff] %vm1556, %v1405
  %1578 = vst.msk [vmem:[#allocation3 + $0xa8] sm:$0xff] %vm1556, %v1407
  %1579 = vst.msk [vmem:[#allocation3 + $0xb0] sm:$0xff] %vm1556, %v1409
  %1580 = vst.msk [vmem:[#allocation3 + $0xb8] sm:$0xff] %vm1556, %v1411
  %1581 = vst.msk [vmem:[#allocation3 + $0xc0] sm:$0xff] %vm1556, %v1413
  %1582 = vst.msk [vmem:[#allocation3 + $0xc8] sm:$0xff] %vm1556, %v1415
  %1583 = vst.msk [vmem:[#allocation3 + $0xd0] sm:$0xff] %vm1556, %v1417
  %1584 = vst.msk [vmem:[#allocation3 + $0xd8] sm:$0xff] %vm1556, %v1419
  %1585 = vst.msk [vmem:[#allocation3 + $0xe0] sm:$0xff] %vm1556, %v1421
  %1586 = vst.msk [vmem:[#allocation3 + $0xe8] sm:$0xff] %vm1556, %v1423
  %1587 = vst.msk [vmem:[#allocation3 + $0xf0] sm:$0xff] %vm1556, %v1425
  %1588 = vst.msk [vmem:[#allocation3 + $0xf8] sm:$0xff] %vm1556, %v1427
  %1589 = vst.msk [vmem:[#allocation3 + $0x100] sm:$0xff] %vm1556, %v1429
  %1590 = vst.msk [vmem:[#allocation3 + $0x108] sm:$0xff] %vm1556, %v1431
  %1591 = vst.msk [vmem:[#allocation3 + $0x110] sm:$0xff] %vm1556, %v1433
  %1592 = vst.msk [vmem:[#allocation3 + $0x118] sm:$0xff] %vm1556, %v1435
  %1593 = vst.msk [vmem:[#allocation3 + $0x120] sm:$0xff] %vm1556, %v1437
  %1594 = vst.msk [vmem:[#allocation3 + $0x128] sm:$0xff] %vm1556, %v1439
  %1595 = vst.msk [vmem:[#allocation3 + $0x130] sm:$0xff] %vm1556, %v1441
  %1596 = vst.msk [vmem:[#allocation3 + $0x138] sm:$0xff] %vm1556, %v1443
  %1597 = vst.msk [vmem:[#allocation3 + $0x140] sm:$0xff] %vm1556, %v1445
  %1598 = vst.msk [vmem:[#allocation3 + $0x148] sm:$0xff] %vm1556, %v1447
  %1599 = vst.msk [vmem:[#allocation3 + $0x150] sm:$0xff] %vm1556, %v1449
  %1600 = vst.msk [vmem:[#allocation3 + $0x158] sm:$0xff] %vm1556, %v1451
  %1601 = vst.msk [vmem:[#allocation3 + $0x160] sm:$0xff] %vm1556, %v1453
  %1602 = vst.msk [vmem:[#allocation3 + $0x168] sm:$0xff] %vm1556, %v1455
  %1603 = vst.msk [vmem:[#allocation3 + $0x170] sm:$0xff] %vm1556, %v1457
  %1604 = vst.msk [vmem:[#allocation3 + $0x178] sm:$0xff] %vm1556, %v1459
  %1605 = vst.msk [vmem:[#allocation3 + $0x180] sm:$0xff] %vm1556, %v1461
  %1606 = vst.msk [vmem:[#allocation3 + $0x188] sm:$0xff] %vm1556, %v1463
  %1607 = vst.msk [vmem:[#allocation3 + $0x190] sm:$0xff] %vm1556, %v1465
  %1608 = vst.msk [vmem:[#allocation3 + $0x198] sm:$0xff] %vm1556, %v1467
  %1609 = vst.msk [vmem:[#allocation3 + $0x1a0] sm:$0xff] %vm1556, %v1469
  %1610 = vst.msk [vmem:[#allocation3 + $0x1a8] sm:$0xff] %vm1556, %v1471
  %1611 = vst.msk [vmem:[#allocation3 + $0x1b0] sm:$0xff] %vm1556, %v1473
  %1612 = vst.msk [vmem:[#allocation3 + $0x1b8] sm:$0xff] %vm1556, %v1475
  %1613 = vst.msk [vmem:[#allocation3 + $0x1c0] sm:$0xff] %vm1556, %v1477
  %1614 = vst.msk [vmem:[#allocation3 + $0x1c8] sm:$0xff] %vm1556, %v1479
  %1615 = vst.msk [vmem:[#allocation3 + $0x1d0] sm:$0xff] %vm1556, %v1481
  %1616 = vst.msk [vmem:[#allocation3 + $0x1d8] sm:$0xff] %vm1556, %v1483
  %1617 = vst.msk [vmem:[#allocation3 + $0x1e0] sm:$0xff] %vm1556, %v1485
  %1618 = vst.msk [vmem:[#allocation3 + $0x1e8] sm:$0xff] %vm1556, %v1487
  %1619 = vst.msk [vmem:[#allocation3 + $0x1f0] sm:$0xff] %vm1556, %v1489
  %1620 = vst.msk [vmem:[#allocation3 + $0x1f8] sm:$0xff] %vm1556, %v1491
  %v1621 = vld [vmem:[%s208 + $0x1] sm:$0xff]
  %v1622 = vld [vmem:[%s208 + $0x9] sm:$0xff]
  %v1623 = vld [vmem:[%s208 + $0x19] sm:$0xff]
  %v1624 = vld [vmem:[%s208 + $0x21] sm:$0xff]
  %v1625 = vld [vmem:[%s208 + $0x31] sm:$0xff]
  %v1626 = vld [vmem:[%s208 + $0x39] sm:$0xff]
  %v1627 = vld [vmem:[%s208 + $0x49] sm:$0xff]
  %v1628 = vld [vmem:[%s208 + $0x51] sm:$0xff]
  %v1629 = vld [vmem:[%s208 + $0x61] sm:$0xff]
  %v1630 = vld [vmem:[%s208 + $0x69] sm:$0xff]
  %v1631 = vld [vmem:[%s208 + $0x79] sm:$0xff]
  %v1632 = vld [vmem:[%s208 + $0x81] sm:$0xff]
  %v1633 = vld [vmem:[%s208 + $0x91] sm:$0xff]
  %v1634 = vld [vmem:[%s208 + $0x99] sm:$0xff]
  %v1635 = vld [vmem:[%s208 + $0xa9] sm:$0xff]
  %v1636 = vld [vmem:[%s208 + $0xb1] sm:$0xff]
  %v1637 = vld [vmem:[%s208 + $0xc1] sm:$0xff]
  %v1638 = vld [vmem:[%s208 + $0xc9] sm:$0xff]
  %v1639 = vld [vmem:[%s208 + $0xd9] sm:$0xff]
  %v1640 = vld [vmem:[%s208 + $0xe1] sm:$0xff]
  %v1641 = vld [vmem:[%s208 + $0xf1] sm:$0xff]
  %v1642 = vld [vmem:[%s208 + $0xf9] sm:$0xff]
  %v1643 = vld [vmem:[%s208 + $0x109] sm:$0xff]
  %v1644 = vld [vmem:[%s208 + $0x111] sm:$0xff]
  %v1645 = vld [vmem:[%s208 + $0x121] sm:$0xff]
  %v1646 = vld [vmem:[%s208 + $0x129] sm:$0xff]
  %v1647 = vld [vmem:[%s208 + $0x139] sm:$0xff]
  %v1648 = vld [vmem:[%s208 + $0x141] sm:$0xff]
  %v1649 = vld [vmem:[%s208 + $0x151] sm:$0xff]
  %v1650 = vld [vmem:[%s208 + $0x159] sm:$0xff]
  %v1651 = vld [vmem:[%s208 + $0x169] sm:$0xff]
  %v1652 = vld [vmem:[%s208 + $0x171] sm:$0xff]
  %v1653 = vld [vmem:[%s208 + $0x1b1] sm:$0xff]
  %v1654 = vld [vmem:[%s208 + $0x1b9] sm:$0xff]
  %v1655 = vld [vmem:[%s208 + $0x1c9] sm:$0xff]
  %v1656 = vld [vmem:[%s208 + $0x1d1] sm:$0xff]
  %v1657 = vld [vmem:[%s208 + $0x1e1] sm:$0xff]
  %v1658 = vld [vmem:[%s208 + $0x1e9] sm:$0xff]
  %v1659 = vld [vmem:[%s208 + $0x1f9] sm:$0xff]
  %v1660 = vld [vmem:[%s208 + $0x201] sm:$0xff]
  %v1661 = vld [vmem:[%s208 + $0x211] sm:$0xff]
  %v1662 = vld [vmem:[%s208 + $0x219] sm:$0xff]
  %v1663 = vld [vmem:[%s208 + $0x229] sm:$0xff]
  %v1664 = vld [vmem:[%s208 + $0x231] sm:$0xff]
  %v1665 = vld [vmem:[%s208 + $0x241] sm:$0xff]
  %v1666 = vld [vmem:[%s208 + $0x249] sm:$0xff]
  %v1667 = vld [vmem:[%s208 + $0x259] sm:$0xff]
  %v1668 = vld [vmem:[%s208 + $0x261] sm:$0xff]
  %v1669 = vld [vmem:[%s208 + $0x271] sm:$0xff]
  %v1670 = vld [vmem:[%s208 + $0x279] sm:$0xff]
  %v1671 = vld [vmem:[%s208 + $0x289] sm:$0xff]
  %v1672 = vld [vmem:[%s208 + $0x291] sm:$0xff]
  %v1673 = vld [vmem:[%s208 + $0x2a1] sm:$0xff]
  %v1674 = vld [vmem:[%s208 + $0x2a9] sm:$0xff]
  %v1675 = vld [vmem:[%s208 + $0x2b9] sm:$0xff]
  %v1676 = vld [vmem:[%s208 + $0x2c1] sm:$0xff]
  %v1677 = vld [vmem:[%s208 + $0x2d1] sm:$0xff]
  %v1678 = vld [vmem:[%s208 + $0x2d9] sm:$0xff]
  %v1679 = vld [vmem:[%s208 + $0x2e9] sm:$0xff]
  %v1680 = vld [vmem:[%s208 + $0x2f1] sm:$0xff]
  %v1681 = vld [vmem:[%s208 + $0x301] sm:$0xff]
  %v1682 = vld [vmem:[%s208 + $0x309] sm:$0xff]
  %v1683 = vld [vmem:[%s208 + $0x319] sm:$0xff]
  %v1684 = vld [vmem:[%s208 + $0x321] sm:$0xff]
  %1749 = vrot.lane.b32.xlu0 %v1621, 4
  %v1750 = vpop.permute.xlu0 %1749
  %1751 = vrot.lane.b32.xlu0 %v1622, 4
  %v1752 = vpop.permute.xlu0 %1751
  %1753 = vrot.lane.b32.xlu0 %v1623, 4
  %v1754 = vpop.permute.xlu0 %1753
  %1755 = vrot.lane.b32.xlu0 %v1624, 4
  %v1756 = vpop.permute.xlu0 %1755
  %1757 = vrot.lane.b32.xlu0 %v1625, 4
  %v1758 = vpop.permute.xlu0 %1757
  %1759 = vrot.lane.b32.xlu0 %v1626, 4
  %v1760 = vpop.permute.xlu0 %1759
  %1761 = vrot.lane.b32.xlu0 %v1627, 4
  %v1762 = vpop.permute.xlu0 %1761
  %1763 = vrot.lane.b32.xlu0 %v1628, 4
  %v1764 = vpop.permute.xlu0 %1763
  %1765 = vrot.lane.b32.xlu0 %v1629, 4
  %v1766 = vpop.permute.xlu0 %1765
  %1767 = vrot.lane.b32.xlu0 %v1630, 4
  %v1768 = vpop.permute.xlu0 %1767
  %1769 = vrot.lane.b32.xlu0 %v1631, 4
  %v1770 = vpop.permute.xlu0 %1769
  %1771 = vrot.lane.b32.xlu0 %v1632, 4
  %v1772 = vpop.permute.xlu0 %1771
  %1773 = vrot.lane.b32.xlu0 %v1633, 4
  %v1774 = vpop.permute.xlu0 %1773
  %1775 = vrot.lane.b32.xlu0 %v1634, 4
  %v1776 = vpop.permute.xlu0 %1775
  %1777 = vrot.lane.b32.xlu0 %v1635, 4
  %v1778 = vpop.permute.xlu0 %1777
  %1779 = vrot.lane.b32.xlu0 %v1636, 4
  %v1780 = vpop.permute.xlu0 %1779
  %1781 = vrot.lane.b32.xlu0 %v1637, 4
  %v1782 = vpop.permute.xlu0 %1781
  %1783 = vrot.lane.b32.xlu0 %v1638, 4
  %v1784 = vpop.permute.xlu0 %1783
  %1785 = vrot.lane.b32.xlu0 %v1639, 4
  %v1786 = vpop.permute.xlu0 %1785
  %1787 = vrot.lane.b32.xlu0 %v1640, 4
  %v1788 = vpop.permute.xlu0 %1787
  %1789 = vrot.lane.b32.xlu0 %v1641, 4
  %v1790 = vpop.permute.xlu0 %1789
  %1791 = vrot.lane.b32.xlu0 %v1642, 4
  %v1792 = vpop.permute.xlu0 %1791
  %1793 = vrot.lane.b32.xlu0 %v1643, 4
  %v1794 = vpop.permute.xlu0 %1793
  %1795 = vrot.lane.b32.xlu0 %v1644, 4
  %v1796 = vpop.permute.xlu0 %1795
  %1797 = vrot.lane.b32.xlu0 %v1645, 4
  %v1798 = vpop.permute.xlu0 %1797
  %1799 = vrot.lane.b32.xlu0 %v1646, 4
  %v1800 = vpop.permute.xlu0 %1799
  %1801 = vrot.lane.b32.xlu0 %v1647, 4
  %v1802 = vpop.permute.xlu0 %1801
  %1803 = vrot.lane.b32.xlu0 %v1648, 4
  %v1804 = vpop.permute.xlu0 %1803
  %1805 = vrot.lane.b32.xlu0 %v1649, 4
  %v1806 = vpop.permute.xlu0 %1805
  %1807 = vrot.lane.b32.xlu0 %v1650, 4
  %v1808 = vpop.permute.xlu0 %1807
  %1809 = vrot.lane.b32.xlu0 %v1651, 4
  %v1810 = vpop.permute.xlu0 %1809
  %1811 = vrot.lane.b32.xlu0 %v1652, 4
  %v1812 = vpop.permute.xlu0 %1811
  %1813 = vrot.lane.b32.xlu0 %v1653, 4
  %v1814 = vpop.permute.xlu0 %1813
  %1815 = vrot.lane.b32.xlu0 %v1654, 4
  %v1816 = vpop.permute.xlu0 %1815
  %1817 = vrot.lane.b32.xlu0 %v1655, 4
  %v1818 = vpop.permute.xlu0 %1817
  %1819 = vrot.lane.b32.xlu0 %v1656, 4
  %v1820 = vpop.permute.xlu0 %1819
  %1821 = vrot.lane.b32.xlu0 %v1657, 4
  %v1822 = vpop.permute.xlu0 %1821
  %1823 = vrot.lane.b32.xlu0 %v1658, 4
  %v1824 = vpop.permute.xlu0 %1823
  %1825 = vrot.lane.b32.xlu0 %v1659, 4
  %v1826 = vpop.permute.xlu0 %1825
  %1827 = vrot.lane.b32.xlu0 %v1660, 4
  %v1828 = vpop.permute.xlu0 %1827
  %1829 = vrot.lane.b32.xlu0 %v1661, 4
  %v1830 = vpop.permute.xlu0 %1829
  %1831 = vrot.lane.b32.xlu0 %v1662, 4
  %v1832 = vpop.permute.xlu0 %1831
  %1833 = vrot.lane.b32.xlu0 %v1663, 4
  %v1834 = vpop.permute.xlu0 %1833
  %1835 = vrot.lane.b32.xlu0 %v1664, 4
  %v1836 = vpop.permute.xlu0 %1835
  %1837 = vrot.lane.b32.xlu0 %v1665, 4
  %v1838 = vpop.permute.xlu0 %1837
  %1839 = vrot.lane.b32.xlu0 %v1666, 4
  %v1840 = vpop.permute.xlu0 %1839
  %1841 = vrot.lane.b32.xlu0 %v1667, 4
  %v1842 = vpop.permute.xlu0 %1841
  %1843 = vrot.lane.b32.xlu0 %v1668, 4
  %v1844 = vpop.permute.xlu0 %1843
  %1845 = vrot.lane.b32.xlu0 %v1669, 4
  %v1846 = vpop.permute.xlu0 %1845
  %1847 = vrot.lane.b32.xlu0 %v1670, 4
  %v1848 = vpop.permute.xlu0 %1847
  %1849 = vrot.lane.b32.xlu0 %v1671, 4
  %v1850 = vpop.permute.xlu0 %1849
  %1851 = vrot.lane.b32.xlu0 %v1672, 4
  %v1852 = vpop.permute.xlu0 %1851
  %1853 = vrot.lane.b32.xlu0 %v1673, 4
  %v1854 = vpop.permute.xlu0 %1853
  %1855 = vrot.lane.b32.xlu0 %v1674, 4
  %v1856 = vpop.permute.xlu0 %1855
  %1857 = vrot.lane.b32.xlu0 %v1675, 4
  %v1858 = vpop.permute.xlu0 %1857
  %1859 = vrot.lane.b32.xlu0 %v1676, 4
  %v1860 = vpop.permute.xlu0 %1859
  %1861 = vrot.lane.b32.xlu0 %v1677, 4
  %v1862 = vpop.permute.xlu0 %1861
  %1863 = vrot.lane.b32.xlu0 %v1678, 4
  %v1864 = vpop.permute.xlu0 %1863
  %1865 = vrot.lane.b32.xlu0 %v1679, 4
  %v1866 = vpop.permute.xlu0 %1865
  %1867 = vrot.lane.b32.xlu0 %v1680, 4
  %v1868 = vpop.permute.xlu0 %1867
  %1869 = vrot.lane.b32.xlu0 %v1681, 4
  %v1870 = vpop.permute.xlu0 %1869
  %1871 = vrot.lane.b32.xlu0 %v1682, 4
  %v1872 = vpop.permute.xlu0 %1871
  %1873 = vrot.lane.b32.xlu0 %v1683, 4
  %v1874 = vpop.permute.xlu0 %1873
  %1875 = vrot.lane.b32.xlu0 %v1684, 4
  %v1876 = vpop.permute.xlu0 %1875
  %vm1941 = vcmask 39968
  %1942 = vst.msk [vmem:[#allocation3] sm:$0xff] %vm1941, %v1750
  %1943 = vst.msk [vmem:[#allocation3 + $0x8] sm:$0xff] %vm1941, %v1752
  %1944 = vst.msk [vmem:[#allocation3 + $0x10] sm:$0xff] %vm1941, %v1754
  %1945 = vst.msk [vmem:[#allocation3 + $0x18] sm:$0xff] %vm1941, %v1756
  %1946 = vst.msk [vmem:[#allocation3 + $0x20] sm:$0xff] %vm1941, %v1758
  %1947 = vst.msk [vmem:[#allocation3 + $0x28] sm:$0xff] %vm1941, %v1760
  %1948 = vst.msk [vmem:[#allocation3 + $0x30] sm:$0xff] %vm1941, %v1762
  %1949 = vst.msk [vmem:[#allocation3 + $0x38] sm:$0xff] %vm1941, %v1764
  %1950 = vst.msk [vmem:[#allocation3 + $0x40] sm:$0xff] %vm1941, %v1766
  %1951 = vst.msk [vmem:[#allocation3 + $0x48] sm:$0xff] %vm1941, %v1768
  %1952 = vst.msk [vmem:[#allocation3 + $0x50] sm:$0xff] %vm1941, %v1770
  %1953 = vst.msk [vmem:[#allocation3 + $0x58] sm:$0xff] %vm1941, %v1772
  %1954 = vst.msk [vmem:[#allocation3 + $0x60] sm:$0xff] %vm1941, %v1774
  %1955 = vst.msk [vmem:[#allocation3 + $0x68] sm:$0xff] %vm1941, %v1776
  %1956 = vst.msk [vmem:[#allocation3 + $0x70] sm:$0xff] %vm1941, %v1778
  %1957 = vst.msk [vmem:[#allocation3 + $0x78] sm:$0xff] %vm1941, %v1780
  %1958 = vst.msk [vmem:[#allocation3 + $0x80] sm:$0xff] %vm1941, %v1782
  %1959 = vst.msk [vmem:[#allocation3 + $0x88] sm:$0xff] %vm1941, %v1784
  %1960 = vst.msk [vmem:[#allocation3 + $0x90] sm:$0xff] %vm1941, %v1786
  %1961 = vst.msk [vmem:[#allocation3 + $0x98] sm:$0xff] %vm1941, %v1788
  %1962 = vst.msk [vmem:[#allocation3 + $0xa0] sm:$0xff] %vm1941, %v1790
  %1963 = vst.msk [vmem:[#allocation3 + $0xa8] sm:$0xff] %vm1941, %v1792
  %1964 = vst.msk [vmem:[#allocation3 + $0xb0] sm:$0xff] %vm1941, %v1794
  %1965 = vst.msk [vmem:[#allocation3 + $0xb8] sm:$0xff] %vm1941, %v1796
  %1966 = vst.msk [vmem:[#allocation3 + $0xc0] sm:$0xff] %vm1941, %v1798
  %1967 = vst.msk [vmem:[#allocation3 + $0xc8] sm:$0xff] %vm1941, %v1800
  %1968 = vst.msk [vmem:[#allocation3 + $0xd0] sm:$0xff] %vm1941, %v1802
  %1969 = vst.msk [vmem:[#allocation3 + $0xd8] sm:$0xff] %vm1941, %v1804
  %1970 = vst.msk [vmem:[#allocation3 + $0xe0] sm:$0xff] %vm1941, %v1806
  %1971 = vst.msk [vmem:[#allocation3 + $0xe8] sm:$0xff] %vm1941, %v1808
  %1972 = vst.msk [vmem:[#allocation3 + $0xf0] sm:$0xff] %vm1941, %v1810
  %1973 = vst.msk [vmem:[#allocation3 + $0xf8] sm:$0xff] %vm1941, %v1812
  %1974 = vst.msk [vmem:[#allocation3 + $0x100] sm:$0xff] %vm1941, %v1814
  %1975 = vst.msk [vmem:[#allocation3 + $0x108] sm:$0xff] %vm1941, %v1816
  %1976 = vst.msk [vmem:[#allocation3 + $0x110] sm:$0xff] %vm1941, %v1818
  %1977 = vst.msk [vmem:[#allocation3 + $0x118] sm:$0xff] %vm1941, %v1820
  %1978 = vst.msk [vmem:[#allocation3 + $0x120] sm:$0xff] %vm1941, %v1822
  %1979 = vst.msk [vmem:[#allocation3 + $0x128] sm:$0xff] %vm1941, %v1824
  %1980 = vst.msk [vmem:[#allocation3 + $0x130] sm:$0xff] %vm1941, %v1826
  %1981 = vst.msk [vmem:[#allocation3 + $0x138] sm:$0xff] %vm1941, %v1828
  %1982 = vst.msk [vmem:[#allocation3 + $0x140] sm:$0xff] %vm1941, %v1830
  %1983 = vst.msk [vmem:[#allocation3 + $0x148] sm:$0xff] %vm1941, %v1832
  %1984 = vst.msk [vmem:[#allocation3 + $0x150] sm:$0xff] %vm1941, %v1834
  %1985 = vst.msk [vmem:[#allocation3 + $0x158] sm:$0xff] %vm1941, %v1836
  %1986 = vst.msk [vmem:[#allocation3 + $0x160] sm:$0xff] %vm1941, %v1838
  %1987 = vst.msk [vmem:[#allocation3 + $0x168] sm:$0xff] %vm1941, %v1840
  %1988 = vst.msk [vmem:[#allocation3 + $0x170] sm:$0xff] %vm1941, %v1842
  %1989 = vst.msk [vmem:[#allocation3 + $0x178] sm:$0xff] %vm1941, %v1844
  %1990 = vst.msk [vmem:[#allocation3 + $0x180] sm:$0xff] %vm1941, %v1846
  %1991 = vst.msk [vmem:[#allocation3 + $0x188] sm:$0xff] %vm1941, %v1848
  %1992 = vst.msk [vmem:[#allocation3 + $0x190] sm:$0xff] %vm1941, %v1850
  %1993 = vst.msk [vmem:[#allocation3 + $0x198] sm:$0xff] %vm1941, %v1852
  %1994 = vst.msk [vmem:[#allocation3 + $0x1a0] sm:$0xff] %vm1941, %v1854
  %1995 = vst.msk [vmem:[#allocation3 + $0x1a8] sm:$0xff] %vm1941, %v1856
  %1996 = vst.msk [vmem:[#allocation3 + $0x1b0] sm:$0xff] %vm1941, %v1858
  %1997 = vst.msk [vmem:[#allocation3 + $0x1b8] sm:$0xff] %vm1941, %v1860
  %1998 = vst.msk [vmem:[#allocation3 + $0x1c0] sm:$0xff] %vm1941, %v1862
  %1999 = vst.msk [vmem:[#allocation3 + $0x1c8] sm:$0xff] %vm1941, %v1864
  %2000 = vst.msk [vmem:[#allocation3 + $0x1d0] sm:$0xff] %vm1941, %v1866
  %2001 = vst.msk [vmem:[#allocation3 + $0x1d8] sm:$0xff] %vm1941, %v1868
  %2002 = vst.msk [vmem:[#allocation3 + $0x1e0] sm:$0xff] %vm1941, %v1870
  %2003 = vst.msk [vmem:[#allocation3 + $0x1e8] sm:$0xff] %vm1941, %v1872
  %2004 = vst.msk [vmem:[#allocation3 + $0x1f0] sm:$0xff] %vm1941, %v1874
  %2005 = vst.msk [vmem:[#allocation3 + $0x1f8] sm:$0xff] %vm1941, %v1876
  %v2006 = vld [vmem:[%s208 + $0x2] sm:$0xff]
  %v2007 = vld [vmem:[%s208 + $0xa] sm:$0xff]
  %v2008 = vld [vmem:[%s208 + $0x1a] sm:$0xff]
  %v2009 = vld [vmem:[%s208 + $0x22] sm:$0xff]
  %v2010 = vld [vmem:[%s208 + $0x32] sm:$0xff]
  %v2011 = vld [vmem:[%s208 + $0x3a] sm:$0xff]
  %v2012 = vld [vmem:[%s208 + $0x4a] sm:$0xff]
  %v2013 = vld [vmem:[%s208 + $0x52] sm:$0xff]
  %v2014 = vld [vmem:[%s208 + $0x62] sm:$0xff]
  %v2015 = vld [vmem:[%s208 + $0x6a] sm:$0xff]
  %v2016 = vld [vmem:[%s208 + $0x7a] sm:$0xff]
  %v2017 = vld [vmem:[%s208 + $0x82] sm:$0xff]
  %v2018 = vld [vmem:[%s208 + $0x92] sm:$0xff]
  %v2019 = vld [vmem:[%s208 + $0x9a] sm:$0xff]
  %v2020 = vld [vmem:[%s208 + $0xaa] sm:$0xff]
  %v2021 = vld [vmem:[%s208 + $0xb2] sm:$0xff]
  %v2022 = vld [vmem:[%s208 + $0xc2] sm:$0xff]
  %v2023 = vld [vmem:[%s208 + $0xca] sm:$0xff]
  %v2024 = vld [vmem:[%s208 + $0xda] sm:$0xff]
  %v2025 = vld [vmem:[%s208 + $0xe2] sm:$0xff]
  %v2026 = vld [vmem:[%s208 + $0xf2] sm:$0xff]
  %v2027 = vld [vmem:[%s208 + $0xfa] sm:$0xff]
  %v2028 = vld [vmem:[%s208 + $0x10a] sm:$0xff]
  %v2029 = vld [vmem:[%s208 + $0x112] sm:$0xff]
  %v2030 = vld [vmem:[%s208 + $0x122] sm:$0xff]
  %v2031 = vld [vmem:[%s208 + $0x12a] sm:$0xff]
  %v2032 = vld [vmem:[%s208 + $0x13a] sm:$0xff]
  %v2033 = vld [vmem:[%s208 + $0x142] sm:$0xff]
  %v2034 = vld [vmem:[%s208 + $0x152] sm:$0xff]
  %v2035 = vld [vmem:[%s208 + $0x15a] sm:$0xff]
  %v2036 = vld [vmem:[%s208 + $0x16a] sm:$0xff]
  %v2037 = vld [vmem:[%s208 + $0x172] sm:$0xff]
  %v2038 = vld [vmem:[%s208 + $0x1b2] sm:$0xff]
  %v2039 = vld [vmem:[%s208 + $0x1ba] sm:$0xff]
  %v2040 = vld [vmem:[%s208 + $0x1ca] sm:$0xff]
  %v2041 = vld [vmem:[%s208 + $0x1d2] sm:$0xff]
  %v2042 = vld [vmem:[%s208 + $0x1e2] sm:$0xff]
  %v2043 = vld [vmem:[%s208 + $0x1ea] sm:$0xff]
  %v2044 = vld [vmem:[%s208 + $0x1fa] sm:$0xff]
  %v2045 = vld [vmem:[%s208 + $0x202] sm:$0xff]
  %v2046 = vld [vmem:[%s208 + $0x212] sm:$0xff]
  %v2047 = vld [vmem:[%s208 + $0x21a] sm:$0xff]
  %v2048 = vld [vmem:[%s208 + $0x22a] sm:$0xff]
  %v2049 = vld [vmem:[%s208 + $0x232] sm:$0xff]
  %v2050 = vld [vmem:[%s208 + $0x242] sm:$0xff]
  %v2051 = vld [vmem:[%s208 + $0x24a] sm:$0xff]
  %v2052 = vld [vmem:[%s208 + $0x25a] sm:$0xff]
  %v2053 = vld [vmem:[%s208 + $0x262] sm:$0xff]
  %v2054 = vld [vmem:[%s208 + $0x272] sm:$0xff]
  %v2055 = vld [vmem:[%s208 + $0x27a] sm:$0xff]
  %v2056 = vld [vmem:[%s208 + $0x28a] sm:$0xff]
  %v2057 = vld [vmem:[%s208 + $0x292] sm:$0xff]
  %v2058 = vld [vmem:[%s208 + $0x2a2] sm:$0xff]
  %v2059 = vld [vmem:[%s208 + $0x2aa] sm:$0xff]
  %v2060 = vld [vmem:[%s208 + $0x2ba] sm:$0xff]
  %v2061 = vld [vmem:[%s208 + $0x2c2] sm:$0xff]
  %v2062 = vld [vmem:[%s208 + $0x2d2] sm:$0xff]
  %v2063 = vld [vmem:[%s208 + $0x2da] sm:$0xff]
  %v2064 = vld [vmem:[%s208 + $0x2ea] sm:$0xff]
  %v2065 = vld [vmem:[%s208 + $0x2f2] sm:$0xff]
  %v2066 = vld [vmem:[%s208 + $0x302] sm:$0xff]
  %v2067 = vld [vmem:[%s208 + $0x30a] sm:$0xff]
  %v2068 = vld [vmem:[%s208 + $0x31a] sm:$0xff]
  %v2069 = vld [vmem:[%s208 + $0x322] sm:$0xff]
  %2134 = vrot.lane.b32.xlu0 %v2006, 5
  %v2135 = vpop.permute.xlu0 %2134
  %2136 = vrot.lane.b32.xlu0 %v2007, 5
  %v2137 = vpop.permute.xlu0 %2136
  %2138 = vrot.lane.b32.xlu0 %v2008, 5
  %v2139 = vpop.permute.xlu0 %2138
  %2140 = vrot.lane.b32.xlu0 %v2009, 5
  %v2141 = vpop.permute.xlu0 %2140
  %2142 = vrot.lane.b32.xlu0 %v2010, 5
  %v2143 = vpop.permute.xlu0 %2142
  %2144 = vrot.lane.b32.xlu0 %v2011, 5
  %v2145 = vpop.permute.xlu0 %2144
  %2146 = vrot.lane.b32.xlu0 %v2012, 5
  %v2147 = vpop.permute.xlu0 %2146
  %2148 = vrot.lane.b32.xlu0 %v2013, 5
  %v2149 = vpop.permute.xlu0 %2148
  %2150 = vrot.lane.b32.xlu0 %v2014, 5
  %v2151 = vpop.permute.xlu0 %2150
  %2152 = vrot.lane.b32.xlu0 %v2015, 5
  %v2153 = vpop.permute.xlu0 %2152
  %2154 = vrot.lane.b32.xlu0 %v2016, 5
  %v2155 = vpop.permute.xlu0 %2154
  %2156 = vrot.lane.b32.xlu0 %v2017, 5
  %v2157 = vpop.permute.xlu0 %2156
  %2158 = vrot.lane.b32.xlu0 %v2018, 5
  %v2159 = vpop.permute.xlu0 %2158
  %2160 = vrot.lane.b32.xlu0 %v2019, 5
  %v2161 = vpop.permute.xlu0 %2160
  %2162 = vrot.lane.b32.xlu0 %v2020, 5
  %v2163 = vpop.permute.xlu0 %2162
  %2164 = vrot.lane.b32.xlu0 %v2021, 5
  %v2165 = vpop.permute.xlu0 %2164
  %2166 = vrot.lane.b32.xlu0 %v2022, 5
  %v2167 = vpop.permute.xlu0 %2166
  %2168 = vrot.lane.b32.xlu0 %v2023, 5
  %v2169 = vpop.permute.xlu0 %2168
  %2170 = vrot.lane.b32.xlu0 %v2024, 5
  %v2171 = vpop.permute.xlu0 %2170
  %2172 = vrot.lane.b32.xlu0 %v2025, 5
  %v2173 = vpop.permute.xlu0 %2172
  %2174 = vrot.lane.b32.xlu0 %v2026, 5
  %v2175 = vpop.permute.xlu0 %2174
  %2176 = vrot.lane.b32.xlu0 %v2027, 5
  %v2177 = vpop.permute.xlu0 %2176
  %2178 = vrot.lane.b32.xlu0 %v2028, 5
  %v2179 = vpop.permute.xlu0 %2178
  %2180 = vrot.lane.b32.xlu0 %v2029, 5
  %v2181 = vpop.permute.xlu0 %2180
  %2182 = vrot.lane.b32.xlu0 %v2030, 5
  %v2183 = vpop.permute.xlu0 %2182
  %2184 = vrot.lane.b32.xlu0 %v2031, 5
  %v2185 = vpop.permute.xlu0 %2184
  %2186 = vrot.lane.b32.xlu0 %v2032, 5
  %v2187 = vpop.permute.xlu0 %2186
  %2188 = vrot.lane.b32.xlu0 %v2033, 5
  %v2189 = vpop.permute.xlu0 %2188
  %2190 = vrot.lane.b32.xlu0 %v2034, 5
  %v2191 = vpop.permute.xlu0 %2190
  %2192 = vrot.lane.b32.xlu0 %v2035, 5
  %v2193 = vpop.permute.xlu0 %2192
  %2194 = vrot.lane.b32.xlu0 %v2036, 5
  %v2195 = vpop.permute.xlu0 %2194
  %2196 = vrot.lane.b32.xlu0 %v2037, 5
  %v2197 = vpop.permute.xlu0 %2196
  %2198 = vrot.lane.b32.xlu0 %v2038, 5
  %v2199 = vpop.permute.xlu0 %2198
  %2200 = vrot.lane.b32.xlu0 %v2039, 5
  %v2201 = vpop.permute.xlu0 %2200
  %2202 = vrot.lane.b32.xlu0 %v2040, 5
  %v2203 = vpop.permute.xlu0 %2202
  %2204 = vrot.lane.b32.xlu0 %v2041, 5
  %v2205 = vpop.permute.xlu0 %2204
  %2206 = vrot.lane.b32.xlu0 %v2042, 5
  %v2207 = vpop.permute.xlu0 %2206
  %2208 = vrot.lane.b32.xlu0 %v2043, 5
  %v2209 = vpop.permute.xlu0 %2208
  %2210 = vrot.lane.b32.xlu0 %v2044, 5
  %v2211 = vpop.permute.xlu0 %2210
  %2212 = vrot.lane.b32.xlu0 %v2045, 5
  %v2213 = vpop.permute.xlu0 %2212
  %2214 = vrot.lane.b32.xlu0 %v2046, 5
  %v2215 = vpop.permute.xlu0 %2214
  %2216 = vrot.lane.b32.xlu0 %v2047, 5
  %v2217 = vpop.permute.xlu0 %2216
  %2218 = vrot.lane.b32.xlu0 %v2048, 5
  %v2219 = vpop.permute.xlu0 %2218
  %2220 = vrot.lane.b32.xlu0 %v2049, 5
  %v2221 = vpop.permute.xlu0 %2220
  %2222 = vrot.lane.b32.xlu0 %v2050, 5
  %v2223 = vpop.permute.xlu0 %2222
  %2224 = vrot.lane.b32.xlu0 %v2051, 5
  %v2225 = vpop.permute.xlu0 %2224
  %2226 = vrot.lane.b32.xlu0 %v2052, 5
  %v2227 = vpop.permute.xlu0 %2226
  %2228 = vrot.lane.b32.xlu0 %v2053, 5
  %v2229 = vpop.permute.xlu0 %2228
  %2230 = vrot.lane.b32.xlu0 %v2054, 5
  %v2231 = vpop.permute.xlu0 %2230
  %2232 = vrot.lane.b32.xlu0 %v2055, 5
  %v2233 = vpop.permute.xlu0 %2232
  %2234 = vrot.lane.b32.xlu0 %v2056, 5
  %v2235 = vpop.permute.xlu0 %2234
  %2236 = vrot.lane.b32.xlu0 %v2057, 5
  %v2237 = vpop.permute.xlu0 %2236
  %2238 = vrot.lane.b32.xlu0 %v2058, 5
  %v2239 = vpop.permute.xlu0 %2238
  %2240 = vrot.lane.b32.xlu0 %v2059, 5
  %v2241 = vpop.permute.xlu0 %2240
  %2242 = vrot.lane.b32.xlu0 %v2060, 5
  %v2243 = vpop.permute.xlu0 %2242
  %2244 = vrot.lane.b32.xlu0 %v2061, 5
  %v2245 = vpop.permute.xlu0 %2244
  %2246 = vrot.lane.b32.xlu0 %v2062, 5
  %v2247 = vpop.permute.xlu0 %2246
  %2248 = vrot.lane.b32.xlu0 %v2063, 5
  %v2249 = vpop.permute.xlu0 %2248
  %2250 = vrot.lane.b32.xlu0 %v2064, 5
  %v2251 = vpop.permute.xlu0 %2250
  %2252 = vrot.lane.b32.xlu0 %v2065, 5
  %v2253 = vpop.permute.xlu0 %2252
  %2254 = vrot.lane.b32.xlu0 %v2066, 5
  %v2255 = vpop.permute.xlu0 %2254
  %2256 = vrot.lane.b32.xlu0 %v2067, 5
  %v2257 = vpop.permute.xlu0 %2256
  %2258 = vrot.lane.b32.xlu0 %v2068, 5
  %v2259 = vpop.permute.xlu0 %2258
  %2260 = vrot.lane.b32.xlu0 %v2069, 5
  %v2261 = vpop.permute.xlu0 %2260
  %vm2326 = vcmask 48168
  %2327 = vst.msk [vmem:[#allocation3] sm:$0xff] %vm2326, %v2135
  %2328 = vst.msk [vmem:[#allocation3 + $0x8] sm:$0xff] %vm2326, %v2137
  %2329 = vst.msk [vmem:[#allocation3 + $0x10] sm:$0xff] %vm2326, %v2139
  %2330 = vst.msk [vmem:[#allocation3 + $0x18] sm:$0xff] %vm2326, %v2141
  %2331 = vst.msk [vmem:[#allocation3 + $0x20] sm:$0xff] %vm2326, %v2143
  %2332 = vst.msk [vmem:[#allocation3 + $0x28] sm:$0xff] %vm2326, %v2145
  %2333 = vst.msk [vmem:[#allocation3 + $0x30] sm:$0xff] %vm2326, %v2147
  %2334 = vst.msk [vmem:[#allocation3 + $0x38] sm:$0xff] %vm2326, %v2149
  %2335 = vst.msk [vmem:[#allocation3 + $0x40] sm:$0xff] %vm2326, %v2151
  %2336 = vst.msk [vmem:[#allocation3 + $0x48] sm:$0xff] %vm2326, %v2153
  %2337 = vst.msk [vmem:[#allocation3 + $0x50] sm:$0xff] %vm2326, %v2155
  %2338 = vst.msk [vmem:[#allocation3 + $0x58] sm:$0xff] %vm2326, %v2157
  %2339 = vst.msk [vmem:[#allocation3 + $0x60] sm:$0xff] %vm2326, %v2159
  %2340 = vst.msk [vmem:[#allocation3 + $0x68] sm:$0xff] %vm2326, %v2161
  %2341 = vst.msk [vmem:[#allocation3 + $0x70] sm:$0xff] %vm2326, %v2163
  %2342 = vst.msk [vmem:[#allocation3 + $0x78] sm:$0xff] %vm2326, %v2165
  %2343 = vst.msk [vmem:[#allocation3 + $0x80] sm:$0xff] %vm2326, %v2167
  %2344 = vst.msk [vmem:[#allocation3 + $0x88] sm:$0xff] %vm2326, %v2169
  %2345 = vst.msk [vmem:[#allocation3 + $0x90] sm:$0xff] %vm2326, %v2171
  %2346 = vst.msk [vmem:[#allocation3 + $0x98] sm:$0xff] %vm2326, %v2173
  %2347 = vst.msk [vmem:[#allocation3 + $0xa0] sm:$0xff] %vm2326, %v2175
  %2348 = vst.msk [vmem:[#allocation3 + $0xa8] sm:$0xff] %vm2326, %v2177
  %2349 = vst.msk [vmem:[#allocation3 + $0xb0] sm:$0xff] %vm2326, %v2179
  %2350 = vst.msk [vmem:[#allocation3 + $0xb8] sm:$0xff] %vm2326, %v2181
  %2351 = vst.msk [vmem:[#allocation3 + $0xc0] sm:$0xff] %vm2326, %v2183
  %2352 = vst.msk [vmem:[#allocation3 + $0xc8] sm:$0xff] %vm2326, %v2185
  %2353 = vst.msk [vmem:[#allocation3 + $0xd0] sm:$0xff] %vm2326, %v2187
  %2354 = vst.msk [vmem:[#allocation3 + $0xd8] sm:$0xff] %vm2326, %v2189
  %2355 = vst.msk [vmem:[#allocation3 + $0xe0] sm:$0xff] %vm2326, %v2191
  %2356 = vst.msk [vmem:[#allocation3 + $0xe8] sm:$0xff] %vm2326, %v2193
  %2357 = vst.msk [vmem:[#allocation3 + $0xf0] sm:$0xff] %vm2326, %v2195
  %2358 = vst.msk [vmem:[#allocation3 + $0xf8] sm:$0xff] %vm2326, %v2197
  %2359 = vst.msk [vmem:[#allocation3 + $0x100] sm:$0xff] %vm2326, %v2199
  %2360 = vst.msk [vmem:[#allocation3 + $0x108] sm:$0xff] %vm2326, %v2201
  %2361 = vst.msk [vmem:[#allocation3 + $0x110] sm:$0xff] %vm2326, %v2203
  %2362 = vst.msk [vmem:[#allocation3 + $0x118] sm:$0xff] %vm2326, %v2205
  %2363 = vst.msk [vmem:[#allocation3 + $0x120] sm:$0xff] %vm2326, %v2207
  %2364 = vst.msk [vmem:[#allocation3 + $0x128] sm:$0xff] %vm2326, %v2209
  %2365 = vst.msk [vmem:[#allocation3 + $0x130] sm:$0xff] %vm2326, %v2211
  %2366 = vst.msk [vmem:[#allocation3 + $0x138] sm:$0xff] %vm2326, %v2213
  %2367 = vst.msk [vmem:[#allocation3 + $0x140] sm:$0xff] %vm2326, %v2215
  %2368 = vst.msk [vmem:[#allocation3 + $0x148] sm:$0xff] %vm2326, %v2217
  %2369 = vst.msk [vmem:[#allocation3 + $0x150] sm:$0xff] %vm2326, %v2219
  %2370 = vst.msk [vmem:[#allocation3 + $0x158] sm:$0xff] %vm2326, %v2221
  %2371 = vst.msk [vmem:[#allocation3 + $0x160] sm:$0xff] %vm2326, %v2223
  %2372 = vst.msk [vmem:[#allocation3 + $0x168] sm:$0xff] %vm2326, %v2225
  %2373 = vst.msk [vmem:[#allocation3 + $0x170] sm:$0xff] %vm2326, %v2227
  %2374 = vst.msk [vmem:[#allocation3 + $0x178] sm:$0xff] %vm2326, %v2229
  %2375 = vst.msk [vmem:[#allocation3 + $0x180] sm:$0xff] %vm2326, %v2231
  %2376 = vst.msk [vmem:[#allocation3 + $0x188] sm:$0xff] %vm2326, %v2233
  %2377 = vst.msk [vmem:[#allocation3 + $0x190] sm:$0xff] %vm2326, %v2235
  %2378 = vst.msk [vmem:[#allocation3 + $0x198] sm:$0xff] %vm2326, %v2237
  %2379 = vst.msk [vmem:[#allocation3 + $0x1a0] sm:$0xff] %vm2326, %v2239
  %2380 = vst.msk [vmem:[#allocation3 + $0x1a8] sm:$0xff] %vm2326, %v2241
  %2381 = vst.msk [vmem:[#allocation3 + $0x1b0] sm:$0xff] %vm2326, %v2243
  %2382 = vst.msk [vmem:[#allocation3 + $0x1b8] sm:$0xff] %vm2326, %v2245
  %2383 = vst.msk [vmem:[#allocation3 + $0x1c0] sm:$0xff] %vm2326, %v2247
  %2384 = vst.msk [vmem:[#allocation3 + $0x1c8] sm:$0xff] %vm2326, %v2249
  %2385 = vst.msk [vmem:[#allocation3 + $0x1d0] sm:$0xff] %vm2326, %v2251
  %2386 = vst.msk [vmem:[#allocation3 + $0x1d8] sm:$0xff] %vm2326, %v2253
  %2387 = vst.msk [vmem:[#allocation3 + $0x1e0] sm:$0xff] %vm2326, %v2255
  %2388 = vst.msk [vmem:[#allocation3 + $0x1e8] sm:$0xff] %vm2326, %v2257
  %2389 = vst.msk [vmem:[#allocation3 + $0x1f0] sm:$0xff] %vm2326, %v2259
  %2390 = vst.msk [vmem:[#allocation3 + $0x1f8] sm:$0xff] %vm2326, %v2261
  %s2391 = scalar_lea.vmem [#allocation2], 48
  %v2392 = vld [vmem:[%s2391] sm:$0xff]
  %v2393 = vld [vmem:[%s2391 + $0x8] sm:$0xff]
  %v2394 = vld [vmem:[%s2391 + $0x18] sm:$0xff]
  %v2395 = vld [vmem:[%s2391 + $0x20] sm:$0xff]
  %v2396 = vld [vmem:[%s2391 + $0x30] sm:$0xff]
  %v2397 = vld [vmem:[%s2391 + $0x38] sm:$0xff]
  %v2398 = vld [vmem:[%s2391 + $0x48] sm:$0xff]
  %v2399 = vld [vmem:[%s2391 + $0x50] sm:$0xff]
  %v2400 = vld [vmem:[%s2391 + $0x60] sm:$0xff]
  %v2401 = vld [vmem:[%s2391 + $0x68] sm:$0xff]
  %v2402 = vld [vmem:[%s2391 + $0x78] sm:$0xff]
  %v2403 = vld [vmem:[%s2391 + $0x80] sm:$0xff]
  %v2404 = vld [vmem:[%s2391 + $0x90] sm:$0xff]
  %v2405 = vld [vmem:[%s2391 + $0x98] sm:$0xff]
  %v2406 = vld [vmem:[%s2391 + $0xa8] sm:$0xff]
  %v2407 = vld [vmem:[%s2391 + $0xb0] sm:$0xff]
  %v2408 = vld [vmem:[%s2391 + $0xc0] sm:$0xff]
  %v2409 = vld [vmem:[%s2391 + $0xc8] sm:$0xff]
  %v2410 = vld [vmem:[%s2391 + $0xd8] sm:$0xff]
  %v2411 = vld [vmem:[%s2391 + $0xe0] sm:$0xff]
  %v2412 = vld [vmem:[%s2391 + $0xf0] sm:$0xff]
  %v2413 = vld [vmem:[%s2391 + $0xf8] sm:$0xff]
  %v2414 = vld [vmem:[%s2391 + $0x108] sm:$0xff]
  %v2415 = vld [vmem:[%s2391 + $0x110] sm:$0xff]
  %v2416 = vld [vmem:[%s2391 + $0x120] sm:$0xff]
  %v2417 = vld [vmem:[%s2391 + $0x128] sm:$0xff]
  %v2418 = vld [vmem:[%s2391 + $0x138] sm:$0xff]
  %v2419 = vld [vmem:[%s2391 + $0x140] sm:$0xff]
  %v2420 = vld [vmem:[%s2391 + $0x150] sm:$0xff]
  %v2421 = vld [vmem:[%s2391 + $0x158] sm:$0xff]
  %v2422 = vld [vmem:[%s2391 + $0x168] sm:$0xff]
  %v2423 = vld [vmem:[%s2391 + $0x170] sm:$0xff]
  %v2424 = vld [vmem:[%s2391 + $0x1b0] sm:$0xff]
  %v2425 = vld [vmem:[%s2391 + $0x1b8] sm:$0xff]
  %v2426 = vld [vmem:[%s2391 + $0x1c8] sm:$0xff]
  %v2427 = vld [vmem:[%s2391 + $0x1d0] sm:$0xff]
  %v2428 = vld [vmem:[%s2391 + $0x1e0] sm:$0xff]
  %v2429 = vld [vmem:[%s2391 + $0x1e8] sm:$0xff]
  %v2430 = vld [vmem:[%s2391 + $0x1f8] sm:$0xff]
  %v2431 = vld [vmem:[%s2391 + $0x200] sm:$0xff]
  %v2432 = vld [vmem:[%s2391 + $0x210] sm:$0xff]
  %v2433 = vld [vmem:[%s2391 + $0x218] sm:$0xff]
  %v2434 = vld [vmem:[%s2391 + $0x228] sm:$0xff]
  %v2435 = vld [vmem:[%s2391 + $0x230] sm:$0xff]
  %v2436 = vld [vmem:[%s2391 + $0x240] sm:$0xff]
  %v2437 = vld [vmem:[%s2391 + $0x248] sm:$0xff]
  %v2438 = vld [vmem:[%s2391 + $0x258] sm:$0xff]
  %v2439 = vld [vmem:[%s2391 + $0x260] sm:$0xff]
  %v2440 = vld [vmem:[%s2391 + $0x270] sm:$0xff]
  %v2441 = vld [vmem:[%s2391 + $0x278] sm:$0xff]
  %v2442 = vld [vmem:[%s2391 + $0x288] sm:$0xff]
  %v2443 = vld [vmem:[%s2391 + $0x290] sm:$0xff]
  %v2444 = vld [vmem:[%s2391 + $0x2a0] sm:$0xff]
  %v2445 = vld [vmem:[%s2391 + $0x2a8] sm:$0xff]
  %v2446 = vld [vmem:[%s2391 + $0x2b8] sm:$0xff]
  %v2447 = vld [vmem:[%s2391 + $0x2c0] sm:$0xff]
  %v2448 = vld [vmem:[%s2391 + $0x2d0] sm:$0xff]
  %v2449 = vld [vmem:[%s2391 + $0x2d8] sm:$0xff]
  %v2450 = vld [vmem:[%s2391 + $0x2e8] sm:$0xff]
  %v2451 = vld [vmem:[%s2391 + $0x2f0] sm:$0xff]
  %v2452 = vld [vmem:[%s2391 + $0x300] sm:$0xff]
  %v2453 = vld [vmem:[%s2391 + $0x308] sm:$0xff]
  %v2454 = vld [vmem:[%s2391 + $0x318] sm:$0xff]
  %v2455 = vld [vmem:[%s2391 + $0x320] sm:$0xff]
  %2520 = vrot.lane.b32.xlu0 %v2392, 6
  %v2521 = vpop.permute.xlu0 %2520
  %2522 = vrot.lane.b32.xlu0 %v2393, 6
  %v2523 = vpop.permute.xlu0 %2522
  %2524 = vrot.lane.b32.xlu0 %v2394, 6
  %v2525 = vpop.permute.xlu0 %2524
  %2526 = vrot.lane.b32.xlu0 %v2395, 6
  %v2527 = vpop.permute.xlu0 %2526
  %2528 = vrot.lane.b32.xlu0 %v2396, 6
  %v2529 = vpop.permute.xlu0 %2528
  %2530 = vrot.lane.b32.xlu0 %v2397, 6
  %v2531 = vpop.permute.xlu0 %2530
  %2532 = vrot.lane.b32.xlu0 %v2398, 6
  %v2533 = vpop.permute.xlu0 %2532
  %2534 = vrot.lane.b32.xlu0 %v2399, 6
  %v2535 = vpop.permute.xlu0 %2534
  %2536 = vrot.lane.b32.xlu0 %v2400, 6
  %v2537 = vpop.permute.xlu0 %2536
  %2538 = vrot.lane.b32.xlu0 %v2401, 6
  %v2539 = vpop.permute.xlu0 %2538
  %2540 = vrot.lane.b32.xlu0 %v2402, 6
  %v2541 = vpop.permute.xlu0 %2540
  %2542 = vrot.lane.b32.xlu0 %v2403, 6
  %v2543 = vpop.permute.xlu0 %2542
  %2544 = vrot.lane.b32.xlu0 %v2404, 6
  %v2545 = vpop.permute.xlu0 %2544
  %2546 = vrot.lane.b32.xlu0 %v2405, 6
  %v2547 = vpop.permute.xlu0 %2546
  %2548 = vrot.lane.b32.xlu0 %v2406, 6
  %v2549 = vpop.permute.xlu0 %2548
  %2550 = vrot.lane.b32.xlu0 %v2407, 6
  %v2551 = vpop.permute.xlu0 %2550
  %2552 = vrot.lane.b32.xlu0 %v2408, 6
  %v2553 = vpop.permute.xlu0 %2552
  %2554 = vrot.lane.b32.xlu0 %v2409, 6
  %v2555 = vpop.permute.xlu0 %2554
  %2556 = vrot.lane.b32.xlu0 %v2410, 6
  %v2557 = vpop.permute.xlu0 %2556
  %2558 = vrot.lane.b32.xlu0 %v2411, 6
  %v2559 = vpop.permute.xlu0 %2558
  %2560 = vrot.lane.b32.xlu0 %v2412, 6
  %v2561 = vpop.permute.xlu0 %2560
  %2562 = vrot.lane.b32.xlu0 %v2413, 6
  %v2563 = vpop.permute.xlu0 %2562
  %2564 = vrot.lane.b32.xlu0 %v2414, 6
  %v2565 = vpop.permute.xlu0 %2564
  %2566 = vrot.lane.b32.xlu0 %v2415, 6
  %v2567 = vpop.permute.xlu0 %2566
  %2568 = vrot.lane.b32.xlu0 %v2416, 6
  %v2569 = vpop.permute.xlu0 %2568
  %2570 = vrot.lane.b32.xlu0 %v2417, 6
  %v2571 = vpop.permute.xlu0 %2570
  %2572 = vrot.lane.b32.xlu0 %v2418, 6
  %v2573 = vpop.permute.xlu0 %2572
  %2574 = vrot.lane.b32.xlu0 %v2419, 6
  %v2575 = vpop.permute.xlu0 %2574
  %2576 = vrot.lane.b32.xlu0 %v2420, 6
  %v2577 = vpop.permute.xlu0 %2576
  %2578 = vrot.lane.b32.xlu0 %v2421, 6
  %v2579 = vpop.permute.xlu0 %2578
  %2580 = vrot.lane.b32.xlu0 %v2422, 6
  %v2581 = vpop.permute.xlu0 %2580
  %2582 = vrot.lane.b32.xlu0 %v2423, 6
  %v2583 = vpop.permute.xlu0 %2582
  %2584 = vrot.lane.b32.xlu0 %v2424, 6
  %v2585 = vpop.permute.xlu0 %2584
  %2586 = vrot.lane.b32.xlu0 %v2425, 6
  %v2587 = vpop.permute.xlu0 %2586
  %2588 = vrot.lane.b32.xlu0 %v2426, 6
  %v2589 = vpop.permute.xlu0 %2588
  %2590 = vrot.lane.b32.xlu0 %v2427, 6
  %v2591 = vpop.permute.xlu0 %2590
  %2592 = vrot.lane.b32.xlu0 %v2428, 6
  %v2593 = vpop.permute.xlu0 %2592
  %2594 = vrot.lane.b32.xlu0 %v2429, 6
  %v2595 = vpop.permute.xlu0 %2594
  %2596 = vrot.lane.b32.xlu0 %v2430, 6
  %v2597 = vpop.permute.xlu0 %2596
  %2598 = vrot.lane.b32.xlu0 %v2431, 6
  %v2599 = vpop.permute.xlu0 %2598
  %2600 = vrot.lane.b32.xlu0 %v2432, 6
  %v2601 = vpop.permute.xlu0 %2600
  %2602 = vrot.lane.b32.xlu0 %v2433, 6
  %v2603 = vpop.permute.xlu0 %2602
  %2604 = vrot.lane.b32.xlu0 %v2434, 6
  %v2605 = vpop.permute.xlu0 %2604
  %2606 = vrot.lane.b32.xlu0 %v2435, 6
  %v2607 = vpop.permute.xlu0 %2606
  %2608 = vrot.lane.b32.xlu0 %v2436, 6
  %v2609 = vpop.permute.xlu0 %2608
  %2610 = vrot.lane.b32.xlu0 %v2437, 6
  %v2611 = vpop.permute.xlu0 %2610
  %2612 = vrot.lane.b32.xlu0 %v2438, 6
  %v2613 = vpop.permute.xlu0 %2612
  %2614 = vrot.lane.b32.xlu0 %v2439, 6
  %v2615 = vpop.permute.xlu0 %2614
  %2616 = vrot.lane.b32.xlu0 %v2440, 6
  %v2617 = vpop.permute.xlu0 %2616
  %2618 = vrot.lane.b32.xlu0 %v2441, 6
  %v2619 = vpop.permute.xlu0 %2618
  %2620 = vrot.lane.b32.xlu0 %v2442, 6
  %v2621 = vpop.permute.xlu0 %2620
  %2622 = vrot.lane.b32.xlu0 %v2443, 6
  %v2623 = vpop.permute.xlu0 %2622
  %2624 = vrot.lane.b32.xlu0 %v2444, 6
  %v2625 = vpop.permute.xlu0 %2624
  %2626 = vrot.lane.b32.xlu0 %v2445, 6
  %v2627 = vpop.permute.xlu0 %2626
  %2628 = vrot.lane.b32.xlu0 %v2446, 6
  %v2629 = vpop.permute.xlu0 %2628
  %2630 = vrot.lane.b32.xlu0 %v2447, 6
  %v2631 = vpop.permute.xlu0 %2630
  %2632 = vrot.lane.b32.xlu0 %v2448, 6
  %v2633 = vpop.permute.xlu0 %2632
  %2634 = vrot.lane.b32.xlu0 %v2449, 6
  %v2635 = vpop.permute.xlu0 %2634
  %2636 = vrot.lane.b32.xlu0 %v2450, 6
  %v2637 = vpop.permute.xlu0 %2636
  %2638 = vrot.lane.b32.xlu0 %v2451, 6
  %v2639 = vpop.permute.xlu0 %2638
  %2640 = vrot.lane.b32.xlu0 %v2452, 6
  %v2641 = vpop.permute.xlu0 %2640
  %2642 = vrot.lane.b32.xlu0 %v2453, 6
  %v2643 = vpop.permute.xlu0 %2642
  %2644 = vrot.lane.b32.xlu0 %v2454, 6
  %v2645 = vpop.permute.xlu0 %2644
  %2646 = vrot.lane.b32.xlu0 %v2455, 6
  %v2647 = vpop.permute.xlu0 %2646
  %vm2712 = vcmask 56368
  %2713 = vst.msk [vmem:[#allocation3] sm:$0xff] %vm2712, %v2521
  %2714 = vst.msk [vmem:[#allocation3 + $0x8] sm:$0xff] %vm2712, %v2523
  %2715 = vst.msk [vmem:[#allocation3 + $0x10] sm:$0xff] %vm2712, %v2525
  %2716 = vst.msk [vmem:[#allocation3 + $0x18] sm:$0xff] %vm2712, %v2527
  %2717 = vst.msk [vmem:[#allocation3 + $0x20] sm:$0xff] %vm2712, %v2529
  %2718 = vst.msk [vmem:[#allocation3 + $0x28] sm:$0xff] %vm2712, %v2531
  %2719 = vst.msk [vmem:[#allocation3 + $0x30] sm:$0xff] %vm2712, %v2533
  %2720 = vst.msk [vmem:[#allocation3 + $0x38] sm:$0xff] %vm2712, %v2535
  %2721 = vst.msk [vmem:[#allocation3 + $0x40] sm:$0xff] %vm2712, %v2537
  %2722 = vst.msk [vmem:[#allocation3 + $0x48] sm:$0xff] %vm2712, %v2539
  %2723 = vst.msk [vmem:[#allocation3 + $0x50] sm:$0xff] %vm2712, %v2541
  %2724 = vst.msk [vmem:[#allocation3 + $0x58] sm:$0xff] %vm2712, %v2543
  %2725 = vst.msk [vmem:[#allocation3 + $0x60] sm:$0xff] %vm2712, %v2545
  %2726 = vst.msk [vmem:[#allocation3 + $0x68] sm:$0xff] %vm2712, %v2547
  %2727 = vst.msk [vmem:[#allocation3 + $0x70] sm:$0xff] %vm2712, %v2549
  %2728 = vst.msk [vmem:[#allocation3 + $0x78] sm:$0xff] %vm2712, %v2551
  %2729 = vst.msk [vmem:[#allocation3 + $0x80] sm:$0xff] %vm2712, %v2553
  %2730 = vst.msk [vmem:[#allocation3 + $0x88] sm:$0xff] %vm2712, %v2555
  %2731 = vst.msk [vmem:[#allocation3 + $0x90] sm:$0xff] %vm2712, %v2557
  %2732 = vst.msk [vmem:[#allocation3 + $0x98] sm:$0xff] %vm2712, %v2559
  %2733 = vst.msk [vmem:[#allocation3 + $0xa0] sm:$0xff] %vm2712, %v2561
  %2734 = vst.msk [vmem:[#allocation3 + $0xa8] sm:$0xff] %vm2712, %v2563
  %2735 = vst.msk [vmem:[#allocation3 + $0xb0] sm:$0xff] %vm2712, %v2565
  %2736 = vst.msk [vmem:[#allocation3 + $0xb8] sm:$0xff] %vm2712, %v2567
  %2737 = vst.msk [vmem:[#allocation3 + $0xc0] sm:$0xff] %vm2712, %v2569
  %2738 = vst.msk [vmem:[#allocation3 + $0xc8] sm:$0xff] %vm2712, %v2571
  %2739 = vst.msk [vmem:[#allocation3 + $0xd0] sm:$0xff] %vm2712, %v2573
  %2740 = vst.msk [vmem:[#allocation3 + $0xd8] sm:$0xff] %vm2712, %v2575
  %2741 = vst.msk [vmem:[#allocation3 + $0xe0] sm:$0xff] %vm2712, %v2577
  %2742 = vst.msk [vmem:[#allocation3 + $0xe8] sm:$0xff] %vm2712, %v2579
  %2743 = vst.msk [vmem:[#allocation3 + $0xf0] sm:$0xff] %vm2712, %v2581
  %2744 = vst.msk [vmem:[#allocation3 + $0xf8] sm:$0xff] %vm2712, %v2583
  %2745 = vst.msk [vmem:[#allocation3 + $0x100] sm:$0xff] %vm2712, %v2585
  %2746 = vst.msk [vmem:[#allocation3 + $0x108] sm:$0xff] %vm2712, %v2587
  %2747 = vst.msk [vmem:[#allocation3 + $0x110] sm:$0xff] %vm2712, %v2589
  %2748 = vst.msk [vmem:[#allocation3 + $0x118] sm:$0xff] %vm2712, %v2591
  %2749 = vst.msk [vmem:[#allocation3 + $0x120] sm:$0xff] %vm2712, %v2593
  %2750 = vst.msk [vmem:[#allocation3 + $0x128] sm:$0xff] %vm2712, %v2595
  %2751 = vst.msk [vmem:[#allocation3 + $0x130] sm:$0xff] %vm2712, %v2597
  %2752 = vst.msk [vmem:[#allocation3 + $0x138] sm:$0xff] %vm2712, %v2599
  %2753 = vst.msk [vmem:[#allocation3 + $0x140] sm:$0xff] %vm2712, %v2601
  %2754 = vst.msk [vmem:[#allocation3 + $0x148] sm:$0xff] %vm2712, %v2603
  %2755 = vst.msk [vmem:[#allocation3 + $0x150] sm:$0xff] %vm2712, %v2605
  %2756 = vst.msk [vmem:[#allocation3 + $0x158] sm:$0xff] %vm2712, %v2607
  %2757 = vst.msk [vmem:[#allocation3 + $0x160] sm:$0xff] %vm2712, %v2609
  %2758 = vst.msk [vmem:[#allocation3 + $0x168] sm:$0xff] %vm2712, %v2611
  %2759 = vst.msk [vmem:[#allocation3 + $0x170] sm:$0xff] %vm2712, %v2613
  %2760 = vst.msk [vmem:[#allocation3 + $0x178] sm:$0xff] %vm2712, %v2615
  %2761 = vst.msk [vmem:[#allocation3 + $0x180] sm:$0xff] %vm2712, %v2617
  %2762 = vst.msk [vmem:[#allocation3 + $0x188] sm:$0xff] %vm2712, %v2619
  %2763 = vst.msk [vmem:[#allocation3 + $0x190] sm:$0xff] %vm2712, %v2621
  %2764 = vst.msk [vmem:[#allocation3 + $0x198] sm:$0xff] %vm2712, %v2623
  %2765 = vst.msk [vmem:[#allocation3 + $0x1a0] sm:$0xff] %vm2712, %v2625
  %2766 = vst.msk [vmem:[#allocation3 + $0x1a8] sm:$0xff] %vm2712, %v2627
  %2767 = vst.msk [vmem:[#allocation3 + $0x1b0] sm:$0xff] %vm2712, %v2629
  %2768 = vst.msk [vmem:[#allocation3 + $0x1b8] sm:$0xff] %vm2712, %v2631
  %2769 = vst.msk [vmem:[#allocation3 + $0x1c0] sm:$0xff] %vm2712, %v2633
  %2770 = vst.msk [vmem:[#allocation3 + $0x1c8] sm:$0xff] %vm2712, %v2635
  %2771 = vst.msk [vmem:[#allocation3 + $0x1d0] sm:$0xff] %vm2712, %v2637
  %2772 = vst.msk [vmem:[#allocation3 + $0x1d8] sm:$0xff] %vm2712, %v2639
  %2773 = vst.msk [vmem:[#allocation3 + $0x1e0] sm:$0xff] %vm2712, %v2641
  %2774 = vst.msk [vmem:[#allocation3 + $0x1e8] sm:$0xff] %vm2712, %v2643
  %2775 = vst.msk [vmem:[#allocation3 + $0x1f0] sm:$0xff] %vm2712, %v2645
  %2776 = vst.msk [vmem:[#allocation3 + $0x1f8] sm:$0xff] %vm2712, %v2647
  %v2777 = vld [vmem:[%s2391 + $0x1] sm:$0xff]
  %v2778 = vld [vmem:[%s2391 + $0x9] sm:$0xff]
  %v2779 = vld [vmem:[%s2391 + $0x19] sm:$0xff]
  %v2780 = vld [vmem:[%s2391 + $0x21] sm:$0xff]
  %v2781 = vld [vmem:[%s2391 + $0x31] sm:$0xff]
  %v2782 = vld [vmem:[%s2391 + $0x39] sm:$0xff]
  %v2783 = vld [vmem:[%s2391 + $0x49] sm:$0xff]
  %v2784 = vld [vmem:[%s2391 + $0x51] sm:$0xff]
  %v2785 = vld [vmem:[%s2391 + $0x61] sm:$0xff]
  %v2786 = vld [vmem:[%s2391 + $0x69] sm:$0xff]
  %v2787 = vld [vmem:[%s2391 + $0x79] sm:$0xff]
  %v2788 = vld [vmem:[%s2391 + $0x81] sm:$0xff]
  %v2789 = vld [vmem:[%s2391 + $0x91] sm:$0xff]
  %v2790 = vld [vmem:[%s2391 + $0x99] sm:$0xff]
  %v2791 = vld [vmem:[%s2391 + $0xa9] sm:$0xff]
  %v2792 = vld [vmem:[%s2391 + $0xb1] sm:$0xff]
  %v2793 = vld [vmem:[%s2391 + $0xc1] sm:$0xff]
  %v2794 = vld [vmem:[%s2391 + $0xc9] sm:$0xff]
  %v2795 = vld [vmem:[%s2391 + $0xd9] sm:$0xff]
  %v2796 = vld [vmem:[%s2391 + $0xe1] sm:$0xff]
  %v2797 = vld [vmem:[%s2391 + $0xf1] sm:$0xff]
  %v2798 = vld [vmem:[%s2391 + $0xf9] sm:$0xff]
  %v2799 = vld [vmem:[%s2391 + $0x109] sm:$0xff]
  %v2800 = vld [vmem:[%s2391 + $0x111] sm:$0xff]
  %v2801 = vld [vmem:[%s2391 + $0x121] sm:$0xff]
  %v2802 = vld [vmem:[%s2391 + $0x129] sm:$0xff]
  %v2803 = vld [vmem:[%s2391 + $0x139] sm:$0xff]
  %v2804 = vld [vmem:[%s2391 + $0x141] sm:$0xff]
  %v2805 = vld [vmem:[%s2391 + $0x151] sm:$0xff]
  %v2806 = vld [vmem:[%s2391 + $0x159] sm:$0xff]
  %v2807 = vld [vmem:[%s2391 + $0x169] sm:$0xff]
  %v2808 = vld [vmem:[%s2391 + $0x171] sm:$0xff]
  %v2809 = vld [vmem:[%s2391 + $0x1b1] sm:$0xff]
  %v2810 = vld [vmem:[%s2391 + $0x1b9] sm:$0xff]
  %v2811 = vld [vmem:[%s2391 + $0x1c9] sm:$0xff]
  %v2812 = vld [vmem:[%s2391 + $0x1d1] sm:$0xff]
  %v2813 = vld [vmem:[%s2391 + $0x1e1] sm:$0xff]
  %v2814 = vld [vmem:[%s2391 + $0x1e9] sm:$0xff]
  %v2815 = vld [vmem:[%s2391 + $0x1f9] sm:$0xff]
  %v2816 = vld [vmem:[%s2391 + $0x201] sm:$0xff]
  %v2817 = vld [vmem:[%s2391 + $0x211] sm:$0xff]
  %v2818 = vld [vmem:[%s2391 + $0x219] sm:$0xff]
  %v2819 = vld [vmem:[%s2391 + $0x229] sm:$0xff]
  %v2820 = vld [vmem:[%s2391 + $0x231] sm:$0xff]
  %v2821 = vld [vmem:[%s2391 + $0x241] sm:$0xff]
  %v2822 = vld [vmem:[%s2391 + $0x249] sm:$0xff]
  %v2823 = vld [vmem:[%s2391 + $0x259] sm:$0xff]
  %v2824 = vld [vmem:[%s2391 + $0x261] sm:$0xff]
  %v2825 = vld [vmem:[%s2391 + $0x271] sm:$0xff]
  %v2826 = vld [vmem:[%s2391 + $0x279] sm:$0xff]
  %v2827 = vld [vmem:[%s2391 + $0x289] sm:$0xff]
  %v2828 = vld [vmem:[%s2391 + $0x291] sm:$0xff]
  %v2829 = vld [vmem:[%s2391 + $0x2a1] sm:$0xff]
  %v2830 = vld [vmem:[%s2391 + $0x2a9] sm:$0xff]
  %v2831 = vld [vmem:[%s2391 + $0x2b9] sm:$0xff]
  %v2832 = vld [vmem:[%s2391 + $0x2c1] sm:$0xff]
  %v2833 = vld [vmem:[%s2391 + $0x2d1] sm:$0xff]
  %v2834 = vld [vmem:[%s2391 + $0x2d9] sm:$0xff]
  %v2835 = vld [vmem:[%s2391 + $0x2e9] sm:$0xff]
  %v2836 = vld [vmem:[%s2391 + $0x2f1] sm:$0xff]
  %v2837 = vld [vmem:[%s2391 + $0x301] sm:$0xff]
  %v2838 = vld [vmem:[%s2391 + $0x309] sm:$0xff]
  %v2839 = vld [vmem:[%s2391 + $0x319] sm:$0xff]
  %v2840 = vld [vmem:[%s2391 + $0x321] sm:$0xff]
  %2905 = vrot.lane.b32.xlu0 %v2777, 7
  %v2906 = vpop.permute.xlu0 %2905
  %2907 = vrot.lane.b32.xlu0 %v2778, 7
  %v2908 = vpop.permute.xlu0 %2907
  %2909 = vrot.lane.b32.xlu0 %v2779, 7
  %v2910 = vpop.permute.xlu0 %2909
  %2911 = vrot.lane.b32.xlu0 %v2780, 7
  %v2912 = vpop.permute.xlu0 %2911
  %2913 = vrot.lane.b32.xlu0 %v2781, 7
  %v2914 = vpop.permute.xlu0 %2913
  %2915 = vrot.lane.b32.xlu0 %v2782, 7
  %v2916 = vpop.permute.xlu0 %2915
  %2917 = vrot.lane.b32.xlu0 %v2783, 7
  %v2918 = vpop.permute.xlu0 %2917
  %2919 = vrot.lane.b32.xlu0 %v2784, 7
  %v2920 = vpop.permute.xlu0 %2919
  %2921 = vrot.lane.b32.xlu0 %v2785, 7
  %v2922 = vpop.permute.xlu0 %2921
  %2923 = vrot.lane.b32.xlu0 %v2786, 7
  %v2924 = vpop.permute.xlu0 %2923
  %2925 = vrot.lane.b32.xlu0 %v2787, 7
  %v2926 = vpop.permute.xlu0 %2925
  %2927 = vrot.lane.b32.xlu0 %v2788, 7
  %v2928 = vpop.permute.xlu0 %2927
  %2929 = vrot.lane.b32.xlu0 %v2789, 7
  %v2930 = vpop.permute.xlu0 %2929
  %2931 = vrot.lane.b32.xlu0 %v2790, 7
  %v2932 = vpop.permute.xlu0 %2931
  %2933 = vrot.lane.b32.xlu0 %v2791, 7
  %v2934 = vpop.permute.xlu0 %2933
  %2935 = vrot.lane.b32.xlu0 %v2792, 7
  %v2936 = vpop.permute.xlu0 %2935
  %2937 = vrot.lane.b32.xlu0 %v2793, 7
  %v2938 = vpop.permute.xlu0 %2937
  %2939 = vrot.lane.b32.xlu0 %v2794, 7
  %v2940 = vpop.permute.xlu0 %2939
  %2941 = vrot.lane.b32.xlu0 %v2795, 7
  %v2942 = vpop.permute.xlu0 %2941
  %2943 = vrot.lane.b32.xlu0 %v2796, 7
  %v2944 = vpop.permute.xlu0 %2943
  %2945 = vrot.lane.b32.xlu0 %v2797, 7
  %v2946 = vpop.permute.xlu0 %2945
  %2947 = vrot.lane.b32.xlu0 %v2798, 7
  %v2948 = vpop.permute.xlu0 %2947
  %2949 = vrot.lane.b32.xlu0 %v2799, 7
  %v2950 = vpop.permute.xlu0 %2949
  %2951 = vrot.lane.b32.xlu0 %v2800, 7
  %v2952 = vpop.permute.xlu0 %2951
  %2953 = vrot.lane.b32.xlu0 %v2801, 7
  %v2954 = vpop.permute.xlu0 %2953
  %2955 = vrot.lane.b32.xlu0 %v2802, 7
  %v2956 = vpop.permute.xlu0 %2955
  %2957 = vrot.lane.b32.xlu0 %v2803, 7
  %v2958 = vpop.permute.xlu0 %2957
  %2959 = vrot.lane.b32.xlu0 %v2804, 7
  %v2960 = vpop.permute.xlu0 %2959
  %2961 = vrot.lane.b32.xlu0 %v2805, 7
  %v2962 = vpop.permute.xlu0 %2961
  %2963 = vrot.lane.b32.xlu0 %v2806, 7
  %v2964 = vpop.permute.xlu0 %2963
  %2965 = vrot.lane.b32.xlu0 %v2807, 7
  %v2966 = vpop.permute.xlu0 %2965
  %2967 = vrot.lane.b32.xlu0 %v2808, 7
  %v2968 = vpop.permute.xlu0 %2967
  %2969 = vrot.lane.b32.xlu0 %v2809, 7
  %v2970 = vpop.permute.xlu0 %2969
  %2971 = vrot.lane.b32.xlu0 %v2810, 7
  %v2972 = vpop.permute.xlu0 %2971
  %2973 = vrot.lane.b32.xlu0 %v2811, 7
  %v2974 = vpop.permute.xlu0 %2973
  %2975 = vrot.lane.b32.xlu0 %v2812, 7
  %v2976 = vpop.permute.xlu0 %2975
  %2977 = vrot.lane.b32.xlu0 %v2813, 7
  %v2978 = vpop.permute.xlu0 %2977
  %2979 = vrot.lane.b32.xlu0 %v2814, 7
  %v2980 = vpop.permute.xlu0 %2979
  %2981 = vrot.lane.b32.xlu0 %v2815, 7
  %v2982 = vpop.permute.xlu0 %2981
  %2983 = vrot.lane.b32.xlu0 %v2816, 7
  %v2984 = vpop.permute.xlu0 %2983
  %2985 = vrot.lane.b32.xlu0 %v2817, 7
  %v2986 = vpop.permute.xlu0 %2985
  %2987 = vrot.lane.b32.xlu0 %v2818, 7
  %v2988 = vpop.permute.xlu0 %2987
  %2989 = vrot.lane.b32.xlu0 %v2819, 7
  %v2990 = vpop.permute.xlu0 %2989
  %2991 = vrot.lane.b32.xlu0 %v2820, 7
  %v2992 = vpop.permute.xlu0 %2991
  %2993 = vrot.lane.b32.xlu0 %v2821, 7
  %v2994 = vpop.permute.xlu0 %2993
  %2995 = vrot.lane.b32.xlu0 %v2822, 7
  %v2996 = vpop.permute.xlu0 %2995
  %2997 = vrot.lane.b32.xlu0 %v2823, 7
  %v2998 = vpop.permute.xlu0 %2997
  %2999 = vrot.lane.b32.xlu0 %v2824, 7
  %v3000 = vpop.permute.xlu0 %2999
  %3001 = vrot.lane.b32.xlu0 %v2825, 7
  %v3002 = vpop.permute.xlu0 %3001
  %3003 = vrot.lane.b32.xlu0 %v2826, 7
  %v3004 = vpop.permute.xlu0 %3003
  %3005 = vrot.lane.b32.xlu0 %v2827, 7
  %v3006 = vpop.permute.xlu0 %3005
  %3007 = vrot.lane.b32.xlu0 %v2828, 7
  %v3008 = vpop.permute.xlu0 %3007
  %3009 = vrot.lane.b32.xlu0 %v2829, 7
  %v3010 = vpop.permute.xlu0 %3009
  %3011 = vrot.lane.b32.xlu0 %v2830, 7
  %v3012 = vpop.permute.xlu0 %3011
  %3013 = vrot.lane.b32.xlu0 %v2831, 7
  %v3014 = vpop.permute.xlu0 %3013
  %3015 = vrot.lane.b32.xlu0 %v2832, 7
  %v3016 = vpop.permute.xlu0 %3015
  %3017 = vrot.lane.b32.xlu0 %v2833, 7
  %v3018 = vpop.permute.xlu0 %3017
  %3019 = vrot.lane.b32.xlu0 %v2834, 7
  %v3020 = vpop.permute.xlu0 %3019
  %3021 = vrot.lane.b32.xlu0 %v2835, 7
  %v3022 = vpop.permute.xlu0 %3021
  %3023 = vrot.lane.b32.xlu0 %v2836, 7
  %v3024 = vpop.permute.xlu0 %3023
  %3025 = vrot.lane.b32.xlu0 %v2837, 7
  %v3026 = vpop.permute.xlu0 %3025
  %3027 = vrot.lane.b32.xlu0 %v2838, 7
  %v3028 = vpop.permute.xlu0 %3027
  %3029 = vrot.lane.b32.xlu0 %v2839, 7
  %v3030 = vpop.permute.xlu0 %3029
  %3031 = vrot.lane.b32.xlu0 %v2840, 7
  %v3032 = vpop.permute.xlu0 %3031
  %vm3097 = vcmask 64568
  %3098 = vst.msk [vmem:[#allocation3] sm:$0xff] %vm3097, %v2906
  %3099 = vst.msk [vmem:[#allocation3 + $0x8] sm:$0xff] %vm3097, %v2908
  %3100 = vst.msk [vmem:[#allocation3 + $0x10] sm:$0xff] %vm3097, %v2910
  %3101 = vst.msk [vmem:[#allocation3 + $0x18] sm:$0xff] %vm3097, %v2912
  %3102 = vst.msk [vmem:[#allocation3 + $0x20] sm:$0xff] %vm3097, %v2914
  %3103 = vst.msk [vmem:[#allocation3 + $0x28] sm:$0xff] %vm3097, %v2916
  %3104 = vst.msk [vmem:[#allocation3 + $0x30] sm:$0xff] %vm3097, %v2918
  %3105 = vst.msk [vmem:[#allocation3 + $0x38] sm:$0xff] %vm3097, %v2920
  %3106 = vst.msk [vmem:[#allocation3 + $0x40] sm:$0xff] %vm3097, %v2922
  %3107 = vst.msk [vmem:[#allocation3 + $0x48] sm:$0xff] %vm3097, %v2924
  %3108 = vst.msk [vmem:[#allocation3 + $0x50] sm:$0xff] %vm3097, %v2926
  %3109 = vst.msk [vmem:[#allocation3 + $0x58] sm:$0xff] %vm3097, %v2928
  %3110 = vst.msk [vmem:[#allocation3 + $0x60] sm:$0xff] %vm3097, %v2930
  %3111 = vst.msk [vmem:[#allocation3 + $0x68] sm:$0xff] %vm3097, %v2932
  %3112 = vst.msk [vmem:[#allocation3 + $0x70] sm:$0xff] %vm3097, %v2934
  %3113 = vst.msk [vmem:[#allocation3 + $0x78] sm:$0xff] %vm3097, %v2936
  %3114 = vst.msk [vmem:[#allocation3 + $0x80] sm:$0xff] %vm3097, %v2938
  %3115 = vst.msk [vmem:[#allocation3 + $0x88] sm:$0xff] %vm3097, %v2940
  %3116 = vst.msk [vmem:[#allocation3 + $0x90] sm:$0xff] %vm3097, %v2942
  %3117 = vst.msk [vmem:[#allocation3 + $0x98] sm:$0xff] %vm3097, %v2944
  %3118 = vst.msk [vmem:[#allocation3 + $0xa0] sm:$0xff] %vm3097, %v2946
  %3119 = vst.msk [vmem:[#allocation3 + $0xa8] sm:$0xff] %vm3097, %v2948
  %3120 = vst.msk [vmem:[#allocation3 + $0xb0] sm:$0xff] %vm3097, %v2950
  %3121 = vst.msk [vmem:[#allocation3 + $0xb8] sm:$0xff] %vm3097, %v2952
  %3122 = vst.msk [vmem:[#allocation3 + $0xc0] sm:$0xff] %vm3097, %v2954
  %3123 = vst.msk [vmem:[#allocation3 + $0xc8] sm:$0xff] %vm3097, %v2956
  %3124 = vst.msk [vmem:[#allocation3 + $0xd0] sm:$0xff] %vm3097, %v2958
  %3125 = vst.msk [vmem:[#allocation3 + $0xd8] sm:$0xff] %vm3097, %v2960
  %3126 = vst.msk [vmem:[#allocation3 + $0xe0] sm:$0xff] %vm3097, %v2962
  %3127 = vst.msk [vmem:[#allocation3 + $0xe8] sm:$0xff] %vm3097, %v2964
  %3128 = vst.msk [vmem:[#allocation3 + $0xf0] sm:$0xff] %vm3097, %v2966
  %3129 = vst.msk [vmem:[#allocation3 + $0xf8] sm:$0xff] %vm3097, %v2968
  %3130 = vst.msk [vmem:[#allocation3 + $0x100] sm:$0xff] %vm3097, %v2970
  %3131 = vst.msk [vmem:[#allocation3 + $0x108] sm:$0xff] %vm3097, %v2972
  %3132 = vst.msk [vmem:[#allocation3 + $0x110] sm:$0xff] %vm3097, %v2974
  %3133 = vst.msk [vmem:[#allocation3 + $0x118] sm:$0xff] %vm3097, %v2976
  %3134 = vst.msk [vmem:[#allocation3 + $0x120] sm:$0xff] %vm3097, %v2978
  %3135 = vst.msk [vmem:[#allocation3 + $0x128] sm:$0xff] %vm3097, %v2980
  %3136 = vst.msk [vmem:[#allocation3 + $0x130] sm:$0xff] %vm3097, %v2982
  %3137 = vst.msk [vmem:[#allocation3 + $0x138] sm:$0xff] %vm3097, %v2984
  %3138 = vst.msk [vmem:[#allocation3 + $0x140] sm:$0xff] %vm3097, %v2986
  %3139 = vst.msk [vmem:[#allocation3 + $0x148] sm:$0xff] %vm3097, %v2988
  %3140 = vst.msk [vmem:[#allocation3 + $0x150] sm:$0xff] %vm3097, %v2990
  %3141 = vst.msk [vmem:[#allocation3 + $0x158] sm:$0xff] %vm3097, %v2992
  %3142 = vst.msk [vmem:[#allocation3 + $0x160] sm:$0xff] %vm3097, %v2994
  %3143 = vst.msk [vmem:[#allocation3 + $0x168] sm:$0xff] %vm3097, %v2996
  %3144 = vst.msk [vmem:[#allocation3 + $0x170] sm:$0xff] %vm3097, %v2998
  %3145 = vst.msk [vmem:[#allocation3 + $0x178] sm:$0xff] %vm3097, %v3000
  %3146 = vst.msk [vmem:[#allocation3 + $0x180] sm:$0xff] %vm3097, %v3002
  %3147 = vst.msk [vmem:[#allocation3 + $0x188] sm:$0xff] %vm3097, %v3004
  %3148 = vst.msk [vmem:[#allocation3 + $0x190] sm:$0xff] %vm3097, %v3006
  %3149 = vst.msk [vmem:[#allocation3 + $0x198] sm:$0xff] %vm3097, %v3008
  %3150 = vst.msk [vmem:[#allocation3 + $0x1a0] sm:$0xff] %vm3097, %v3010
  %3151 = vst.msk [vmem:[#allocation3 + $0x1a8] sm:$0xff] %vm3097, %v3012
  %3152 = vst.msk [vmem:[#allocation3 + $0x1b0] sm:$0xff] %vm3097, %v3014
  %3153 = vst.msk [vmem:[#allocation3 + $0x1b8] sm:$0xff] %vm3097, %v3016
  %3154 = vst.msk [vmem:[#allocation3 + $0x1c0] sm:$0xff] %vm3097, %v3018
  %3155 = vst.msk [vmem:[#allocation3 + $0x1c8] sm:$0xff] %vm3097, %v3020
  %3156 = vst.msk [vmem:[#allocation3 + $0x1d0] sm:$0xff] %vm3097, %v3022
  %3157 = vst.msk [vmem:[#allocation3 + $0x1d8] sm:$0xff] %vm3097, %v3024
  %3158 = vst.msk [vmem:[#allocation3 + $0x1e0] sm:$0xff] %vm3097, %v3026
  %3159 = vst.msk [vmem:[#allocation3 + $0x1e8] sm:$0xff] %vm3097, %v3028
  %3160 = vst.msk [vmem:[#allocation3 + $0x1f0] sm:$0xff] %vm3097, %v3030
  %3161 = vst.msk [vmem:[#allocation3 + $0x1f8] sm:$0xff] %vm3097, %v3032
  %v3162 = vld [vmem:[%s2391 + $0x2] sm:$0xff]
  %v3163 = vld [vmem:[%s2391 + $0xa] sm:$0xff]
  %v3164 = vld [vmem:[%s2391 + $0x1a] sm:$0xff]
  %v3165 = vld [vmem:[%s2391 + $0x22] sm:$0xff]
  %v3166 = vld [vmem:[%s2391 + $0x32] sm:$0xff]
  %v3167 = vld [vmem:[%s2391 + $0x3a] sm:$0xff]
  %v3168 = vld [vmem:[%s2391 + $0x4a] sm:$0xff]
  %v3169 = vld [vmem:[%s2391 + $0x52] sm:$0xff]
  %v3170 = vld [vmem:[%s2391 + $0x62] sm:$0xff]
  %v3171 = vld [vmem:[%s2391 + $0x6a] sm:$0xff]
  %v3172 = vld [vmem:[%s2391 + $0x7a] sm:$0xff]
  %v3173 = vld [vmem:[%s2391 + $0x82] sm:$0xff]
  %v3174 = vld [vmem:[%s2391 + $0x92] sm:$0xff]
  %v3175 = vld [vmem:[%s2391 + $0x9a] sm:$0xff]
  %v3176 = vld [vmem:[%s2391 + $0xaa] sm:$0xff]
  %v3177 = vld [vmem:[%s2391 + $0xb2] sm:$0xff]
  %v3178 = vld [vmem:[%s2391 + $0xc2] sm:$0xff]
  %v3179 = vld [vmem:[%s2391 + $0xca] sm:$0xff]
  %v3180 = vld [vmem:[%s2391 + $0xda] sm:$0xff]
  %v3181 = vld [vmem:[%s2391 + $0xe2] sm:$0xff]
  %v3182 = vld [vmem:[%s2391 + $0xf2] sm:$0xff]
  %v3183 = vld [vmem:[%s2391 + $0xfa] sm:$0xff]
  %v3184 = vld [vmem:[%s2391 + $0x10a] sm:$0xff]
  %v3185 = vld [vmem:[%s2391 + $0x112] sm:$0xff]
  %v3186 = vld [vmem:[%s2391 + $0x122] sm:$0xff]
  %v3187 = vld [vmem:[%s2391 + $0x12a] sm:$0xff]
  %v3188 = vld [vmem:[%s2391 + $0x13a] sm:$0xff]
  %v3189 = vld [vmem:[%s2391 + $0x142] sm:$0xff]
  %v3190 = vld [vmem:[%s2391 + $0x152] sm:$0xff]
  %v3191 = vld [vmem:[%s2391 + $0x15a] sm:$0xff]
  %v3192 = vld [vmem:[%s2391 + $0x16a] sm:$0xff]
  %v3193 = vld [vmem:[%s2391 + $0x172] sm:$0xff]
  %v3194 = vld [vmem:[%s2391 + $0x1b2] sm:$0xff]
  %v3195 = vld [vmem:[%s2391 + $0x1ba] sm:$0xff]
  %v3196 = vld [vmem:[%s2391 + $0x1ca] sm:$0xff]
  %v3197 = vld [vmem:[%s2391 + $0x1d2] sm:$0xff]
  %v3198 = vld [vmem:[%s2391 + $0x1e2] sm:$0xff]
  %v3199 = vld [vmem:[%s2391 + $0x1ea] sm:$0xff]
  %v3200 = vld [vmem:[%s2391 + $0x1fa] sm:$0xff]
  %v3201 = vld [vmem:[%s2391 + $0x202] sm:$0xff]
  %v3202 = vld [vmem:[%s2391 + $0x212] sm:$0xff]
  %v3203 = vld [vmem:[%s2391 + $0x21a] sm:$0xff]
  %v3204 = vld [vmem:[%s2391 + $0x22a] sm:$0xff]
  %v3205 = vld [vmem:[%s2391 + $0x232] sm:$0xff]
  %v3206 = vld [vmem:[%s2391 + $0x242] sm:$0xff]
  %v3207 = vld [vmem:[%s2391 + $0x24a] sm:$0xff]
  %v3208 = vld [vmem:[%s2391 + $0x25a] sm:$0xff]
  %v3209 = vld [vmem:[%s2391 + $0x262] sm:$0xff]
  %v3210 = vld [vmem:[%s2391 + $0x272] sm:$0xff]
  %v3211 = vld [vmem:[%s2391 + $0x27a] sm:$0xff]
  %v3212 = vld [vmem:[%s2391 + $0x28a] sm:$0xff]
  %v3213 = vld [vmem:[%s2391 + $0x292] sm:$0xff]
  %v3214 = vld [vmem:[%s2391 + $0x2a2] sm:$0xff]
  %v3215 = vld [vmem:[%s2391 + $0x2aa] sm:$0xff]
  %v3216 = vld [vmem:[%s2391 + $0x2ba] sm:$0xff]
  %v3217 = vld [vmem:[%s2391 + $0x2c2] sm:$0xff]
  %v3218 = vld [vmem:[%s2391 + $0x2d2] sm:$0xff]
  %v3219 = vld [vmem:[%s2391 + $0x2da] sm:$0xff]
  %v3220 = vld [vmem:[%s2391 + $0x2ea] sm:$0xff]
  %v3221 = vld [vmem:[%s2391 + $0x2f2] sm:$0xff]
  %v3222 = vld [vmem:[%s2391 + $0x302] sm:$0xff]
  %v3223 = vld [vmem:[%s2391 + $0x30a] sm:$0xff]
  %v3224 = vld [vmem:[%s2391 + $0x31a] sm:$0xff]
  %v3225 = vld [vmem:[%s2391 + $0x322] sm:$0xff]
  %3290 = vrot.lane.b32.xlu0 %v3162, 8
  %v3291 = vpop.permute.xlu0 %3290
  %3292 = vrot.lane.b32.xlu0 %v3163, 8
  %v3293 = vpop.permute.xlu0 %3292
  %3294 = vrot.lane.b32.xlu0 %v3164, 8
  %v3295 = vpop.permute.xlu0 %3294
  %3296 = vrot.lane.b32.xlu0 %v3165, 8
  %v3297 = vpop.permute.xlu0 %3296
  %3298 = vrot.lane.b32.xlu0 %v3166, 8
  %v3299 = vpop.permute.xlu0 %3298
  %3300 = vrot.lane.b32.xlu0 %v3167, 8
  %v3301 = vpop.permute.xlu0 %3300
  %3302 = vrot.lane.b32.xlu0 %v3168, 8
  %v3303 = vpop.permute.xlu0 %3302
  %3304 = vrot.lane.b32.xlu0 %v3169, 8
  %v3305 = vpop.permute.xlu0 %3304
  %3306 = vrot.lane.b32.xlu0 %v3170, 8
  %v3307 = vpop.permute.xlu0 %3306
  %3308 = vrot.lane.b32.xlu0 %v3171, 8
  %v3309 = vpop.permute.xlu0 %3308
  %3310 = vrot.lane.b32.xlu0 %v3172, 8
  %v3311 = vpop.permute.xlu0 %3310
  %3312 = vrot.lane.b32.xlu0 %v3173, 8
  %v3313 = vpop.permute.xlu0 %3312
  %3314 = vrot.lane.b32.xlu0 %v3174, 8
  %v3315 = vpop.permute.xlu0 %3314
  %3316 = vrot.lane.b32.xlu0 %v3175, 8
  %v3317 = vpop.permute.xlu0 %3316
  %3318 = vrot.lane.b32.xlu0 %v3176, 8
  %v3319 = vpop.permute.xlu0 %3318
  %3320 = vrot.lane.b32.xlu0 %v3177, 8
  %v3321 = vpop.permute.xlu0 %3320
  %3322 = vrot.lane.b32.xlu0 %v3178, 8
  %v3323 = vpop.permute.xlu0 %3322
  %3324 = vrot.lane.b32.xlu0 %v3179, 8
  %v3325 = vpop.permute.xlu0 %3324
  %3326 = vrot.lane.b32.xlu0 %v3180, 8
  %v3327 = vpop.permute.xlu0 %3326
  %3328 = vrot.lane.b32.xlu0 %v3181, 8
  %v3329 = vpop.permute.xlu0 %3328
  %3330 = vrot.lane.b32.xlu0 %v3182, 8
  %v3331 = vpop.permute.xlu0 %3330
  %3332 = vrot.lane.b32.xlu0 %v3183, 8
  %v3333 = vpop.permute.xlu0 %3332
  %3334 = vrot.lane.b32.xlu0 %v3184, 8
  %v3335 = vpop.permute.xlu0 %3334
  %3336 = vrot.lane.b32.xlu0 %v3185, 8
  %v3337 = vpop.permute.xlu0 %3336
  %3338 = vrot.lane.b32.xlu0 %v3186, 8
  %v3339 = vpop.permute.xlu0 %3338
  %3340 = vrot.lane.b32.xlu0 %v3187, 8
  %v3341 = vpop.permute.xlu0 %3340
  %3342 = vrot.lane.b32.xlu0 %v3188, 8
  %v3343 = vpop.permute.xlu0 %3342
  %3344 = vrot.lane.b32.xlu0 %v3189, 8
  %v3345 = vpop.permute.xlu0 %3344
  %3346 = vrot.lane.b32.xlu0 %v3190, 8
  %v3347 = vpop.permute.xlu0 %3346
  %3348 = vrot.lane.b32.xlu0 %v3191, 8
  %v3349 = vpop.permute.xlu0 %3348
  %3350 = vrot.lane.b32.xlu0 %v3192, 8
  %v3351 = vpop.permute.xlu0 %3350
  %3352 = vrot.lane.b32.xlu0 %v3193, 8
  %v3353 = vpop.permute.xlu0 %3352
  %3354 = vrot.lane.b32.xlu0 %v3194, 8
  %v3355 = vpop.permute.xlu0 %3354
  %3356 = vrot.lane.b32.xlu0 %v3195, 8
  %v3357 = vpop.permute.xlu0 %3356
  %3358 = vrot.lane.b32.xlu0 %v3196, 8
  %v3359 = vpop.permute.xlu0 %3358
  %3360 = vrot.lane.b32.xlu0 %v3197, 8
  %v3361 = vpop.permute.xlu0 %3360
  %3362 = vrot.lane.b32.xlu0 %v3198, 8
  %v3363 = vpop.permute.xlu0 %3362
  %3364 = vrot.lane.b32.xlu0 %v3199, 8
  %v3365 = vpop.permute.xlu0 %3364
  %3366 = vrot.lane.b32.xlu0 %v3200, 8
  %v3367 = vpop.permute.xlu0 %3366
  %3368 = vrot.lane.b32.xlu0 %v3201, 8
  %v3369 = vpop.permute.xlu0 %3368
  %3370 = vrot.lane.b32.xlu0 %v3202, 8
  %v3371 = vpop.permute.xlu0 %3370
  %3372 = vrot.lane.b32.xlu0 %v3203, 8
  %v3373 = vpop.permute.xlu0 %3372
  %3374 = vrot.lane.b32.xlu0 %v3204, 8
  %v3375 = vpop.permute.xlu0 %3374
  %3376 = vrot.lane.b32.xlu0 %v3205, 8
  %v3377 = vpop.permute.xlu0 %3376
  %3378 = vrot.lane.b32.xlu0 %v3206, 8
  %v3379 = vpop.permute.xlu0 %3378
  %3380 = vrot.lane.b32.xlu0 %v3207, 8
  %v3381 = vpop.permute.xlu0 %3380
  %3382 = vrot.lane.b32.xlu0 %v3208, 8
  %v3383 = vpop.permute.xlu0 %3382
  %3384 = vrot.lane.b32.xlu0 %v3209, 8
  %v3385 = vpop.permute.xlu0 %3384
  %3386 = vrot.lane.b32.xlu0 %v3210, 8
  %v3387 = vpop.permute.xlu0 %3386
  %3388 = vrot.lane.b32.xlu0 %v3211, 8
  %v3389 = vpop.permute.xlu0 %3388
  %3390 = vrot.lane.b32.xlu0 %v3212, 8
  %v3391 = vpop.permute.xlu0 %3390
  %3392 = vrot.lane.b32.xlu0 %v3213, 8
  %v3393 = vpop.permute.xlu0 %3392
  %3394 = vrot.lane.b32.xlu0 %v3214, 8
  %v3395 = vpop.permute.xlu0 %3394
  %3396 = vrot.lane.b32.xlu0 %v3215, 8
  %v3397 = vpop.permute.xlu0 %3396
  %3398 = vrot.lane.b32.xlu0 %v3216, 8
  %v3399 = vpop.permute.xlu0 %3398
  %3400 = vrot.lane.b32.xlu0 %v3217, 8
  %v3401 = vpop.permute.xlu0 %3400
  %3402 = vrot.lane.b32.xlu0 %v3218, 8
  %v3403 = vpop.permute.xlu0 %3402
  %3404 = vrot.lane.b32.xlu0 %v3219, 8
  %v3405 = vpop.permute.xlu0 %3404
  %3406 = vrot.lane.b32.xlu0 %v3220, 8
  %v3407 = vpop.permute.xlu0 %3406
  %3408 = vrot.lane.b32.xlu0 %v3221, 8
  %v3409 = vpop.permute.xlu0 %3408
  %3410 = vrot.lane.b32.xlu0 %v3222, 8
  %v3411 = vpop.permute.xlu0 %3410
  %3412 = vrot.lane.b32.xlu0 %v3223, 8
  %v3413 = vpop.permute.xlu0 %3412
  %3414 = vrot.lane.b32.xlu0 %v3224, 8
  %v3415 = vpop.permute.xlu0 %3414
  %3416 = vrot.lane.b32.xlu0 %v3225, 8
  %v3417 = vpop.permute.xlu0 %3416
  %vm3482 = vcmask 72768
  %3483 = vst.msk [vmem:[#allocation3] sm:$0xff] %vm3482, %v3291
  %3484 = vst.msk [vmem:[#allocation3 + $0x8] sm:$0xff] %vm3482, %v3293
  %3485 = vst.msk [vmem:[#allocation3 + $0x10] sm:$0xff] %vm3482, %v3295
  %3486 = vst.msk [vmem:[#allocation3 + $0x18] sm:$0xff] %vm3482, %v3297
  %3487 = vst.msk [vmem:[#allocation3 + $0x20] sm:$0xff] %vm3482, %v3299
  %3488 = vst.msk [vmem:[#allocation3 + $0x28] sm:$0xff] %vm3482, %v3301
  %3489 = vst.msk [vmem:[#allocation3 + $0x30] sm:$0xff] %vm3482, %v3303
  %3490 = vst.msk [vmem:[#allocation3 + $0x38] sm:$0xff] %vm3482, %v3305
  %3491 = vst.msk [vmem:[#allocation3 + $0x40] sm:$0xff] %vm3482, %v3307
  %3492 = vst.msk [vmem:[#allocation3 + $0x48] sm:$0xff] %vm3482, %v3309
  %3493 = vst.msk [vmem:[#allocation3 + $0x50] sm:$0xff] %vm3482, %v3311
  %3494 = vst.msk [vmem:[#allocation3 + $0x58] sm:$0xff] %vm3482, %v3313
  %3495 = vst.msk [vmem:[#allocation3 + $0x60] sm:$0xff] %vm3482, %v3315
  %3496 = vst.msk [vmem:[#allocation3 + $0x68] sm:$0xff] %vm3482, %v3317
  %3497 = vst.msk [vmem:[#allocation3 + $0x70] sm:$0xff] %vm3482, %v3319
  %3498 = vst.msk [vmem:[#allocation3 + $0x78] sm:$0xff] %vm3482, %v3321
  %3499 = vst.msk [vmem:[#allocation3 + $0x80] sm:$0xff] %vm3482, %v3323
  %3500 = vst.msk [vmem:[#allocation3 + $0x88] sm:$0xff] %vm3482, %v3325
  %3501 = vst.msk [vmem:[#allocation3 + $0x90] sm:$0xff] %vm3482, %v3327
  %3502 = vst.msk [vmem:[#allocation3 + $0x98] sm:$0xff] %vm3482, %v3329
  %3503 = vst.msk [vmem:[#allocation3 + $0xa0] sm:$0xff] %vm3482, %v3331
  %3504 = vst.msk [vmem:[#allocation3 + $0xa8] sm:$0xff] %vm3482, %v3333
  %3505 = vst.msk [vmem:[#allocation3 + $0xb0] sm:$0xff] %vm3482, %v3335
  %3506 = vst.msk [vmem:[#allocation3 + $0xb8] sm:$0xff] %vm3482, %v3337
  %3507 = vst.msk [vmem:[#allocation3 + $0xc0] sm:$0xff] %vm3482, %v3339
  %3508 = vst.msk [vmem:[#allocation3 + $0xc8] sm:$0xff] %vm3482, %v3341
  %3509 = vst.msk [vmem:[#allocation3 + $0xd0] sm:$0xff] %vm3482, %v3343
  %3510 = vst.msk [vmem:[#allocation3 + $0xd8] sm:$0xff] %vm3482, %v3345
  %3511 = vst.msk [vmem:[#allocation3 + $0xe0] sm:$0xff] %vm3482, %v3347
  %3512 = vst.msk [vmem:[#allocation3 + $0xe8] sm:$0xff] %vm3482, %v3349
  %3513 = vst.msk [vmem:[#allocation3 + $0xf0] sm:$0xff] %vm3482, %v3351
  %3514 = vst.msk [vmem:[#allocation3 + $0xf8] sm:$0xff] %vm3482, %v3353
  %3515 = vst.msk [vmem:[#allocation3 + $0x100] sm:$0xff] %vm3482, %v3355
  %3516 = vst.msk [vmem:[#allocation3 + $0x108] sm:$0xff] %vm3482, %v3357
  %3517 = vst.msk [vmem:[#allocation3 + $0x110] sm:$0xff] %vm3482, %v3359
  %3518 = vst.msk [vmem:[#allocation3 + $0x118] sm:$0xff] %vm3482, %v3361
  %3519 = vst.msk [vmem:[#allocation3 + $0x120] sm:$0xff] %vm3482, %v3363
  %3520 = vst.msk [vmem:[#allocation3 + $0x128] sm:$0xff] %vm3482, %v3365
  %3521 = vst.msk [vmem:[#allocation3 + $0x130] sm:$0xff] %vm3482, %v3367
  %3522 = vst.msk [vmem:[#allocation3 + $0x138] sm:$0xff] %vm3482, %v3369
  %3523 = vst.msk [vmem:[#allocation3 + $0x140] sm:$0xff] %vm3482, %v3371
  %3524 = vst.msk [vmem:[#allocation3 + $0x148] sm:$0xff] %vm3482, %v3373
  %3525 = vst.msk [vmem:[#allocation3 + $0x150] sm:$0xff] %vm3482, %v3375
  %3526 = vst.msk [vmem:[#allocation3 + $0x158] sm:$0xff] %vm3482, %v3377
  %3527 = vst.msk [vmem:[#allocation3 + $0x160] sm:$0xff] %vm3482, %v3379
  %3528 = vst.msk [vmem:[#allocation3 + $0x168] sm:$0xff] %vm3482, %v3381
  %3529 = vst.msk [vmem:[#allocation3 + $0x170] sm:$0xff] %vm3482, %v3383
  %3530 = vst.msk [vmem:[#allocation3 + $0x178] sm:$0xff] %vm3482, %v3385
  %3531 = vst.msk [vmem:[#allocation3 + $0x180] sm:$0xff] %vm3482, %v3387
  %3532 = vst.msk [vmem:[#allocation3 + $0x188] sm:$0xff] %vm3482, %v3389
  %3533 = vst.msk [vmem:[#allocation3 + $0x190] sm:$0xff] %vm3482, %v3391
  %3534 = vst.msk [vmem:[#allocation3 + $0x198] sm:$0xff] %vm3482, %v3393
  %3535 = vst.msk [vmem:[#allocation3 + $0x1a0] sm:$0xff] %vm3482, %v3395
  %3536 = vst.msk [vmem:[#allocation3 + $0x1a8] sm:$0xff] %vm3482, %v3397
  %3537 = vst.msk [vmem:[#allocation3 + $0x1b0] sm:$0xff] %vm3482, %v3399
  %3538 = vst.msk [vmem:[#allocation3 + $0x1b8] sm:$0xff] %vm3482, %v3401
  %3539 = vst.msk [vmem:[#allocation3 + $0x1c0] sm:$0xff] %vm3482, %v3403
  %3540 = vst.msk [vmem:[#allocation3 + $0x1c8] sm:$0xff] %vm3482, %v3405
  %3541 = vst.msk [vmem:[#allocation3 + $0x1d0] sm:$0xff] %vm3482, %v3407
  %3542 = vst.msk [vmem:[#allocation3 + $0x1d8] sm:$0xff] %vm3482, %v3409
  %3543 = vst.msk [vmem:[#allocation3 + $0x1e0] sm:$0xff] %vm3482, %v3411
  %3544 = vst.msk [vmem:[#allocation3 + $0x1e8] sm:$0xff] %vm3482, %v3413
  %3545 = vst.msk [vmem:[#allocation3 + $0x1f0] sm:$0xff] %vm3482, %v3415
  %3546 = vst.msk [vmem:[#allocation3 + $0x1f8] sm:$0xff] %vm3482, %v3417
  %v3547 = vld [vmem:[#allocation3] sm:$0xff]
  %v3548 = vld [vmem:[#allocation3 + $0x8] sm:$0xff]
  %v3549 = vld [vmem:[#allocation3 + $0x10] sm:$0xff]
  %v3550 = vld [vmem:[#allocation3 + $0x18] sm:$0xff]
  %v3551 = vld [vmem:[#allocation3 + $0x20] sm:$0xff]
  %v3552 = vld [vmem:[#allocation3 + $0x28] sm:$0xff]
  %v3553 = vld [vmem:[#allocation3 + $0x30] sm:$0xff]
  %v3554 = vld [vmem:[#allocation3 + $0x38] sm:$0xff]
  %v3555 = vld [vmem:[#allocation3 + $0x40] sm:$0xff]
  %v3556 = vld [vmem:[#allocation3 + $0x48] sm:$0xff]
  %v3557 = vld [vmem:[#allocation3 + $0x50] sm:$0xff]
  %v3558 = vld [vmem:[#allocation3 + $0x58] sm:$0xff]
  %v3559 = vld [vmem:[#allocation3 + $0x60] sm:$0xff]
  %v3560 = vld [vmem:[#allocation3 + $0x68] sm:$0xff]
  %v3561 = vld [vmem:[#allocation3 + $0x70] sm:$0xff]
  %v3562 = vld [vmem:[#allocation3 + $0x78] sm:$0xff]
  %v3563 = vld [vmem:[#allocation3 + $0x80] sm:$0xff]
  %v3564 = vld [vmem:[#allocation3 + $0x88] sm:$0xff]
  %v3565 = vld [vmem:[#allocation3 + $0x90] sm:$0xff]
  %v3566 = vld [vmem:[#allocation3 + $0x98] sm:$0xff]
  %v3567 = vld [vmem:[#allocation3 + $0xa0] sm:$0xff]
  %v3568 = vld [vmem:[#allocation3 + $0xa8] sm:$0xff]
  %v3569 = vld [vmem:[#allocation3 + $0xb0] sm:$0xff]
  %v3570 = vld [vmem:[#allocation3 + $0xb8] sm:$0xff]
  %v3571 = vld [vmem:[#allocation3 + $0xc0] sm:$0xff]
  %v3572 = vld [vmem:[#allocation3 + $0xc8] sm:$0xff]
  %v3573 = vld [vmem:[#allocation3 + $0xd0] sm:$0xff]
  %v3574 = vld [vmem:[#allocation3 + $0xd8] sm:$0xff]
  %v3575 = vld [vmem:[#allocation3 + $0xe0] sm:$0xff]
  %v3576 = vld [vmem:[#allocation3 + $0xe8] sm:$0xff]
  %v3577 = vld [vmem:[#allocation3 + $0xf0] sm:$0xff]
  %v3578 = vld [vmem:[#allocation3 + $0xf8] sm:$0xff]
  %v3579 = vld [vmem:[#allocation3 + $0x100] sm:$0xff]
  %v3580 = vld [vmem:[#allocation3 + $0x108] sm:$0xff]
  %v3581 = vld [vmem:[#allocation3 + $0x110] sm:$0xff]
  %v3582 = vld [vmem:[#allocation3 + $0x118] sm:$0xff]
  %v3583 = vld [vmem:[#allocation3 + $0x120] sm:$0xff]
  %v3584 = vld [vmem:[#allocation3 + $0x128] sm:$0xff]
  %v3585 = vld [vmem:[#allocation3 + $0x130] sm:$0xff]
  %v3586 = vld [vmem:[#allocation3 + $0x138] sm:$0xff]
  %v3587 = vld [vmem:[#allocation3 + $0x140] sm:$0xff]
  %v3588 = vld [vmem:[#allocation3 + $0x148] sm:$0xff]
  %v3589 = vld [vmem:[#allocation3 + $0x150] sm:$0xff]
  %v3590 = vld [vmem:[#allocation3 + $0x158] sm:$0xff]
  %v3591 = vld [vmem:[#allocation3 + $0x160] sm:$0xff]
  %v3592 = vld [vmem:[#allocation3 + $0x168] sm:$0xff]
  %v3593 = vld [vmem:[#allocation3 + $0x170] sm:$0xff]
  %v3594 = vld [vmem:[#allocation3 + $0x178] sm:$0xff]
  %v3595 = vld [vmem:[#allocation3 + $0x180] sm:$0xff]
  %v3596 = vld [vmem:[#allocation3 + $0x188] sm:$0xff]
  %v3597 = vld [vmem:[#allocation3 + $0x190] sm:$0xff]
  %v3598 = vld [vmem:[#allocation3 + $0x198] sm:$0xff]
  %v3599 = vld [vmem:[#allocation3 + $0x1a0] sm:$0xff]
  %v3600 = vld [vmem:[#allocation3 + $0x1a8] sm:$0xff]
  %v3601 = vld [vmem:[#allocation3 + $0x1b0] sm:$0xff]
  %v3602 = vld [vmem:[#allocation3 + $0x1b8] sm:$0xff]
  %v3603 = vld [vmem:[#allocation3 + $0x1c0] sm:$0xff]
  %v3604 = vld [vmem:[#allocation3 + $0x1c8] sm:$0xff]
  %v3605 = vld [vmem:[#allocation3 + $0x1d0] sm:$0xff]
  %v3606 = vld [vmem:[#allocation3 + $0x1d8] sm:$0xff]
  %v3607 = vld [vmem:[#allocation3 + $0x1e0] sm:$0xff]
  %v3608 = vld [vmem:[#allocation3 + $0x1e8] sm:$0xff]
  %v3609 = vld [vmem:[#allocation3 + $0x1f0] sm:$0xff]
  %v3610 = vld [vmem:[#allocation3 + $0x1f8] sm:$0xff]
  %v3611 = vld [vmem:[%s1] sm:$0xff]
  %v3612 = vld [vmem:[%s1 + $0x8] sm:$0xff]
  %v3613 = vld [vmem:[%s2] sm:$0x1]
  %v3615 = vlaneseq
  %v3616 = vshrl.u32 %v3615, 7
  %v3617 = vsub.s32 0, %v3616
  %v3618 = vrot.slane %v3613, %v3617
  %v3621 = vsel %vm273, %v3547, 0
  %v3624 = vsel %vm273, %v3548, 0
  %v3627 = vsel %vm273, %v3549, 0
  %v3630 = vsel %vm273, %v3550, 0
  %v3633 = vsel %vm273, %v3551, 0
  %v3636 = vsel %vm273, %v3552, 0
  %v3639 = vsel %vm273, %v3553, 0
  %v3642 = vsel %vm273, %v3554, 0
  %v3645 = vsel %vm273, %v3555, 0
  %v3648 = vsel %vm273, %v3556, 0
  %v3651 = vsel %vm273, %v3557, 0
  %v3654 = vsel %vm273, %v3558, 0
  %v3657 = vsel %vm273, %v3559, 0
  %v3660 = vsel %vm273, %v3560, 0
  %v3663 = vsel %vm273, %v3561, 0
  %v3666 = vsel %vm273, %v3562, 0
  %v3669 = vsel %vm273, %v3563, 0
  %v3672 = vsel %vm273, %v3564, 0
  %v3675 = vsel %vm273, %v3565, 0
  %v3678 = vsel %vm273, %v3566, 0
  %v3681 = vsel %vm273, %v3567, 0
  %v3684 = vsel %vm273, %v3568, 0
  %v3687 = vsel %vm273, %v3569, 0
  %v3690 = vsel %vm273, %v3570, 0
  %v3693 = vsel %vm273, %v3571, 0
  %v3696 = vsel %vm273, %v3572, 0
  %v3699 = vsel %vm273, %v3573, 0
  %v3702 = vsel %vm273, %v3574, 0
  %v3705 = vsel %vm273, %v3575, 0
  %v3708 = vsel %vm273, %v3576, 0
  %v3711 = vsel %vm273, %v3577, 0
  %v3714 = vsel %vm273, %v3578, 0
  %v3717 = vsel %vm273, %v3579, 0
  %v3720 = vsel %vm273, %v3580, 0
  %v3723 = vsel %vm273, %v3581, 0
  %v3726 = vsel %vm273, %v3582, 0
  %v3729 = vsel %vm273, %v3583, 0
  %v3732 = vsel %vm273, %v3584, 0
  %v3735 = vsel %vm273, %v3585, 0
  %v3738 = vsel %vm273, %v3586, 0
  %v3741 = vsel %vm273, %v3587, 0
  %v3744 = vsel %vm273, %v3588, 0
  %v3747 = vsel %vm273, %v3589, 0
  %v3750 = vsel %vm273, %v3590, 0
  %v3753 = vsel %vm273, %v3591, 0
  %v3756 = vsel %vm273, %v3592, 0
  %v3759 = vsel %vm273, %v3593, 0
  %v3762 = vsel %vm273, %v3594, 0
  %v3765 = vsel %vm273, %v3595, 0
  %v3768 = vsel %vm273, %v3596, 0
  %v3771 = vsel %vm273, %v3597, 0
  %v3774 = vsel %vm273, %v3598, 0
  %v3777 = vsel %vm273, %v3599, 0
  %v3780 = vsel %vm273, %v3600, 0
  %v3783 = vsel %vm273, %v3601, 0
  %v3786 = vsel %vm273, %v3602, 0
  %v3789 = vsel %vm273, %v3603, 0
  %v3792 = vsel %vm273, %v3604, 0
  %v3795 = vsel %vm273, %v3605, 0
  %v3798 = vsel %vm273, %v3606, 0
  %v3801 = vsel %vm273, %v3607, 0
  %v3804 = vsel %vm273, %v3608, 0
  %v3807 = vsel %vm273, %v3609, 0
  %v3810 = vsel %vm273, %v3610, 0
  %3812 = vmatprep.subr.mxu0 0.0
  %3813 = vmatpush1.msra.mxu0 %v3611
  %3814 = vmatprep.subr.mxu0 0.0
  %3815 = vmatpush1.msra.mxu0 %v3612
  %3816 = vmatprep.subr.mxu0 0.0
  %3817 = vmatpush1.msra.mxu0 0.0
  %3818 = vmatprep.subr.mxu0 0.0
  %3819 = vmatpush1.msra.mxu0 0.0
  %3820 = vmatprep.subr.mxu0 0.0
  %3821 = vmatpush1.msra.mxu0 0.0
  %3822 = vmatprep.subr.mxu0 0.0
  %3823 = vmatpush1.msra.mxu0 0.0
  %3824 = vmatprep.subr.mxu0 0.0
  %3825 = vmatpush1.msra.mxu0 0.0
  %3826 = vmatprep.subr.mxu0 0.0
  %3827 = vmatpush1.msra.mxu0 0.0
  %3828 = vmatprep.subr.mxu0 0.0
  %3829 = vmatpush1.msra.mxu0 0.0
  %3830 = vmatprep.subr.mxu0 0.0
  %3831 = vmatpush1.msra.mxu0 0.0
  %3832 = vmatprep.subr.mxu0 0.0
  %3833 = vmatpush1.msra.mxu0 0.0
  %3834 = vmatprep.subr.mxu0 0.0
  %3835 = vmatpush1.msra.mxu0 0.0
  %3836 = vmatprep.subr.mxu0 0.0
  %3837 = vmatpush1.msra.mxu0 0.0
  %3838 = vmatprep.subr.mxu0 0.0
  %3839 = vmatpush1.msra.mxu0 0.0
  %3840 = vmatprep.subr.mxu0 0.0
  %3841 = vmatpush1.msra.mxu0 0.0
  %3842 = vmatprep.subr.mxu0 0.0
  %3843 = vmatpush1.msra.mxu0 0.0
  %3844 = vmatprep.subr.mxu0 0.0
  %3845 = vmatpush1.msra.mxu0 0.0
  %3846 = vmatprep.subr.mxu0 0.0
  %3847 = vmatpush1.msra.mxu0 0.0
  %3848 = vmatprep.subr.mxu0 0.0
  %3849 = vmatpush1.msra.mxu0 0.0
  %3850 = vmatprep.subr.mxu0 0.0
  %3851 = vmatpush1.msra.mxu0 0.0
  %3852 = vmatprep.subr.mxu0 0.0
  %3853 = vmatpush1.msra.mxu0 0.0
  %3854 = vmatprep.subr.mxu0 0.0
  %3855 = vmatpush1.msra.mxu0 0.0
  %3856 = vmatprep.subr.mxu0 0.0
  %3857 = vmatpush1.msra.mxu0 0.0
  %3858 = vmatprep.subr.mxu0 0.0
  %3859 = vmatpush1.msra.mxu0 0.0
  %3860 = vmatprep.subr.mxu0 0.0
  %3861 = vmatpush1.msra.mxu0 0.0
  %3862 = vmatprep.subr.mxu0 0.0
  %3863 = vmatpush1.msra.mxu0 0.0
  %3864 = vmatprep.subr.mxu0 0.0
  %3865 = vmatpush1.msra.mxu0 0.0
  %3866 = vmatprep.subr.mxu0 0.0
  %3867 = vmatpush1.msra.mxu0 0.0
  %3868 = vmatprep.subr.mxu0 0.0
  %3869 = vmatpush1.msra.mxu0 0.0
  %3870 = vmatprep.subr.mxu0 0.0
  %3871 = vmatpush1.msra.mxu0 0.0
  %3872 = vmatprep.subr.mxu0 0.0
  %3873 = vmatpush1.msra.mxu0 0.0
  %3874 = vmatprep.subr.mxu0 0.0
  %3875 = vmatpush1.msra.mxu0 0.0
  %3876 = vmatprep.mubr.f32.mxu0 0.0
  %3877 = vmatmul.mubr.f32.gmra.mrb[0].mxu0 %v3621
  %v3878 = vpop.f32.mrb[0].mxu0
  %v3879 = vadd.f32 %v3618, %v3878
  %v3880 = vpop.f32.mrb[0].mxu0
  %3881 = vmatprep.mubr.f32.mxu0 0.0
  %3882 = vmatmul.mubr.f32.gmra.mrb[0].mxu0 %v3624
  %v3883 = vpop.f32.mrb[0].mxu0
  %v3884 = vadd.f32 %v3618, %v3883
  %v3885 = vpop.f32.mrb[0].mxu0
  %3886 = vmatprep.mubr.f32.mxu0 0.0
  %3887 = vmatmul.mubr.f32.gmra.mrb[0].mxu0 %v3627
  %v3888 = vpop.f32.mrb[0].mxu0
  %v3889 = vadd.f32 %v3618, %v3888
  %v3890 = vpop.f32.mrb[0].mxu0
  %3891 = vmatprep.mubr.f32.mxu0 0.0
  %3892 = vmatmul.mubr.f32.gmra.mrb[0].mxu0 %v3630
  %v3893 = vpop.f32.mrb[0].mxu0
  %v3894 = vadd.f32 %v3618, %v3893
  %v3895 = vpop.f32.mrb[0].mxu0
  %3896 = vmatprep.mubr.f32.mxu0 0.0
  %3897 = vmatmul.mubr.f32.gmra.mrb[0].mxu0 %v3633
  %v3898 = vpop.f32.mrb[0].mxu0
  %v3899 = vadd.f32 %v3618, %v3898
  %v3900 = vpop.f32.mrb[0].mxu0
  %3901 = vmatprep.mubr.f32.mxu0 0.0
  %3902 = vmatmul.mubr.f32.gmra.mrb[0].mxu0 %v3636
  %v3903 = vpop.f32.mrb[0].mxu0
  %v3904 = vadd.f32 %v3618, %v3903
  %v3905 = vpop.f32.mrb[0].mxu0
  %3906 = vmatprep.mubr.f32.mxu0 0.0
  %3907 = vmatmul.mubr.f32.gmra.mrb[0].mxu0 %v3639
  %v3908 = vpop.f32.mrb[0].mxu0
  %v3909 = vadd.f32 %v3618, %v3908
  %v3910 = vpop.f32.mrb[0].mxu0
  %3911 = vmatprep.mubr.f32.mxu0 0.0
  %3912 = vmatmul.mubr.f32.gmra.mrb[0].mxu0 %v3642
  %v3913 = vpop.f32.mrb[0].mxu0
  %v3914 = vadd.f32 %v3618, %v3913
  %v3915 = vpop.f32.mrb[0].mxu0
  %3916 = vmatprep.mubr.f32.mxu0 0.0
  %3917 = vmatmul.mubr.f32.gmra.mrb[0].mxu0 %v3645
  %v3918 = vpop.f32.mrb[0].mxu0
  %v3919 = vadd.f32 %v3618, %v3918
  %v3920 = vpop.f32.mrb[0].mxu0
  %3921 = vmatprep.mubr.f32.mxu0 0.0
  %3922 = vmatmul.mubr.f32.gmra.mrb[0].mxu0 %v3648
  %v3923 = vpop.f32.mrb[0].mxu0
  %v3924 = vadd.f32 %v3618, %v3923
  %v3925 = vpop.f32.mrb[0].mxu0
  %3926 = vmatprep.mubr.f32.mxu0 0.0
  %3927 = vmatmul.mubr.f32.gmra.mrb[0].mxu0 %v3651
  %v3928 = vpop.f32.mrb[0].mxu0
  %v3929 = vadd.f32 %v3618, %v3928
  %v3930 = vpop.f32.mrb[0].mxu0
  %3931 = vmatprep.mubr.f32.mxu0 0.0
  %3932 = vmatmul.mubr.f32.gmra.mrb[0].mxu0 %v3654
  %v3933 = vpop.f32.mrb[0].mxu0
  %v3934 = vadd.f32 %v3618, %v3933
  %v3935 = vpop.f32.mrb[0].mxu0
  %3936 = vmatprep.mubr.f32.mxu0 0.0
  %3937 = vmatmul.mubr.f32.gmra.mrb[0].mxu0 %v3657
  %v3938 = vpop.f32.mrb[0].mxu0
  %v3939 = vadd.f32 %v3618, %v3938
  %v3940 = vpop.f32.mrb[0].mxu0
  %3941 = vmatprep.mubr.f32.mxu0 0.0
  %3942 = vmatmul.mubr.f32.gmra.mrb[0].mxu0 %v3660
  %v3943 = vpop.f32.mrb[0].mxu0
  %v3944 = vadd.f32 %v3618, %v3943
  %v3945 = vpop.f32.mrb[0].mxu0
  %3946 = vmatprep.mubr.f32.mxu0 0.0
  %3947 = vmatmul.mubr.f32.gmra.mrb[0].mxu0 %v3663
  %v3948 = vpop.f32.mrb[0].mxu0
  %v3949 = vadd.f32 %v3618, %v3948
  %v3950 = vpop.f32.mrb[0].mxu0
  %3951 = vmatprep.mubr.f32.mxu0 0.0
  %3952 = vmatmul.mubr.f32.gmra.mrb[0].mxu0 %v3666
  %v3953 = vpop.f32.mrb[0].mxu0
  %v3954 = vadd.f32 %v3618, %v3953
  %v3955 = vpop.f32.mrb[0].mxu0
  %3956 = vmatprep.mubr.f32.mxu0 0.0
  %3957 = vmatmul.mubr.f32.gmra.mrb[0].mxu0 %v3669
  %v3958 = vpop.f32.mrb[0].mxu0
  %v3959 = vadd.f32 %v3618, %v3958
  %v3960 = vpop.f32.mrb[0].mxu0
  %3961 = vmatprep.mubr.f32.mxu0 0.0
  %3962 = vmatmul.mubr.f32.gmra.mrb[0].mxu0 %v3672
  %v3963 = vpop.f32.mrb[0].mxu0
  %v3964 = vadd.f32 %v3618, %v3963
  %v3965 = vpop.f32.mrb[0].mxu0
  %3966 = vmatprep.mubr.f32.mxu0 0.0
  %3967 = vmatmul.mubr.f32.gmra.mrb[0].mxu0 %v3675
  %v3968 = vpop.f32.mrb[0].mxu0
  %v3969 = vadd.f32 %v3618, %v3968
  %v3970 = vpop.f32.mrb[0].mxu0
  %3971 = vmatprep.mubr.f32.mxu0 0.0
  %3972 = vmatmul.mubr.f32.gmra.mrb[0].mxu0 %v3678
  %v3973 = vpop.f32.mrb[0].mxu0
  %v3974 = vadd.f32 %v3618, %v3973
  %v3975 = vpop.f32.mrb[0].mxu0
  %3976 = vmatprep.mubr.f32.mxu0 0.0
  %3977 = vmatmul.mubr.f32.gmra.mrb[0].mxu0 %v3681
  %v3978 = vpop.f32.mrb[0].mxu0
  %v3979 = vadd.f32 %v3618, %v3978
  %v3980 = vpop.f32.mrb[0].mxu0
  %3981 = vmatprep.mubr.f32.mxu0 0.0
  %3982 = vmatmul.mubr.f32.gmra.mrb[0].mxu0 %v3684
  %v3983 = vpop.f32.mrb[0].mxu0
  %v3984 = vadd.f32 %v3618, %v3983
  %v3985 = vpop.f32.mrb[0].mxu0
  %3986 = vmatprep.mubr.f32.mxu0 0.0
  %3987 = vmatmul.mubr.f32.gmra.mrb[0].mxu0 %v3687
  %v3988 = vpop.f32.mrb[0].mxu0
  %v3989 = vadd.f32 %v3618, %v3988
  %v3990 = vpop.f32.mrb[0].mxu0
  %3991 = vmatprep.mubr.f32.mxu0 0.0
  %3992 = vmatmul.mubr.f32.gmra.mrb[0].mxu0 %v3690
  %v3993 = vpop.f32.mrb[0].mxu0
  %v3994 = vadd.f32 %v3618, %v3993
  %v3995 = vpop.f32.mrb[0].mxu0
  %3996 = vmatprep.mubr.f32.mxu0 0.0
  %3997 = vmatmul.mubr.f32.gmra.mrb[0].mxu0 %v3693
  %v3998 = vpop.f32.mrb[0].mxu0
  %v3999 = vadd.f32 %v3618, %v3998
  %v4000 = vpop.f32.mrb[0].mxu0
  %4001 = vmatprep.mubr.f32.mxu0 0.0
  %4002 = vmatmul.mubr.f32.gmra.mrb[0].mxu0 %v3696
  %v4003 = vpop.f32.mrb[0].mxu0
  %v4004 = vadd.f32 %v3618, %v4003
  %v4005 = vpop.f32.mrb[0].mxu0
  %4006 = vmatprep.mubr.f32.mxu0 0.0
  %4007 = vmatmul.mubr.f32.gmra.mrb[0].mxu0 %v3699
  %v4008 = vpop.f32.mrb[0].mxu0
  %v4009 = vadd.f32 %v3618, %v4008
  %v4010 = vpop.f32.mrb[0].mxu0
  %4011 = vmatprep.mubr.f32.mxu0 0.0
  %4012 = vmatmul.mubr.f32.gmra.mrb[0].mxu0 %v3702
  %v4013 = vpop.f32.mrb[0].mxu0
  %v4014 = vadd.f32 %v3618, %v4013
  %v4015 = vpop.f32.mrb[0].mxu0
  %4016 = vmatprep.mubr.f32.mxu0 0.0
  %4017 = vmatmul.mubr.f32.gmra.mrb[0].mxu0 %v3705
  %v4018 = vpop.f32.mrb[0].mxu0
  %v4019 = vadd.f32 %v3618, %v4018
  %v4020 = vpop.f32.mrb[0].mxu0
  %4021 = vmatprep.mubr.f32.mxu0 0.0
  %4022 = vmatmul.mubr.f32.gmra.mrb[0].mxu0 %v3708
  %v4023 = vpop.f32.mrb[0].mxu0
  %v4024 = vadd.f32 %v3618, %v4023
  %v4025 = vpop.f32.mrb[0].mxu0
  %4026 = vmatprep.mubr.f32.mxu0 0.0
  %4027 = vmatmul.mubr.f32.gmra.mrb[0].mxu0 %v3711
  %v4028 = vpop.f32.mrb[0].mxu0
  %v4029 = vadd.f32 %v3618, %v4028
  %v4030 = vpop.f32.mrb[0].mxu0
  %4031 = vmatprep.mubr.f32.mxu0 0.0
  %4032 = vmatmul.mubr.f32.gmra.mrb[0].mxu0 %v3714
  %v4033 = vpop.f32.mrb[0].mxu0
  %v4034 = vadd.f32 %v3618, %v4033
  %v4035 = vpop.f32.mrb[0].mxu0
  %4036 = vmatprep.mubr.f32.mxu0 0.0
  %4037 = vmatmul.mubr.f32.gmra.mrb[0].mxu0 %v3717
  %v4038 = vpop.f32.mrb[0].mxu0
  %v4039 = vadd.f32 %v3618, %v4038
  %v4040 = vpop.f32.mrb[0].mxu0
  %4041 = vmatprep.mubr.f32.mxu0 0.0
  %4042 = vmatmul.mubr.f32.gmra.mrb[0].mxu0 %v3720
  %v4043 = vpop.f32.mrb[0].mxu0
  %v4044 = vadd.f32 %v3618, %v4043
  %v4045 = vpop.f32.mrb[0].mxu0
  %4046 = vmatprep.mubr.f32.mxu0 0.0
  %4047 = vmatmul.mubr.f32.gmra.mrb[0].mxu0 %v3723
  %v4048 = vpop.f32.mrb[0].mxu0
  %v4049 = vadd.f32 %v3618, %v4048
  %v4050 = vpop.f32.mrb[0].mxu0
  %4051 = vmatprep.mubr.f32.mxu0 0.0
  %4052 = vmatmul.mubr.f32.gmra.mrb[0].mxu0 %v3726
  %v4053 = vpop.f32.mrb[0].mxu0
  %v4054 = vadd.f32 %v3618, %v4053
  %v4055 = vpop.f32.mrb[0].mxu0
  %4056 = vmatprep.mubr.f32.mxu0 0.0
  %4057 = vmatmul.mubr.f32.gmra.mrb[0].mxu0 %v3729
  %v4058 = vpop.f32.mrb[0].mxu0
  %v4059 = vadd.f32 %v3618, %v4058
  %v4060 = vpop.f32.mrb[0].mxu0
  %4061 = vmatprep.mubr.f32.mxu0 0.0
  %4062 = vmatmul.mubr.f32.gmra.mrb[0].mxu0 %v3732
  %v4063 = vpop.f32.mrb[0].mxu0
  %v4064 = vadd.f32 %v3618, %v4063
  %v4065 = vpop.f32.mrb[0].mxu0
  %4066 = vmatprep.mubr.f32.mxu0 0.0
  %4067 = vmatmul.mubr.f32.gmra.mrb[0].mxu0 %v3735
  %v4068 = vpop.f32.mrb[0].mxu0
  %v4069 = vadd.f32 %v3618, %v4068
  %v4070 = vpop.f32.mrb[0].mxu0
  %4071 = vmatprep.mubr.f32.mxu0 0.0
  %4072 = vmatmul.mubr.f32.gmra.mrb[0].mxu0 %v3738
  %v4073 = vpop.f32.mrb[0].mxu0
  %v4074 = vadd.f32 %v3618, %v4073
  %v4075 = vpop.f32.mrb[0].mxu0
  %4076 = vmatprep.mubr.f32.mxu0 0.0
  %4077 = vmatmul.mubr.f32.gmra.mrb[0].mxu0 %v3741
  %v4078 = vpop.f32.mrb[0].mxu0
  %v4079 = vadd.f32 %v3618, %v4078
  %v4080 = vpop.f32.mrb[0].mxu0
  %4081 = vmatprep.mubr.f32.mxu0 0.0
  %4082 = vmatmul.mubr.f32.gmra.mrb[0].mxu0 %v3744
  %v4083 = vpop.f32.mrb[0].mxu0
  %v4084 = vadd.f32 %v3618, %v4083
  %v4085 = vpop.f32.mrb[0].mxu0
  %4086 = vmatprep.mubr.f32.mxu0 0.0
  %4087 = vmatmul.mubr.f32.gmra.mrb[0].mxu0 %v3747
  %v4088 = vpop.f32.mrb[0].mxu0
  %v4089 = vadd.f32 %v3618, %v4088
  %v4090 = vpop.f32.mrb[0].mxu0
  %4091 = vmatprep.mubr.f32.mxu0 0.0
  %4092 = vmatmul.mubr.f32.gmra.mrb[0].mxu0 %v3750
  %v4093 = vpop.f32.mrb[0].mxu0
  %v4094 = vadd.f32 %v3618, %v4093
  %v4095 = vpop.f32.mrb[0].mxu0
  %4096 = vmatprep.mubr.f32.mxu0 0.0
  %4097 = vmatmul.mubr.f32.gmra.mrb[0].mxu0 %v3753
  %v4098 = vpop.f32.mrb[0].mxu0
  %v4099 = vadd.f32 %v3618, %v4098
  %v4100 = vpop.f32.mrb[0].mxu0
  %4101 = vmatprep.mubr.f32.mxu0 0.0
  %4102 = vmatmul.mubr.f32.gmra.mrb[0].mxu0 %v3756
  %v4103 = vpop.f32.mrb[0].mxu0
  %v4104 = vadd.f32 %v3618, %v4103
  %v4105 = vpop.f32.mrb[0].mxu0
  %4106 = vmatprep.mubr.f32.mxu0 0.0
  %4107 = vmatmul.mubr.f32.gmra.mrb[0].mxu0 %v3759
  %v4108 = vpop.f32.mrb[0].mxu0
  %v4109 = vadd.f32 %v3618, %v4108
  %v4110 = vpop.f32.mrb[0].mxu0
  %4111 = vmatprep.mubr.f32.mxu0 0.0
  %4112 = vmatmul.mubr.f32.gmra.mrb[0].mxu0 %v3762
  %v4113 = vpop.f32.mrb[0].mxu0
  %v4114 = vadd.f32 %v3618, %v4113
  %v4115 = vpop.f32.mrb[0].mxu0
  %4116 = vmatprep.mubr.f32.mxu0 0.0
  %4117 = vmatmul.mubr.f32.gmra.mrb[0].mxu0 %v3765
  %v4118 = vpop.f32.mrb[0].mxu0
  %v4119 = vadd.f32 %v3618, %v4118
  %v4120 = vpop.f32.mrb[0].mxu0
  %4121 = vmatprep.mubr.f32.mxu0 0.0
  %4122 = vmatmul.mubr.f32.gmra.mrb[0].mxu0 %v3768
  %v4123 = vpop.f32.mrb[0].mxu0
  %v4124 = vadd.f32 %v3618, %v4123
  %v4125 = vpop.f32.mrb[0].mxu0
  %4126 = vmatprep.mubr.f32.mxu0 0.0
  %4127 = vmatmul.mubr.f32.gmra.mrb[0].mxu0 %v3771
  %v4128 = vpop.f32.mrb[0].mxu0
  %v4129 = vadd.f32 %v3618, %v4128
  %v4130 = vpop.f32.mrb[0].mxu0
  %4131 = vmatprep.mubr.f32.mxu0 0.0
  %4132 = vmatmul.mubr.f32.gmra.mrb[0].mxu0 %v3774
  %v4133 = vpop.f32.mrb[0].mxu0
  %v4134 = vadd.f32 %v3618, %v4133
  %v4135 = vpop.f32.mrb[0].mxu0
  %4136 = vmatprep.mubr.f32.mxu0 0.0
  %4137 = vmatmul.mubr.f32.gmra.mrb[0].mxu0 %v3777
  %v4138 = vpop.f32.mrb[0].mxu0
  %v4139 = vadd.f32 %v3618, %v4138
  %v4140 = vpop.f32.mrb[0].mxu0
  %4141 = vmatprep.mubr.f32.mxu0 0.0
  %4142 = vmatmul.mubr.f32.gmra.mrb[0].mxu0 %v3780
  %v4143 = vpop.f32.mrb[0].mxu0
  %v4144 = vadd.f32 %v3618, %v4143
  %v4145 = vpop.f32.mrb[0].mxu0
  %4146 = vmatprep.mubr.f32.mxu0 0.0
  %4147 = vmatmul.mubr.f32.gmra.mrb[0].mxu0 %v3783
  %v4148 = vpop.f32.mrb[0].mxu0
  %v4149 = vadd.f32 %v3618, %v4148
  %v4150 = vpop.f32.mrb[0].mxu0
  %4151 = vmatprep.mubr.f32.mxu0 0.0
  %4152 = vmatmul.mubr.f32.gmra.mrb[0].mxu0 %v3786
  %v4153 = vpop.f32.mrb[0].mxu0
  %v4154 = vadd.f32 %v3618, %v4153
  %v4155 = vpop.f32.mrb[0].mxu0
  %4156 = vmatprep.mubr.f32.mxu0 0.0
  %4157 = vmatmul.mubr.f32.gmra.mrb[0].mxu0 %v3789
  %v4158 = vpop.f32.mrb[0].mxu0
  %v4159 = vadd.f32 %v3618, %v4158
  %v4160 = vpop.f32.mrb[0].mxu0
  %4161 = vmatprep.mubr.f32.mxu0 0.0
  %4162 = vmatmul.mubr.f32.gmra.mrb[0].mxu0 %v3792
  %v4163 = vpop.f32.mrb[0].mxu0
  %v4164 = vadd.f32 %v3618, %v4163
  %v4165 = vpop.f32.mrb[0].mxu0
  %4166 = vmatprep.mubr.f32.mxu0 0.0
  %4167 = vmatmul.mubr.f32.gmra.mrb[0].mxu0 %v3795
  %v4168 = vpop.f32.mrb[0].mxu0
  %v4169 = vadd.f32 %v3618, %v4168
  %v4170 = vpop.f32.mrb[0].mxu0
  %4171 = vmatprep.mubr.f32.mxu0 0.0
  %4172 = vmatmul.mubr.f32.gmra.mrb[0].mxu0 %v3798
  %v4173 = vpop.f32.mrb[0].mxu0
  %v4174 = vadd.f32 %v3618, %v4173
  %v4175 = vpop.f32.mrb[0].mxu0
  %4176 = vmatprep.mubr.f32.mxu0 0.0
  %4177 = vmatmul.mubr.f32.gmra.mrb[0].mxu0 %v3801
  %v4178 = vpop.f32.mrb[0].mxu0
  %v4179 = vadd.f32 %v3618, %v4178
  %v4180 = vpop.f32.mrb[0].mxu0
  %4181 = vmatprep.mubr.f32.mxu0 0.0
  %4182 = vmatmul.mubr.f32.gmra.mrb[0].mxu0 %v3804
  %v4183 = vpop.f32.mrb[0].mxu0
  %v4184 = vadd.f32 %v3618, %v4183
  %v4185 = vpop.f32.mrb[0].mxu0
  %4186 = vmatprep.mubr.f32.mxu0 0.0
  %4187 = vmatmul.mubr.f32.gmra.mrb[0].mxu0 %v3807
  %v4188 = vpop.f32.mrb[0].mxu0
  %v4189 = vadd.f32 %v3618, %v4188
  %v4190 = vpop.f32.mrb[0].mxu0
  %4191 = vmatprep.mubr.f32.mxu0 0.0
  %4192 = vmatmul.mubr.f32.gmra.mrb[0].mxu0 %v3810
  %v4193 = vpop.f32.mrb[0].mxu0
  %v4194 = vadd.f32 %v3618, %v4193
  %v4195 = vpop.f32.mrb[0].mxu0
  %4196 = vdwg.mxu0
  %vm4197 = vcmp.ge.f32.partialorder %v3879, 0.0
  %vm4198 = vcmp.ge.f32.partialorder %v3884, 0.0
  %vm4199 = vcmp.ge.f32.partialorder %v3889, 0.0
  %vm4200 = vcmp.ge.f32.partialorder %v3894, 0.0
  %vm4201 = vcmp.ge.f32.partialorder %v3899, 0.0
  %vm4202 = vcmp.ge.f32.partialorder %v3904, 0.0
  %vm4203 = vcmp.ge.f32.partialorder %v3909, 0.0
  %vm4204 = vcmp.ge.f32.partialorder %v3914, 0.0
  %vm4205 = vcmp.ge.f32.partialorder %v3919, 0.0
  %vm4206 = vcmp.ge.f32.partialorder %v3924, 0.0
  %vm4207 = vcmp.ge.f32.partialorder %v3929, 0.0
  %vm4208 = vcmp.ge.f32.partialorder %v3934, 0.0
  %vm4209 = vcmp.ge.f32.partialorder %v3939, 0.0
  %vm4210 = vcmp.ge.f32.partialorder %v3944, 0.0
  %vm4211 = vcmp.ge.f32.partialorder %v3949, 0.0
  %vm4212 = vcmp.ge.f32.partialorder %v3954, 0.0
  %vm4213 = vcmp.ge.f32.partialorder %v3959, 0.0
  %vm4214 = vcmp.ge.f32.partialorder %v3964, 0.0
  %vm4215 = vcmp.ge.f32.partialorder %v3969, 0.0
  %vm4216 = vcmp.ge.f32.partialorder %v3974, 0.0
  %vm4217 = vcmp.ge.f32.partialorder %v3979, 0.0
  %vm4218 = vcmp.ge.f32.partialorder %v3984, 0.0
  %vm4219 = vcmp.ge.f32.partialorder %v3989, 0.0
  %vm4220 = vcmp.ge.f32.partialorder %v3994, 0.0
  %vm4221 = vcmp.ge.f32.partialorder %v3999, 0.0
  %vm4222 = vcmp.ge.f32.partialorder %v4004, 0.0
  %vm4223 = vcmp.ge.f32.partialorder %v4009, 0.0
  %vm4224 = vcmp.ge.f32.partialorder %v4014, 0.0
  %vm4225 = vcmp.ge.f32.partialorder %v4019, 0.0
  %vm4226 = vcmp.ge.f32.partialorder %v4024, 0.0
  %vm4227 = vcmp.ge.f32.partialorder %v4029, 0.0
  %vm4228 = vcmp.ge.f32.partialorder %v4034, 0.0
  %vm4229 = vcmp.ge.f32.partialorder %v4039, 0.0
  %vm4230 = vcmp.ge.f32.partialorder %v4044, 0.0
  %vm4231 = vcmp.ge.f32.partialorder %v4049, 0.0
  %vm4232 = vcmp.ge.f32.partialorder %v4054, 0.0
  %vm4233 = vcmp.ge.f32.partialorder %v4059, 0.0
  %vm4234 = vcmp.ge.f32.partialorder %v4064, 0.0
  %vm4235 = vcmp.ge.f32.partialorder %v4069, 0.0
  %vm4236 = vcmp.ge.f32.partialorder %v4074, 0.0
  %vm4237 = vcmp.ge.f32.partialorder %v4079, 0.0
  %vm4238 = vcmp.ge.f32.partialorder %v4084, 0.0
  %vm4239 = vcmp.ge.f32.partialorder %v4089, 0.0
  %vm4240 = vcmp.ge.f32.partialorder %v4094, 0.0
  %vm4241 = vcmp.ge.f32.partialorder %v4099, 0.0
  %vm4242 = vcmp.ge.f32.partialorder %v4104, 0.0
  %vm4243 = vcmp.ge.f32.partialorder %v4109, 0.0
  %vm4244 = vcmp.ge.f32.partialorder %v4114, 0.0
  %vm4245 = vcmp.ge.f32.partialorder %v4119, 0.0
  %vm4246 = vcmp.ge.f32.partialorder %v4124, 0.0
  %vm4247 = vcmp.ge.f32.partialorder %v4129, 0.0
  %vm4248 = vcmp.ge.f32.partialorder %v4134, 0.0
  %vm4249 = vcmp.ge.f32.partialorder %v4139, 0.0
  %vm4250 = vcmp.ge.f32.partialorder %v4144, 0.0
  %vm4251 = vcmp.ge.f32.partialorder %v4149, 0.0
  %vm4252 = vcmp.ge.f32.partialorder %v4154, 0.0
  %vm4253 = vcmp.ge.f32.partialorder %v4159, 0.0
  %vm4254 = vcmp.ge.f32.partialorder %v4164, 0.0
  %vm4255 = vcmp.ge.f32.partialorder %v4169, 0.0
  %vm4256 = vcmp.ge.f32.partialorder %v4174, 0.0
  %vm4257 = vcmp.ge.f32.partialorder %v4179, 0.0
  %vm4258 = vcmp.ge.f32.partialorder %v4184, 0.0
  %vm4259 = vcmp.ge.f32.partialorder %v4189, 0.0
  %vm4260 = vcmp.ge.f32.partialorder %v4194, 0.0
  %v4261 = vmul.f32 %v3879, 0.2
  %v4262 = vmul.f32 %v3884, 0.2
  %v4263 = vmul.f32 %v3889, 0.2
  %v4264 = vmul.f32 %v3894, 0.2
  %v4265 = vmul.f32 %v3899, 0.2
  %v4266 = vmul.f32 %v3904, 0.2
  %v4267 = vmul.f32 %v3909, 0.2
  %v4268 = vmul.f32 %v3914, 0.2
  %v4269 = vmul.f32 %v3919, 0.2
  %v4270 = vmul.f32 %v3924, 0.2
  %v4271 = vmul.f32 %v3929, 0.2
  %v4272 = vmul.f32 %v3934, 0.2
  %v4273 = vmul.f32 %v3939, 0.2
  %v4274 = vmul.f32 %v3944, 0.2
  %v4275 = vmul.f32 %v3949, 0.2
  %v4276 = vmul.f32 %v3954, 0.2
  %v4277 = vmul.f32 %v3959, 0.2
  %v4278 = vmul.f32 %v3964, 0.2
  %v4279 = vmul.f32 %v3969, 0.2
  %v4280 = vmul.f32 %v3974, 0.2
  %v4281 = vmul.f32 %v3979, 0.2
  %v4282 = vmul.f32 %v3984, 0.2
  %v4283 = vmul.f32 %v3989, 0.2
  %v4284 = vmul.f32 %v3994, 0.2
  %v4285 = vmul.f32 %v3999, 0.2
  %v4286 = vmul.f32 %v4004, 0.2
  %v4287 = vmul.f32 %v4009, 0.2
  %v4288 = vmul.f32 %v4014, 0.2
  %v4289 = vmul.f32 %v4019, 0.2
  %v4290 = vmul.f32 %v4024, 0.2
  %v4291 = vmul.f32 %v4029, 0.2
  %v4292 = vmul.f32 %v4034, 0.2
  %v4293 = vmul.f32 %v4039, 0.2
  %v4294 = vmul.f32 %v4044, 0.2
  %v4295 = vmul.f32 %v4049, 0.2
  %v4296 = vmul.f32 %v4054, 0.2
  %v4297 = vmul.f32 %v4059, 0.2
  %v4298 = vmul.f32 %v4064, 0.2
  %v4299 = vmul.f32 %v4069, 0.2
  %v4300 = vmul.f32 %v4074, 0.2
  %v4301 = vmul.f32 %v4079, 0.2
  %v4302 = vmul.f32 %v4084, 0.2
  %v4303 = vmul.f32 %v4089, 0.2
  %v4304 = vmul.f32 %v4094, 0.2
  %v4305 = vmul.f32 %v4099, 0.2
  %v4306 = vmul.f32 %v4104, 0.2
  %v4307 = vmul.f32 %v4109, 0.2
  %v4308 = vmul.f32 %v4114, 0.2
  %v4309 = vmul.f32 %v4119, 0.2
  %v4310 = vmul.f32 %v4124, 0.2
  %v4311 = vmul.f32 %v4129, 0.2
  %v4312 = vmul.f32 %v4134, 0.2
  %v4313 = vmul.f32 %v4139, 0.2
  %v4314 = vmul.f32 %v4144, 0.2
  %v4315 = vmul.f32 %v4149, 0.2
  %v4316 = vmul.f32 %v4154, 0.2
  %v4317 = vmul.f32 %v4159, 0.2
  %v4318 = vmul.f32 %v4164, 0.2
  %v4319 = vmul.f32 %v4169, 0.2
  %v4320 = vmul.f32 %v4174, 0.2
  %v4321 = vmul.f32 %v4179, 0.2
  %v4322 = vmul.f32 %v4184, 0.2
  %v4323 = vmul.f32 %v4189, 0.2
  %v4324 = vmul.f32 %v4194, 0.2
  %v4325 = vsel %vm4197, %v3879, %v4261
  %v4326 = vsel %vm4198, %v3884, %v4262
  %v4327 = vsel %vm4199, %v3889, %v4263
  %v4328 = vsel %vm4200, %v3894, %v4264
  %v4329 = vsel %vm4201, %v3899, %v4265
  %v4330 = vsel %vm4202, %v3904, %v4266
  %v4331 = vsel %vm4203, %v3909, %v4267
  %v4332 = vsel %vm4204, %v3914, %v4268
  %v4333 = vsel %vm4205, %v3919, %v4269
  %v4334 = vsel %vm4206, %v3924, %v4270
  %v4335 = vsel %vm4207, %v3929, %v4271
  %v4336 = vsel %vm4208, %v3934, %v4272
  %v4337 = vsel %vm4209, %v3939, %v4273
  %v4338 = vsel %vm4210, %v3944, %v4274
  %v4339 = vsel %vm4211, %v3949, %v4275
  %v4340 = vsel %vm4212, %v3954, %v4276
  %v4341 = vsel %vm4213, %v3959, %v4277
  %v4342 = vsel %vm4214, %v3964, %v4278
  %v4343 = vsel %vm4215, %v3969, %v4279
  %v4344 = vsel %vm4216, %v3974, %v4280
  %v4345 = vsel %vm4217, %v3979, %v4281
  %v4346 = vsel %vm4218, %v3984, %v4282
  %v4347 = vsel %vm4219, %v3989, %v4283
  %v4348 = vsel %vm4220, %v3994, %v4284
  %v4349 = vsel %vm4221, %v3999, %v4285
  %v4350 = vsel %vm4222, %v4004, %v4286
  %v4351 = vsel %vm4223, %v4009, %v4287
  %v4352 = vsel %vm4224, %v4014, %v4288
  %v4353 = vsel %vm4225, %v4019, %v4289
  %v4354 = vsel %vm4226, %v4024, %v4290
  %v4355 = vsel %vm4227, %v4029, %v4291
  %v4356 = vsel %vm4228, %v4034, %v4292
  %v4357 = vsel %vm4229, %v4039, %v4293
  %v4358 = vsel %vm4230, %v4044, %v4294
  %v4359 = vsel %vm4231, %v4049, %v4295
  %v4360 = vsel %vm4232, %v4054, %v4296
  %v4361 = vsel %vm4233, %v4059, %v4297
  %v4362 = vsel %vm4234, %v4064, %v4298
  %v4363 = vsel %vm4235, %v4069, %v4299
  %v4364 = vsel %vm4236, %v4074, %v4300
  %v4365 = vsel %vm4237, %v4079, %v4301
  %v4366 = vsel %vm4238, %v4084, %v4302
  %v4367 = vsel %vm4239, %v4089, %v4303
  %v4368 = vsel %vm4240, %v4094, %v4304
  %v4369 = vsel %vm4241, %v4099, %v4305
  %v4370 = vsel %vm4242, %v4104, %v4306
  %v4371 = vsel %vm4243, %v4109, %v4307
  %v4372 = vsel %vm4244, %v4114, %v4308
  %v4373 = vsel %vm4245, %v4119, %v4309
  %v4374 = vsel %vm4246, %v4124, %v4310
  %v4375 = vsel %vm4247, %v4129, %v4311
  %v4376 = vsel %vm4248, %v4134, %v4312
  %v4377 = vsel %vm4249, %v4139, %v4313
  %v4378 = vsel %vm4250, %v4144, %v4314
  %v4379 = vsel %vm4251, %v4149, %v4315
  %v4380 = vsel %vm4252, %v4154, %v4316
  %v4381 = vsel %vm4253, %v4159, %v4317
  %v4382 = vsel %vm4254, %v4164, %v4318
  %v4383 = vsel %vm4255, %v4169, %v4319
  %v4384 = vsel %vm4256, %v4174, %v4320
  %v4385 = vsel %vm4257, %v4179, %v4321
  %v4386 = vsel %vm4258, %v4184, %v4322
  %v4387 = vsel %vm4259, %v4189, %v4323
  %v4388 = vsel %vm4260, %v4194, %v4324
  %4389 = vst.msk [vmem:[#allocation4] sm:$0xff] %vm273, 0.0
  %4390 = vst.msk [vmem:[#allocation4 + $0x8] sm:$0xff] %vm273, 0.0
  %vm4391 = vcmask 123904
  %4392 = vst.msk [vmem:[#allocation4 + $0x10] sm:$0x3] %vm4391, 0.0
  %4393 = vst.msk [vmem:[#allocation4 + $0x18] sm:$0xff] %vm273, 0.0
  %4394 = vst.msk [vmem:[#allocation4 + $0x20] sm:$0xff] %vm273, 0.0
  %4395 = vst.msk [vmem:[#allocation4 + $0x28] sm:$0x3] %vm4391, 0.0
  %4396 = vst.msk [vmem:[#allocation4 + $0x30] sm:$0xff] %vm273, 0.0
  %4397 = vst.msk [vmem:[#allocation4 + $0x38] sm:$0xff] %vm273, 0.0
  %4398 = vst.msk [vmem:[#allocation4 + $0x40] sm:$0x3] %vm4391, 0.0
  %4399 = vst.msk [vmem:[#allocation4 + $0x48] sm:$0xff] %vm273, 0.0
  %4400 = vst.msk [vmem:[#allocation4 + $0x50] sm:$0xff] %vm273, 0.0
  %4401 = vst.msk [vmem:[#allocation4 + $0x58] sm:$0x3] %vm4391, 0.0
  %4402 = vst.msk [vmem:[#allocation4 + $0x60] sm:$0xff] %vm273, 0.0
  %4403 = vst.msk [vmem:[#allocation4 + $0x68] sm:$0xff] %vm273, 0.0
  %4404 = vst.msk [vmem:[#allocation4 + $0x70] sm:$0x3] %vm4391, 0.0
  %4405 = vst.msk [vmem:[#allocation4 + $0x78] sm:$0xff] %vm273, 0.0
  %4406 = vst.msk [vmem:[#allocation4 + $0x80] sm:$0xff] %vm273, 0.0
  %4407 = vst.msk [vmem:[#allocation4 + $0x88] sm:$0x3] %vm4391, 0.0
  %4408 = vst.msk [vmem:[#allocation4 + $0x90] sm:$0xff] %vm273, 0.0
  %4409 = vst.msk [vmem:[#allocation4 + $0x98] sm:$0xff] %vm273, 0.0
  %4410 = vst.msk [vmem:[#allocation4 + $0xa0] sm:$0x3] %vm4391, 0.0
  %4411 = vst.msk [vmem:[#allocation4 + $0xa8] sm:$0xff] %vm273, 0.0
  %4412 = vst.msk [vmem:[#allocation4 + $0xb0] sm:$0xff] %vm273, 0.0
  %4413 = vst.msk [vmem:[#allocation4 + $0xb8] sm:$0x3] %vm4391, 0.0
  %4414 = vst.msk [vmem:[#allocation4 + $0xc0] sm:$0xff] %vm273, 0.0
  %4415 = vst.msk [vmem:[#allocation4 + $0xc8] sm:$0xff] %vm273, 0.0
  %4416 = vst.msk [vmem:[#allocation4 + $0xd0] sm:$0x3] %vm4391, 0.0
  %4417 = vst.msk [vmem:[#allocation4 + $0xd8] sm:$0xff] %vm273, 0.0
  %4418 = vst.msk [vmem:[#allocation4 + $0xe0] sm:$0xff] %vm273, 0.0
  %4419 = vst.msk [vmem:[#allocation4 + $0xe8] sm:$0x3] %vm4391, 0.0
  %4420 = vst.msk [vmem:[#allocation4 + $0xf0] sm:$0xff] %vm273, 0.0
  %4421 = vst.msk [vmem:[#allocation4 + $0xf8] sm:$0xff] %vm273, 0.0
  %4422 = vst.msk [vmem:[#allocation4 + $0x100] sm:$0x3] %vm4391, 0.0
  %4423 = vst.msk [vmem:[#allocation4 + $0x108] sm:$0xff] %vm273, 0.0
  %4424 = vst.msk [vmem:[#allocation4 + $0x110] sm:$0xff] %vm273, 0.0
  %4425 = vst.msk [vmem:[#allocation4 + $0x118] sm:$0x3] %vm4391, 0.0
  %4426 = vst.msk [vmem:[#allocation4 + $0x120] sm:$0xff] %vm273, 0.0
  %4427 = vst.msk [vmem:[#allocation4 + $0x128] sm:$0xff] %vm273, 0.0
  %4428 = vst.msk [vmem:[#allocation4 + $0x130] sm:$0x3] %vm4391, 0.0
  %4429 = vst.msk [vmem:[#allocation4 + $0x138] sm:$0xff] %vm273, 0.0
  %4430 = vst.msk [vmem:[#allocation4 + $0x140] sm:$0xff] %vm273, 0.0
  %4431 = vst.msk [vmem:[#allocation4 + $0x148] sm:$0x3] %vm4391, 0.0
  %4432 = vst.msk [vmem:[#allocation4 + $0x150] sm:$0xff] %vm273, 0.0
  %4433 = vst.msk [vmem:[#allocation4 + $0x158] sm:$0xff] %vm273, 0.0
  %4434 = vst.msk [vmem:[#allocation4 + $0x160] sm:$0x3] %vm4391, 0.0
  %4435 = vst.msk [vmem:[#allocation4 + $0x168] sm:$0xff] %vm273, 0.0
  %4436 = vst.msk [vmem:[#allocation4 + $0x170] sm:$0xff] %vm273, 0.0
  %4437 = vst.msk [vmem:[#allocation4 + $0x178] sm:$0x3] %vm4391, 0.0
  %4438 = vst.msk [vmem:[#allocation4 + $0x180] sm:$0xff] %vm273, 0.0
  %4439 = vst.msk [vmem:[#allocation4 + $0x188] sm:$0xff] %vm273, 0.0
  %4440 = vst.msk [vmem:[#allocation4 + $0x190] sm:$0x3] %vm4391, 0.0
  %4441 = vst.msk [vmem:[#allocation4 + $0x198] sm:$0xff] %vm273, 0.0
  %4442 = vst.msk [vmem:[#allocation4 + $0x1a0] sm:$0xff] %vm273, 0.0
  %4443 = vst.msk [vmem:[#allocation4 + $0x1a8] sm:$0x3] %vm4391, 0.0
  %4444 = vst.msk [vmem:[#allocation4 + $0x1b0] sm:$0xff] %vm273, 0.0
  %4445 = vst.msk [vmem:[#allocation4 + $0x1b8] sm:$0xff] %vm273, 0.0
  %4446 = vst.msk [vmem:[#allocation4 + $0x1c0] sm:$0x3] %vm4391, 0.0
  %4447 = vst.msk [vmem:[#allocation4 + $0x1c8] sm:$0xff] %vm273, 0.0
  %4448 = vst.msk [vmem:[#allocation4 + $0x1d0] sm:$0xff] %vm273, 0.0
  %4449 = vst.msk [vmem:[#allocation4 + $0x1d8] sm:$0x3] %vm4391, 0.0
  %4450 = vst.msk [vmem:[#allocation4 + $0x1e0] sm:$0xff] %vm273, 0.0
  %4451 = vst.msk [vmem:[#allocation4 + $0x1e8] sm:$0xff] %vm273, 0.0
  %4452 = vst.msk [vmem:[#allocation4 + $0x1f0] sm:$0x3] %vm4391, 0.0
  %4453 = vst.msk [vmem:[#allocation4 + $0x1f8] sm:$0xff] %vm273, 0.0
  %4454 = vst.msk [vmem:[#allocation4 + $0x200] sm:$0xff] %vm273, 0.0
  %4455 = vst.msk [vmem:[#allocation4 + $0x208] sm:$0x3] %vm4391, 0.0
  %4456 = vst.msk [vmem:[#allocation4 + $0x210] sm:$0xff] %vm273, 0.0
  %4457 = vst.msk [vmem:[#allocation4 + $0x218] sm:$0xff] %vm273, 0.0
  %4458 = vst.msk [vmem:[#allocation4 + $0x220] sm:$0x3] %vm4391, 0.0
  %4459 = vst.msk [vmem:[#allocation4 + $0x228] sm:$0xff] %vm273, 0.0
  %4460 = vst.msk [vmem:[#allocation4 + $0x230] sm:$0xff] %vm273, 0.0
  %4461 = vst.msk [vmem:[#allocation4 + $0x238] sm:$0x3] %vm4391, 0.0
  %4462 = vst.msk [vmem:[#allocation4 + $0x240] sm:$0xff] %vm273, 0.0
  %4463 = vst.msk [vmem:[#allocation4 + $0x248] sm:$0xff] %vm273, 0.0
  %4464 = vst.msk [vmem:[#allocation4 + $0x250] sm:$0x3] %vm4391, 0.0
  %4465 = vst.msk [vmem:[#allocation4 + $0x258] sm:$0xff] %vm273, 0.0
  %4466 = vst.msk [vmem:[#allocation4 + $0x260] sm:$0xff] %vm273, 0.0
  %4467 = vst.msk [vmem:[#allocation4 + $0x268] sm:$0x3] %vm4391, 0.0
  %4468 = vst.msk [vmem:[#allocation4 + $0x270] sm:$0xff] %vm273, 0.0
  %4469 = vst.msk [vmem:[#allocation4 + $0x278] sm:$0xff] %vm273, 0.0
  %4470 = vst.msk [vmem:[#allocation4 + $0x280] sm:$0x3] %vm4391, 0.0
  %4471 = vst.msk [vmem:[#allocation4 + $0x288] sm:$0xff] %vm273, 0.0
  %4472 = vst.msk [vmem:[#allocation4 + $0x290] sm:$0xff] %vm273, 0.0
  %4473 = vst.msk [vmem:[#allocation4 + $0x298] sm:$0x3] %vm4391, 0.0
  %4474 = vst.msk [vmem:[#allocation4 + $0x2a0] sm:$0xff] %vm273, 0.0
  %4475 = vst.msk [vmem:[#allocation4 + $0x2a8] sm:$0xff] %vm273, 0.0
  %4476 = vst.msk [vmem:[#allocation4 + $0x2b0] sm:$0x3] %vm4391, 0.0
  %4477 = vst.msk [vmem:[#allocation4 + $0x2b8] sm:$0xff] %vm273, 0.0
  %4478 = vst.msk [vmem:[#allocation4 + $0x2c0] sm:$0xff] %vm273, 0.0
  %4479 = vst.msk [vmem:[#allocation4 + $0x2c8] sm:$0x3] %vm4391, 0.0
  %4480 = vst.msk [vmem:[#allocation4 + $0x2d0] sm:$0xff] %vm273, 0.0
  %4481 = vst.msk [vmem:[#allocation4 + $0x2d8] sm:$0xff] %vm273, 0.0
  %4482 = vst.msk [vmem:[#allocation4 + $0x2e0] sm:$0x3] %vm4391, 0.0
  %4483 = vst.msk [vmem:[#allocation4 + $0x2e8] sm:$0xff] %vm273, 0.0
  %4484 = vst.msk [vmem:[#allocation4 + $0x2f0] sm:$0xff] %vm273, 0.0
  %4485 = vst.msk [vmem:[#allocation4 + $0x2f8] sm:$0x3] %vm4391, 0.0
  %4486 = vst.msk [vmem:[#allocation4 + $0x300] sm:$0xff] %vm273, 0.0
  %4487 = vst.msk [vmem:[#allocation4 + $0x308] sm:$0xff] %vm273, 0.0
  %4488 = vst.msk [vmem:[#allocation4 + $0x310] sm:$0x3] %vm4391, 0.0
  %4489 = vst.msk [vmem:[#allocation4 + $0x318] sm:$0xff] %vm273, 0.0
  %4490 = vst.msk [vmem:[#allocation4 + $0x320] sm:$0xff] %vm273, 0.0
  %4491 = vst.msk [vmem:[#allocation4 + $0x328] sm:$0x3] %vm4391, 0.0
  %4492 = vst.msk [vmem:[#allocation4 + $0x330] sm:$0xff] %vm273, 0.0
  %4493 = vst.msk [vmem:[#allocation4 + $0x338] sm:$0xff] %vm273, 0.0
  %4494 = vst.msk [vmem:[#allocation4 + $0x340] sm:$0x3] %vm4391, 0.0
  %4495 = vst.msk [vmem:[#allocation4 + $0x348] sm:$0xff] %vm273, 0.0
  %4496 = vst.msk [vmem:[#allocation4 + $0x350] sm:$0xff] %vm273, 0.0
  %4497 = vst.msk [vmem:[#allocation4 + $0x358] sm:$0x3] %vm4391, 0.0
  %s4498 = scalar_lea.vmem [#allocation4], 24
  %4499 = vst.msk [vmem:[%s4498 + $0x1] sm:$0xff] %vm273, %v4325
  %4500 = vst.msk [vmem:[%s4498 + $0x9] sm:$0xff] %vm273, %v4326
  %4501 = vst.msk [vmem:[%s4498 + $0x19] sm:$0xff] %vm273, %v4327
  %4502 = vst.msk [vmem:[%s4498 + $0x21] sm:$0xff] %vm273, %v4328
  %4503 = vst.msk [vmem:[%s4498 + $0x31] sm:$0xff] %vm273, %v4329
  %4504 = vst.msk [vmem:[%s4498 + $0x39] sm:$0xff] %vm273, %v4330
  %4505 = vst.msk [vmem:[%s4498 + $0x49] sm:$0xff] %vm273, %v4331
  %4506 = vst.msk [vmem:[%s4498 + $0x51] sm:$0xff] %vm273, %v4332
  %4507 = vst.msk [vmem:[%s4498 + $0x61] sm:$0xff] %vm273, %v4333
  %4508 = vst.msk [vmem:[%s4498 + $0x69] sm:$0xff] %vm273, %v4334
  %4509 = vst.msk [vmem:[%s4498 + $0x79] sm:$0xff] %vm273, %v4335
  %4510 = vst.msk [vmem:[%s4498 + $0x81] sm:$0xff] %vm273, %v4336
  %4511 = vst.msk [vmem:[%s4498 + $0x91] sm:$0xff] %vm273, %v4337
  %4512 = vst.msk [vmem:[%s4498 + $0x99] sm:$0xff] %vm273, %v4338
  %4513 = vst.msk [vmem:[%s4498 + $0xa9] sm:$0xff] %vm273, %v4339
  %4514 = vst.msk [vmem:[%s4498 + $0xb1] sm:$0xff] %vm273, %v4340
  %4515 = vst.msk [vmem:[%s4498 + $0xc1] sm:$0xff] %vm273, %v4341
  %4516 = vst.msk [vmem:[%s4498 + $0xc9] sm:$0xff] %vm273, %v4342
  %4517 = vst.msk [vmem:[%s4498 + $0xd9] sm:$0xff] %vm273, %v4343
  %4518 = vst.msk [vmem:[%s4498 + $0xe1] sm:$0xff] %vm273, %v4344
  %4519 = vst.msk [vmem:[%s4498 + $0xf1] sm:$0xff] %vm273, %v4345
  %4520 = vst.msk [vmem:[%s4498 + $0xf9] sm:$0xff] %vm273, %v4346
  %4521 = vst.msk [vmem:[%s4498 + $0x109] sm:$0xff] %vm273, %v4347
  %4522 = vst.msk [vmem:[%s4498 + $0x111] sm:$0xff] %vm273, %v4348
  %4523 = vst.msk [vmem:[%s4498 + $0x121] sm:$0xff] %vm273, %v4349
  %4524 = vst.msk [vmem:[%s4498 + $0x129] sm:$0xff] %vm273, %v4350
  %4525 = vst.msk [vmem:[%s4498 + $0x139] sm:$0xff] %vm273, %v4351
  %4526 = vst.msk [vmem:[%s4498 + $0x141] sm:$0xff] %vm273, %v4352
  %4527 = vst.msk [vmem:[%s4498 + $0x151] sm:$0xff] %vm273, %v4353
  %4528 = vst.msk [vmem:[%s4498 + $0x159] sm:$0xff] %vm273, %v4354
  %4529 = vst.msk [vmem:[%s4498 + $0x169] sm:$0xff] %vm273, %v4355
  %4530 = vst.msk [vmem:[%s4498 + $0x171] sm:$0xff] %vm273, %v4356
  %4531 = vst.msk [vmem:[%s4498 + $0x1b1] sm:$0xff] %vm273, %v4357
  %4532 = vst.msk [vmem:[%s4498 + $0x1b9] sm:$0xff] %vm273, %v4358
  %4533 = vst.msk [vmem:[%s4498 + $0x1c9] sm:$0xff] %vm273, %v4359
  %4534 = vst.msk [vmem:[%s4498 + $0x1d1] sm:$0xff] %vm273, %v4360
  %4535 = vst.msk [vmem:[%s4498 + $0x1e1] sm:$0xff] %vm273, %v4361
  %4536 = vst.msk [vmem:[%s4498 + $0x1e9] sm:$0xff] %vm273, %v4362
  %4537 = vst.msk [vmem:[%s4498 + $0x1f9] sm:$0xff] %vm273, %v4363
  %4538 = vst.msk [vmem:[%s4498 + $0x201] sm:$0xff] %vm273, %v4364
  %4539 = vst.msk [vmem:[%s4498 + $0x211] sm:$0xff] %vm273, %v4365
  %4540 = vst.msk [vmem:[%s4498 + $0x219] sm:$0xff] %vm273, %v4366
  %4541 = vst.msk [vmem:[%s4498 + $0x229] sm:$0xff] %vm273, %v4367
  %4542 = vst.msk [vmem:[%s4498 + $0x231] sm:$0xff] %vm273, %v4368
  %4543 = vst.msk [vmem:[%s4498 + $0x241] sm:$0xff] %vm273, %v4369
  %4544 = vst.msk [vmem:[%s4498 + $0x249] sm:$0xff] %vm273, %v4370
  %4545 = vst.msk [vmem:[%s4498 + $0x259] sm:$0xff] %vm273, %v4371
  %4546 = vst.msk [vmem:[%s4498 + $0x261] sm:$0xff] %vm273, %v4372
  %4547 = vst.msk [vmem:[%s4498 + $0x271] sm:$0xff] %vm273, %v4373
  %4548 = vst.msk [vmem:[%s4498 + $0x279] sm:$0xff] %vm273, %v4374
  %4549 = vst.msk [vmem:[%s4498 + $0x289] sm:$0xff] %vm273, %v4375
  %4550 = vst.msk [vmem:[%s4498 + $0x291] sm:$0xff] %vm273, %v4376
  %4551 = vst.msk [vmem:[%s4498 + $0x2a1] sm:$0xff] %vm273, %v4377
  %4552 = vst.msk [vmem:[%s4498 + $0x2a9] sm:$0xff] %vm273, %v4378
  %4553 = vst.msk [vmem:[%s4498 + $0x2b9] sm:$0xff] %vm273, %v4379
  %4554 = vst.msk [vmem:[%s4498 + $0x2c1] sm:$0xff] %vm273, %v4380
  %4555 = vst.msk [vmem:[%s4498 + $0x2d1] sm:$0xff] %vm273, %v4381
  %4556 = vst.msk [vmem:[%s4498 + $0x2d9] sm:$0xff] %vm273, %v4382
  %4557 = vst.msk [vmem:[%s4498 + $0x2e9] sm:$0xff] %vm273, %v4383
  %4558 = vst.msk [vmem:[%s4498 + $0x2f1] sm:$0xff] %vm273, %v4384
  %4559 = vst.msk [vmem:[%s4498 + $0x301] sm:$0xff] %vm273, %v4385
  %4560 = vst.msk [vmem:[%s4498 + $0x309] sm:$0xff] %vm273, %v4386
  %4561 = vst.msk [vmem:[%s4498 + $0x319] sm:$0xff] %vm273, %v4387
  %4562 = vst.msk [vmem:[%s4498 + $0x321] sm:$0xff] %vm273, %v4388
  %v4563 = vld [vmem:[#allocation4] sm:$0xff]
  %v4564 = vld [vmem:[#allocation4 + $0x8] sm:$0xff]
  %v4565 = vld [vmem:[#allocation4 + $0x18] sm:$0xff]
  %v4566 = vld [vmem:[#allocation4 + $0x20] sm:$0xff]
  %v4567 = vld [vmem:[#allocation4 + $0x30] sm:$0xff]
  %v4568 = vld [vmem:[#allocation4 + $0x38] sm:$0xff]
  %v4569 = vld [vmem:[#allocation4 + $0x48] sm:$0xff]
  %v4570 = vld [vmem:[#allocation4 + $0x50] sm:$0xff]
  %v4571 = vld [vmem:[#allocation4 + $0x60] sm:$0xff]
  %v4572 = vld [vmem:[#allocation4 + $0x68] sm:$0xff]
  %v4573 = vld [vmem:[#allocation4 + $0x78] sm:$0xff]
  %v4574 = vld [vmem:[#allocation4 + $0x80] sm:$0xff]
  %v4575 = vld [vmem:[#allocation4 + $0x90] sm:$0xff]
  %v4576 = vld [vmem:[#allocation4 + $0x98] sm:$0xff]
  %v4577 = vld [vmem:[#allocation4 + $0xa8] sm:$0xff]
  %v4578 = vld [vmem:[#allocation4 + $0xb0] sm:$0xff]
  %v4579 = vld [vmem:[#allocation4 + $0xc0] sm:$0xff]
  %v4580 = vld [vmem:[#allocation4 + $0xc8] sm:$0xff]
  %v4581 = vld [vmem:[#allocation4 + $0xd8] sm:$0xff]
  %v4582 = vld [vmem:[#allocation4 + $0xe0] sm:$0xff]
  %v4583 = vld [vmem:[#allocation4 + $0xf0] sm:$0xff]
  %v4584 = vld [vmem:[#allocation4 + $0xf8] sm:$0xff]
  %v4585 = vld [vmem:[#allocation4 + $0x108] sm:$0xff]
  %v4586 = vld [vmem:[#allocation4 + $0x110] sm:$0xff]
  %v4587 = vld [vmem:[#allocation4 + $0x120] sm:$0xff]
  %v4588 = vld [vmem:[#allocation4 + $0x128] sm:$0xff]
  %v4589 = vld [vmem:[#allocation4 + $0x138] sm:$0xff]
  %v4590 = vld [vmem:[#allocation4 + $0x140] sm:$0xff]
  %v4591 = vld [vmem:[#allocation4 + $0x150] sm:$0xff]
  %v4592 = vld [vmem:[#allocation4 + $0x158] sm:$0xff]
  %v4593 = vld [vmem:[#allocation4 + $0x168] sm:$0xff]
  %v4594 = vld [vmem:[#allocation4 + $0x170] sm:$0xff]
  %v4595 = vld [vmem:[#allocation4 + $0x1b0] sm:$0xff]
  %v4596 = vld [vmem:[#allocation4 + $0x1b8] sm:$0xff]
  %v4597 = vld [vmem:[#allocation4 + $0x1c8] sm:$0xff]
  %v4598 = vld [vmem:[#allocation4 + $0x1d0] sm:$0xff]
  %v4599 = vld [vmem:[#allocation4 + $0x1e0] sm:$0xff]
  %v4600 = vld [vmem:[#allocation4 + $0x1e8] sm:$0xff]
  %v4601 = vld [vmem:[#allocation4 + $0x1f8] sm:$0xff]
  %v4602 = vld [vmem:[#allocation4 + $0x200] sm:$0xff]
  %v4603 = vld [vmem:[#allocation4 + $0x210] sm:$0xff]
  %v4604 = vld [vmem:[#allocation4 + $0x218] sm:$0xff]
  %v4605 = vld [vmem:[#allocation4 + $0x228] sm:$0xff]
  %v4606 = vld [vmem:[#allocation4 + $0x230] sm:$0xff]
  %v4607 = vld [vmem:[#allocation4 + $0x240] sm:$0xff]
  %v4608 = vld [vmem:[#allocation4 + $0x248] sm:$0xff]
  %v4609 = vld [vmem:[#allocation4 + $0x258] sm:$0xff]
  %v4610 = vld [vmem:[#allocation4 + $0x260] sm:$0xff]
  %v4611 = vld [vmem:[#allocation4 + $0x270] sm:$0xff]
  %v4612 = vld [vmem:[#allocation4 + $0x278] sm:$0xff]
  %v4613 = vld [vmem:[#allocation4 + $0x288] sm:$0xff]
  %v4614 = vld [vmem:[#allocation4 + $0x290] sm:$0xff]
  %v4615 = vld [vmem:[#allocation4 + $0x2a0] sm:$0xff]
  %v4616 = vld [vmem:[#allocation4 + $0x2a8] sm:$0xff]
  %v4617 = vld [vmem:[#allocation4 + $0x2b8] sm:$0xff]
  %v4618 = vld [vmem:[#allocation4 + $0x2c0] sm:$0xff]
  %v4619 = vld [vmem:[#allocation4 + $0x2d0] sm:$0xff]
  %v4620 = vld [vmem:[#allocation4 + $0x2d8] sm:$0xff]
  %v4621 = vld [vmem:[#allocation4 + $0x2e8] sm:$0xff]
  %v4622 = vld [vmem:[#allocation4 + $0x2f0] sm:$0xff]
  %v4623 = vld [vmem:[#allocation4 + $0x300] sm:$0xff]
  %v4624 = vld [vmem:[#allocation4 + $0x308] sm:$0xff]
  %v4625 = vld [vmem:[#allocation4 + $0x318] sm:$0xff]
  %v4626 = vld [vmem:[#allocation4 + $0x320] sm:$0xff]
  %4627 = vst.msk [vmem:[#allocation5] sm:$0xff] %vm273, %v4563
  %4628 = vst.msk [vmem:[#allocation5 + $0x10] sm:$0xff] %vm273, %v4564
  %4629 = vst.msk [vmem:[#allocation5 + $0x20] sm:$0xff] %vm273, %v4565
  %4630 = vst.msk [vmem:[#allocation5 + $0x30] sm:$0xff] %vm273, %v4566
  %4631 = vst.msk [vmem:[#allocation5 + $0x40] sm:$0xff] %vm273, %v4567
  %4632 = vst.msk [vmem:[#allocation5 + $0x50] sm:$0xff] %vm273, %v4568
  %4633 = vst.msk [vmem:[#allocation5 + $0x60] sm:$0xff] %vm273, %v4569
  %4634 = vst.msk [vmem:[#allocation5 + $0x70] sm:$0xff] %vm273, %v4570
  %4635 = vst.msk [vmem:[#allocation5 + $0x80] sm:$0xff] %vm273, %v4571
  %4636 = vst.msk [vmem:[#allocation5 + $0x90] sm:$0xff] %vm273, %v4572
  %4637 = vst.msk [vmem:[#allocation5 + $0xa0] sm:$0xff] %vm273, %v4573
  %4638 = vst.msk [vmem:[#allocation5 + $0xb0] sm:$0xff] %vm273, %v4574
  %4639 = vst.msk [vmem:[#allocation5 + $0xc0] sm:$0xff] %vm273, %v4575
  %4640 = vst.msk [vmem:[#allocation5 + $0xd0] sm:$0xff] %vm273, %v4576
  %4641 = vst.msk [vmem:[#allocation5 + $0xe0] sm:$0xff] %vm273, %v4577
  %4642 = vst.msk [vmem:[#allocation5 + $0xf0] sm:$0xff] %vm273, %v4578
  %4643 = vst.msk [vmem:[#allocation5 + $0x100] sm:$0xff] %vm273, %v4579
  %4644 = vst.msk [vmem:[#allocation5 + $0x110] sm:$0xff] %vm273, %v4580
  %4645 = vst.msk [vmem:[#allocation5 + $0x120] sm:$0xff] %vm273, %v4581
  %4646 = vst.msk [vmem:[#allocation5 + $0x130] sm:$0xff] %vm273, %v4582
  %4647 = vst.msk [vmem:[#allocation5 + $0x140] sm:$0xff] %vm273, %v4583
  %4648 = vst.msk [vmem:[#allocation5 + $0x150] sm:$0xff] %vm273, %v4584
  %4649 = vst.msk [vmem:[#allocation5 + $0x160] sm:$0xff] %vm273, %v4585
  %4650 = vst.msk [vmem:[#allocation5 + $0x170] sm:$0xff] %vm273, %v4586
  %4651 = vst.msk [vmem:[#allocation5 + $0x180] sm:$0xff] %vm273, %v4587
  %4652 = vst.msk [vmem:[#allocation5 + $0x190] sm:$0xff] %vm273, %v4588
  %4653 = vst.msk [vmem:[#allocation5 + $0x1a0] sm:$0xff] %vm273, %v4589
  %4654 = vst.msk [vmem:[#allocation5 + $0x1b0] sm:$0xff] %vm273, %v4590
  %4655 = vst.msk [vmem:[#allocation5 + $0x1c0] sm:$0xff] %vm273, %v4591
  %4656 = vst.msk [vmem:[#allocation5 + $0x1d0] sm:$0xff] %vm273, %v4592
  %4657 = vst.msk [vmem:[#allocation5 + $0x1e0] sm:$0xff] %vm273, %v4593
  %4658 = vst.msk [vmem:[#allocation5 + $0x1f0] sm:$0xff] %vm273, %v4594
  %4659 = vst.msk [vmem:[#allocation5 + $0x200] sm:$0xff] %vm273, %v4595
  %4660 = vst.msk [vmem:[#allocation5 + $0x210] sm:$0xff] %vm273, %v4596
  %4661 = vst.msk [vmem:[#allocation5 + $0x220] sm:$0xff] %vm273, %v4597
  %4662 = vst.msk [vmem:[#allocation5 + $0x230] sm:$0xff] %vm273, %v4598
  %4663 = vst.msk [vmem:[#allocation5 + $0x240] sm:$0xff] %vm273, %v4599
  %4664 = vst.msk [vmem:[#allocation5 + $0x250] sm:$0xff] %vm273, %v4600
  %4665 = vst.msk [vmem:[#allocation5 + $0x260] sm:$0xff] %vm273, %v4601
  %4666 = vst.msk [vmem:[#allocation5 + $0x270] sm:$0xff] %vm273, %v4602
  %4667 = vst.msk [vmem:[#allocation5 + $0x280] sm:$0xff] %vm273, %v4603
  %4668 = vst.msk [vmem:[#allocation5 + $0x290] sm:$0xff] %vm273, %v4604
  %4669 = vst.msk [vmem:[#allocation5 + $0x2a0] sm:$0xff] %vm273, %v4605
  %4670 = vst.msk [vmem:[#allocation5 + $0x2b0] sm:$0xff] %vm273, %v4606
  %4671 = vst.msk [vmem:[#allocation5 + $0x2c0] sm:$0xff] %vm273, %v4607
  %4672 = vst.msk [vmem:[#allocation5 + $0x2d0] sm:$0xff] %vm273, %v4608
  %4673 = vst.msk [vmem:[#allocation5 + $0x2e0] sm:$0xff] %vm273, %v4609
  %4674 = vst.msk [vmem:[#allocation5 + $0x2f0] sm:$0xff] %vm273, %v4610
  %4675 = vst.msk [vmem:[#allocation5 + $0x300] sm:$0xff] %vm273, %v4611
  %4676 = vst.msk [vmem:[#allocation5 + $0x310] sm:$0xff] %vm273, %v4612
  %4677 = vst.msk [vmem:[#allocation5 + $0x320] sm:$0xff] %vm273, %v4613
  %4678 = vst.msk [vmem:[#allocation5 + $0x330] sm:$0xff] %vm273, %v4614
  %4679 = vst.msk [vmem:[#allocation5 + $0x340] sm:$0xff] %vm273, %v4615
  %4680 = vst.msk [vmem:[#allocation5 + $0x350] sm:$0xff] %vm273, %v4616
  %4681 = vst.msk [vmem:[#allocation5 + $0x360] sm:$0xff] %vm273, %v4617
  %4682 = vst.msk [vmem:[#allocation5 + $0x370] sm:$0xff] %vm273, %v4618
  %4683 = vst.msk [vmem:[#allocation5 + $0x380] sm:$0xff] %vm273, %v4619
  %4684 = vst.msk [vmem:[#allocation5 + $0x390] sm:$0xff] %vm273, %v4620
  %4685 = vst.msk [vmem:[#allocation5 + $0x3a0] sm:$0xff] %vm273, %v4621
  %4686 = vst.msk [vmem:[#allocation5 + $0x3b0] sm:$0xff] %vm273, %v4622
  %4687 = vst.msk [vmem:[#allocation5 + $0x3c0] sm:$0xff] %vm273, %v4623
  %4688 = vst.msk [vmem:[#allocation5 + $0x3d0] sm:$0xff] %vm273, %v4624
  %4689 = vst.msk [vmem:[#allocation5 + $0x3e0] sm:$0xff] %vm273, %v4625
  %4690 = vst.msk [vmem:[#allocation5 + $0x3f0] sm:$0xff] %vm273, %v4626
  %v4691 = vld [vmem:[#allocation4 + $0x1] sm:$0xff]
  %v4692 = vld [vmem:[#allocation4 + $0x9] sm:$0xff]
  %v4693 = vld [vmem:[#allocation4 + $0x19] sm:$0xff]
  %v4694 = vld [vmem:[#allocation4 + $0x21] sm:$0xff]
  %v4695 = vld [vmem:[#allocation4 + $0x31] sm:$0xff]
  %v4696 = vld [vmem:[#allocation4 + $0x39] sm:$0xff]
  %v4697 = vld [vmem:[#allocation4 + $0x49] sm:$0xff]
  %v4698 = vld [vmem:[#allocation4 + $0x51] sm:$0xff]
  %v4699 = vld [vmem:[#allocation4 + $0x61] sm:$0xff]
  %v4700 = vld [vmem:[#allocation4 + $0x69] sm:$0xff]
  %v4701 = vld [vmem:[#allocation4 + $0x79] sm:$0xff]
  %v4702 = vld [vmem:[#allocation4 + $0x81] sm:$0xff]
  %v4703 = vld [vmem:[#allocation4 + $0x91] sm:$0xff]
  %v4704 = vld [vmem:[#allocation4 + $0x99] sm:$0xff]
  %v4705 = vld [vmem:[#allocation4 + $0xa9] sm:$0xff]
  %v4706 = vld [vmem:[#allocation4 + $0xb1] sm:$0xff]
  %v4707 = vld [vmem:[#allocation4 + $0xc1] sm:$0xff]
  %v4708 = vld [vmem:[#allocation4 + $0xc9] sm:$0xff]
  %v4709 = vld [vmem:[#allocation4 + $0xd9] sm:$0xff]
  %v4710 = vld [vmem:[#allocation4 + $0xe1] sm:$0xff]
  %v4711 = vld [vmem:[#allocation4 + $0xf1] sm:$0xff]
  %v4712 = vld [vmem:[#allocation4 + $0xf9] sm:$0xff]
  %v4713 = vld [vmem:[#allocation4 + $0x109] sm:$0xff]
  %v4714 = vld [vmem:[#allocation4 + $0x111] sm:$0xff]
  %v4715 = vld [vmem:[#allocation4 + $0x121] sm:$0xff]
  %v4716 = vld [vmem:[#allocation4 + $0x129] sm:$0xff]
  %v4717 = vld [vmem:[#allocation4 + $0x139] sm:$0xff]
  %v4718 = vld [vmem:[#allocation4 + $0x141] sm:$0xff]
  %v4719 = vld [vmem:[#allocation4 + $0x151] sm:$0xff]
  %v4720 = vld [vmem:[#allocation4 + $0x159] sm:$0xff]
  %v4721 = vld [vmem:[#allocation4 + $0x169] sm:$0xff]
  %v4722 = vld [vmem:[#allocation4 + $0x171] sm:$0xff]
  %v4723 = vld [vmem:[#allocation4 + $0x1b1] sm:$0xff]
  %v4724 = vld [vmem:[#allocation4 + $0x1b9] sm:$0xff]
  %v4725 = vld [vmem:[#allocation4 + $0x1c9] sm:$0xff]
  %v4726 = vld [vmem:[#allocation4 + $0x1d1] sm:$0xff]
  %v4727 = vld [vmem:[#allocation4 + $0x1e1] sm:$0xff]
  %v4728 = vld [vmem:[#allocation4 + $0x1e9] sm:$0xff]
  %v4729 = vld [vmem:[#allocation4 + $0x1f9] sm:$0xff]
  %v4730 = vld [vmem:[#allocation4 + $0x201] sm:$0xff]
  %v4731 = vld [vmem:[#allocation4 + $0x211] sm:$0xff]
  %v4732 = vld [vmem:[#allocation4 + $0x219] sm:$0xff]
  %v4733 = vld [vmem:[#allocation4 + $0x229] sm:$0xff]
  %v4734 = vld [vmem:[#allocation4 + $0x231] sm:$0xff]
  %v4735 = vld [vmem:[#allocation4 + $0x241] sm:$0xff]
  %v4736 = vld [vmem:[#allocation4 + $0x249] sm:$0xff]
  %v4737 = vld [vmem:[#allocation4 + $0x259] sm:$0xff]
  %v4738 = vld [vmem:[#allocation4 + $0x261] sm:$0xff]
  %v4739 = vld [vmem:[#allocation4 + $0x271] sm:$0xff]
  %v4740 = vld [vmem:[#allocation4 + $0x279] sm:$0xff]
  %v4741 = vld [vmem:[#allocation4 + $0x289] sm:$0xff]
  %v4742 = vld [vmem:[#allocation4 + $0x291] sm:$0xff]
  %v4743 = vld [vmem:[#allocation4 + $0x2a1] sm:$0xff]
  %v4744 = vld [vmem:[#allocation4 + $0x2a9] sm:$0xff]
  %v4745 = vld [vmem:[#allocation4 + $0x2b9] sm:$0xff]
  %v4746 = vld [vmem:[#allocation4 + $0x2c1] sm:$0xff]
  %v4747 = vld [vmem:[#allocation4 + $0x2d1] sm:$0xff]
  %v4748 = vld [vmem:[#allocation4 + $0x2d9] sm:$0xff]
  %v4749 = vld [vmem:[#allocation4 + $0x2e9] sm:$0xff]
  %v4750 = vld [vmem:[#allocation4 + $0x2f1] sm:$0xff]
  %v4751 = vld [vmem:[#allocation4 + $0x301] sm:$0xff]
  %v4752 = vld [vmem:[#allocation4 + $0x309] sm:$0xff]
  %v4753 = vld [vmem:[#allocation4 + $0x319] sm:$0xff]
  %v4754 = vld [vmem:[#allocation4 + $0x321] sm:$0xff]
  %4819 = vrot.lane.b32.xlu0 %v4691, 16
  %v4820 = vpop.permute.xlu0 %4819
  %4821 = vrot.lane.b32.xlu0 %v4692, 16
  %v4822 = vpop.permute.xlu0 %4821
  %4823 = vrot.lane.b32.xlu0 %v4693, 16
  %v4824 = vpop.permute.xlu0 %4823
  %4825 = vrot.lane.b32.xlu0 %v4694, 16
  %v4826 = vpop.permute.xlu0 %4825
  %4827 = vrot.lane.b32.xlu0 %v4695, 16
  %v4828 = vpop.permute.xlu0 %4827
  %4829 = vrot.lane.b32.xlu0 %v4696, 16
  %v4830 = vpop.permute.xlu0 %4829
  %4831 = vrot.lane.b32.xlu0 %v4697, 16
  %v4832 = vpop.permute.xlu0 %4831
  %4833 = vrot.lane.b32.xlu0 %v4698, 16
  %v4834 = vpop.permute.xlu0 %4833
  %4835 = vrot.lane.b32.xlu0 %v4699, 16
  %v4836 = vpop.permute.xlu0 %4835
  %4837 = vrot.lane.b32.xlu0 %v4700, 16
  %v4838 = vpop.permute.xlu0 %4837
  %4839 = vrot.lane.b32.xlu0 %v4701, 16
  %v4840 = vpop.permute.xlu0 %4839
  %4841 = vrot.lane.b32.xlu0 %v4702, 16
  %v4842 = vpop.permute.xlu0 %4841
  %4843 = vrot.lane.b32.xlu0 %v4703, 16
  %v4844 = vpop.permute.xlu0 %4843
  %4845 = vrot.lane.b32.xlu0 %v4704, 16
  %v4846 = vpop.permute.xlu0 %4845
  %4847 = vrot.lane.b32.xlu0 %v4705, 16
  %v4848 = vpop.permute.xlu0 %4847
  %4849 = vrot.lane.b32.xlu0 %v4706, 16
  %v4850 = vpop.permute.xlu0 %4849
  %4851 = vrot.lane.b32.xlu0 %v4707, 16
  %v4852 = vpop.permute.xlu0 %4851
  %4853 = vrot.lane.b32.xlu0 %v4708, 16
  %v4854 = vpop.permute.xlu0 %4853
  %4855 = vrot.lane.b32.xlu0 %v4709, 16
  %v4856 = vpop.permute.xlu0 %4855
  %4857 = vrot.lane.b32.xlu0 %v4710, 16
  %v4858 = vpop.permute.xlu0 %4857
  %4859 = vrot.lane.b32.xlu0 %v4711, 16
  %v4860 = vpop.permute.xlu0 %4859
  %4861 = vrot.lane.b32.xlu0 %v4712, 16
  %v4862 = vpop.permute.xlu0 %4861
  %4863 = vrot.lane.b32.xlu0 %v4713, 16
  %v4864 = vpop.permute.xlu0 %4863
  %4865 = vrot.lane.b32.xlu0 %v4714, 16
  %v4866 = vpop.permute.xlu0 %4865
  %4867 = vrot.lane.b32.xlu0 %v4715, 16
  %v4868 = vpop.permute.xlu0 %4867
  %4869 = vrot.lane.b32.xlu0 %v4716, 16
  %v4870 = vpop.permute.xlu0 %4869
  %4871 = vrot.lane.b32.xlu0 %v4717, 16
  %v4872 = vpop.permute.xlu0 %4871
  %4873 = vrot.lane.b32.xlu0 %v4718, 16
  %v4874 = vpop.permute.xlu0 %4873
  %4875 = vrot.lane.b32.xlu0 %v4719, 16
  %v4876 = vpop.permute.xlu0 %4875
  %4877 = vrot.lane.b32.xlu0 %v4720, 16
  %v4878 = vpop.permute.xlu0 %4877
  %4879 = vrot.lane.b32.xlu0 %v4721, 16
  %v4880 = vpop.permute.xlu0 %4879
  %4881 = vrot.lane.b32.xlu0 %v4722, 16
  %v4882 = vpop.permute.xlu0 %4881
  %4883 = vrot.lane.b32.xlu0 %v4723, 16
  %v4884 = vpop.permute.xlu0 %4883
  %4885 = vrot.lane.b32.xlu0 %v4724, 16
  %v4886 = vpop.permute.xlu0 %4885
  %4887 = vrot.lane.b32.xlu0 %v4725, 16
  %v4888 = vpop.permute.xlu0 %4887
  %4889 = vrot.lane.b32.xlu0 %v4726, 16
  %v4890 = vpop.permute.xlu0 %4889
  %4891 = vrot.lane.b32.xlu0 %v4727, 16
  %v4892 = vpop.permute.xlu0 %4891
  %4893 = vrot.lane.b32.xlu0 %v4728, 16
  %v4894 = vpop.permute.xlu0 %4893
  %4895 = vrot.lane.b32.xlu0 %v4729, 16
  %v4896 = vpop.permute.xlu0 %4895
  %4897 = vrot.lane.b32.xlu0 %v4730, 16
  %v4898 = vpop.permute.xlu0 %4897
  %4899 = vrot.lane.b32.xlu0 %v4731, 16
  %v4900 = vpop.permute.xlu0 %4899
  %4901 = vrot.lane.b32.xlu0 %v4732, 16
  %v4902 = vpop.permute.xlu0 %4901
  %4903 = vrot.lane.b32.xlu0 %v4733, 16
  %v4904 = vpop.permute.xlu0 %4903
  %4905 = vrot.lane.b32.xlu0 %v4734, 16
  %v4906 = vpop.permute.xlu0 %4905
  %4907 = vrot.lane.b32.xlu0 %v4735, 16
  %v4908 = vpop.permute.xlu0 %4907
  %4909 = vrot.lane.b32.xlu0 %v4736, 16
  %v4910 = vpop.permute.xlu0 %4909
  %4911 = vrot.lane.b32.xlu0 %v4737, 16
  %v4912 = vpop.permute.xlu0 %4911
  %4913 = vrot.lane.b32.xlu0 %v4738, 16
  %v4914 = vpop.permute.xlu0 %4913
  %4915 = vrot.lane.b32.xlu0 %v4739, 16
  %v4916 = vpop.permute.xlu0 %4915
  %4917 = vrot.lane.b32.xlu0 %v4740, 16
  %v4918 = vpop.permute.xlu0 %4917
  %4919 = vrot.lane.b32.xlu0 %v4741, 16
  %v4920 = vpop.permute.xlu0 %4919
  %4921 = vrot.lane.b32.xlu0 %v4742, 16
  %v4922 = vpop.permute.xlu0 %4921
  %4923 = vrot.lane.b32.xlu0 %v4743, 16
  %v4924 = vpop.permute.xlu0 %4923
  %4925 = vrot.lane.b32.xlu0 %v4744, 16
  %v4926 = vpop.permute.xlu0 %4925
  %4927 = vrot.lane.b32.xlu0 %v4745, 16
  %v4928 = vpop.permute.xlu0 %4927
  %4929 = vrot.lane.b32.xlu0 %v4746, 16
  %v4930 = vpop.permute.xlu0 %4929
  %4931 = vrot.lane.b32.xlu0 %v4747, 16
  %v4932 = vpop.permute.xlu0 %4931
  %4933 = vrot.lane.b32.xlu0 %v4748, 16
  %v4934 = vpop.permute.xlu0 %4933
  %4935 = vrot.lane.b32.xlu0 %v4749, 16
  %v4936 = vpop.permute.xlu0 %4935
  %4937 = vrot.lane.b32.xlu0 %v4750, 16
  %v4938 = vpop.permute.xlu0 %4937
  %4939 = vrot.lane.b32.xlu0 %v4751, 16
  %v4940 = vpop.permute.xlu0 %4939
  %4941 = vrot.lane.b32.xlu0 %v4752, 16
  %v4942 = vpop.permute.xlu0 %4941
  %4943 = vrot.lane.b32.xlu0 %v4753, 16
  %v4944 = vpop.permute.xlu0 %4943
  %4945 = vrot.lane.b32.xlu0 %v4754, 16
  %v4946 = vpop.permute.xlu0 %4945
  %vm5011 = vcmask 261248
  %5012 = vst.msk [vmem:[#allocation5] sm:$0xff] %vm5011, %v4820
  %5013 = vst.msk [vmem:[#allocation5 + $0x10] sm:$0xff] %vm5011, %v4822
  %5014 = vst.msk [vmem:[#allocation5 + $0x20] sm:$0xff] %vm5011, %v4824
  %5015 = vst.msk [vmem:[#allocation5 + $0x30] sm:$0xff] %vm5011, %v4826
  %5016 = vst.msk [vmem:[#allocation5 + $0x40] sm:$0xff] %vm5011, %v4828
  %5017 = vst.msk [vmem:[#allocation5 + $0x50] sm:$0xff] %vm5011, %v4830
  %5018 = vst.msk [vmem:[#allocation5 + $0x60] sm:$0xff] %vm5011, %v4832
  %5019 = vst.msk [vmem:[#allocation5 + $0x70] sm:$0xff] %vm5011, %v4834
  %5020 = vst.msk [vmem:[#allocation5 + $0x80] sm:$0xff] %vm5011, %v4836
  %5021 = vst.msk [vmem:[#allocation5 + $0x90] sm:$0xff] %vm5011, %v4838
  %5022 = vst.msk [vmem:[#allocation5 + $0xa0] sm:$0xff] %vm5011, %v4840
  %5023 = vst.msk [vmem:[#allocation5 + $0xb0] sm:$0xff] %vm5011, %v4842
  %5024 = vst.msk [vmem:[#allocation5 + $0xc0] sm:$0xff] %vm5011, %v4844
  %5025 = vst.msk [vmem:[#allocation5 + $0xd0] sm:$0xff] %vm5011, %v4846
  %5026 = vst.msk [vmem:[#allocation5 + $0xe0] sm:$0xff] %vm5011, %v4848
  %5027 = vst.msk [vmem:[#allocation5 + $0xf0] sm:$0xff] %vm5011, %v4850
  %5028 = vst.msk [vmem:[#allocation5 + $0x100] sm:$0xff] %vm5011, %v4852
  %5029 = vst.msk [vmem:[#allocation5 + $0x110] sm:$0xff] %vm5011, %v4854
  %5030 = vst.msk [vmem:[#allocation5 + $0x120] sm:$0xff] %vm5011, %v4856
  %5031 = vst.msk [vmem:[#allocation5 + $0x130] sm:$0xff] %vm5011, %v4858
  %5032 = vst.msk [vmem:[#allocation5 + $0x140] sm:$0xff] %vm5011, %v4860
  %5033 = vst.msk [vmem:[#allocation5 + $0x150] sm:$0xff] %vm5011, %v4862
  %5034 = vst.msk [vmem:[#allocation5 + $0x160] sm:$0xff] %vm5011, %v4864
  %5035 = vst.msk [vmem:[#allocation5 + $0x170] sm:$0xff] %vm5011, %v4866
  %5036 = vst.msk [vmem:[#allocation5 + $0x180] sm:$0xff] %vm5011, %v4868
  %5037 = vst.msk [vmem:[#allocation5 + $0x190] sm:$0xff] %vm5011, %v4870
  %5038 = vst.msk [vmem:[#allocation5 + $0x1a0] sm:$0xff] %vm5011, %v4872
  %5039 = vst.msk [vmem:[#allocation5 + $0x1b0] sm:$0xff] %vm5011, %v4874
  %5040 = vst.msk [vmem:[#allocation5 + $0x1c0] sm:$0xff] %vm5011, %v4876
  %5041 = vst.msk [vmem:[#allocation5 + $0x1d0] sm:$0xff] %vm5011, %v4878
  %5042 = vst.msk [vmem:[#allocation5 + $0x1e0] sm:$0xff] %vm5011, %v4880
  %5043 = vst.msk [vmem:[#allocation5 + $0x1f0] sm:$0xff] %vm5011, %v4882
  %5044 = vst.msk [vmem:[#allocation5 + $0x200] sm:$0xff] %vm5011, %v4884
  %5045 = vst.msk [vmem:[#allocation5 + $0x210] sm:$0xff] %vm5011, %v4886
  %5046 = vst.msk [vmem:[#allocation5 + $0x220] sm:$0xff] %vm5011, %v4888
  %5047 = vst.msk [vmem:[#allocation5 + $0x230] sm:$0xff] %vm5011, %v4890
  %5048 = vst.msk [vmem:[#allocation5 + $0x240] sm:$0xff] %vm5011, %v4892
  %5049 = vst.msk [vmem:[#allocation5 + $0x250] sm:$0xff] %vm5011, %v4894
  %5050 = vst.msk [vmem:[#allocation5 + $0x260] sm:$0xff] %vm5011, %v4896
  %5051 = vst.msk [vmem:[#allocation5 + $0x270] sm:$0xff] %vm5011, %v4898
  %5052 = vst.msk [vmem:[#allocation5 + $0x280] sm:$0xff] %vm5011, %v4900
  %5053 = vst.msk [vmem:[#allocation5 + $0x290] sm:$0xff] %vm5011, %v4902
  %5054 = vst.msk [vmem:[#allocation5 + $0x2a0] sm:$0xff] %vm5011, %v4904
  %5055 = vst.msk [vmem:[#allocation5 + $0x2b0] sm:$0xff] %vm5011, %v4906
  %5056 = vst.msk [vmem:[#allocation5 + $0x2c0] sm:$0xff] %vm5011, %v4908
  %5057 = vst.msk [vmem:[#allocation5 + $0x2d0] sm:$0xff] %vm5011, %v4910
  %5058 = vst.msk [vmem:[#allocation5 + $0x2e0] sm:$0xff] %vm5011, %v4912
  %5059 = vst.msk [vmem:[#allocation5 + $0x2f0] sm:$0xff] %vm5011, %v4914
  %5060 = vst.msk [vmem:[#allocation5 + $0x300] sm:$0xff] %vm5011, %v4916
  %5061 = vst.msk [vmem:[#allocation5 + $0x310] sm:$0xff] %vm5011, %v4918
  %5062 = vst.msk [vmem:[#allocation5 + $0x320] sm:$0xff] %vm5011, %v4920
  %5063 = vst.msk [vmem:[#allocation5 + $0x330] sm:$0xff] %vm5011, %v4922
  %5064 = vst.msk [vmem:[#allocation5 + $0x340] sm:$0xff] %vm5011, %v4924
  %5065 = vst.msk [vmem:[#allocation5 + $0x350] sm:$0xff] %vm5011, %v4926
  %5066 = vst.msk [vmem:[#allocation5 + $0x360] sm:$0xff] %vm5011, %v4928
  %5067 = vst.msk [vmem:[#allocation5 + $0x370] sm:$0xff] %vm5011, %v4930
  %5068 = vst.msk [vmem:[#allocation5 + $0x380] sm:$0xff] %vm5011, %v4932
  %5069 = vst.msk [vmem:[#allocation5 + $0x390] sm:$0xff] %vm5011, %v4934
  %5070 = vst.msk [vmem:[#allocation5 + $0x3a0] sm:$0xff] %vm5011, %v4936
  %5071 = vst.msk [vmem:[#allocation5 + $0x3b0] sm:$0xff] %vm5011, %v4938
  %5072 = vst.msk [vmem:[#allocation5 + $0x3c0] sm:$0xff] %vm5011, %v4940
  %5073 = vst.msk [vmem:[#allocation5 + $0x3d0] sm:$0xff] %vm5011, %v4942
  %5074 = vst.msk [vmem:[#allocation5 + $0x3e0] sm:$0xff] %vm5011, %v4944
  %5075 = vst.msk [vmem:[#allocation5 + $0x3f0] sm:$0xff] %vm5011, %v4946
  %v5076 = vld [vmem:[#allocation4 + $0x2] sm:$0xff]
  %v5077 = vld [vmem:[#allocation4 + $0xa] sm:$0xff]
  %v5078 = vld [vmem:[#allocation4 + $0x1a] sm:$0xff]
  %v5079 = vld [vmem:[#allocation4 + $0x22] sm:$0xff]
  %v5080 = vld [vmem:[#allocation4 + $0x32] sm:$0xff]
  %v5081 = vld [vmem:[#allocation4 + $0x3a] sm:$0xff]
  %v5082 = vld [vmem:[#allocation4 + $0x4a] sm:$0xff]
  %v5083 = vld [vmem:[#allocation4 + $0x52] sm:$0xff]
  %v5084 = vld [vmem:[#allocation4 + $0x62] sm:$0xff]
  %v5085 = vld [vmem:[#allocation4 + $0x6a] sm:$0xff]
  %v5086 = vld [vmem:[#allocation4 + $0x7a] sm:$0xff]
  %v5087 = vld [vmem:[#allocation4 + $0x82] sm:$0xff]
  %v5088 = vld [vmem:[#allocation4 + $0x92] sm:$0xff]
  %v5089 = vld [vmem:[#allocation4 + $0x9a] sm:$0xff]
  %v5090 = vld [vmem:[#allocation4 + $0xaa] sm:$0xff]
  %v5091 = vld [vmem:[#allocation4 + $0xb2] sm:$0xff]
  %v5092 = vld [vmem:[#allocation4 + $0xc2] sm:$0xff]
  %v5093 = vld [vmem:[#allocation4 + $0xca] sm:$0xff]
  %v5094 = vld [vmem:[#allocation4 + $0xda] sm:$0xff]
  %v5095 = vld [vmem:[#allocation4 + $0xe2] sm:$0xff]
  %v5096 = vld [vmem:[#allocation4 + $0xf2] sm:$0xff]
  %v5097 = vld [vmem:[#allocation4 + $0xfa] sm:$0xff]
  %v5098 = vld [vmem:[#allocation4 + $0x10a] sm:$0xff]
  %v5099 = vld [vmem:[#allocation4 + $0x112] sm:$0xff]
  %v5100 = vld [vmem:[#allocation4 + $0x122] sm:$0xff]
  %v5101 = vld [vmem:[#allocation4 + $0x12a] sm:$0xff]
  %v5102 = vld [vmem:[#allocation4 + $0x13a] sm:$0xff]
  %v5103 = vld [vmem:[#allocation4 + $0x142] sm:$0xff]
  %v5104 = vld [vmem:[#allocation4 + $0x152] sm:$0xff]
  %v5105 = vld [vmem:[#allocation4 + $0x15a] sm:$0xff]
  %v5106 = vld [vmem:[#allocation4 + $0x16a] sm:$0xff]
  %v5107 = vld [vmem:[#allocation4 + $0x172] sm:$0xff]
  %v5108 = vld [vmem:[#allocation4 + $0x1b2] sm:$0xff]
  %v5109 = vld [vmem:[#allocation4 + $0x1ba] sm:$0xff]
  %v5110 = vld [vmem:[#allocation4 + $0x1ca] sm:$0xff]
  %v5111 = vld [vmem:[#allocation4 + $0x1d2] sm:$0xff]
  %v5112 = vld [vmem:[#allocation4 + $0x1e2] sm:$0xff]
  %v5113 = vld [vmem:[#allocation4 + $0x1ea] sm:$0xff]
  %v5114 = vld [vmem:[#allocation4 + $0x1fa] sm:$0xff]
  %v5115 = vld [vmem:[#allocation4 + $0x202] sm:$0xff]
  %v5116 = vld [vmem:[#allocation4 + $0x212] sm:$0xff]
  %v5117 = vld [vmem:[#allocation4 + $0x21a] sm:$0xff]
  %v5118 = vld [vmem:[#allocation4 + $0x22a] sm:$0xff]
  %v5119 = vld [vmem:[#allocation4 + $0x232] sm:$0xff]
  %v5120 = vld [vmem:[#allocation4 + $0x242] sm:$0xff]
  %v5121 = vld [vmem:[#allocation4 + $0x24a] sm:$0xff]
  %v5122 = vld [vmem:[#allocation4 + $0x25a] sm:$0xff]
  %v5123 = vld [vmem:[#allocation4 + $0x262] sm:$0xff]
  %v5124 = vld [vmem:[#allocation4 + $0x272] sm:$0xff]
  %v5125 = vld [vmem:[#allocation4 + $0x27a] sm:$0xff]
  %v5126 = vld [vmem:[#allocation4 + $0x28a] sm:$0xff]
  %v5127 = vld [vmem:[#allocation4 + $0x292] sm:$0xff]
  %v5128 = vld [vmem:[#allocation4 + $0x2a2] sm:$0xff]
  %v5129 = vld [vmem:[#allocation4 + $0x2aa] sm:$0xff]
  %v5130 = vld [vmem:[#allocation4 + $0x2ba] sm:$0xff]
  %v5131 = vld [vmem:[#allocation4 + $0x2c2] sm:$0xff]
  %v5132 = vld [vmem:[#allocation4 + $0x2d2] sm:$0xff]
  %v5133 = vld [vmem:[#allocation4 + $0x2da] sm:$0xff]
  %v5134 = vld [vmem:[#allocation4 + $0x2ea] sm:$0xff]
  %v5135 = vld [vmem:[#allocation4 + $0x2f2] sm:$0xff]
  %v5136 = vld [vmem:[#allocation4 + $0x302] sm:$0xff]
  %v5137 = vld [vmem:[#allocation4 + $0x30a] sm:$0xff]
  %v5138 = vld [vmem:[#allocation4 + $0x31a] sm:$0xff]
  %v5139 = vld [vmem:[#allocation4 + $0x322] sm:$0xff]
  %5204 = vrot.lane.b32.xlu0 %v5076, 32
  %v5205 = vpop.permute.xlu0 %5204
  %5206 = vrot.lane.b32.xlu0 %v5077, 32
  %v5207 = vpop.permute.xlu0 %5206
  %5208 = vrot.lane.b32.xlu0 %v5078, 32
  %v5209 = vpop.permute.xlu0 %5208
  %5210 = vrot.lane.b32.xlu0 %v5079, 32
  %v5211 = vpop.permute.xlu0 %5210
  %5212 = vrot.lane.b32.xlu0 %v5080, 32
  %v5213 = vpop.permute.xlu0 %5212
  %5214 = vrot.lane.b32.xlu0 %v5081, 32
  %v5215 = vpop.permute.xlu0 %5214
  %5216 = vrot.lane.b32.xlu0 %v5082, 32
  %v5217 = vpop.permute.xlu0 %5216
  %5218 = vrot.lane.b32.xlu0 %v5083, 32
  %v5219 = vpop.permute.xlu0 %5218
  %5220 = vrot.lane.b32.xlu0 %v5084, 32
  %v5221 = vpop.permute.xlu0 %5220
  %5222 = vrot.lane.b32.xlu0 %v5085, 32
  %v5223 = vpop.permute.xlu0 %5222
  %5224 = vrot.lane.b32.xlu0 %v5086, 32
  %v5225 = vpop.permute.xlu0 %5224
  %5226 = vrot.lane.b32.xlu0 %v5087, 32
  %v5227 = vpop.permute.xlu0 %5226
  %5228 = vrot.lane.b32.xlu0 %v5088, 32
  %v5229 = vpop.permute.xlu0 %5228
  %5230 = vrot.lane.b32.xlu0 %v5089, 32
  %v5231 = vpop.permute.xlu0 %5230
  %5232 = vrot.lane.b32.xlu0 %v5090, 32
  %v5233 = vpop.permute.xlu0 %5232
  %5234 = vrot.lane.b32.xlu0 %v5091, 32
  %v5235 = vpop.permute.xlu0 %5234
  %5236 = vrot.lane.b32.xlu0 %v5092, 32
  %v5237 = vpop.permute.xlu0 %5236
  %5238 = vrot.lane.b32.xlu0 %v5093, 32
  %v5239 = vpop.permute.xlu0 %5238
  %5240 = vrot.lane.b32.xlu0 %v5094, 32
  %v5241 = vpop.permute.xlu0 %5240
  %5242 = vrot.lane.b32.xlu0 %v5095, 32
  %v5243 = vpop.permute.xlu0 %5242
  %5244 = vrot.lane.b32.xlu0 %v5096, 32
  %v5245 = vpop.permute.xlu0 %5244
  %5246 = vrot.lane.b32.xlu0 %v5097, 32
  %v5247 = vpop.permute.xlu0 %5246
  %5248 = vrot.lane.b32.xlu0 %v5098, 32
  %v5249 = vpop.permute.xlu0 %5248
  %5250 = vrot.lane.b32.xlu0 %v5099, 32
  %v5251 = vpop.permute.xlu0 %5250
  %5252 = vrot.lane.b32.xlu0 %v5100, 32
  %v5253 = vpop.permute.xlu0 %5252
  %5254 = vrot.lane.b32.xlu0 %v5101, 32
  %v5255 = vpop.permute.xlu0 %5254
  %5256 = vrot.lane.b32.xlu0 %v5102, 32
  %v5257 = vpop.permute.xlu0 %5256
  %5258 = vrot.lane.b32.xlu0 %v5103, 32
  %v5259 = vpop.permute.xlu0 %5258
  %5260 = vrot.lane.b32.xlu0 %v5104, 32
  %v5261 = vpop.permute.xlu0 %5260
  %5262 = vrot.lane.b32.xlu0 %v5105, 32
  %v5263 = vpop.permute.xlu0 %5262
  %5264 = vrot.lane.b32.xlu0 %v5106, 32
  %v5265 = vpop.permute.xlu0 %5264
  %5266 = vrot.lane.b32.xlu0 %v5107, 32
  %v5267 = vpop.permute.xlu0 %5266
  %5268 = vrot.lane.b32.xlu0 %v5108, 32
  %v5269 = vpop.permute.xlu0 %5268
  %5270 = vrot.lane.b32.xlu0 %v5109, 32
  %v5271 = vpop.permute.xlu0 %5270
  %5272 = vrot.lane.b32.xlu0 %v5110, 32
  %v5273 = vpop.permute.xlu0 %5272
  %5274 = vrot.lane.b32.xlu0 %v5111, 32
  %v5275 = vpop.permute.xlu0 %5274
  %5276 = vrot.lane.b32.xlu0 %v5112, 32
  %v5277 = vpop.permute.xlu0 %5276
  %5278 = vrot.lane.b32.xlu0 %v5113, 32
  %v5279 = vpop.permute.xlu0 %5278
  %5280 = vrot.lane.b32.xlu0 %v5114, 32
  %v5281 = vpop.permute.xlu0 %5280
  %5282 = vrot.lane.b32.xlu0 %v5115, 32
  %v5283 = vpop.permute.xlu0 %5282
  %5284 = vrot.lane.b32.xlu0 %v5116, 32
  %v5285 = vpop.permute.xlu0 %5284
  %5286 = vrot.lane.b32.xlu0 %v5117, 32
  %v5287 = vpop.permute.xlu0 %5286
  %5288 = vrot.lane.b32.xlu0 %v5118, 32
  %v5289 = vpop.permute.xlu0 %5288
  %5290 = vrot.lane.b32.xlu0 %v5119, 32
  %v5291 = vpop.permute.xlu0 %5290
  %5292 = vrot.lane.b32.xlu0 %v5120, 32
  %v5293 = vpop.permute.xlu0 %5292
  %5294 = vrot.lane.b32.xlu0 %v5121, 32
  %v5295 = vpop.permute.xlu0 %5294
  %5296 = vrot.lane.b32.xlu0 %v5122, 32
  %v5297 = vpop.permute.xlu0 %5296
  %5298 = vrot.lane.b32.xlu0 %v5123, 32
  %v5299 = vpop.permute.xlu0 %5298
  %5300 = vrot.lane.b32.xlu0 %v5124, 32
  %v5301 = vpop.permute.xlu0 %5300
  %5302 = vrot.lane.b32.xlu0 %v5125, 32
  %v5303 = vpop.permute.xlu0 %5302
  %5304 = vrot.lane.b32.xlu0 %v5126, 32
  %v5305 = vpop.permute.xlu0 %5304
  %5306 = vrot.lane.b32.xlu0 %v5127, 32
  %v5307 = vpop.permute.xlu0 %5306
  %5308 = vrot.lane.b32.xlu0 %v5128, 32
  %v5309 = vpop.permute.xlu0 %5308
  %5310 = vrot.lane.b32.xlu0 %v5129, 32
  %v5311 = vpop.permute.xlu0 %5310
  %5312 = vrot.lane.b32.xlu0 %v5130, 32
  %v5313 = vpop.permute.xlu0 %5312
  %5314 = vrot.lane.b32.xlu0 %v5131, 32
  %v5315 = vpop.permute.xlu0 %5314
  %5316 = vrot.lane.b32.xlu0 %v5132, 32
  %v5317 = vpop.permute.xlu0 %5316
  %5318 = vrot.lane.b32.xlu0 %v5133, 32
  %v5319 = vpop.permute.xlu0 %5318
  %5320 = vrot.lane.b32.xlu0 %v5134, 32
  %v5321 = vpop.permute.xlu0 %5320
  %5322 = vrot.lane.b32.xlu0 %v5135, 32
  %v5323 = vpop.permute.xlu0 %5322
  %5324 = vrot.lane.b32.xlu0 %v5136, 32
  %v5325 = vpop.permute.xlu0 %5324
  %5326 = vrot.lane.b32.xlu0 %v5137, 32
  %v5327 = vpop.permute.xlu0 %5326
  %5328 = vrot.lane.b32.xlu0 %v5138, 32
  %v5329 = vpop.permute.xlu0 %5328
  %5330 = vrot.lane.b32.xlu0 %v5139, 32
  %v5331 = vpop.permute.xlu0 %5330
  %vm5396 = vcmask 392448
  %5397 = vst.msk [vmem:[#allocation5] sm:$0xff] %vm5396, %v5205
  %5398 = vst.msk [vmem:[#allocation5 + $0x10] sm:$0xff] %vm5396, %v5207
  %5399 = vst.msk [vmem:[#allocation5 + $0x20] sm:$0xff] %vm5396, %v5209
  %5400 = vst.msk [vmem:[#allocation5 + $0x30] sm:$0xff] %vm5396, %v5211
  %5401 = vst.msk [vmem:[#allocation5 + $0x40] sm:$0xff] %vm5396, %v5213
  %5402 = vst.msk [vmem:[#allocation5 + $0x50] sm:$0xff] %vm5396, %v5215
  %5403 = vst.msk [vmem:[#allocation5 + $0x60] sm:$0xff] %vm5396, %v5217
  %5404 = vst.msk [vmem:[#allocation5 + $0x70] sm:$0xff] %vm5396, %v5219
  %5405 = vst.msk [vmem:[#allocation5 + $0x80] sm:$0xff] %vm5396, %v5221
  %5406 = vst.msk [vmem:[#allocation5 + $0x90] sm:$0xff] %vm5396, %v5223
  %5407 = vst.msk [vmem:[#allocation5 + $0xa0] sm:$0xff] %vm5396, %v5225
  %5408 = vst.msk [vmem:[#allocation5 + $0xb0] sm:$0xff] %vm5396, %v5227
  %5409 = vst.msk [vmem:[#allocation5 + $0xc0] sm:$0xff] %vm5396, %v5229
  %5410 = vst.msk [vmem:[#allocation5 + $0xd0] sm:$0xff] %vm5396, %v5231
  %5411 = vst.msk [vmem:[#allocation5 + $0xe0] sm:$0xff] %vm5396, %v5233
  %5412 = vst.msk [vmem:[#allocation5 + $0xf0] sm:$0xff] %vm5396, %v5235
  %5413 = vst.msk [vmem:[#allocation5 + $0x100] sm:$0xff] %vm5396, %v5237
  %5414 = vst.msk [vmem:[#allocation5 + $0x110] sm:$0xff] %vm5396, %v5239
  %5415 = vst.msk [vmem:[#allocation5 + $0x120] sm:$0xff] %vm5396, %v5241
  %5416 = vst.msk [vmem:[#allocation5 + $0x130] sm:$0xff] %vm5396, %v5243
  %5417 = vst.msk [vmem:[#allocation5 + $0x140] sm:$0xff] %vm5396, %v5245
  %5418 = vst.msk [vmem:[#allocation5 + $0x150] sm:$0xff] %vm5396, %v5247
  %5419 = vst.msk [vmem:[#allocation5 + $0x160] sm:$0xff] %vm5396, %v5249
  %5420 = vst.msk [vmem:[#allocation5 + $0x170] sm:$0xff] %vm5396, %v5251
  %5421 = vst.msk [vmem:[#allocation5 + $0x180] sm:$0xff] %vm5396, %v5253
  %5422 = vst.msk [vmem:[#allocation5 + $0x190] sm:$0xff] %vm5396, %v5255
  %5423 = vst.msk [vmem:[#allocation5 + $0x1a0] sm:$0xff] %vm5396, %v5257
  %5424 = vst.msk [vmem:[#allocation5 + $0x1b0] sm:$0xff] %vm5396, %v5259
  %5425 = vst.msk [vmem:[#allocation5 + $0x1c0] sm:$0xff] %vm5396, %v5261
  %5426 = vst.msk [vmem:[#allocation5 + $0x1d0] sm:$0xff] %vm5396, %v5263
  %5427 = vst.msk [vmem:[#allocation5 + $0x1e0] sm:$0xff] %vm5396, %v5265
  %5428 = vst.msk [vmem:[#allocation5 + $0x1f0] sm:$0xff] %vm5396, %v5267
  %5429 = vst.msk [vmem:[#allocation5 + $0x200] sm:$0xff] %vm5396, %v5269
  %5430 = vst.msk [vmem:[#allocation5 + $0x210] sm:$0xff] %vm5396, %v5271
  %5431 = vst.msk [vmem:[#allocation5 + $0x220] sm:$0xff] %vm5396, %v5273
  %5432 = vst.msk [vmem:[#allocation5 + $0x230] sm:$0xff] %vm5396, %v5275
  %5433 = vst.msk [vmem:[#allocation5 + $0x240] sm:$0xff] %vm5396, %v5277
  %5434 = vst.msk [vmem:[#allocation5 + $0x250] sm:$0xff] %vm5396, %v5279
  %5435 = vst.msk [vmem:[#allocation5 + $0x260] sm:$0xff] %vm5396, %v5281
  %5436 = vst.msk [vmem:[#allocation5 + $0x270] sm:$0xff] %vm5396, %v5283
  %5437 = vst.msk [vmem:[#allocation5 + $0x280] sm:$0xff] %vm5396, %v5285
  %5438 = vst.msk [vmem:[#allocation5 + $0x290] sm:$0xff] %vm5396, %v5287
  %5439 = vst.msk [vmem:[#allocation5 + $0x2a0] sm:$0xff] %vm5396, %v5289
  %5440 = vst.msk [vmem:[#allocation5 + $0x2b0] sm:$0xff] %vm5396, %v5291
  %5441 = vst.msk [vmem:[#allocation5 + $0x2c0] sm:$0xff] %vm5396, %v5293
  %5442 = vst.msk [vmem:[#allocation5 + $0x2d0] sm:$0xff] %vm5396, %v5295
  %5443 = vst.msk [vmem:[#allocation5 + $0x2e0] sm:$0xff] %vm5396, %v5297
  %5444 = vst.msk [vmem:[#allocation5 + $0x2f0] sm:$0xff] %vm5396, %v5299
  %5445 = vst.msk [vmem:[#allocation5 + $0x300] sm:$0xff] %vm5396, %v5301
  %5446 = vst.msk [vmem:[#allocation5 + $0x310] sm:$0xff] %vm5396, %v5303
  %5447 = vst.msk [vmem:[#allocation5 + $0x320] sm:$0xff] %vm5396, %v5305
  %5448 = vst.msk [vmem:[#allocation5 + $0x330] sm:$0xff] %vm5396, %v5307
  %5449 = vst.msk [vmem:[#allocation5 + $0x340] sm:$0xff] %vm5396, %v5309
  %5450 = vst.msk [vmem:[#allocation5 + $0x350] sm:$0xff] %vm5396, %v5311
  %5451 = vst.msk [vmem:[#allocation5 + $0x360] sm:$0xff] %vm5396, %v5313
  %5452 = vst.msk [vmem:[#allocation5 + $0x370] sm:$0xff] %vm5396, %v5315
  %5453 = vst.msk [vmem:[#allocation5 + $0x380] sm:$0xff] %vm5396, %v5317
  %5454 = vst.msk [vmem:[#allocation5 + $0x390] sm:$0xff] %vm5396, %v5319
  %5455 = vst.msk [vmem:[#allocation5 + $0x3a0] sm:$0xff] %vm5396, %v5321
  %5456 = vst.msk [vmem:[#allocation5 + $0x3b0] sm:$0xff] %vm5396, %v5323
  %5457 = vst.msk [vmem:[#allocation5 + $0x3c0] sm:$0xff] %vm5396, %v5325
  %5458 = vst.msk [vmem:[#allocation5 + $0x3d0] sm:$0xff] %vm5396, %v5327
  %5459 = vst.msk [vmem:[#allocation5 + $0x3e0] sm:$0xff] %vm5396, %v5329
  %5460 = vst.msk [vmem:[#allocation5 + $0x3f0] sm:$0xff] %vm5396, %v5331
  %v5461 = vld [vmem:[%s4498] sm:$0xff]
  %v5462 = vld [vmem:[%s4498 + $0x8] sm:$0xff]
  %v5463 = vld [vmem:[%s4498 + $0x18] sm:$0xff]
  %v5464 = vld [vmem:[%s4498 + $0x20] sm:$0xff]
  %v5465 = vld [vmem:[%s4498 + $0x30] sm:$0xff]
  %v5466 = vld [vmem:[%s4498 + $0x38] sm:$0xff]
  %v5467 = vld [vmem:[%s4498 + $0x48] sm:$0xff]
  %v5468 = vld [vmem:[%s4498 + $0x50] sm:$0xff]
  %v5469 = vld [vmem:[%s4498 + $0x60] sm:$0xff]
  %v5470 = vld [vmem:[%s4498 + $0x68] sm:$0xff]
  %v5471 = vld [vmem:[%s4498 + $0x78] sm:$0xff]
  %v5472 = vld [vmem:[%s4498 + $0x80] sm:$0xff]
  %v5473 = vld [vmem:[%s4498 + $0x90] sm:$0xff]
  %v5474 = vld [vmem:[%s4498 + $0x98] sm:$0xff]
  %v5475 = vld [vmem:[%s4498 + $0xa8] sm:$0xff]
  %v5476 = vld [vmem:[%s4498 + $0xb0] sm:$0xff]
  %v5477 = vld [vmem:[%s4498 + $0xc0] sm:$0xff]
  %v5478 = vld [vmem:[%s4498 + $0xc8] sm:$0xff]
  %v5479 = vld [vmem:[%s4498 + $0xd8] sm:$0xff]
  %v5480 = vld [vmem:[%s4498 + $0xe0] sm:$0xff]
  %v5481 = vld [vmem:[%s4498 + $0xf0] sm:$0xff]
  %v5482 = vld [vmem:[%s4498 + $0xf8] sm:$0xff]
  %v5483 = vld [vmem:[%s4498 + $0x108] sm:$0xff]
  %v5484 = vld [vmem:[%s4498 + $0x110] sm:$0xff]
  %v5485 = vld [vmem:[%s4498 + $0x120] sm:$0xff]
  %v5486 = vld [vmem:[%s4498 + $0x128] sm:$0xff]
  %v5487 = vld [vmem:[%s4498 + $0x138] sm:$0xff]
  %v5488 = vld [vmem:[%s4498 + $0x140] sm:$0xff]
  %v5489 = vld [vmem:[%s4498 + $0x150] sm:$0xff]
  %v5490 = vld [vmem:[%s4498 + $0x158] sm:$0xff]
  %v5491 = vld [vmem:[%s4498 + $0x168] sm:$0xff]
  %v5492 = vld [vmem:[%s4498 + $0x170] sm:$0xff]
  %v5493 = vld [vmem:[%s4498 + $0x1b0] sm:$0xff]
  %v5494 = vld [vmem:[%s4498 + $0x1b8] sm:$0xff]
  %v5495 = vld [vmem:[%s4498 + $0x1c8] sm:$0xff]
  %v5496 = vld [vmem:[%s4498 + $0x1d0] sm:$0xff]
  %v5497 = vld [vmem:[%s4498 + $0x1e0] sm:$0xff]
  %v5498 = vld [vmem:[%s4498 + $0x1e8] sm:$0xff]
  %v5499 = vld [vmem:[%s4498 + $0x1f8] sm:$0xff]
  %v5500 = vld [vmem:[%s4498 + $0x200] sm:$0xff]
  %v5501 = vld [vmem:[%s4498 + $0x210] sm:$0xff]
  %v5502 = vld [vmem:[%s4498 + $0x218] sm:$0xff]
  %v5503 = vld [vmem:[%s4498 + $0x228] sm:$0xff]
  %v5504 = vld [vmem:[%s4498 + $0x230] sm:$0xff]
  %v5505 = vld [vmem:[%s4498 + $0x240] sm:$0xff]
  %v5506 = vld [vmem:[%s4498 + $0x248] sm:$0xff]
  %v5507 = vld [vmem:[%s4498 + $0x258] sm:$0xff]
  %v5508 = vld [vmem:[%s4498 + $0x260] sm:$0xff]
  %v5509 = vld [vmem:[%s4498 + $0x270] sm:$0xff]
  %v5510 = vld [vmem:[%s4498 + $0x278] sm:$0xff]
  %v5511 = vld [vmem:[%s4498 + $0x288] sm:$0xff]
  %v5512 = vld [vmem:[%s4498 + $0x290] sm:$0xff]
  %v5513 = vld [vmem:[%s4498 + $0x2a0] sm:$0xff]
  %v5514 = vld [vmem:[%s4498 + $0x2a8] sm:$0xff]
  %v5515 = vld [vmem:[%s4498 + $0x2b8] sm:$0xff]
  %v5516 = vld [vmem:[%s4498 + $0x2c0] sm:$0xff]
  %v5517 = vld [vmem:[%s4498 + $0x2d0] sm:$0xff]
  %v5518 = vld [vmem:[%s4498 + $0x2d8] sm:$0xff]
  %v5519 = vld [vmem:[%s4498 + $0x2e8] sm:$0xff]
  %v5520 = vld [vmem:[%s4498 + $0x2f0] sm:$0xff]
  %v5521 = vld [vmem:[%s4498 + $0x300] sm:$0xff]
  %v5522 = vld [vmem:[%s4498 + $0x308] sm:$0xff]
  %v5523 = vld [vmem:[%s4498 + $0x318] sm:$0xff]
  %v5524 = vld [vmem:[%s4498 + $0x320] sm:$0xff]
  %5589 = vrot.lane.b32.xlu0 %v5461, 48
  %v5590 = vpop.permute.xlu0 %5589
  %5591 = vrot.lane.b32.xlu0 %v5462, 48
  %v5592 = vpop.permute.xlu0 %5591
  %5593 = vrot.lane.b32.xlu0 %v5463, 48
  %v5594 = vpop.permute.xlu0 %5593
  %5595 = vrot.lane.b32.xlu0 %v5464, 48
  %v5596 = vpop.permute.xlu0 %5595
  %5597 = vrot.lane.b32.xlu0 %v5465, 48
  %v5598 = vpop.permute.xlu0 %5597
  %5599 = vrot.lane.b32.xlu0 %v5466, 48
  %v5600 = vpop.permute.xlu0 %5599
  %5601 = vrot.lane.b32.xlu0 %v5467, 48
  %v5602 = vpop.permute.xlu0 %5601
  %5603 = vrot.lane.b32.xlu0 %v5468, 48
  %v5604 = vpop.permute.xlu0 %5603
  %5605 = vrot.lane.b32.xlu0 %v5469, 48
  %v5606 = vpop.permute.xlu0 %5605
  %5607 = vrot.lane.b32.xlu0 %v5470, 48
  %v5608 = vpop.permute.xlu0 %5607
  %5609 = vrot.lane.b32.xlu0 %v5471, 48
  %v5610 = vpop.permute.xlu0 %5609
  %5611 = vrot.lane.b32.xlu0 %v5472, 48
  %v5612 = vpop.permute.xlu0 %5611
  %5613 = vrot.lane.b32.xlu0 %v5473, 48
  %v5614 = vpop.permute.xlu0 %5613
  %5615 = vrot.lane.b32.xlu0 %v5474, 48
  %v5616 = vpop.permute.xlu0 %5615
  %5617 = vrot.lane.b32.xlu0 %v5475, 48
  %v5618 = vpop.permute.xlu0 %5617
  %5619 = vrot.lane.b32.xlu0 %v5476, 48
  %v5620 = vpop.permute.xlu0 %5619
  %5621 = vrot.lane.b32.xlu0 %v5477, 48
  %v5622 = vpop.permute.xlu0 %5621
  %5623 = vrot.lane.b32.xlu0 %v5478, 48
  %v5624 = vpop.permute.xlu0 %5623
  %5625 = vrot.lane.b32.xlu0 %v5479, 48
  %v5626 = vpop.permute.xlu0 %5625
  %5627 = vrot.lane.b32.xlu0 %v5480, 48
  %v5628 = vpop.permute.xlu0 %5627
  %5629 = vrot.lane.b32.xlu0 %v5481, 48
  %v5630 = vpop.permute.xlu0 %5629
  %5631 = vrot.lane.b32.xlu0 %v5482, 48
  %v5632 = vpop.permute.xlu0 %5631
  %5633 = vrot.lane.b32.xlu0 %v5483, 48
  %v5634 = vpop.permute.xlu0 %5633
  %5635 = vrot.lane.b32.xlu0 %v5484, 48
  %v5636 = vpop.permute.xlu0 %5635
  %5637 = vrot.lane.b32.xlu0 %v5485, 48
  %v5638 = vpop.permute.xlu0 %5637
  %5639 = vrot.lane.b32.xlu0 %v5486, 48
  %v5640 = vpop.permute.xlu0 %5639
  %5641 = vrot.lane.b32.xlu0 %v5487, 48
  %v5642 = vpop.permute.xlu0 %5641
  %5643 = vrot.lane.b32.xlu0 %v5488, 48
  %v5644 = vpop.permute.xlu0 %5643
  %5645 = vrot.lane.b32.xlu0 %v5489, 48
  %v5646 = vpop.permute.xlu0 %5645
  %5647 = vrot.lane.b32.xlu0 %v5490, 48
  %v5648 = vpop.permute.xlu0 %5647
  %5649 = vrot.lane.b32.xlu0 %v5491, 48
  %v5650 = vpop.permute.xlu0 %5649
  %5651 = vrot.lane.b32.xlu0 %v5492, 48
  %v5652 = vpop.permute.xlu0 %5651
  %5653 = vrot.lane.b32.xlu0 %v5493, 48
  %v5654 = vpop.permute.xlu0 %5653
  %5655 = vrot.lane.b32.xlu0 %v5494, 48
  %v5656 = vpop.permute.xlu0 %5655
  %5657 = vrot.lane.b32.xlu0 %v5495, 48
  %v5658 = vpop.permute.xlu0 %5657
  %5659 = vrot.lane.b32.xlu0 %v5496, 48
  %v5660 = vpop.permute.xlu0 %5659
  %5661 = vrot.lane.b32.xlu0 %v5497, 48
  %v5662 = vpop.permute.xlu0 %5661
  %5663 = vrot.lane.b32.xlu0 %v5498, 48
  %v5664 = vpop.permute.xlu0 %5663
  %5665 = vrot.lane.b32.xlu0 %v5499, 48
  %v5666 = vpop.permute.xlu0 %5665
  %5667 = vrot.lane.b32.xlu0 %v5500, 48
  %v5668 = vpop.permute.xlu0 %5667
  %5669 = vrot.lane.b32.xlu0 %v5501, 48
  %v5670 = vpop.permute.xlu0 %5669
  %5671 = vrot.lane.b32.xlu0 %v5502, 48
  %v5672 = vpop.permute.xlu0 %5671
  %5673 = vrot.lane.b32.xlu0 %v5503, 48
  %v5674 = vpop.permute.xlu0 %5673
  %5675 = vrot.lane.b32.xlu0 %v5504, 48
  %v5676 = vpop.permute.xlu0 %5675
  %5677 = vrot.lane.b32.xlu0 %v5505, 48
  %v5678 = vpop.permute.xlu0 %5677
  %5679 = vrot.lane.b32.xlu0 %v5506, 48
  %v5680 = vpop.permute.xlu0 %5679
  %5681 = vrot.lane.b32.xlu0 %v5507, 48
  %v5682 = vpop.permute.xlu0 %5681
  %5683 = vrot.lane.b32.xlu0 %v5508, 48
  %v5684 = vpop.permute.xlu0 %5683
  %5685 = vrot.lane.b32.xlu0 %v5509, 48
  %v5686 = vpop.permute.xlu0 %5685
  %5687 = vrot.lane.b32.xlu0 %v5510, 48
  %v5688 = vpop.permute.xlu0 %5687
  %5689 = vrot.lane.b32.xlu0 %v5511, 48
  %v5690 = vpop.permute.xlu0 %5689
  %5691 = vrot.lane.b32.xlu0 %v5512, 48
  %v5692 = vpop.permute.xlu0 %5691
  %5693 = vrot.lane.b32.xlu0 %v5513, 48
  %v5694 = vpop.permute.xlu0 %5693
  %5695 = vrot.lane.b32.xlu0 %v5514, 48
  %v5696 = vpop.permute.xlu0 %5695
  %5697 = vrot.lane.b32.xlu0 %v5515, 48
  %v5698 = vpop.permute.xlu0 %5697
  %5699 = vrot.lane.b32.xlu0 %v5516, 48
  %v5700 = vpop.permute.xlu0 %5699
  %5701 = vrot.lane.b32.xlu0 %v5517, 48
  %v5702 = vpop.permute.xlu0 %5701
  %5703 = vrot.lane.b32.xlu0 %v5518, 48
  %v5704 = vpop.permute.xlu0 %5703
  %5705 = vrot.lane.b32.xlu0 %v5519, 48
  %v5706 = vpop.permute.xlu0 %5705
  %5707 = vrot.lane.b32.xlu0 %v5520, 48
  %v5708 = vpop.permute.xlu0 %5707
  %5709 = vrot.lane.b32.xlu0 %v5521, 48
  %v5710 = vpop.permute.xlu0 %5709
  %5711 = vrot.lane.b32.xlu0 %v5522, 48
  %v5712 = vpop.permute.xlu0 %5711
  %5713 = vrot.lane.b32.xlu0 %v5523, 48
  %v5714 = vpop.permute.xlu0 %5713
  %5715 = vrot.lane.b32.xlu0 %v5524, 48
  %v5716 = vpop.permute.xlu0 %5715
  %vm5781 = vcmask 523648
  %5782 = vst.msk [vmem:[#allocation5] sm:$0xff] %vm5781, %v5590
  %5783 = vst.msk [vmem:[#allocation5 + $0x10] sm:$0xff] %vm5781, %v5592
  %5784 = vst.msk [vmem:[#allocation5 + $0x20] sm:$0xff] %vm5781, %v5594
  %5785 = vst.msk [vmem:[#allocation5 + $0x30] sm:$0xff] %vm5781, %v5596
  %5786 = vst.msk [vmem:[#allocation5 + $0x40] sm:$0xff] %vm5781, %v5598
  %5787 = vst.msk [vmem:[#allocation5 + $0x50] sm:$0xff] %vm5781, %v5600
  %5788 = vst.msk [vmem:[#allocation5 + $0x60] sm:$0xff] %vm5781, %v5602
  %5789 = vst.msk [vmem:[#allocation5 + $0x70] sm:$0xff] %vm5781, %v5604
  %5790 = vst.msk [vmem:[#allocation5 + $0x80] sm:$0xff] %vm5781, %v5606
  %5791 = vst.msk [vmem:[#allocation5 + $0x90] sm:$0xff] %vm5781, %v5608
  %5792 = vst.msk [vmem:[#allocation5 + $0xa0] sm:$0xff] %vm5781, %v5610
  %5793 = vst.msk [vmem:[#allocation5 + $0xb0] sm:$0xff] %vm5781, %v5612
  %5794 = vst.msk [vmem:[#allocation5 + $0xc0] sm:$0xff] %vm5781, %v5614
  %5795 = vst.msk [vmem:[#allocation5 + $0xd0] sm:$0xff] %vm5781, %v5616
  %5796 = vst.msk [vmem:[#allocation5 + $0xe0] sm:$0xff] %vm5781, %v5618
  %5797 = vst.msk [vmem:[#allocation5 + $0xf0] sm:$0xff] %vm5781, %v5620
  %5798 = vst.msk [vmem:[#allocation5 + $0x100] sm:$0xff] %vm5781, %v5622
  %5799 = vst.msk [vmem:[#allocation5 + $0x110] sm:$0xff] %vm5781, %v5624
  %5800 = vst.msk [vmem:[#allocation5 + $0x120] sm:$0xff] %vm5781, %v5626
  %5801 = vst.msk [vmem:[#allocation5 + $0x130] sm:$0xff] %vm5781, %v5628
  %5802 = vst.msk [vmem:[#allocation5 + $0x140] sm:$0xff] %vm5781, %v5630
  %5803 = vst.msk [vmem:[#allocation5 + $0x150] sm:$0xff] %vm5781, %v5632
  %5804 = vst.msk [vmem:[#allocation5 + $0x160] sm:$0xff] %vm5781, %v5634
  %5805 = vst.msk [vmem:[#allocation5 + $0x170] sm:$0xff] %vm5781, %v5636
  %5806 = vst.msk [vmem:[#allocation5 + $0x180] sm:$0xff] %vm5781, %v5638
  %5807 = vst.msk [vmem:[#allocation5 + $0x190] sm:$0xff] %vm5781, %v5640
  %5808 = vst.msk [vmem:[#allocation5 + $0x1a0] sm:$0xff] %vm5781, %v5642
  %5809 = vst.msk [vmem:[#allocation5 + $0x1b0] sm:$0xff] %vm5781, %v5644
  %5810 = vst.msk [vmem:[#allocation5 + $0x1c0] sm:$0xff] %vm5781, %v5646
  %5811 = vst.msk [vmem:[#allocation5 + $0x1d0] sm:$0xff] %vm5781, %v5648
  %5812 = vst.msk [vmem:[#allocation5 + $0x1e0] sm:$0xff] %vm5781, %v5650
  %5813 = vst.msk [vmem:[#allocation5 + $0x1f0] sm:$0xff] %vm5781, %v5652
  %5814 = vst.msk [vmem:[#allocation5 + $0x200] sm:$0xff] %vm5781, %v5654
  %5815 = vst.msk [vmem:[#allocation5 + $0x210] sm:$0xff] %vm5781, %v5656
  %5816 = vst.msk [vmem:[#allocation5 + $0x220] sm:$0xff] %vm5781, %v5658
  %5817 = vst.msk [vmem:[#allocation5 + $0x230] sm:$0xff] %vm5781, %v5660
  %5818 = vst.msk [vmem:[#allocation5 + $0x240] sm:$0xff] %vm5781, %v5662
  %5819 = vst.msk [vmem:[#allocation5 + $0x250] sm:$0xff] %vm5781, %v5664
  %5820 = vst.msk [vmem:[#allocation5 + $0x260] sm:$0xff] %vm5781, %v5666
  %5821 = vst.msk [vmem:[#allocation5 + $0x270] sm:$0xff] %vm5781, %v5668
  %5822 = vst.msk [vmem:[#allocation5 + $0x280] sm:$0xff] %vm5781, %v5670
  %5823 = vst.msk [vmem:[#allocation5 + $0x290] sm:$0xff] %vm5781, %v5672
  %5824 = vst.msk [vmem:[#allocation5 + $0x2a0] sm:$0xff] %vm5781, %v5674
  %5825 = vst.msk [vmem:[#allocation5 + $0x2b0] sm:$0xff] %vm5781, %v5676
  %5826 = vst.msk [vmem:[#allocation5 + $0x2c0] sm:$0xff] %vm5781, %v5678
  %5827 = vst.msk [vmem:[#allocation5 + $0x2d0] sm:$0xff] %vm5781, %v5680
  %5828 = vst.msk [vmem:[#allocation5 + $0x2e0] sm:$0xff] %vm5781, %v5682
  %5829 = vst.msk [vmem:[#allocation5 + $0x2f0] sm:$0xff] %vm5781, %v5684
  %5830 = vst.msk [vmem:[#allocation5 + $0x300] sm:$0xff] %vm5781, %v5686
  %5831 = vst.msk [vmem:[#allocation5 + $0x310] sm:$0xff] %vm5781, %v5688
  %5832 = vst.msk [vmem:[#allocation5 + $0x320] sm:$0xff] %vm5781, %v5690
  %5833 = vst.msk [vmem:[#allocation5 + $0x330] sm:$0xff] %vm5781, %v5692
  %5834 = vst.msk [vmem:[#allocation5 + $0x340] sm:$0xff] %vm5781, %v5694
  %5835 = vst.msk [vmem:[#allocation5 + $0x350] sm:$0xff] %vm5781, %v5696
  %5836 = vst.msk [vmem:[#allocation5 + $0x360] sm:$0xff] %vm5781, %v5698
  %5837 = vst.msk [vmem:[#allocation5 + $0x370] sm:$0xff] %vm5781, %v5700
  %5838 = vst.msk [vmem:[#allocation5 + $0x380] sm:$0xff] %vm5781, %v5702
  %5839 = vst.msk [vmem:[#allocation5 + $0x390] sm:$0xff] %vm5781, %v5704
  %5840 = vst.msk [vmem:[#allocation5 + $0x3a0] sm:$0xff] %vm5781, %v5706
  %5841 = vst.msk [vmem:[#allocation5 + $0x3b0] sm:$0xff] %vm5781, %v5708
  %5842 = vst.msk [vmem:[#allocation5 + $0x3c0] sm:$0xff] %vm5781, %v5710
  %5843 = vst.msk [vmem:[#allocation5 + $0x3d0] sm:$0xff] %vm5781, %v5712
  %5844 = vst.msk [vmem:[#allocation5 + $0x3e0] sm:$0xff] %vm5781, %v5714
  %5845 = vst.msk [vmem:[#allocation5 + $0x3f0] sm:$0xff] %vm5781, %v5716
  %v5846 = vld [vmem:[%s4498 + $0x1] sm:$0xff]
  %v5847 = vld [vmem:[%s4498 + $0x9] sm:$0xff]
  %v5848 = vld [vmem:[%s4498 + $0x19] sm:$0xff]
  %v5849 = vld [vmem:[%s4498 + $0x21] sm:$0xff]
  %v5850 = vld [vmem:[%s4498 + $0x31] sm:$0xff]
  %v5851 = vld [vmem:[%s4498 + $0x39] sm:$0xff]
  %v5852 = vld [vmem:[%s4498 + $0x49] sm:$0xff]
  %v5853 = vld [vmem:[%s4498 + $0x51] sm:$0xff]
  %v5854 = vld [vmem:[%s4498 + $0x61] sm:$0xff]
  %v5855 = vld [vmem:[%s4498 + $0x69] sm:$0xff]
  %v5856 = vld [vmem:[%s4498 + $0x79] sm:$0xff]
  %v5857 = vld [vmem:[%s4498 + $0x81] sm:$0xff]
  %v5858 = vld [vmem:[%s4498 + $0x91] sm:$0xff]
  %v5859 = vld [vmem:[%s4498 + $0x99] sm:$0xff]
  %v5860 = vld [vmem:[%s4498 + $0xa9] sm:$0xff]
  %v5861 = vld [vmem:[%s4498 + $0xb1] sm:$0xff]
  %v5862 = vld [vmem:[%s4498 + $0xc1] sm:$0xff]
  %v5863 = vld [vmem:[%s4498 + $0xc9] sm:$0xff]
  %v5864 = vld [vmem:[%s4498 + $0xd9] sm:$0xff]
  %v5865 = vld [vmem:[%s4498 + $0xe1] sm:$0xff]
  %v5866 = vld [vmem:[%s4498 + $0xf1] sm:$0xff]
  %v5867 = vld [vmem:[%s4498 + $0xf9] sm:$0xff]
  %v5868 = vld [vmem:[%s4498 + $0x109] sm:$0xff]
  %v5869 = vld [vmem:[%s4498 + $0x111] sm:$0xff]
  %v5870 = vld [vmem:[%s4498 + $0x121] sm:$0xff]
  %v5871 = vld [vmem:[%s4498 + $0x129] sm:$0xff]
  %v5872 = vld [vmem:[%s4498 + $0x139] sm:$0xff]
  %v5873 = vld [vmem:[%s4498 + $0x141] sm:$0xff]
  %v5874 = vld [vmem:[%s4498 + $0x151] sm:$0xff]
  %v5875 = vld [vmem:[%s4498 + $0x159] sm:$0xff]
  %v5876 = vld [vmem:[%s4498 + $0x169] sm:$0xff]
  %v5877 = vld [vmem:[%s4498 + $0x171] sm:$0xff]
  %v5878 = vld [vmem:[%s4498 + $0x1b1] sm:$0xff]
  %v5879 = vld [vmem:[%s4498 + $0x1b9] sm:$0xff]
  %v5880 = vld [vmem:[%s4498 + $0x1c9] sm:$0xff]
  %v5881 = vld [vmem:[%s4498 + $0x1d1] sm:$0xff]
  %v5882 = vld [vmem:[%s4498 + $0x1e1] sm:$0xff]
  %v5883 = vld [vmem:[%s4498 + $0x1e9] sm:$0xff]
  %v5884 = vld [vmem:[%s4498 + $0x1f9] sm:$0xff]
  %v5885 = vld [vmem:[%s4498 + $0x201] sm:$0xff]
  %v5886 = vld [vmem:[%s4498 + $0x211] sm:$0xff]
  %v5887 = vld [vmem:[%s4498 + $0x219] sm:$0xff]
  %v5888 = vld [vmem:[%s4498 + $0x229] sm:$0xff]
  %v5889 = vld [vmem:[%s4498 + $0x231] sm:$0xff]
  %v5890 = vld [vmem:[%s4498 + $0x241] sm:$0xff]
  %v5891 = vld [vmem:[%s4498 + $0x249] sm:$0xff]
  %v5892 = vld [vmem:[%s4498 + $0x259] sm:$0xff]
  %v5893 = vld [vmem:[%s4498 + $0x261] sm:$0xff]
  %v5894 = vld [vmem:[%s4498 + $0x271] sm:$0xff]
  %v5895 = vld [vmem:[%s4498 + $0x279] sm:$0xff]
  %v5896 = vld [vmem:[%s4498 + $0x289] sm:$0xff]
  %v5897 = vld [vmem:[%s4498 + $0x291] sm:$0xff]
  %v5898 = vld [vmem:[%s4498 + $0x2a1] sm:$0xff]
  %v5899 = vld [vmem:[%s4498 + $0x2a9] sm:$0xff]
  %v5900 = vld [vmem:[%s4498 + $0x2b9] sm:$0xff]
  %v5901 = vld [vmem:[%s4498 + $0x2c1] sm:$0xff]
  %v5902 = vld [vmem:[%s4498 + $0x2d1] sm:$0xff]
  %v5903 = vld [vmem:[%s4498 + $0x2d9] sm:$0xff]
  %v5904 = vld [vmem:[%s4498 + $0x2e9] sm:$0xff]
  %v5905 = vld [vmem:[%s4498 + $0x2f1] sm:$0xff]
  %v5906 = vld [vmem:[%s4498 + $0x301] sm:$0xff]
  %v5907 = vld [vmem:[%s4498 + $0x309] sm:$0xff]
  %v5908 = vld [vmem:[%s4498 + $0x319] sm:$0xff]
  %v5909 = vld [vmem:[%s4498 + $0x321] sm:$0xff]
  %5974 = vrot.lane.b32.xlu0 %v5846, 64
  %v5975 = vpop.permute.xlu0 %5974
  %5976 = vrot.lane.b32.xlu0 %v5847, 64
  %v5977 = vpop.permute.xlu0 %5976
  %5978 = vrot.lane.b32.xlu0 %v5848, 64
  %v5979 = vpop.permute.xlu0 %5978
  %5980 = vrot.lane.b32.xlu0 %v5849, 64
  %v5981 = vpop.permute.xlu0 %5980
  %5982 = vrot.lane.b32.xlu0 %v5850, 64
  %v5983 = vpop.permute.xlu0 %5982
  %5984 = vrot.lane.b32.xlu0 %v5851, 64
  %v5985 = vpop.permute.xlu0 %5984
  %5986 = vrot.lane.b32.xlu0 %v5852, 64
  %v5987 = vpop.permute.xlu0 %5986
  %5988 = vrot.lane.b32.xlu0 %v5853, 64
  %v5989 = vpop.permute.xlu0 %5988
  %5990 = vrot.lane.b32.xlu0 %v5854, 64
  %v5991 = vpop.permute.xlu0 %5990
  %5992 = vrot.lane.b32.xlu0 %v5855, 64
  %v5993 = vpop.permute.xlu0 %5992
  %5994 = vrot.lane.b32.xlu0 %v5856, 64
  %v5995 = vpop.permute.xlu0 %5994
  %5996 = vrot.lane.b32.xlu0 %v5857, 64
  %v5997 = vpop.permute.xlu0 %5996
  %5998 = vrot.lane.b32.xlu0 %v5858, 64
  %v5999 = vpop.permute.xlu0 %5998
  %6000 = vrot.lane.b32.xlu0 %v5859, 64
  %v6001 = vpop.permute.xlu0 %6000
  %6002 = vrot.lane.b32.xlu0 %v5860, 64
  %v6003 = vpop.permute.xlu0 %6002
  %6004 = vrot.lane.b32.xlu0 %v5861, 64
  %v6005 = vpop.permute.xlu0 %6004
  %6006 = vrot.lane.b32.xlu0 %v5862, 64
  %v6007 = vpop.permute.xlu0 %6006
  %6008 = vrot.lane.b32.xlu0 %v5863, 64
  %v6009 = vpop.permute.xlu0 %6008
  %6010 = vrot.lane.b32.xlu0 %v5864, 64
  %v6011 = vpop.permute.xlu0 %6010
  %6012 = vrot.lane.b32.xlu0 %v5865, 64
  %v6013 = vpop.permute.xlu0 %6012
  %6014 = vrot.lane.b32.xlu0 %v5866, 64
  %v6015 = vpop.permute.xlu0 %6014
  %6016 = vrot.lane.b32.xlu0 %v5867, 64
  %v6017 = vpop.permute.xlu0 %6016
  %6018 = vrot.lane.b32.xlu0 %v5868, 64
  %v6019 = vpop.permute.xlu0 %6018
  %6020 = vrot.lane.b32.xlu0 %v5869, 64
  %v6021 = vpop.permute.xlu0 %6020
  %6022 = vrot.lane.b32.xlu0 %v5870, 64
  %v6023 = vpop.permute.xlu0 %6022
  %6024 = vrot.lane.b32.xlu0 %v5871, 64
  %v6025 = vpop.permute.xlu0 %6024
  %6026 = vrot.lane.b32.xlu0 %v5872, 64
  %v6027 = vpop.permute.xlu0 %6026
  %6028 = vrot.lane.b32.xlu0 %v5873, 64
  %v6029 = vpop.permute.xlu0 %6028
  %6030 = vrot.lane.b32.xlu0 %v5874, 64
  %v6031 = vpop.permute.xlu0 %6030
  %6032 = vrot.lane.b32.xlu0 %v5875, 64
  %v6033 = vpop.permute.xlu0 %6032
  %6034 = vrot.lane.b32.xlu0 %v5876, 64
  %v6035 = vpop.permute.xlu0 %6034
  %6036 = vrot.lane.b32.xlu0 %v5877, 64
  %v6037 = vpop.permute.xlu0 %6036
  %6038 = vrot.lane.b32.xlu0 %v5878, 64
  %v6039 = vpop.permute.xlu0 %6038
  %6040 = vrot.lane.b32.xlu0 %v5879, 64
  %v6041 = vpop.permute.xlu0 %6040
  %6042 = vrot.lane.b32.xlu0 %v5880, 64
  %v6043 = vpop.permute.xlu0 %6042
  %6044 = vrot.lane.b32.xlu0 %v5881, 64
  %v6045 = vpop.permute.xlu0 %6044
  %6046 = vrot.lane.b32.xlu0 %v5882, 64
  %v6047 = vpop.permute.xlu0 %6046
  %6048 = vrot.lane.b32.xlu0 %v5883, 64
  %v6049 = vpop.permute.xlu0 %6048
  %6050 = vrot.lane.b32.xlu0 %v5884, 64
  %v6051 = vpop.permute.xlu0 %6050
  %6052 = vrot.lane.b32.xlu0 %v5885, 64
  %v6053 = vpop.permute.xlu0 %6052
  %6054 = vrot.lane.b32.xlu0 %v5886, 64
  %v6055 = vpop.permute.xlu0 %6054
  %6056 = vrot.lane.b32.xlu0 %v5887, 64
  %v6057 = vpop.permute.xlu0 %6056
  %6058 = vrot.lane.b32.xlu0 %v5888, 64
  %v6059 = vpop.permute.xlu0 %6058
  %6060 = vrot.lane.b32.xlu0 %v5889, 64
  %v6061 = vpop.permute.xlu0 %6060
  %6062 = vrot.lane.b32.xlu0 %v5890, 64
  %v6063 = vpop.permute.xlu0 %6062
  %6064 = vrot.lane.b32.xlu0 %v5891, 64
  %v6065 = vpop.permute.xlu0 %6064
  %6066 = vrot.lane.b32.xlu0 %v5892, 64
  %v6067 = vpop.permute.xlu0 %6066
  %6068 = vrot.lane.b32.xlu0 %v5893, 64
  %v6069 = vpop.permute.xlu0 %6068
  %6070 = vrot.lane.b32.xlu0 %v5894, 64
  %v6071 = vpop.permute.xlu0 %6070
  %6072 = vrot.lane.b32.xlu0 %v5895, 64
  %v6073 = vpop.permute.xlu0 %6072
  %6074 = vrot.lane.b32.xlu0 %v5896, 64
  %v6075 = vpop.permute.xlu0 %6074
  %6076 = vrot.lane.b32.xlu0 %v5897, 64
  %v6077 = vpop.permute.xlu0 %6076
  %6078 = vrot.lane.b32.xlu0 %v5898, 64
  %v6079 = vpop.permute.xlu0 %6078
  %6080 = vrot.lane.b32.xlu0 %v5899, 64
  %v6081 = vpop.permute.xlu0 %6080
  %6082 = vrot.lane.b32.xlu0 %v5900, 64
  %v6083 = vpop.permute.xlu0 %6082
  %6084 = vrot.lane.b32.xlu0 %v5901, 64
  %v6085 = vpop.permute.xlu0 %6084
  %6086 = vrot.lane.b32.xlu0 %v5902, 64
  %v6087 = vpop.permute.xlu0 %6086
  %6088 = vrot.lane.b32.xlu0 %v5903, 64
  %v6089 = vpop.permute.xlu0 %6088
  %6090 = vrot.lane.b32.xlu0 %v5904, 64
  %v6091 = vpop.permute.xlu0 %6090
  %6092 = vrot.lane.b32.xlu0 %v5905, 64
  %v6093 = vpop.permute.xlu0 %6092
  %6094 = vrot.lane.b32.xlu0 %v5906, 64
  %v6095 = vpop.permute.xlu0 %6094
  %6096 = vrot.lane.b32.xlu0 %v5907, 64
  %v6097 = vpop.permute.xlu0 %6096
  %6098 = vrot.lane.b32.xlu0 %v5908, 64
  %v6099 = vpop.permute.xlu0 %6098
  %6100 = vrot.lane.b32.xlu0 %v5909, 64
  %v6101 = vpop.permute.xlu0 %6100
  %vm6166 = vcmask 654848
  %6167 = vst.msk [vmem:[#allocation5] sm:$0xff] %vm6166, %v5975
  %6168 = vst.msk [vmem:[#allocation5 + $0x10] sm:$0xff] %vm6166, %v5977
  %6169 = vst.msk [vmem:[#allocation5 + $0x20] sm:$0xff] %vm6166, %v5979
  %6170 = vst.msk [vmem:[#allocation5 + $0x30] sm:$0xff] %vm6166, %v5981
  %6171 = vst.msk [vmem:[#allocation5 + $0x40] sm:$0xff] %vm6166, %v5983
  %6172 = vst.msk [vmem:[#allocation5 + $0x50] sm:$0xff] %vm6166, %v5985
  %6173 = vst.msk [vmem:[#allocation5 + $0x60] sm:$0xff] %vm6166, %v5987
  %6174 = vst.msk [vmem:[#allocation5 + $0x70] sm:$0xff] %vm6166, %v5989
  %6175 = vst.msk [vmem:[#allocation5 + $0x80] sm:$0xff] %vm6166, %v5991
  %6176 = vst.msk [vmem:[#allocation5 + $0x90] sm:$0xff] %vm6166, %v5993
  %6177 = vst.msk [vmem:[#allocation5 + $0xa0] sm:$0xff] %vm6166, %v5995
  %6178 = vst.msk [vmem:[#allocation5 + $0xb0] sm:$0xff] %vm6166, %v5997
  %6179 = vst.msk [vmem:[#allocation5 + $0xc0] sm:$0xff] %vm6166, %v5999
  %6180 = vst.msk [vmem:[#allocation5 + $0xd0] sm:$0xff] %vm6166, %v6001
  %6181 = vst.msk [vmem:[#allocation5 + $0xe0] sm:$0xff] %vm6166, %v6003
  %6182 = vst.msk [vmem:[#allocation5 + $0xf0] sm:$0xff] %vm6166, %v6005
  %6183 = vst.msk [vmem:[#allocation5 + $0x100] sm:$0xff] %vm6166, %v6007
  %6184 = vst.msk [vmem:[#allocation5 + $0x110] sm:$0xff] %vm6166, %v6009
  %6185 = vst.msk [vmem:[#allocation5 + $0x120] sm:$0xff] %vm6166, %v6011
  %6186 = vst.msk [vmem:[#allocation5 + $0x130] sm:$0xff] %vm6166, %v6013
  %6187 = vst.msk [vmem:[#allocation5 + $0x140] sm:$0xff] %vm6166, %v6015
  %6188 = vst.msk [vmem:[#allocation5 + $0x150] sm:$0xff] %vm6166, %v6017
  %6189 = vst.msk [vmem:[#allocation5 + $0x160] sm:$0xff] %vm6166, %v6019
  %6190 = vst.msk [vmem:[#allocation5 + $0x170] sm:$0xff] %vm6166, %v6021
  %6191 = vst.msk [vmem:[#allocation5 + $0x180] sm:$0xff] %vm6166, %v6023
  %6192 = vst.msk [vmem:[#allocation5 + $0x190] sm:$0xff] %vm6166, %v6025
  %6193 = vst.msk [vmem:[#allocation5 + $0x1a0] sm:$0xff] %vm6166, %v6027
  %6194 = vst.msk [vmem:[#allocation5 + $0x1b0] sm:$0xff] %vm6166, %v6029
  %6195 = vst.msk [vmem:[#allocation5 + $0x1c0] sm:$0xff] %vm6166, %v6031
  %6196 = vst.msk [vmem:[#allocation5 + $0x1d0] sm:$0xff] %vm6166, %v6033
  %6197 = vst.msk [vmem:[#allocation5 + $0x1e0] sm:$0xff] %vm6166, %v6035
  %6198 = vst.msk [vmem:[#allocation5 + $0x1f0] sm:$0xff] %vm6166, %v6037
  %6199 = vst.msk [vmem:[#allocation5 + $0x200] sm:$0xff] %vm6166, %v6039
  %6200 = vst.msk [vmem:[#allocation5 + $0x210] sm:$0xff] %vm6166, %v6041
  %6201 = vst.msk [vmem:[#allocation5 + $0x220] sm:$0xff] %vm6166, %v6043
  %6202 = vst.msk [vmem:[#allocation5 + $0x230] sm:$0xff] %vm6166, %v6045
  %6203 = vst.msk [vmem:[#allocation5 + $0x240] sm:$0xff] %vm6166, %v6047
  %6204 = vst.msk [vmem:[#allocation5 + $0x250] sm:$0xff] %vm6166, %v6049
  %6205 = vst.msk [vmem:[#allocation5 + $0x260] sm:$0xff] %vm6166, %v6051
  %6206 = vst.msk [vmem:[#allocation5 + $0x270] sm:$0xff] %vm6166, %v6053
  %6207 = vst.msk [vmem:[#allocation5 + $0x280] sm:$0xff] %vm6166, %v6055
  %6208 = vst.msk [vmem:[#allocation5 + $0x290] sm:$0xff] %vm6166, %v6057
  %6209 = vst.msk [vmem:[#allocation5 + $0x2a0] sm:$0xff] %vm6166, %v6059
  %6210 = vst.msk [vmem:[#allocation5 + $0x2b0] sm:$0xff] %vm6166, %v6061
  %6211 = vst.msk [vmem:[#allocation5 + $0x2c0] sm:$0xff] %vm6166, %v6063
  %6212 = vst.msk [vmem:[#allocation5 + $0x2d0] sm:$0xff] %vm6166, %v6065
  %6213 = vst.msk [vmem:[#allocation5 + $0x2e0] sm:$0xff] %vm6166, %v6067
  %6214 = vst.msk [vmem:[#allocation5 + $0x2f0] sm:$0xff] %vm6166, %v6069
  %6215 = vst.msk [vmem:[#allocation5 + $0x300] sm:$0xff] %vm6166, %v6071
  %6216 = vst.msk [vmem:[#allocation5 + $0x310] sm:$0xff] %vm6166, %v6073
  %6217 = vst.msk [vmem:[#allocation5 + $0x320] sm:$0xff] %vm6166, %v6075
  %6218 = vst.msk [vmem:[#allocation5 + $0x330] sm:$0xff] %vm6166, %v6077
  %6219 = vst.msk [vmem:[#allocation5 + $0x340] sm:$0xff] %vm6166, %v6079
  %6220 = vst.msk [vmem:[#allocation5 + $0x350] sm:$0xff] %vm6166, %v6081
  %6221 = vst.msk [vmem:[#allocation5 + $0x360] sm:$0xff] %vm6166, %v6083
  %6222 = vst.msk [vmem:[#allocation5 + $0x370] sm:$0xff] %vm6166, %v6085
  %6223 = vst.msk [vmem:[#allocation5 + $0x380] sm:$0xff] %vm6166, %v6087
  %6224 = vst.msk [vmem:[#allocation5 + $0x390] sm:$0xff] %vm6166, %v6089
  %6225 = vst.msk [vmem:[#allocation5 + $0x3a0] sm:$0xff] %vm6166, %v6091
  %6226 = vst.msk [vmem:[#allocation5 + $0x3b0] sm:$0xff] %vm6166, %v6093
  %6227 = vst.msk [vmem:[#allocation5 + $0x3c0] sm:$0xff] %vm6166, %v6095
  %6228 = vst.msk [vmem:[#allocation5 + $0x3d0] sm:$0xff] %vm6166, %v6097
  %6229 = vst.msk [vmem:[#allocation5 + $0x3e0] sm:$0xff] %vm6166, %v6099
  %6230 = vst.msk [vmem:[#allocation5 + $0x3f0] sm:$0xff] %vm6166, %v6101
  %v6231 = vld [vmem:[%s4498 + $0x2] sm:$0xff]
  %v6232 = vld [vmem:[%s4498 + $0xa] sm:$0xff]
  %v6233 = vld [vmem:[%s4498 + $0x1a] sm:$0xff]
  %v6234 = vld [vmem:[%s4498 + $0x22] sm:$0xff]
  %v6235 = vld [vmem:[%s4498 + $0x32] sm:$0xff]
  %v6236 = vld [vmem:[%s4498 + $0x3a] sm:$0xff]
  %v6237 = vld [vmem:[%s4498 + $0x4a] sm:$0xff]
  %v6238 = vld [vmem:[%s4498 + $0x52] sm:$0xff]
  %v6239 = vld [vmem:[%s4498 + $0x62] sm:$0xff]
  %v6240 = vld [vmem:[%s4498 + $0x6a] sm:$0xff]
  %v6241 = vld [vmem:[%s4498 + $0x7a] sm:$0xff]
  %v6242 = vld [vmem:[%s4498 + $0x82] sm:$0xff]
  %v6243 = vld [vmem:[%s4498 + $0x92] sm:$0xff]
  %v6244 = vld [vmem:[%s4498 + $0x9a] sm:$0xff]
  %v6245 = vld [vmem:[%s4498 + $0xaa] sm:$0xff]
  %v6246 = vld [vmem:[%s4498 + $0xb2] sm:$0xff]
  %v6247 = vld [vmem:[%s4498 + $0xc2] sm:$0xff]
  %v6248 = vld [vmem:[%s4498 + $0xca] sm:$0xff]
  %v6249 = vld [vmem:[%s4498 + $0xda] sm:$0xff]
  %v6250 = vld [vmem:[%s4498 + $0xe2] sm:$0xff]
  %v6251 = vld [vmem:[%s4498 + $0xf2] sm:$0xff]
  %v6252 = vld [vmem:[%s4498 + $0xfa] sm:$0xff]
  %v6253 = vld [vmem:[%s4498 + $0x10a] sm:$0xff]
  %v6254 = vld [vmem:[%s4498 + $0x112] sm:$0xff]
  %v6255 = vld [vmem:[%s4498 + $0x122] sm:$0xff]
  %v6256 = vld [vmem:[%s4498 + $0x12a] sm:$0xff]
  %v6257 = vld [vmem:[%s4498 + $0x13a] sm:$0xff]
  %v6258 = vld [vmem:[%s4498 + $0x142] sm:$0xff]
  %v6259 = vld [vmem:[%s4498 + $0x152] sm:$0xff]
  %v6260 = vld [vmem:[%s4498 + $0x15a] sm:$0xff]
  %v6261 = vld [vmem:[%s4498 + $0x16a] sm:$0xff]
  %v6262 = vld [vmem:[%s4498 + $0x172] sm:$0xff]
  %v6263 = vld [vmem:[%s4498 + $0x1b2] sm:$0xff]
  %v6264 = vld [vmem:[%s4498 + $0x1ba] sm:$0xff]
  %v6265 = vld [vmem:[%s4498 + $0x1ca] sm:$0xff]
  %v6266 = vld [vmem:[%s4498 + $0x1d2] sm:$0xff]
  %v6267 = vld [vmem:[%s4498 + $0x1e2] sm:$0xff]
  %v6268 = vld [vmem:[%s4498 + $0x1ea] sm:$0xff]
  %v6269 = vld [vmem:[%s4498 + $0x1fa] sm:$0xff]
  %v6270 = vld [vmem:[%s4498 + $0x202] sm:$0xff]
  %v6271 = vld [vmem:[%s4498 + $0x212] sm:$0xff]
  %v6272 = vld [vmem:[%s4498 + $0x21a] sm:$0xff]
  %v6273 = vld [vmem:[%s4498 + $0x22a] sm:$0xff]
  %v6274 = vld [vmem:[%s4498 + $0x232] sm:$0xff]
  %v6275 = vld [vmem:[%s4498 + $0x242] sm:$0xff]
  %v6276 = vld [vmem:[%s4498 + $0x24a] sm:$0xff]
  %v6277 = vld [vmem:[%s4498 + $0x25a] sm:$0xff]
  %v6278 = vld [vmem:[%s4498 + $0x262] sm:$0xff]
  %v6279 = vld [vmem:[%s4498 + $0x272] sm:$0xff]
  %v6280 = vld [vmem:[%s4498 + $0x27a] sm:$0xff]
  %v6281 = vld [vmem:[%s4498 + $0x28a] sm:$0xff]
  %v6282 = vld [vmem:[%s4498 + $0x292] sm:$0xff]
  %v6283 = vld [vmem:[%s4498 + $0x2a2] sm:$0xff]
  %v6284 = vld [vmem:[%s4498 + $0x2aa] sm:$0xff]
  %v6285 = vld [vmem:[%s4498 + $0x2ba] sm:$0xff]
  %v6286 = vld [vmem:[%s4498 + $0x2c2] sm:$0xff]
  %v6287 = vld [vmem:[%s4498 + $0x2d2] sm:$0xff]
  %v6288 = vld [vmem:[%s4498 + $0x2da] sm:$0xff]
  %v6289 = vld [vmem:[%s4498 + $0x2ea] sm:$0xff]
  %v6290 = vld [vmem:[%s4498 + $0x2f2] sm:$0xff]
  %v6291 = vld [vmem:[%s4498 + $0x302] sm:$0xff]
  %v6292 = vld [vmem:[%s4498 + $0x30a] sm:$0xff]
  %v6293 = vld [vmem:[%s4498 + $0x31a] sm:$0xff]
  %v6294 = vld [vmem:[%s4498 + $0x322] sm:$0xff]
  %6359 = vrot.lane.b32.xlu0 %v6231, 80
  %v6360 = vpop.permute.xlu0 %6359
  %6361 = vrot.lane.b32.xlu0 %v6232, 80
  %v6362 = vpop.permute.xlu0 %6361
  %6363 = vrot.lane.b32.xlu0 %v6233, 80
  %v6364 = vpop.permute.xlu0 %6363
  %6365 = vrot.lane.b32.xlu0 %v6234, 80
  %v6366 = vpop.permute.xlu0 %6365
  %6367 = vrot.lane.b32.xlu0 %v6235, 80
  %v6368 = vpop.permute.xlu0 %6367
  %6369 = vrot.lane.b32.xlu0 %v6236, 80
  %v6370 = vpop.permute.xlu0 %6369
  %6371 = vrot.lane.b32.xlu0 %v6237, 80
  %v6372 = vpop.permute.xlu0 %6371
  %6373 = vrot.lane.b32.xlu0 %v6238, 80
  %v6374 = vpop.permute.xlu0 %6373
  %6375 = vrot.lane.b32.xlu0 %v6239, 80
  %v6376 = vpop.permute.xlu0 %6375
  %6377 = vrot.lane.b32.xlu0 %v6240, 80
  %v6378 = vpop.permute.xlu0 %6377
  %6379 = vrot.lane.b32.xlu0 %v6241, 80
  %v6380 = vpop.permute.xlu0 %6379
  %6381 = vrot.lane.b32.xlu0 %v6242, 80
  %v6382 = vpop.permute.xlu0 %6381
  %6383 = vrot.lane.b32.xlu0 %v6243, 80
  %v6384 = vpop.permute.xlu0 %6383
  %6385 = vrot.lane.b32.xlu0 %v6244, 80
  %v6386 = vpop.permute.xlu0 %6385
  %6387 = vrot.lane.b32.xlu0 %v6245, 80
  %v6388 = vpop.permute.xlu0 %6387
  %6389 = vrot.lane.b32.xlu0 %v6246, 80
  %v6390 = vpop.permute.xlu0 %6389
  %6391 = vrot.lane.b32.xlu0 %v6247, 80
  %v6392 = vpop.permute.xlu0 %6391
  %6393 = vrot.lane.b32.xlu0 %v6248, 80
  %v6394 = vpop.permute.xlu0 %6393
  %6395 = vrot.lane.b32.xlu0 %v6249, 80
  %v6396 = vpop.permute.xlu0 %6395
  %6397 = vrot.lane.b32.xlu0 %v6250, 80
  %v6398 = vpop.permute.xlu0 %6397
  %6399 = vrot.lane.b32.xlu0 %v6251, 80
  %v6400 = vpop.permute.xlu0 %6399
  %6401 = vrot.lane.b32.xlu0 %v6252, 80
  %v6402 = vpop.permute.xlu0 %6401
  %6403 = vrot.lane.b32.xlu0 %v6253, 80
  %v6404 = vpop.permute.xlu0 %6403
  %6405 = vrot.lane.b32.xlu0 %v6254, 80
  %v6406 = vpop.permute.xlu0 %6405
  %6407 = vrot.lane.b32.xlu0 %v6255, 80
  %v6408 = vpop.permute.xlu0 %6407
  %6409 = vrot.lane.b32.xlu0 %v6256, 80
  %v6410 = vpop.permute.xlu0 %6409
  %6411 = vrot.lane.b32.xlu0 %v6257, 80
  %v6412 = vpop.permute.xlu0 %6411
  %6413 = vrot.lane.b32.xlu0 %v6258, 80
  %v6414 = vpop.permute.xlu0 %6413
  %6415 = vrot.lane.b32.xlu0 %v6259, 80
  %v6416 = vpop.permute.xlu0 %6415
  %6417 = vrot.lane.b32.xlu0 %v6260, 80
  %v6418 = vpop.permute.xlu0 %6417
  %6419 = vrot.lane.b32.xlu0 %v6261, 80
  %v6420 = vpop.permute.xlu0 %6419
  %6421 = vrot.lane.b32.xlu0 %v6262, 80
  %v6422 = vpop.permute.xlu0 %6421
  %6423 = vrot.lane.b32.xlu0 %v6263, 80
  %v6424 = vpop.permute.xlu0 %6423
  %6425 = vrot.lane.b32.xlu0 %v6264, 80
  %v6426 = vpop.permute.xlu0 %6425
  %6427 = vrot.lane.b32.xlu0 %v6265, 80
  %v6428 = vpop.permute.xlu0 %6427
  %6429 = vrot.lane.b32.xlu0 %v6266, 80
  %v6430 = vpop.permute.xlu0 %6429
  %6431 = vrot.lane.b32.xlu0 %v6267, 80
  %v6432 = vpop.permute.xlu0 %6431
  %6433 = vrot.lane.b32.xlu0 %v6268, 80
  %v6434 = vpop.permute.xlu0 %6433
  %6435 = vrot.lane.b32.xlu0 %v6269, 80
  %v6436 = vpop.permute.xlu0 %6435
  %6437 = vrot.lane.b32.xlu0 %v6270, 80
  %v6438 = vpop.permute.xlu0 %6437
  %6439 = vrot.lane.b32.xlu0 %v6271, 80
  %v6440 = vpop.permute.xlu0 %6439
  %6441 = vrot.lane.b32.xlu0 %v6272, 80
  %v6442 = vpop.permute.xlu0 %6441
  %6443 = vrot.lane.b32.xlu0 %v6273, 80
  %v6444 = vpop.permute.xlu0 %6443
  %6445 = vrot.lane.b32.xlu0 %v6274, 80
  %v6446 = vpop.permute.xlu0 %6445
  %6447 = vrot.lane.b32.xlu0 %v6275, 80
  %v6448 = vpop.permute.xlu0 %6447
  %6449 = vrot.lane.b32.xlu0 %v6276, 80
  %v6450 = vpop.permute.xlu0 %6449
  %6451 = vrot.lane.b32.xlu0 %v6277, 80
  %v6452 = vpop.permute.xlu0 %6451
  %6453 = vrot.lane.b32.xlu0 %v6278, 80
  %v6454 = vpop.permute.xlu0 %6453
  %6455 = vrot.lane.b32.xlu0 %v6279, 80
  %v6456 = vpop.permute.xlu0 %6455
  %6457 = vrot.lane.b32.xlu0 %v6280, 80
  %v6458 = vpop.permute.xlu0 %6457
  %6459 = vrot.lane.b32.xlu0 %v6281, 80
  %v6460 = vpop.permute.xlu0 %6459
  %6461 = vrot.lane.b32.xlu0 %v6282, 80
  %v6462 = vpop.permute.xlu0 %6461
  %6463 = vrot.lane.b32.xlu0 %v6283, 80
  %v6464 = vpop.permute.xlu0 %6463
  %6465 = vrot.lane.b32.xlu0 %v6284, 80
  %v6466 = vpop.permute.xlu0 %6465
  %6467 = vrot.lane.b32.xlu0 %v6285, 80
  %v6468 = vpop.permute.xlu0 %6467
  %6469 = vrot.lane.b32.xlu0 %v6286, 80
  %v6470 = vpop.permute.xlu0 %6469
  %6471 = vrot.lane.b32.xlu0 %v6287, 80
  %v6472 = vpop.permute.xlu0 %6471
  %6473 = vrot.lane.b32.xlu0 %v6288, 80
  %v6474 = vpop.permute.xlu0 %6473
  %6475 = vrot.lane.b32.xlu0 %v6289, 80
  %v6476 = vpop.permute.xlu0 %6475
  %6477 = vrot.lane.b32.xlu0 %v6290, 80
  %v6478 = vpop.permute.xlu0 %6477
  %6479 = vrot.lane.b32.xlu0 %v6291, 80
  %v6480 = vpop.permute.xlu0 %6479
  %6481 = vrot.lane.b32.xlu0 %v6292, 80
  %v6482 = vpop.permute.xlu0 %6481
  %6483 = vrot.lane.b32.xlu0 %v6293, 80
  %v6484 = vpop.permute.xlu0 %6483
  %6485 = vrot.lane.b32.xlu0 %v6294, 80
  %v6486 = vpop.permute.xlu0 %6485
  %vm6551 = vcmask 786048
  %6552 = vst.msk [vmem:[#allocation5] sm:$0xff] %vm6551, %v6360
  %6553 = vst.msk [vmem:[#allocation5 + $0x10] sm:$0xff] %vm6551, %v6362
  %6554 = vst.msk [vmem:[#allocation5 + $0x20] sm:$0xff] %vm6551, %v6364
  %6555 = vst.msk [vmem:[#allocation5 + $0x30] sm:$0xff] %vm6551, %v6366
  %6556 = vst.msk [vmem:[#allocation5 + $0x40] sm:$0xff] %vm6551, %v6368
  %6557 = vst.msk [vmem:[#allocation5 + $0x50] sm:$0xff] %vm6551, %v6370
  %6558 = vst.msk [vmem:[#allocation5 + $0x60] sm:$0xff] %vm6551, %v6372
  %6559 = vst.msk [vmem:[#allocation5 + $0x70] sm:$0xff] %vm6551, %v6374
  %6560 = vst.msk [vmem:[#allocation5 + $0x80] sm:$0xff] %vm6551, %v6376
  %6561 = vst.msk [vmem:[#allocation5 + $0x90] sm:$0xff] %vm6551, %v6378
  %6562 = vst.msk [vmem:[#allocation5 + $0xa0] sm:$0xff] %vm6551, %v6380
  %6563 = vst.msk [vmem:[#allocation5 + $0xb0] sm:$0xff] %vm6551, %v6382
  %6564 = vst.msk [vmem:[#allocation5 + $0xc0] sm:$0xff] %vm6551, %v6384
  %6565 = vst.msk [vmem:[#allocation5 + $0xd0] sm:$0xff] %vm6551, %v6386
  %6566 = vst.msk [vmem:[#allocation5 + $0xe0] sm:$0xff] %vm6551, %v6388
  %6567 = vst.msk [vmem:[#allocation5 + $0xf0] sm:$0xff] %vm6551, %v6390
  %6568 = vst.msk [vmem:[#allocation5 + $0x100] sm:$0xff] %vm6551, %v6392
  %6569 = vst.msk [vmem:[#allocation5 + $0x110] sm:$0xff] %vm6551, %v6394
  %6570 = vst.msk [vmem:[#allocation5 + $0x120] sm:$0xff] %vm6551, %v6396
  %6571 = vst.msk [vmem:[#allocation5 + $0x130] sm:$0xff] %vm6551, %v6398
  %6572 = vst.msk [vmem:[#allocation5 + $0x140] sm:$0xff] %vm6551, %v6400
  %6573 = vst.msk [vmem:[#allocation5 + $0x150] sm:$0xff] %vm6551, %v6402
  %6574 = vst.msk [vmem:[#allocation5 + $0x160] sm:$0xff] %vm6551, %v6404
  %6575 = vst.msk [vmem:[#allocation5 + $0x170] sm:$0xff] %vm6551, %v6406
  %6576 = vst.msk [vmem:[#allocation5 + $0x180] sm:$0xff] %vm6551, %v6408
  %6577 = vst.msk [vmem:[#allocation5 + $0x190] sm:$0xff] %vm6551, %v6410
  %6578 = vst.msk [vmem:[#allocation5 + $0x1a0] sm:$0xff] %vm6551, %v6412
  %6579 = vst.msk [vmem:[#allocation5 + $0x1b0] sm:$0xff] %vm6551, %v6414
  %6580 = vst.msk [vmem:[#allocation5 + $0x1c0] sm:$0xff] %vm6551, %v6416
  %6581 = vst.msk [vmem:[#allocation5 + $0x1d0] sm:$0xff] %vm6551, %v6418
  %6582 = vst.msk [vmem:[#allocation5 + $0x1e0] sm:$0xff] %vm6551, %v6420
  %6583 = vst.msk [vmem:[#allocation5 + $0x1f0] sm:$0xff] %vm6551, %v6422
  %6584 = vst.msk [vmem:[#allocation5 + $0x200] sm:$0xff] %vm6551, %v6424
  %6585 = vst.msk [vmem:[#allocation5 + $0x210] sm:$0xff] %vm6551, %v6426
  %6586 = vst.msk [vmem:[#allocation5 + $0x220] sm:$0xff] %vm6551, %v6428
  %6587 = vst.msk [vmem:[#allocation5 + $0x230] sm:$0xff] %vm6551, %v6430
  %6588 = vst.msk [vmem:[#allocation5 + $0x240] sm:$0xff] %vm6551, %v6432
  %6589 = vst.msk [vmem:[#allocation5 + $0x250] sm:$0xff] %vm6551, %v6434
  %6590 = vst.msk [vmem:[#allocation5 + $0x260] sm:$0xff] %vm6551, %v6436
  %6591 = vst.msk [vmem:[#allocation5 + $0x270] sm:$0xff] %vm6551, %v6438
  %6592 = vst.msk [vmem:[#allocation5 + $0x280] sm:$0xff] %vm6551, %v6440
  %6593 = vst.msk [vmem:[#allocation5 + $0x290] sm:$0xff] %vm6551, %v6442
  %6594 = vst.msk [vmem:[#allocation5 + $0x2a0] sm:$0xff] %vm6551, %v6444
  %6595 = vst.msk [vmem:[#allocation5 + $0x2b0] sm:$0xff] %vm6551, %v6446
  %6596 = vst.msk [vmem:[#allocation5 + $0x2c0] sm:$0xff] %vm6551, %v6448
  %6597 = vst.msk [vmem:[#allocation5 + $0x2d0] sm:$0xff] %vm6551, %v6450
  %6598 = vst.msk [vmem:[#allocation5 + $0x2e0] sm:$0xff] %vm6551, %v6452
  %6599 = vst.msk [vmem:[#allocation5 + $0x2f0] sm:$0xff] %vm6551, %v6454
  %6600 = vst.msk [vmem:[#allocation5 + $0x300] sm:$0xff] %vm6551, %v6456
  %6601 = vst.msk [vmem:[#allocation5 + $0x310] sm:$0xff] %vm6551, %v6458
  %6602 = vst.msk [vmem:[#allocation5 + $0x320] sm:$0xff] %vm6551, %v6460
  %6603 = vst.msk [vmem:[#allocation5 + $0x330] sm:$0xff] %vm6551, %v6462
  %6604 = vst.msk [vmem:[#allocation5 + $0x340] sm:$0xff] %vm6551, %v6464
  %6605 = vst.msk [vmem:[#allocation5 + $0x350] sm:$0xff] %vm6551, %v6466
  %6606 = vst.msk [vmem:[#allocation5 + $0x360] sm:$0xff] %vm6551, %v6468
  %6607 = vst.msk [vmem:[#allocation5 + $0x370] sm:$0xff] %vm6551, %v6470
  %6608 = vst.msk [vmem:[#allocation5 + $0x380] sm:$0xff] %vm6551, %v6472
  %6609 = vst.msk [vmem:[#allocation5 + $0x390] sm:$0xff] %vm6551, %v6474
  %6610 = vst.msk [vmem:[#allocation5 + $0x3a0] sm:$0xff] %vm6551, %v6476
  %6611 = vst.msk [vmem:[#allocation5 + $0x3b0] sm:$0xff] %vm6551, %v6478
  %6612 = vst.msk [vmem:[#allocation5 + $0x3c0] sm:$0xff] %vm6551, %v6480
  %6613 = vst.msk [vmem:[#allocation5 + $0x3d0] sm:$0xff] %vm6551, %v6482
  %6614 = vst.msk [vmem:[#allocation5 + $0x3e0] sm:$0xff] %vm6551, %v6484
  %6615 = vst.msk [vmem:[#allocation5 + $0x3f0] sm:$0xff] %vm6551, %v6486
  %s6616 = scalar_lea.vmem [#allocation4], 48
  %v6617 = vld [vmem:[%s6616] sm:$0xff]
  %v6618 = vld [vmem:[%s6616 + $0x8] sm:$0xff]
  %v6619 = vld [vmem:[%s6616 + $0x18] sm:$0xff]
  %v6620 = vld [vmem:[%s6616 + $0x20] sm:$0xff]
  %v6621 = vld [vmem:[%s6616 + $0x30] sm:$0xff]
  %v6622 = vld [vmem:[%s6616 + $0x38] sm:$0xff]
  %v6623 = vld [vmem:[%s6616 + $0x48] sm:$0xff]
  %v6624 = vld [vmem:[%s6616 + $0x50] sm:$0xff]
  %v6625 = vld [vmem:[%s6616 + $0x60] sm:$0xff]
  %v6626 = vld [vmem:[%s6616 + $0x68] sm:$0xff]
  %v6627 = vld [vmem:[%s6616 + $0x78] sm:$0xff]
  %v6628 = vld [vmem:[%s6616 + $0x80] sm:$0xff]
  %v6629 = vld [vmem:[%s6616 + $0x90] sm:$0xff]
  %v6630 = vld [vmem:[%s6616 + $0x98] sm:$0xff]
  %v6631 = vld [vmem:[%s6616 + $0xa8] sm:$0xff]
  %v6632 = vld [vmem:[%s6616 + $0xb0] sm:$0xff]
  %v6633 = vld [vmem:[%s6616 + $0xc0] sm:$0xff]
  %v6634 = vld [vmem:[%s6616 + $0xc8] sm:$0xff]
  %v6635 = vld [vmem:[%s6616 + $0xd8] sm:$0xff]
  %v6636 = vld [vmem:[%s6616 + $0xe0] sm:$0xff]
  %v6637 = vld [vmem:[%s6616 + $0xf0] sm:$0xff]
  %v6638 = vld [vmem:[%s6616 + $0xf8] sm:$0xff]
  %v6639 = vld [vmem:[%s6616 + $0x108] sm:$0xff]
  %v6640 = vld [vmem:[%s6616 + $0x110] sm:$0xff]
  %v6641 = vld [vmem:[%s6616 + $0x120] sm:$0xff]
  %v6642 = vld [vmem:[%s6616 + $0x128] sm:$0xff]
  %v6643 = vld [vmem:[%s6616 + $0x138] sm:$0xff]
  %v6644 = vld [vmem:[%s6616 + $0x140] sm:$0xff]
  %v6645 = vld [vmem:[%s6616 + $0x150] sm:$0xff]
  %v6646 = vld [vmem:[%s6616 + $0x158] sm:$0xff]
  %v6647 = vld [vmem:[%s6616 + $0x168] sm:$0xff]
  %v6648 = vld [vmem:[%s6616 + $0x170] sm:$0xff]
  %v6649 = vld [vmem:[%s6616 + $0x1b0] sm:$0xff]
  %v6650 = vld [vmem:[%s6616 + $0x1b8] sm:$0xff]
  %v6651 = vld [vmem:[%s6616 + $0x1c8] sm:$0xff]
  %v6652 = vld [vmem:[%s6616 + $0x1d0] sm:$0xff]
  %v6653 = vld [vmem:[%s6616 + $0x1e0] sm:$0xff]
  %v6654 = vld [vmem:[%s6616 + $0x1e8] sm:$0xff]
  %v6655 = vld [vmem:[%s6616 + $0x1f8] sm:$0xff]
  %v6656 = vld [vmem:[%s6616 + $0x200] sm:$0xff]
  %v6657 = vld [vmem:[%s6616 + $0x210] sm:$0xff]
  %v6658 = vld [vmem:[%s6616 + $0x218] sm:$0xff]
  %v6659 = vld [vmem:[%s6616 + $0x228] sm:$0xff]
  %v6660 = vld [vmem:[%s6616 + $0x230] sm:$0xff]
  %v6661 = vld [vmem:[%s6616 + $0x240] sm:$0xff]
  %v6662 = vld [vmem:[%s6616 + $0x248] sm:$0xff]
  %v6663 = vld [vmem:[%s6616 + $0x258] sm:$0xff]
  %v6664 = vld [vmem:[%s6616 + $0x260] sm:$0xff]
  %v6665 = vld [vmem:[%s6616 + $0x270] sm:$0xff]
  %v6666 = vld [vmem:[%s6616 + $0x278] sm:$0xff]
  %v6667 = vld [vmem:[%s6616 + $0x288] sm:$0xff]
  %v6668 = vld [vmem:[%s6616 + $0x290] sm:$0xff]
  %v6669 = vld [vmem:[%s6616 + $0x2a0] sm:$0xff]
  %v6670 = vld [vmem:[%s6616 + $0x2a8] sm:$0xff]
  %v6671 = vld [vmem:[%s6616 + $0x2b8] sm:$0xff]
  %v6672 = vld [vmem:[%s6616 + $0x2c0] sm:$0xff]
  %v6673 = vld [vmem:[%s6616 + $0x2d0] sm:$0xff]
  %v6674 = vld [vmem:[%s6616 + $0x2d8] sm:$0xff]
  %v6675 = vld [vmem:[%s6616 + $0x2e8] sm:$0xff]
  %v6676 = vld [vmem:[%s6616 + $0x2f0] sm:$0xff]
  %v6677 = vld [vmem:[%s6616 + $0x300] sm:$0xff]
  %v6678 = vld [vmem:[%s6616 + $0x308] sm:$0xff]
  %v6679 = vld [vmem:[%s6616 + $0x318] sm:$0xff]
  %v6680 = vld [vmem:[%s6616 + $0x320] sm:$0xff]
  %6745 = vrot.lane.b32.xlu0 %v6617, 96
  %v6746 = vpop.permute.xlu0 %6745
  %6747 = vrot.lane.b32.xlu0 %v6618, 96
  %v6748 = vpop.permute.xlu0 %6747
  %6749 = vrot.lane.b32.xlu0 %v6619, 96
  %v6750 = vpop.permute.xlu0 %6749
  %6751 = vrot.lane.b32.xlu0 %v6620, 96
  %v6752 = vpop.permute.xlu0 %6751
  %6753 = vrot.lane.b32.xlu0 %v6621, 96
  %v6754 = vpop.permute.xlu0 %6753
  %6755 = vrot.lane.b32.xlu0 %v6622, 96
  %v6756 = vpop.permute.xlu0 %6755
  %6757 = vrot.lane.b32.xlu0 %v6623, 96
  %v6758 = vpop.permute.xlu0 %6757
  %6759 = vrot.lane.b32.xlu0 %v6624, 96
  %v6760 = vpop.permute.xlu0 %6759
  %6761 = vrot.lane.b32.xlu0 %v6625, 96
  %v6762 = vpop.permute.xlu0 %6761
  %6763 = vrot.lane.b32.xlu0 %v6626, 96
  %v6764 = vpop.permute.xlu0 %6763
  %6765 = vrot.lane.b32.xlu0 %v6627, 96
  %v6766 = vpop.permute.xlu0 %6765
  %6767 = vrot.lane.b32.xlu0 %v6628, 96
  %v6768 = vpop.permute.xlu0 %6767
  %6769 = vrot.lane.b32.xlu0 %v6629, 96
  %v6770 = vpop.permute.xlu0 %6769
  %6771 = vrot.lane.b32.xlu0 %v6630, 96
  %v6772 = vpop.permute.xlu0 %6771
  %6773 = vrot.lane.b32.xlu0 %v6631, 96
  %v6774 = vpop.permute.xlu0 %6773
  %6775 = vrot.lane.b32.xlu0 %v6632, 96
  %v6776 = vpop.permute.xlu0 %6775
  %6777 = vrot.lane.b32.xlu0 %v6633, 96
  %v6778 = vpop.permute.xlu0 %6777
  %6779 = vrot.lane.b32.xlu0 %v6634, 96
  %v6780 = vpop.permute.xlu0 %6779
  %6781 = vrot.lane.b32.xlu0 %v6635, 96
  %v6782 = vpop.permute.xlu0 %6781
  %6783 = vrot.lane.b32.xlu0 %v6636, 96
  %v6784 = vpop.permute.xlu0 %6783
  %6785 = vrot.lane.b32.xlu0 %v6637, 96
  %v6786 = vpop.permute.xlu0 %6785
  %6787 = vrot.lane.b32.xlu0 %v6638, 96
  %v6788 = vpop.permute.xlu0 %6787
  %6789 = vrot.lane.b32.xlu0 %v6639, 96
  %v6790 = vpop.permute.xlu0 %6789
  %6791 = vrot.lane.b32.xlu0 %v6640, 96
  %v6792 = vpop.permute.xlu0 %6791
  %6793 = vrot.lane.b32.xlu0 %v6641, 96
  %v6794 = vpop.permute.xlu0 %6793
  %6795 = vrot.lane.b32.xlu0 %v6642, 96
  %v6796 = vpop.permute.xlu0 %6795
  %6797 = vrot.lane.b32.xlu0 %v6643, 96
  %v6798 = vpop.permute.xlu0 %6797
  %6799 = vrot.lane.b32.xlu0 %v6644, 96
  %v6800 = vpop.permute.xlu0 %6799
  %6801 = vrot.lane.b32.xlu0 %v6645, 96
  %v6802 = vpop.permute.xlu0 %6801
  %6803 = vrot.lane.b32.xlu0 %v6646, 96
  %v6804 = vpop.permute.xlu0 %6803
  %6805 = vrot.lane.b32.xlu0 %v6647, 96
  %v6806 = vpop.permute.xlu0 %6805
  %6807 = vrot.lane.b32.xlu0 %v6648, 96
  %v6808 = vpop.permute.xlu0 %6807
  %6809 = vrot.lane.b32.xlu0 %v6649, 96
  %v6810 = vpop.permute.xlu0 %6809
  %6811 = vrot.lane.b32.xlu0 %v6650, 96
  %v6812 = vpop.permute.xlu0 %6811
  %6813 = vrot.lane.b32.xlu0 %v6651, 96
  %v6814 = vpop.permute.xlu0 %6813
  %6815 = vrot.lane.b32.xlu0 %v6652, 96
  %v6816 = vpop.permute.xlu0 %6815
  %6817 = vrot.lane.b32.xlu0 %v6653, 96
  %v6818 = vpop.permute.xlu0 %6817
  %6819 = vrot.lane.b32.xlu0 %v6654, 96
  %v6820 = vpop.permute.xlu0 %6819
  %6821 = vrot.lane.b32.xlu0 %v6655, 96
  %v6822 = vpop.permute.xlu0 %6821
  %6823 = vrot.lane.b32.xlu0 %v6656, 96
  %v6824 = vpop.permute.xlu0 %6823
  %6825 = vrot.lane.b32.xlu0 %v6657, 96
  %v6826 = vpop.permute.xlu0 %6825
  %6827 = vrot.lane.b32.xlu0 %v6658, 96
  %v6828 = vpop.permute.xlu0 %6827
  %6829 = vrot.lane.b32.xlu0 %v6659, 96
  %v6830 = vpop.permute.xlu0 %6829
  %6831 = vrot.lane.b32.xlu0 %v6660, 96
  %v6832 = vpop.permute.xlu0 %6831
  %6833 = vrot.lane.b32.xlu0 %v6661, 96
  %v6834 = vpop.permute.xlu0 %6833
  %6835 = vrot.lane.b32.xlu0 %v6662, 96
  %v6836 = vpop.permute.xlu0 %6835
  %6837 = vrot.lane.b32.xlu0 %v6663, 96
  %v6838 = vpop.permute.xlu0 %6837
  %6839 = vrot.lane.b32.xlu0 %v6664, 96
  %v6840 = vpop.permute.xlu0 %6839
  %6841 = vrot.lane.b32.xlu0 %v6665, 96
  %v6842 = vpop.permute.xlu0 %6841
  %6843 = vrot.lane.b32.xlu0 %v6666, 96
  %v6844 = vpop.permute.xlu0 %6843
  %6845 = vrot.lane.b32.xlu0 %v6667, 96
  %v6846 = vpop.permute.xlu0 %6845
  %6847 = vrot.lane.b32.xlu0 %v6668, 96
  %v6848 = vpop.permute.xlu0 %6847
  %6849 = vrot.lane.b32.xlu0 %v6669, 96
  %v6850 = vpop.permute.xlu0 %6849
  %6851 = vrot.lane.b32.xlu0 %v6670, 96
  %v6852 = vpop.permute.xlu0 %6851
  %6853 = vrot.lane.b32.xlu0 %v6671, 96
  %v6854 = vpop.permute.xlu0 %6853
  %6855 = vrot.lane.b32.xlu0 %v6672, 96
  %v6856 = vpop.permute.xlu0 %6855
  %6857 = vrot.lane.b32.xlu0 %v6673, 96
  %v6858 = vpop.permute.xlu0 %6857
  %6859 = vrot.lane.b32.xlu0 %v6674, 96
  %v6860 = vpop.permute.xlu0 %6859
  %6861 = vrot.lane.b32.xlu0 %v6675, 96
  %v6862 = vpop.permute.xlu0 %6861
  %6863 = vrot.lane.b32.xlu0 %v6676, 96
  %v6864 = vpop.permute.xlu0 %6863
  %6865 = vrot.lane.b32.xlu0 %v6677, 96
  %v6866 = vpop.permute.xlu0 %6865
  %6867 = vrot.lane.b32.xlu0 %v6678, 96
  %v6868 = vpop.permute.xlu0 %6867
  %6869 = vrot.lane.b32.xlu0 %v6679, 96
  %v6870 = vpop.permute.xlu0 %6869
  %6871 = vrot.lane.b32.xlu0 %v6680, 96
  %v6872 = vpop.permute.xlu0 %6871
  %vm6937 = vcmask 917248
  %6938 = vst.msk [vmem:[#allocation5] sm:$0xff] %vm6937, %v6746
  %6939 = vst.msk [vmem:[#allocation5 + $0x10] sm:$0xff] %vm6937, %v6748
  %6940 = vst.msk [vmem:[#allocation5 + $0x20] sm:$0xff] %vm6937, %v6750
  %6941 = vst.msk [vmem:[#allocation5 + $0x30] sm:$0xff] %vm6937, %v6752
  %6942 = vst.msk [vmem:[#allocation5 + $0x40] sm:$0xff] %vm6937, %v6754
  %6943 = vst.msk [vmem:[#allocation5 + $0x50] sm:$0xff] %vm6937, %v6756
  %6944 = vst.msk [vmem:[#allocation5 + $0x60] sm:$0xff] %vm6937, %v6758
  %6945 = vst.msk [vmem:[#allocation5 + $0x70] sm:$0xff] %vm6937, %v6760
  %6946 = vst.msk [vmem:[#allocation5 + $0x80] sm:$0xff] %vm6937, %v6762
  %6947 = vst.msk [vmem:[#allocation5 + $0x90] sm:$0xff] %vm6937, %v6764
  %6948 = vst.msk [vmem:[#allocation5 + $0xa0] sm:$0xff] %vm6937, %v6766
  %6949 = vst.msk [vmem:[#allocation5 + $0xb0] sm:$0xff] %vm6937, %v6768
  %6950 = vst.msk [vmem:[#allocation5 + $0xc0] sm:$0xff] %vm6937, %v6770
  %6951 = vst.msk [vmem:[#allocation5 + $0xd0] sm:$0xff] %vm6937, %v6772
  %6952 = vst.msk [vmem:[#allocation5 + $0xe0] sm:$0xff] %vm6937, %v6774
  %6953 = vst.msk [vmem:[#allocation5 + $0xf0] sm:$0xff] %vm6937, %v6776
  %6954 = vst.msk [vmem:[#allocation5 + $0x100] sm:$0xff] %vm6937, %v6778
  %6955 = vst.msk [vmem:[#allocation5 + $0x110] sm:$0xff] %vm6937, %v6780
  %6956 = vst.msk [vmem:[#allocation5 + $0x120] sm:$0xff] %vm6937, %v6782
  %6957 = vst.msk [vmem:[#allocation5 + $0x130] sm:$0xff] %vm6937, %v6784
  %6958 = vst.msk [vmem:[#allocation5 + $0x140] sm:$0xff] %vm6937, %v6786
  %6959 = vst.msk [vmem:[#allocation5 + $0x150] sm:$0xff] %vm6937, %v6788
  %6960 = vst.msk [vmem:[#allocation5 + $0x160] sm:$0xff] %vm6937, %v6790
  %6961 = vst.msk [vmem:[#allocation5 + $0x170] sm:$0xff] %vm6937, %v6792
  %6962 = vst.msk [vmem:[#allocation5 + $0x180] sm:$0xff] %vm6937, %v6794
  %6963 = vst.msk [vmem:[#allocation5 + $0x190] sm:$0xff] %vm6937, %v6796
  %6964 = vst.msk [vmem:[#allocation5 + $0x1a0] sm:$0xff] %vm6937, %v6798
  %6965 = vst.msk [vmem:[#allocation5 + $0x1b0] sm:$0xff] %vm6937, %v6800
  %6966 = vst.msk [vmem:[#allocation5 + $0x1c0] sm:$0xff] %vm6937, %v6802
  %6967 = vst.msk [vmem:[#allocation5 + $0x1d0] sm:$0xff] %vm6937, %v6804
  %6968 = vst.msk [vmem:[#allocation5 + $0x1e0] sm:$0xff] %vm6937, %v6806
  %6969 = vst.msk [vmem:[#allocation5 + $0x1f0] sm:$0xff] %vm6937, %v6808
  %6970 = vst.msk [vmem:[#allocation5 + $0x200] sm:$0xff] %vm6937, %v6810
  %6971 = vst.msk [vmem:[#allocation5 + $0x210] sm:$0xff] %vm6937, %v6812
  %6972 = vst.msk [vmem:[#allocation5 + $0x220] sm:$0xff] %vm6937, %v6814
  %6973 = vst.msk [vmem:[#allocation5 + $0x230] sm:$0xff] %vm6937, %v6816
  %6974 = vst.msk [vmem:[#allocation5 + $0x240] sm:$0xff] %vm6937, %v6818
  %6975 = vst.msk [vmem:[#allocation5 + $0x250] sm:$0xff] %vm6937, %v6820
  %6976 = vst.msk [vmem:[#allocation5 + $0x260] sm:$0xff] %vm6937, %v6822
  %6977 = vst.msk [vmem:[#allocation5 + $0x270] sm:$0xff] %vm6937, %v6824
  %6978 = vst.msk [vmem:[#allocation5 + $0x280] sm:$0xff] %vm6937, %v6826
  %6979 = vst.msk [vmem:[#allocation5 + $0x290] sm:$0xff] %vm6937, %v6828
  %6980 = vst.msk [vmem:[#allocation5 + $0x2a0] sm:$0xff] %vm6937, %v6830
  %6981 = vst.msk [vmem:[#allocation5 + $0x2b0] sm:$0xff] %vm6937, %v6832
  %6982 = vst.msk [vmem:[#allocation5 + $0x2c0] sm:$0xff] %vm6937, %v6834
  %6983 = vst.msk [vmem:[#allocation5 + $0x2d0] sm:$0xff] %vm6937, %v6836
  %6984 = vst.msk [vmem:[#allocation5 + $0x2e0] sm:$0xff] %vm6937, %v6838
  %6985 = vst.msk [vmem:[#allocation5 + $0x2f0] sm:$0xff] %vm6937, %v6840
  %6986 = vst.msk [vmem:[#allocation5 + $0x300] sm:$0xff] %vm6937, %v6842
  %6987 = vst.msk [vmem:[#allocation5 + $0x310] sm:$0xff] %vm6937, %v6844
  %6988 = vst.msk [vmem:[#allocation5 + $0x320] sm:$0xff] %vm6937, %v6846
  %6989 = vst.msk [vmem:[#allocation5 + $0x330] sm:$0xff] %vm6937, %v6848
  %6990 = vst.msk [vmem:[#allocation5 + $0x340] sm:$0xff] %vm6937, %v6850
  %6991 = vst.msk [vmem:[#allocation5 + $0x350] sm:$0xff] %vm6937, %v6852
  %6992 = vst.msk [vmem:[#allocation5 + $0x360] sm:$0xff] %vm6937, %v6854
  %6993 = vst.msk [vmem:[#allocation5 + $0x370] sm:$0xff] %vm6937, %v6856
  %6994 = vst.msk [vmem:[#allocation5 + $0x380] sm:$0xff] %vm6937, %v6858
  %6995 = vst.msk [vmem:[#allocation5 + $0x390] sm:$0xff] %vm6937, %v6860
  %6996 = vst.msk [vmem:[#allocation5 + $0x3a0] sm:$0xff] %vm6937, %v6862
  %6997 = vst.msk [vmem:[#allocation5 + $0x3b0] sm:$0xff] %vm6937, %v6864
  %6998 = vst.msk [vmem:[#allocation5 + $0x3c0] sm:$0xff] %vm6937, %v6866
  %6999 = vst.msk [vmem:[#allocation5 + $0x3d0] sm:$0xff] %vm6937, %v6868
  %7000 = vst.msk [vmem:[#allocation5 + $0x3e0] sm:$0xff] %vm6937, %v6870
  %7001 = vst.msk [vmem:[#allocation5 + $0x3f0] sm:$0xff] %vm6937, %v6872
  %v7002 = vld [vmem:[%s6616 + $0x1] sm:$0xff]
  %v7003 = vld [vmem:[%s6616 + $0x9] sm:$0xff]
  %v7004 = vld [vmem:[%s6616 + $0x19] sm:$0xff]
  %v7005 = vld [vmem:[%s6616 + $0x21] sm:$0xff]
  %v7006 = vld [vmem:[%s6616 + $0x31] sm:$0xff]
  %v7007 = vld [vmem:[%s6616 + $0x39] sm:$0xff]
  %v7008 = vld [vmem:[%s6616 + $0x49] sm:$0xff]
  %v7009 = vld [vmem:[%s6616 + $0x51] sm:$0xff]
  %v7010 = vld [vmem:[%s6616 + $0x61] sm:$0xff]
  %v7011 = vld [vmem:[%s6616 + $0x69] sm:$0xff]
  %v7012 = vld [vmem:[%s6616 + $0x79] sm:$0xff]
  %v7013 = vld [vmem:[%s6616 + $0x81] sm:$0xff]
  %v7014 = vld [vmem:[%s6616 + $0x91] sm:$0xff]
  %v7015 = vld [vmem:[%s6616 + $0x99] sm:$0xff]
  %v7016 = vld [vmem:[%s6616 + $0xa9] sm:$0xff]
  %v7017 = vld [vmem:[%s6616 + $0xb1] sm:$0xff]
  %v7018 = vld [vmem:[%s6616 + $0xc1] sm:$0xff]
  %v7019 = vld [vmem:[%s6616 + $0xc9] sm:$0xff]
  %v7020 = vld [vmem:[%s6616 + $0xd9] sm:$0xff]
  %v7021 = vld [vmem:[%s6616 + $0xe1] sm:$0xff]
  %v7022 = vld [vmem:[%s6616 + $0xf1] sm:$0xff]
  %v7023 = vld [vmem:[%s6616 + $0xf9] sm:$0xff]
  %v7024 = vld [vmem:[%s6616 + $0x109] sm:$0xff]
  %v7025 = vld [vmem:[%s6616 + $0x111] sm:$0xff]
  %v7026 = vld [vmem:[%s6616 + $0x121] sm:$0xff]
  %v7027 = vld [vmem:[%s6616 + $0x129] sm:$0xff]
  %v7028 = vld [vmem:[%s6616 + $0x139] sm:$0xff]
  %v7029 = vld [vmem:[%s6616 + $0x141] sm:$0xff]
  %v7030 = vld [vmem:[%s6616 + $0x151] sm:$0xff]
  %v7031 = vld [vmem:[%s6616 + $0x159] sm:$0xff]
  %v7032 = vld [vmem:[%s6616 + $0x169] sm:$0xff]
  %v7033 = vld [vmem:[%s6616 + $0x171] sm:$0xff]
  %v7034 = vld [vmem:[%s6616 + $0x1b1] sm:$0xff]
  %v7035 = vld [vmem:[%s6616 + $0x1b9] sm:$0xff]
  %v7036 = vld [vmem:[%s6616 + $0x1c9] sm:$0xff]
  %v7037 = vld [vmem:[%s6616 + $0x1d1] sm:$0xff]
  %v7038 = vld [vmem:[%s6616 + $0x1e1] sm:$0xff]
  %v7039 = vld [vmem:[%s6616 + $0x1e9] sm:$0xff]
  %v7040 = vld [vmem:[%s6616 + $0x1f9] sm:$0xff]
  %v7041 = vld [vmem:[%s6616 + $0x201] sm:$0xff]
  %v7042 = vld [vmem:[%s6616 + $0x211] sm:$0xff]
  %v7043 = vld [vmem:[%s6616 + $0x219] sm:$0xff]
  %v7044 = vld [vmem:[%s6616 + $0x229] sm:$0xff]
  %v7045 = vld [vmem:[%s6616 + $0x231] sm:$0xff]
  %v7046 = vld [vmem:[%s6616 + $0x241] sm:$0xff]
  %v7047 = vld [vmem:[%s6616 + $0x249] sm:$0xff]
  %v7048 = vld [vmem:[%s6616 + $0x259] sm:$0xff]
  %v7049 = vld [vmem:[%s6616 + $0x261] sm:$0xff]
  %v7050 = vld [vmem:[%s6616 + $0x271] sm:$0xff]
  %v7051 = vld [vmem:[%s6616 + $0x279] sm:$0xff]
  %v7052 = vld [vmem:[%s6616 + $0x289] sm:$0xff]
  %v7053 = vld [vmem:[%s6616 + $0x291] sm:$0xff]
  %v7054 = vld [vmem:[%s6616 + $0x2a1] sm:$0xff]
  %v7055 = vld [vmem:[%s6616 + $0x2a9] sm:$0xff]
  %v7056 = vld [vmem:[%s6616 + $0x2b9] sm:$0xff]
  %v7057 = vld [vmem:[%s6616 + $0x2c1] sm:$0xff]
  %v7058 = vld [vmem:[%s6616 + $0x2d1] sm:$0xff]
  %v7059 = vld [vmem:[%s6616 + $0x2d9] sm:$0xff]
  %v7060 = vld [vmem:[%s6616 + $0x2e9] sm:$0xff]
  %v7061 = vld [vmem:[%s6616 + $0x2f1] sm:$0xff]
  %v7062 = vld [vmem:[%s6616 + $0x301] sm:$0xff]
  %v7063 = vld [vmem:[%s6616 + $0x309] sm:$0xff]
  %v7064 = vld [vmem:[%s6616 + $0x319] sm:$0xff]
  %v7065 = vld [vmem:[%s6616 + $0x321] sm:$0xff]
  %7130 = vrot.lane.b32.xlu0 %v7002, 112
  %v7131 = vpop.permute.xlu0 %7130
  %7132 = vrot.lane.b32.xlu0 %v7003, 112
  %v7133 = vpop.permute.xlu0 %7132
  %7134 = vrot.lane.b32.xlu0 %v7004, 112
  %v7135 = vpop.permute.xlu0 %7134
  %7136 = vrot.lane.b32.xlu0 %v7005, 112
  %v7137 = vpop.permute.xlu0 %7136
  %7138 = vrot.lane.b32.xlu0 %v7006, 112
  %v7139 = vpop.permute.xlu0 %7138
  %7140 = vrot.lane.b32.xlu0 %v7007, 112
  %v7141 = vpop.permute.xlu0 %7140
  %7142 = vrot.lane.b32.xlu0 %v7008, 112
  %v7143 = vpop.permute.xlu0 %7142
  %7144 = vrot.lane.b32.xlu0 %v7009, 112
  %v7145 = vpop.permute.xlu0 %7144
  %7146 = vrot.lane.b32.xlu0 %v7010, 112
  %v7147 = vpop.permute.xlu0 %7146
  %7148 = vrot.lane.b32.xlu0 %v7011, 112
  %v7149 = vpop.permute.xlu0 %7148
  %7150 = vrot.lane.b32.xlu0 %v7012, 112
  %v7151 = vpop.permute.xlu0 %7150
  %7152 = vrot.lane.b32.xlu0 %v7013, 112
  %v7153 = vpop.permute.xlu0 %7152
  %7154 = vrot.lane.b32.xlu0 %v7014, 112
  %v7155 = vpop.permute.xlu0 %7154
  %7156 = vrot.lane.b32.xlu0 %v7015, 112
  %v7157 = vpop.permute.xlu0 %7156
  %7158 = vrot.lane.b32.xlu0 %v7016, 112
  %v7159 = vpop.permute.xlu0 %7158
  %7160 = vrot.lane.b32.xlu0 %v7017, 112
  %v7161 = vpop.permute.xlu0 %7160
  %7162 = vrot.lane.b32.xlu0 %v7018, 112
  %v7163 = vpop.permute.xlu0 %7162
  %7164 = vrot.lane.b32.xlu0 %v7019, 112
  %v7165 = vpop.permute.xlu0 %7164
  %7166 = vrot.lane.b32.xlu0 %v7020, 112
  %v7167 = vpop.permute.xlu0 %7166
  %7168 = vrot.lane.b32.xlu0 %v7021, 112
  %v7169 = vpop.permute.xlu0 %7168
  %7170 = vrot.lane.b32.xlu0 %v7022, 112
  %v7171 = vpop.permute.xlu0 %7170
  %7172 = vrot.lane.b32.xlu0 %v7023, 112
  %v7173 = vpop.permute.xlu0 %7172
  %7174 = vrot.lane.b32.xlu0 %v7024, 112
  %v7175 = vpop.permute.xlu0 %7174
  %7176 = vrot.lane.b32.xlu0 %v7025, 112
  %v7177 = vpop.permute.xlu0 %7176
  %7178 = vrot.lane.b32.xlu0 %v7026, 112
  %v7179 = vpop.permute.xlu0 %7178
  %7180 = vrot.lane.b32.xlu0 %v7027, 112
  %v7181 = vpop.permute.xlu0 %7180
  %7182 = vrot.lane.b32.xlu0 %v7028, 112
  %v7183 = vpop.permute.xlu0 %7182
  %7184 = vrot.lane.b32.xlu0 %v7029, 112
  %v7185 = vpop.permute.xlu0 %7184
  %7186 = vrot.lane.b32.xlu0 %v7030, 112
  %v7187 = vpop.permute.xlu0 %7186
  %7188 = vrot.lane.b32.xlu0 %v7031, 112
  %v7189 = vpop.permute.xlu0 %7188
  %7190 = vrot.lane.b32.xlu0 %v7032, 112
  %v7191 = vpop.permute.xlu0 %7190
  %7192 = vrot.lane.b32.xlu0 %v7033, 112
  %v7193 = vpop.permute.xlu0 %7192
  %7194 = vrot.lane.b32.xlu0 %v7034, 112
  %v7195 = vpop.permute.xlu0 %7194
  %7196 = vrot.lane.b32.xlu0 %v7035, 112
  %v7197 = vpop.permute.xlu0 %7196
  %7198 = vrot.lane.b32.xlu0 %v7036, 112
  %v7199 = vpop.permute.xlu0 %7198
  %7200 = vrot.lane.b32.xlu0 %v7037, 112
  %v7201 = vpop.permute.xlu0 %7200
  %7202 = vrot.lane.b32.xlu0 %v7038, 112
  %v7203 = vpop.permute.xlu0 %7202
  %7204 = vrot.lane.b32.xlu0 %v7039, 112
  %v7205 = vpop.permute.xlu0 %7204
  %7206 = vrot.lane.b32.xlu0 %v7040, 112
  %v7207 = vpop.permute.xlu0 %7206
  %7208 = vrot.lane.b32.xlu0 %v7041, 112
  %v7209 = vpop.permute.xlu0 %7208
  %7210 = vrot.lane.b32.xlu0 %v7042, 112
  %v7211 = vpop.permute.xlu0 %7210
  %7212 = vrot.lane.b32.xlu0 %v7043, 112
  %v7213 = vpop.permute.xlu0 %7212
  %7214 = vrot.lane.b32.xlu0 %v7044, 112
  %v7215 = vpop.permute.xlu0 %7214
  %7216 = vrot.lane.b32.xlu0 %v7045, 112
  %v7217 = vpop.permute.xlu0 %7216
  %7218 = vrot.lane.b32.xlu0 %v7046, 112
  %v7219 = vpop.permute.xlu0 %7218
  %7220 = vrot.lane.b32.xlu0 %v7047, 112
  %v7221 = vpop.permute.xlu0 %7220
  %7222 = vrot.lane.b32.xlu0 %v7048, 112
  %v7223 = vpop.permute.xlu0 %7222
  %7224 = vrot.lane.b32.xlu0 %v7049, 112
  %v7225 = vpop.permute.xlu0 %7224
  %7226 = vrot.lane.b32.xlu0 %v7050, 112
  %v7227 = vpop.permute.xlu0 %7226
  %7228 = vrot.lane.b32.xlu0 %v7051, 112
  %v7229 = vpop.permute.xlu0 %7228
  %7230 = vrot.lane.b32.xlu0 %v7052, 112
  %v7231 = vpop.permute.xlu0 %7230
  %7232 = vrot.lane.b32.xlu0 %v7053, 112
  %v7233 = vpop.permute.xlu0 %7232
  %7234 = vrot.lane.b32.xlu0 %v7054, 112
  %v7235 = vpop.permute.xlu0 %7234
  %7236 = vrot.lane.b32.xlu0 %v7055, 112
  %v7237 = vpop.permute.xlu0 %7236
  %7238 = vrot.lane.b32.xlu0 %v7056, 112
  %v7239 = vpop.permute.xlu0 %7238
  %7240 = vrot.lane.b32.xlu0 %v7057, 112
  %v7241 = vpop.permute.xlu0 %7240
  %7242 = vrot.lane.b32.xlu0 %v7058, 112
  %v7243 = vpop.permute.xlu0 %7242
  %7244 = vrot.lane.b32.xlu0 %v7059, 112
  %v7245 = vpop.permute.xlu0 %7244
  %7246 = vrot.lane.b32.xlu0 %v7060, 112
  %v7247 = vpop.permute.xlu0 %7246
  %7248 = vrot.lane.b32.xlu0 %v7061, 112
  %v7249 = vpop.permute.xlu0 %7248
  %7250 = vrot.lane.b32.xlu0 %v7062, 112
  %v7251 = vpop.permute.xlu0 %7250
  %7252 = vrot.lane.b32.xlu0 %v7063, 112
  %v7253 = vpop.permute.xlu0 %7252
  %7254 = vrot.lane.b32.xlu0 %v7064, 112
  %v7255 = vpop.permute.xlu0 %7254
  %7256 = vrot.lane.b32.xlu0 %v7065, 112
  %v7257 = vpop.permute.xlu0 %7256
  %vm7322 = vcmask 1048448
  %7323 = vst.msk [vmem:[#allocation5] sm:$0xff] %vm7322, %v7131
  %7324 = vst.msk [vmem:[#allocation5 + $0x10] sm:$0xff] %vm7322, %v7133
  %7325 = vst.msk [vmem:[#allocation5 + $0x20] sm:$0xff] %vm7322, %v7135
  %7326 = vst.msk [vmem:[#allocation5 + $0x30] sm:$0xff] %vm7322, %v7137
  %7327 = vst.msk [vmem:[#allocation5 + $0x40] sm:$0xff] %vm7322, %v7139
  %7328 = vst.msk [vmem:[#allocation5 + $0x50] sm:$0xff] %vm7322, %v7141
  %7329 = vst.msk [vmem:[#allocation5 + $0x60] sm:$0xff] %vm7322, %v7143
  %7330 = vst.msk [vmem:[#allocation5 + $0x70] sm:$0xff] %vm7322, %v7145
  %7331 = vst.msk [vmem:[#allocation5 + $0x80] sm:$0xff] %vm7322, %v7147
  %7332 = vst.msk [vmem:[#allocation5 + $0x90] sm:$0xff] %vm7322, %v7149
  %7333 = vst.msk [vmem:[#allocation5 + $0xa0] sm:$0xff] %vm7322, %v7151
  %7334 = vst.msk [vmem:[#allocation5 + $0xb0] sm:$0xff] %vm7322, %v7153
  %7335 = vst.msk [vmem:[#allocation5 + $0xc0] sm:$0xff] %vm7322, %v7155
  %7336 = vst.msk [vmem:[#allocation5 + $0xd0] sm:$0xff] %vm7322, %v7157
  %7337 = vst.msk [vmem:[#allocation5 + $0xe0] sm:$0xff] %vm7322, %v7159
  %7338 = vst.msk [vmem:[#allocation5 + $0xf0] sm:$0xff] %vm7322, %v7161
  %7339 = vst.msk [vmem:[#allocation5 + $0x100] sm:$0xff] %vm7322, %v7163
  %7340 = vst.msk [vmem:[#allocation5 + $0x110] sm:$0xff] %vm7322, %v7165
  %7341 = vst.msk [vmem:[#allocation5 + $0x120] sm:$0xff] %vm7322, %v7167
  %7342 = vst.msk [vmem:[#allocation5 + $0x130] sm:$0xff] %vm7322, %v7169
  %7343 = vst.msk [vmem:[#allocation5 + $0x140] sm:$0xff] %vm7322, %v7171
  %7344 = vst.msk [vmem:[#allocation5 + $0x150] sm:$0xff] %vm7322, %v7173
  %7345 = vst.msk [vmem:[#allocation5 + $0x160] sm:$0xff] %vm7322, %v7175
  %7346 = vst.msk [vmem:[#allocation5 + $0x170] sm:$0xff] %vm7322, %v7177
  %7347 = vst.msk [vmem:[#allocation5 + $0x180] sm:$0xff] %vm7322, %v7179
  %7348 = vst.msk [vmem:[#allocation5 + $0x190] sm:$0xff] %vm7322, %v7181
  %7349 = vst.msk [vmem:[#allocation5 + $0x1a0] sm:$0xff] %vm7322, %v7183
  %7350 = vst.msk [vmem:[#allocation5 + $0x1b0] sm:$0xff] %vm7322, %v7185
  %7351 = vst.msk [vmem:[#allocation5 + $0x1c0] sm:$0xff] %vm7322, %v7187
  %7352 = vst.msk [vmem:[#allocation5 + $0x1d0] sm:$0xff] %vm7322, %v7189
  %7353 = vst.msk [vmem:[#allocation5 + $0x1e0] sm:$0xff] %vm7322, %v7191
  %7354 = vst.msk [vmem:[#allocation5 + $0x1f0] sm:$0xff] %vm7322, %v7193
  %7355 = vst.msk [vmem:[#allocation5 + $0x200] sm:$0xff] %vm7322, %v7195
  %7356 = vst.msk [vmem:[#allocation5 + $0x210] sm:$0xff] %vm7322, %v7197
  %7357 = vst.msk [vmem:[#allocation5 + $0x220] sm:$0xff] %vm7322, %v7199
  %7358 = vst.msk [vmem:[#allocation5 + $0x230] sm:$0xff] %vm7322, %v7201
  %7359 = vst.msk [vmem:[#allocation5 + $0x240] sm:$0xff] %vm7322, %v7203
  %7360 = vst.msk [vmem:[#allocation5 + $0x250] sm:$0xff] %vm7322, %v7205
  %7361 = vst.msk [vmem:[#allocation5 + $0x260] sm:$0xff] %vm7322, %v7207
  %7362 = vst.msk [vmem:[#allocation5 + $0x270] sm:$0xff] %vm7322, %v7209
  %7363 = vst.msk [vmem:[#allocation5 + $0x280] sm:$0xff] %vm7322, %v7211
  %7364 = vst.msk [vmem:[#allocation5 + $0x290] sm:$0xff] %vm7322, %v7213
  %7365 = vst.msk [vmem:[#allocation5 + $0x2a0] sm:$0xff] %vm7322, %v7215
  %7366 = vst.msk [vmem:[#allocation5 + $0x2b0] sm:$0xff] %vm7322, %v7217
  %7367 = vst.msk [vmem:[#allocation5 + $0x2c0] sm:$0xff] %vm7322, %v7219
  %7368 = vst.msk [vmem:[#allocation5 + $0x2d0] sm:$0xff] %vm7322, %v7221
  %7369 = vst.msk [vmem:[#allocation5 + $0x2e0] sm:$0xff] %vm7322, %v7223
  %7370 = vst.msk [vmem:[#allocation5 + $0x2f0] sm:$0xff] %vm7322, %v7225
  %7371 = vst.msk [vmem:[#allocation5 + $0x300] sm:$0xff] %vm7322, %v7227
  %7372 = vst.msk [vmem:[#allocation5 + $0x310] sm:$0xff] %vm7322, %v7229
  %7373 = vst.msk [vmem:[#allocation5 + $0x320] sm:$0xff] %vm7322, %v7231
  %7374 = vst.msk [vmem:[#allocation5 + $0x330] sm:$0xff] %vm7322, %v7233
  %7375 = vst.msk [vmem:[#allocation5 + $0x340] sm:$0xff] %vm7322, %v7235
  %7376 = vst.msk [vmem:[#allocation5 + $0x350] sm:$0xff] %vm7322, %v7237
  %7377 = vst.msk [vmem:[#allocation5 + $0x360] sm:$0xff] %vm7322, %v7239
  %7378 = vst.msk [vmem:[#allocation5 + $0x370] sm:$0xff] %vm7322, %v7241
  %7379 = vst.msk [vmem:[#allocation5 + $0x380] sm:$0xff] %vm7322, %v7243
  %7380 = vst.msk [vmem:[#allocation5 + $0x390] sm:$0xff] %vm7322, %v7245
  %7381 = vst.msk [vmem:[#allocation5 + $0x3a0] sm:$0xff] %vm7322, %v7247
  %7382 = vst.msk [vmem:[#allocation5 + $0x3b0] sm:$0xff] %vm7322, %v7249
  %7383 = vst.msk [vmem:[#allocation5 + $0x3c0] sm:$0xff] %vm7322, %v7251
  %7384 = vst.msk [vmem:[#allocation5 + $0x3d0] sm:$0xff] %vm7322, %v7253
  %7385 = vst.msk [vmem:[#allocation5 + $0x3e0] sm:$0xff] %vm7322, %v7255
  %7386 = vst.msk [vmem:[#allocation5 + $0x3f0] sm:$0xff] %vm7322, %v7257
  %v7387 = vld [vmem:[%s6616 + $0x2] sm:$0xff]
  %v7388 = vld [vmem:[%s6616 + $0xa] sm:$0xff]
  %v7389 = vld [vmem:[%s6616 + $0x1a] sm:$0xff]
  %v7390 = vld [vmem:[%s6616 + $0x22] sm:$0xff]
  %v7391 = vld [vmem:[%s6616 + $0x32] sm:$0xff]
  %v7392 = vld [vmem:[%s6616 + $0x3a] sm:$0xff]
  %v7393 = vld [vmem:[%s6616 + $0x4a] sm:$0xff]
  %v7394 = vld [vmem:[%s6616 + $0x52] sm:$0xff]
  %v7395 = vld [vmem:[%s6616 + $0x62] sm:$0xff]
  %v7396 = vld [vmem:[%s6616 + $0x6a] sm:$0xff]
  %v7397 = vld [vmem:[%s6616 + $0x7a] sm:$0xff]
  %v7398 = vld [vmem:[%s6616 + $0x82] sm:$0xff]
  %v7399 = vld [vmem:[%s6616 + $0x92] sm:$0xff]
  %v7400 = vld [vmem:[%s6616 + $0x9a] sm:$0xff]
  %v7401 = vld [vmem:[%s6616 + $0xaa] sm:$0xff]
  %v7402 = vld [vmem:[%s6616 + $0xb2] sm:$0xff]
  %v7403 = vld [vmem:[%s6616 + $0xc2] sm:$0xff]
  %v7404 = vld [vmem:[%s6616 + $0xca] sm:$0xff]
  %v7405 = vld [vmem:[%s6616 + $0xda] sm:$0xff]
  %v7406 = vld [vmem:[%s6616 + $0xe2] sm:$0xff]
  %v7407 = vld [vmem:[%s6616 + $0xf2] sm:$0xff]
  %v7408 = vld [vmem:[%s6616 + $0xfa] sm:$0xff]
  %v7409 = vld [vmem:[%s6616 + $0x10a] sm:$0xff]
  %v7410 = vld [vmem:[%s6616 + $0x112] sm:$0xff]
  %v7411 = vld [vmem:[%s6616 + $0x122] sm:$0xff]
  %v7412 = vld [vmem:[%s6616 + $0x12a] sm:$0xff]
  %v7413 = vld [vmem:[%s6616 + $0x13a] sm:$0xff]
  %v7414 = vld [vmem:[%s6616 + $0x142] sm:$0xff]
  %v7415 = vld [vmem:[%s6616 + $0x152] sm:$0xff]
  %v7416 = vld [vmem:[%s6616 + $0x15a] sm:$0xff]
  %v7417 = vld [vmem:[%s6616 + $0x16a] sm:$0xff]
  %v7418 = vld [vmem:[%s6616 + $0x172] sm:$0xff]
  %v7419 = vld [vmem:[%s6616 + $0x1b2] sm:$0xff]
  %v7420 = vld [vmem:[%s6616 + $0x1ba] sm:$0xff]
  %v7421 = vld [vmem:[%s6616 + $0x1ca] sm:$0xff]
  %v7422 = vld [vmem:[%s6616 + $0x1d2] sm:$0xff]
  %v7423 = vld [vmem:[%s6616 + $0x1e2] sm:$0xff]
  %v7424 = vld [vmem:[%s6616 + $0x1ea] sm:$0xff]
  %v7425 = vld [vmem:[%s6616 + $0x1fa] sm:$0xff]
  %v7426 = vld [vmem:[%s6616 + $0x202] sm:$0xff]
  %v7427 = vld [vmem:[%s6616 + $0x212] sm:$0xff]
  %v7428 = vld [vmem:[%s6616 + $0x21a] sm:$0xff]
  %v7429 = vld [vmem:[%s6616 + $0x22a] sm:$0xff]
  %v7430 = vld [vmem:[%s6616 + $0x232] sm:$0xff]
  %v7431 = vld [vmem:[%s6616 + $0x242] sm:$0xff]
  %v7432 = vld [vmem:[%s6616 + $0x24a] sm:$0xff]
  %v7433 = vld [vmem:[%s6616 + $0x25a] sm:$0xff]
  %v7434 = vld [vmem:[%s6616 + $0x262] sm:$0xff]
  %v7435 = vld [vmem:[%s6616 + $0x272] sm:$0xff]
  %v7436 = vld [vmem:[%s6616 + $0x27a] sm:$0xff]
  %v7437 = vld [vmem:[%s6616 + $0x28a] sm:$0xff]
  %v7438 = vld [vmem:[%s6616 + $0x292] sm:$0xff]
  %v7439 = vld [vmem:[%s6616 + $0x2a2] sm:$0xff]
  %v7440 = vld [vmem:[%s6616 + $0x2aa] sm:$0xff]
  %v7441 = vld [vmem:[%s6616 + $0x2ba] sm:$0xff]
  %v7442 = vld [vmem:[%s6616 + $0x2c2] sm:$0xff]
  %v7443 = vld [vmem:[%s6616 + $0x2d2] sm:$0xff]
  %v7444 = vld [vmem:[%s6616 + $0x2da] sm:$0xff]
  %v7445 = vld [vmem:[%s6616 + $0x2ea] sm:$0xff]
  %v7446 = vld [vmem:[%s6616 + $0x2f2] sm:$0xff]
  %v7447 = vld [vmem:[%s6616 + $0x302] sm:$0xff]
  %v7448 = vld [vmem:[%s6616 + $0x30a] sm:$0xff]
  %v7449 = vld [vmem:[%s6616 + $0x31a] sm:$0xff]
  %v7450 = vld [vmem:[%s6616 + $0x322] sm:$0xff]
  %7451 = vst.msk [vmem:[#allocation5 + $0x8] sm:$0xff] %vm273, %v7387
  %7452 = vst.msk [vmem:[#allocation5 + $0x18] sm:$0xff] %vm273, %v7388
  %7453 = vst.msk [vmem:[#allocation5 + $0x28] sm:$0xff] %vm273, %v7389
  %7454 = vst.msk [vmem:[#allocation5 + $0x38] sm:$0xff] %vm273, %v7390
  %7455 = vst.msk [vmem:[#allocation5 + $0x48] sm:$0xff] %vm273, %v7391
  %7456 = vst.msk [vmem:[#allocation5 + $0x58] sm:$0xff] %vm273, %v7392
  %7457 = vst.msk [vmem:[#allocation5 + $0x68] sm:$0xff] %vm273, %v7393
  %7458 = vst.msk [vmem:[#allocation5 + $0x78] sm:$0xff] %vm273, %v7394
  %7459 = vst.msk [vmem:[#allocation5 + $0x88] sm:$0xff] %vm273, %v7395
  %7460 = vst.msk [vmem:[#allocation5 + $0x98] sm:$0xff] %vm273, %v7396
  %7461 = vst.msk [vmem:[#allocation5 + $0xa8] sm:$0xff] %vm273, %v7397
  %7462 = vst.msk [vmem:[#allocation5 + $0xb8] sm:$0xff] %vm273, %v7398
  %7463 = vst.msk [vmem:[#allocation5 + $0xc8] sm:$0xff] %vm273, %v7399
  %7464 = vst.msk [vmem:[#allocation5 + $0xd8] sm:$0xff] %vm273, %v7400
  %7465 = vst.msk [vmem:[#allocation5 + $0xe8] sm:$0xff] %vm273, %v7401
  %7466 = vst.msk [vmem:[#allocation5 + $0xf8] sm:$0xff] %vm273, %v7402
  %7467 = vst.msk [vmem:[#allocation5 + $0x108] sm:$0xff] %vm273, %v7403
  %7468 = vst.msk [vmem:[#allocation5 + $0x118] sm:$0xff] %vm273, %v7404
  %7469 = vst.msk [vmem:[#allocation5 + $0x128] sm:$0xff] %vm273, %v7405
  %7470 = vst.msk [vmem:[#allocation5 + $0x138] sm:$0xff] %vm273, %v7406
  %7471 = vst.msk [vmem:[#allocation5 + $0x148] sm:$0xff] %vm273, %v7407
  %7472 = vst.msk [vmem:[#allocation5 + $0x158] sm:$0xff] %vm273, %v7408
  %7473 = vst.msk [vmem:[#allocation5 + $0x168] sm:$0xff] %vm273, %v7409
  %7474 = vst.msk [vmem:[#allocation5 + $0x178] sm:$0xff] %vm273, %v7410
  %7475 = vst.msk [vmem:[#allocation5 + $0x188] sm:$0xff] %vm273, %v7411
  %7476 = vst.msk [vmem:[#allocation5 + $0x198] sm:$0xff] %vm273, %v7412
  %7477 = vst.msk [vmem:[#allocation5 + $0x1a8] sm:$0xff] %vm273, %v7413
  %7478 = vst.msk [vmem:[#allocation5 + $0x1b8] sm:$0xff] %vm273, %v7414
  %7479 = vst.msk [vmem:[#allocation5 + $0x1c8] sm:$0xff] %vm273, %v7415
  %7480 = vst.msk [vmem:[#allocation5 + $0x1d8] sm:$0xff] %vm273, %v7416
  %7481 = vst.msk [vmem:[#allocation5 + $0x1e8] sm:$0xff] %vm273, %v7417
  %7482 = vst.msk [vmem:[#allocation5 + $0x1f8] sm:$0xff] %vm273, %v7418
  %7483 = vst.msk [vmem:[#allocation5 + $0x208] sm:$0xff] %vm273, %v7419
  %7484 = vst.msk [vmem:[#allocation5 + $0x218] sm:$0xff] %vm273, %v7420
  %7485 = vst.msk [vmem:[#allocation5 + $0x228] sm:$0xff] %vm273, %v7421
  %7486 = vst.msk [vmem:[#allocation5 + $0x238] sm:$0xff] %vm273, %v7422
  %7487 = vst.msk [vmem:[#allocation5 + $0x248] sm:$0xff] %vm273, %v7423
  %7488 = vst.msk [vmem:[#allocation5 + $0x258] sm:$0xff] %vm273, %v7424
  %7489 = vst.msk [vmem:[#allocation5 + $0x268] sm:$0xff] %vm273, %v7425
  %7490 = vst.msk [vmem:[#allocation5 + $0x278] sm:$0xff] %vm273, %v7426
  %7491 = vst.msk [vmem:[#allocation5 + $0x288] sm:$0xff] %vm273, %v7427
  %7492 = vst.msk [vmem:[#allocation5 + $0x298] sm:$0xff] %vm273, %v7428
  %7493 = vst.msk [vmem:[#allocation5 + $0x2a8] sm:$0xff] %vm273, %v7429
  %7494 = vst.msk [vmem:[#allocation5 + $0x2b8] sm:$0xff] %vm273, %v7430
  %7495 = vst.msk [vmem:[#allocation5 + $0x2c8] sm:$0xff] %vm273, %v7431
  %7496 = vst.msk [vmem:[#allocation5 + $0x2d8] sm:$0xff] %vm273, %v7432
  %7497 = vst.msk [vmem:[#allocation5 + $0x2e8] sm:$0xff] %vm273, %v7433
  %7498 = vst.msk [vmem:[#allocation5 + $0x2f8] sm:$0xff] %vm273, %v7434
  %7499 = vst.msk [vmem:[#allocation5 + $0x308] sm:$0xff] %vm273, %v7435
  %7500 = vst.msk [vmem:[#allocation5 + $0x318] sm:$0xff] %vm273, %v7436
  %7501 = vst.msk [vmem:[#allocation5 + $0x328] sm:$0xff] %vm273, %v7437
  %7502 = vst.msk [vmem:[#allocation5 + $0x338] sm:$0xff] %vm273, %v7438
  %7503 = vst.msk [vmem:[#allocation5 + $0x348] sm:$0xff] %vm273, %v7439
  %7504 = vst.msk [vmem:[#allocation5 + $0x358] sm:$0xff] %vm273, %v7440
  %7505 = vst.msk [vmem:[#allocation5 + $0x368] sm:$0xff] %vm273, %v7441
  %7506 = vst.msk [vmem:[#allocation5 + $0x378] sm:$0xff] %vm273, %v7442
  %7507 = vst.msk [vmem:[#allocation5 + $0x388] sm:$0xff] %vm273, %v7443
  %7508 = vst.msk [vmem:[#allocation5 + $0x398] sm:$0xff] %vm273, %v7444
  %7509 = vst.msk [vmem:[#allocation5 + $0x3a8] sm:$0xff] %vm273, %v7445
  %7510 = vst.msk [vmem:[#allocation5 + $0x3b8] sm:$0xff] %vm273, %v7446
  %7511 = vst.msk [vmem:[#allocation5 + $0x3c8] sm:$0xff] %vm273, %v7447
  %7512 = vst.msk [vmem:[#allocation5 + $0x3d8] sm:$0xff] %vm273, %v7448
  %7513 = vst.msk [vmem:[#allocation5 + $0x3e8] sm:$0xff] %vm273, %v7449
  %7514 = vst.msk [vmem:[#allocation5 + $0x3f8] sm:$0xff] %vm273, %v7450
  %v7515 = vld [vmem:[#allocation5] sm:$0xff]
  %v7516 = vld [vmem:[#allocation5 + $0x8] sm:$0xff]
  %v7517 = vld [vmem:[#allocation5 + $0x10] sm:$0xff]
  %v7518 = vld [vmem:[#allocation5 + $0x18] sm:$0xff]
  %v7519 = vld [vmem:[#allocation5 + $0x20] sm:$0xff]
  %v7520 = vld [vmem:[#allocation5 + $0x28] sm:$0xff]
  %v7521 = vld [vmem:[#allocation5 + $0x30] sm:$0xff]
  %v7522 = vld [vmem:[#allocation5 + $0x38] sm:$0xff]
  %v7523 = vld [vmem:[#allocation5 + $0x40] sm:$0xff]
  %v7524 = vld [vmem:[#allocation5 + $0x48] sm:$0xff]
  %v7525 = vld [vmem:[#allocation5 + $0x50] sm:$0xff]
  %v7526 = vld [vmem:[#allocation5 + $0x58] sm:$0xff]
  %v7527 = vld [vmem:[#allocation5 + $0x60] sm:$0xff]
  %v7528 = vld [vmem:[#allocation5 + $0x68] sm:$0xff]
  %v7529 = vld [vmem:[#allocation5 + $0x70] sm:$0xff]
  %v7530 = vld [vmem:[#allocation5 + $0x78] sm:$0xff]
  %v7531 = vld [vmem:[#allocation5 + $0x80] sm:$0xff]
  %v7532 = vld [vmem:[#allocation5 + $0x88] sm:$0xff]
  %v7533 = vld [vmem:[#allocation5 + $0x90] sm:$0xff]
  %v7534 = vld [vmem:[#allocation5 + $0x98] sm:$0xff]
  %v7535 = vld [vmem:[#allocation5 + $0xa0] sm:$0xff]
  %v7536 = vld [vmem:[#allocation5 + $0xa8] sm:$0xff]
  %v7537 = vld [vmem:[#allocation5 + $0xb0] sm:$0xff]
  %v7538 = vld [vmem:[#allocation5 + $0xb8] sm:$0xff]
  %v7539 = vld [vmem:[#allocation5 + $0xc0] sm:$0xff]
  %v7540 = vld [vmem:[#allocation5 + $0xc8] sm:$0xff]
  %v7541 = vld [vmem:[#allocation5 + $0xd0] sm:$0xff]
  %v7542 = vld [vmem:[#allocation5 + $0xd8] sm:$0xff]
  %v7543 = vld [vmem:[#allocation5 + $0xe0] sm:$0xff]
  %v7544 = vld [vmem:[#allocation5 + $0xe8] sm:$0xff]
  %v7545 = vld [vmem:[#allocation5 + $0xf0] sm:$0xff]
  %v7546 = vld [vmem:[#allocation5 + $0xf8] sm:$0xff]
  %v7547 = vld [vmem:[#allocation5 + $0x100] sm:$0xff]
  %v7548 = vld [vmem:[#allocation5 + $0x108] sm:$0xff]
  %v7549 = vld [vmem:[#allocation5 + $0x110] sm:$0xff]
  %v7550 = vld [vmem:[#allocation5 + $0x118] sm:$0xff]
  %v7551 = vld [vmem:[#allocation5 + $0x120] sm:$0xff]
  %v7552 = vld [vmem:[#allocation5 + $0x128] sm:$0xff]
  %v7553 = vld [vmem:[#allocation5 + $0x130] sm:$0xff]
  %v7554 = vld [vmem:[#allocation5 + $0x138] sm:$0xff]
  %v7555 = vld [vmem:[#allocation5 + $0x140] sm:$0xff]
  %v7556 = vld [vmem:[#allocation5 + $0x148] sm:$0xff]
  %v7557 = vld [vmem:[#allocation5 + $0x150] sm:$0xff]
  %v7558 = vld [vmem:[#allocation5 + $0x158] sm:$0xff]
  %v7559 = vld [vmem:[#allocation5 + $0x160] sm:$0xff]
  %v7560 = vld [vmem:[#allocation5 + $0x168] sm:$0xff]
  %v7561 = vld [vmem:[#allocation5 + $0x170] sm:$0xff]
  %v7562 = vld [vmem:[#allocation5 + $0x178] sm:$0xff]
  %v7563 = vld [vmem:[#allocation5 + $0x180] sm:$0xff]
  %v7564 = vld [vmem:[#allocation5 + $0x188] sm:$0xff]
  %v7565 = vld [vmem:[#allocation5 + $0x190] sm:$0xff]
  %v7566 = vld [vmem:[#allocation5 + $0x198] sm:$0xff]
  %v7567 = vld [vmem:[#allocation5 + $0x1a0] sm:$0xff]
  %v7568 = vld [vmem:[#allocation5 + $0x1a8] sm:$0xff]
  %v7569 = vld [vmem:[#allocation5 + $0x1b0] sm:$0xff]
  %v7570 = vld [vmem:[#allocation5 + $0x1b8] sm:$0xff]
  %v7571 = vld [vmem:[#allocation5 + $0x1c0] sm:$0xff]
  %v7572 = vld [vmem:[#allocation5 + $0x1c8] sm:$0xff]
  %v7573 = vld [vmem:[#allocation5 + $0x1d0] sm:$0xff]
  %v7574 = vld [vmem:[#allocation5 + $0x1d8] sm:$0xff]
  %v7575 = vld [vmem:[#allocation5 + $0x1e0] sm:$0xff]
  %v7576 = vld [vmem:[#allocation5 + $0x1e8] sm:$0xff]
  %v7577 = vld [vmem:[#allocation5 + $0x1f0] sm:$0xff]
  %v7578 = vld [vmem:[#allocation5 + $0x1f8] sm:$0xff]
  %v7579 = vld [vmem:[#allocation5 + $0x200] sm:$0xff]
  %v7580 = vld [vmem:[#allocation5 + $0x208] sm:$0xff]
  %v7581 = vld [vmem:[#allocation5 + $0x210] sm:$0xff]
  %v7582 = vld [vmem:[#allocation5 + $0x218] sm:$0xff]
  %v7583 = vld [vmem:[#allocation5 + $0x220] sm:$0xff]
  %v7584 = vld [vmem:[#allocation5 + $0x228] sm:$0xff]
  %v7585 = vld [vmem:[#allocation5 + $0x230] sm:$0xff]
  %v7586 = vld [vmem:[#allocation5 + $0x238] sm:$0xff]
  %v7587 = vld [vmem:[#allocation5 + $0x240] sm:$0xff]
  %v7588 = vld [vmem:[#allocation5 + $0x248] sm:$0xff]
  %v7589 = vld [vmem:[#allocation5 + $0x250] sm:$0xff]
  %v7590 = vld [vmem:[#allocation5 + $0x258] sm:$0xff]
  %v7591 = vld [vmem:[#allocation5 + $0x260] sm:$0xff]
  %v7592 = vld [vmem:[#allocation5 + $0x268] sm:$0xff]
  %v7593 = vld [vmem:[#allocation5 + $0x270] sm:$0xff]
  %v7594 = vld [vmem:[#allocation5 + $0x278] sm:$0xff]
  %v7595 = vld [vmem:[#allocation5 + $0x280] sm:$0xff]
  %v7596 = vld [vmem:[#allocation5 + $0x288] sm:$0xff]
  %v7597 = vld [vmem:[#allocation5 + $0x290] sm:$0xff]
  %v7598 = vld [vmem:[#allocation5 + $0x298] sm:$0xff]
  %v7599 = vld [vmem:[#allocation5 + $0x2a0] sm:$0xff]
  %v7600 = vld [vmem:[#allocation5 + $0x2a8] sm:$0xff]
  %v7601 = vld [vmem:[#allocation5 + $0x2b0] sm:$0xff]
  %v7602 = vld [vmem:[#allocation5 + $0x2b8] sm:$0xff]
  %v7603 = vld [vmem:[#allocation5 + $0x2c0] sm:$0xff]
  %v7604 = vld [vmem:[#allocation5 + $0x2c8] sm:$0xff]
  %v7605 = vld [vmem:[#allocation5 + $0x2d0] sm:$0xff]
  %v7606 = vld [vmem:[#allocation5 + $0x2d8] sm:$0xff]
  %v7607 = vld [vmem:[#allocation5 + $0x2e0] sm:$0xff]
  %v7608 = vld [vmem:[#allocation5 + $0x2e8] sm:$0xff]
  %v7609 = vld [vmem:[#allocation5 + $0x2f0] sm:$0xff]
  %v7610 = vld [vmem:[#allocation5 + $0x2f8] sm:$0xff]
  %v7611 = vld [vmem:[#allocation5 + $0x300] sm:$0xff]
  %v7612 = vld [vmem:[#allocation5 + $0x308] sm:$0xff]
  %v7613 = vld [vmem:[#allocation5 + $0x310] sm:$0xff]
  %v7614 = vld [vmem:[#allocation5 + $0x318] sm:$0xff]
  %v7615 = vld [vmem:[#allocation5 + $0x320] sm:$0xff]
  %v7616 = vld [vmem:[#allocation5 + $0x328] sm:$0xff]
  %v7617 = vld [vmem:[#allocation5 + $0x330] sm:$0xff]
  %v7618 = vld [vmem:[#allocation5 + $0x338] sm:$0xff]
  %v7619 = vld [vmem:[#allocation5 + $0x340] sm:$0xff]
  %v7620 = vld [vmem:[#allocation5 + $0x348] sm:$0xff]
  %v7621 = vld [vmem:[#allocation5 + $0x350] sm:$0xff]
  %v7622 = vld [vmem:[#allocation5 + $0x358] sm:$0xff]
  %v7623 = vld [vmem:[#allocation5 + $0x360] sm:$0xff]
  %v7624 = vld [vmem:[#allocation5 + $0x368] sm:$0xff]
  %v7625 = vld [vmem:[#allocation5 + $0x370] sm:$0xff]
  %v7626 = vld [vmem:[#allocation5 + $0x378] sm:$0xff]
  %v7627 = vld [vmem:[#allocation5 + $0x380] sm:$0xff]
  %v7628 = vld [vmem:[#allocation5 + $0x388] sm:$0xff]
  %v7629 = vld [vmem:[#allocation5 + $0x390] sm:$0xff]
  %v7630 = vld [vmem:[#allocation5 + $0x398] sm:$0xff]
  %v7631 = vld [vmem:[#allocation5 + $0x3a0] sm:$0xff]
  %v7632 = vld [vmem:[#allocation5 + $0x3a8] sm:$0xff]
  %v7633 = vld [vmem:[#allocation5 + $0x3b0] sm:$0xff]
  %v7634 = vld [vmem:[#allocation5 + $0x3b8] sm:$0xff]
  %v7635 = vld [vmem:[#allocation5 + $0x3c0] sm:$0xff]
  %v7636 = vld [vmem:[#allocation5 + $0x3c8] sm:$0xff]
  %v7637 = vld [vmem:[#allocation5 + $0x3d0] sm:$0xff]
  %v7638 = vld [vmem:[#allocation5 + $0x3d8] sm:$0xff]
  %v7639 = vld [vmem:[#allocation5 + $0x3e0] sm:$0xff]
  %v7640 = vld [vmem:[#allocation5 + $0x3e8] sm:$0xff]
  %v7641 = vld [vmem:[#allocation5 + $0x3f0] sm:$0xff]
  %v7642 = vld [vmem:[#allocation5 + $0x3f8] sm:$0xff]
  %v7643 = vld [vmem:[%s3] sm:$0xff]
  %v7644 = vld [vmem:[%s3 + $0x8] sm:$0xff]
  %v7645 = vld [vmem:[%s3 + $0x10] sm:$0xff]
  %v7646 = vld [vmem:[%s3 + $0x18] sm:$0xff]
  %v7647 = vld [vmem:[%s3 + $0x20] sm:$0xff]
  %v7648 = vld [vmem:[%s3 + $0x28] sm:$0xff]
  %v7649 = vld [vmem:[%s3 + $0x30] sm:$0xff]
  %v7650 = vld [vmem:[%s3 + $0x38] sm:$0xff]
  %v7651 = vld [vmem:[%s3 + $0x40] sm:$0xff]
  %v7652 = vld [vmem:[%s3 + $0x48] sm:$0xff]
  %v7653 = vld [vmem:[%s3 + $0x50] sm:$0xff]
  %v7654 = vld [vmem:[%s3 + $0x58] sm:$0xff]
  %v7655 = vld [vmem:[%s3 + $0x60] sm:$0xff]
  %v7656 = vld [vmem:[%s3 + $0x68] sm:$0xff]
  %v7657 = vld [vmem:[%s3 + $0x70] sm:$0xff]
  %v7658 = vld [vmem:[%s3 + $0x78] sm:$0xff]
  %v7659 = vld [vmem:[%s3 + $0x80] sm:$0xff]
  %v7660 = vld [vmem:[%s3 + $0x88] sm:$0xff]
  %v7661 = vld [vmem:[%s4] sm:$0x1]
  %v7663 = vlaneseq
  %v7664 = vshrl.u32 %v7663, 7
  %v7665 = vsub.s32 0, %v7664
  %v7666 = vrot.slane %v7661, %v7665
  %v7669 = vsel %vm273, %v7516, 0
  %v7672 = vsel %vm273, %v7518, 0
  %v7675 = vsel %vm273, %v7520, 0
  %v7678 = vsel %vm273, %v7522, 0
  %v7681 = vsel %vm273, %v7524, 0
  %v7684 = vsel %vm273, %v7526, 0
  %v7687 = vsel %vm273, %v7528, 0
  %v7690 = vsel %vm273, %v7530, 0
  %v7693 = vsel %vm273, %v7532, 0
  %v7696 = vsel %vm273, %v7534, 0
  %v7699 = vsel %vm273, %v7536, 0
  %v7702 = vsel %vm273, %v7538, 0
  %v7705 = vsel %vm273, %v7540, 0
  %v7708 = vsel %vm273, %v7542, 0
  %v7711 = vsel %vm273, %v7544, 0
  %v7714 = vsel %vm273, %v7546, 0
  %v7717 = vsel %vm273, %v7548, 0
  %v7720 = vsel %vm273, %v7550, 0
  %v7723 = vsel %vm273, %v7552, 0
  %v7726 = vsel %vm273, %v7554, 0
  %v7729 = vsel %vm273, %v7556, 0
  %v7732 = vsel %vm273, %v7558, 0
  %v7735 = vsel %vm273, %v7560, 0
  %v7738 = vsel %vm273, %v7562, 0
  %v7741 = vsel %vm273, %v7564, 0
  %v7744 = vsel %vm273, %v7566, 0
  %v7747 = vsel %vm273, %v7568, 0
  %v7750 = vsel %vm273, %v7570, 0
  %v7753 = vsel %vm273, %v7572, 0
  %v7756 = vsel %vm273, %v7574, 0
  %v7759 = vsel %vm273, %v7576, 0
  %v7762 = vsel %vm273, %v7578, 0
  %v7765 = vsel %vm273, %v7580, 0
  %v7768 = vsel %vm273, %v7582, 0
  %v7771 = vsel %vm273, %v7584, 0
  %v7774 = vsel %vm273, %v7586, 0
  %v7777 = vsel %vm273, %v7588, 0
  %v7780 = vsel %vm273, %v7590, 0
  %v7783 = vsel %vm273, %v7592, 0
  %v7786 = vsel %vm273, %v7594, 0
  %v7789 = vsel %vm273, %v7596, 0
  %v7792 = vsel %vm273, %v7598, 0
  %v7795 = vsel %vm273, %v7600, 0
  %v7798 = vsel %vm273, %v7602, 0
  %v7801 = vsel %vm273, %v7604, 0
  %v7804 = vsel %vm273, %v7606, 0
  %v7807 = vsel %vm273, %v7608, 0
  %v7810 = vsel %vm273, %v7610, 0
  %v7813 = vsel %vm273, %v7612, 0
  %v7816 = vsel %vm273, %v7614, 0
  %v7819 = vsel %vm273, %v7616, 0
  %v7822 = vsel %vm273, %v7618, 0
  %v7825 = vsel %vm273, %v7620, 0
  %v7828 = vsel %vm273, %v7622, 0
  %v7831 = vsel %vm273, %v7624, 0
  %v7834 = vsel %vm273, %v7626, 0
  %v7837 = vsel %vm273, %v7628, 0
  %v7840 = vsel %vm273, %v7630, 0
  %v7843 = vsel %vm273, %v7632, 0
  %v7846 = vsel %vm273, %v7634, 0
  %v7849 = vsel %vm273, %v7636, 0
  %v7852 = vsel %vm273, %v7638, 0
  %v7855 = vsel %vm273, %v7640, 0
  %v7858 = vsel %vm273, %v7642, 0
  %7860 = vmatprep.subr.mxu0 0.0
  %7861 = vmatpush1.msra.mxu0 %v7643
  %7862 = vmatprep.subr.mxu0 0.0
  %7863 = vmatpush1.msra.mxu0 %v7644
  %7864 = vmatprep.subr.mxu0 0.0
  %7865 = vmatpush1.msra.mxu0 %v7645
  %7866 = vmatprep.subr.mxu0 0.0
  %7867 = vmatpush1.msra.mxu0 %v7646
  %7868 = vmatprep.subr.mxu0 0.0
  %7869 = vmatpush1.msra.mxu0 %v7647
  %7870 = vmatprep.subr.mxu0 0.0
  %7871 = vmatpush1.msra.mxu0 %v7648
  %7872 = vmatprep.subr.mxu0 0.0
  %7873 = vmatpush1.msra.mxu0 %v7649
  %7874 = vmatprep.subr.mxu0 0.0
  %7875 = vmatpush1.msra.mxu0 %v7650
  %7876 = vmatprep.subr.mxu0 0.0
  %7877 = vmatpush1.msra.mxu0 %v7651
  %7878 = vmatprep.subr.mxu0 0.0
  %7879 = vmatpush1.msra.mxu0 %v7652
  %7880 = vmatprep.subr.mxu0 0.0
  %7881 = vmatpush1.msra.mxu0 %v7653
  %7882 = vmatprep.subr.mxu0 0.0
  %7883 = vmatpush1.msra.mxu0 %v7654
  %7884 = vmatprep.subr.mxu0 0.0
  %7885 = vmatpush1.msra.mxu0 %v7655
  %7886 = vmatprep.subr.mxu0 0.0
  %7887 = vmatpush1.msra.mxu0 %v7656
  %7888 = vmatprep.subr.mxu0 0.0
  %7889 = vmatpush1.msra.mxu0 %v7657
  %7890 = vmatprep.subr.mxu0 0.0
  %7891 = vmatpush1.msra.mxu0 %v7658
  %7892 = vmatprep.subr.mxu0 0.0
  %7893 = vmatpush1.msra.mxu0 %v7659
  %7894 = vmatprep.subr.mxu0 0.0
  %7895 = vmatpush1.msra.mxu0 %v7660
  %7896 = vmatprep.subr.mxu0 0.0
  %7897 = vmatpush1.msra.mxu0 0.0
  %7898 = vmatprep.subr.mxu0 0.0
  %7899 = vmatpush1.msra.mxu0 0.0
  %7900 = vmatprep.subr.mxu0 0.0
  %7901 = vmatpush1.msra.mxu0 0.0
  %7902 = vmatprep.subr.mxu0 0.0
  %7903 = vmatpush1.msra.mxu0 0.0
  %7904 = vmatprep.subr.mxu0 0.0
  %7905 = vmatpush1.msra.mxu0 0.0
  %7906 = vmatprep.subr.mxu0 0.0
  %7907 = vmatpush1.msra.mxu0 0.0
  %7908 = vmatprep.subr.mxu0 0.0
  %7909 = vmatpush1.msra.mxu0 0.0
  %7910 = vmatprep.subr.mxu0 0.0
  %7911 = vmatpush1.msra.mxu0 0.0
  %7912 = vmatprep.subr.mxu0 0.0
  %7913 = vmatpush1.msra.mxu0 0.0
  %7914 = vmatprep.subr.mxu0 0.0
  %7915 = vmatpush1.msra.mxu0 0.0
  %7916 = vmatprep.subr.mxu0 0.0
  %7917 = vmatpush1.msra.mxu0 0.0
  %7918 = vmatprep.subr.mxu0 0.0
  %7919 = vmatpush1.msra.mxu0 0.0
  %7920 = vmatprep.subr.mxu0 0.0
  %7921 = vmatpush1.msra.mxu0 0.0
  %7922 = vmatprep.subr.mxu0 0.0
  %7923 = vmatpush1.msra.mxu0 0.0
  %7924 = vmatprep.mubr.f32.mxu0 %v7669
  %7925 = vmatmul.mubr.f32.gmra.mrb[0].mxu0 %v7515
  %v7926 = vpop.f32.mrb[0].mxu0
  %v7927 = vadd.f32 %v7666, %v7926
  %v7928 = vpop.f32.mrb[0].mxu0
  %7929 = vmatprep.mubr.f32.mxu0 %v7672
  %7930 = vmatmul.mubr.f32.gmra.mrb[0].mxu0 %v7517
  %v7931 = vpop.f32.mrb[0].mxu0
  %v7932 = vadd.f32 %v7666, %v7931
  %v7933 = vpop.f32.mrb[0].mxu0
  %7934 = vmatprep.mubr.f32.mxu0 %v7675
  %7935 = vmatmul.mubr.f32.gmra.mrb[0].mxu0 %v7519
  %v7936 = vpop.f32.mrb[0].mxu0
  %v7937 = vadd.f32 %v7666, %v7936
  %v7938 = vpop.f32.mrb[0].mxu0
  %7939 = vmatprep.mubr.f32.mxu0 %v7678
  %7940 = vmatmul.mubr.f32.gmra.mrb[0].mxu0 %v7521
  %v7941 = vpop.f32.mrb[0].mxu0
  %v7942 = vadd.f32 %v7666, %v7941
  %v7943 = vpop.f32.mrb[0].mxu0
  %7944 = vmatprep.mubr.f32.mxu0 %v7681
  %7945 = vmatmul.mubr.f32.gmra.mrb[0].mxu0 %v7523
  %v7946 = vpop.f32.mrb[0].mxu0
  %v7947 = vadd.f32 %v7666, %v7946
  %v7948 = vpop.f32.mrb[0].mxu0
  %7949 = vmatprep.mubr.f32.mxu0 %v7684
  %7950 = vmatmul.mubr.f32.gmra.mrb[0].mxu0 %v7525
  %v7951 = vpop.f32.mrb[0].mxu0
  %v7952 = vadd.f32 %v7666, %v7951
  %v7953 = vpop.f32.mrb[0].mxu0
  %7954 = vmatprep.mubr.f32.mxu0 %v7687
  %7955 = vmatmul.mubr.f32.gmra.mrb[0].mxu0 %v7527
  %v7956 = vpop.f32.mrb[0].mxu0
  %v7957 = vadd.f32 %v7666, %v7956
  %v7958 = vpop.f32.mrb[0].mxu0
  %7959 = vmatprep.mubr.f32.mxu0 %v7690
  %7960 = vmatmul.mubr.f32.gmra.mrb[0].mxu0 %v7529
  %v7961 = vpop.f32.mrb[0].mxu0
  %v7962 = vadd.f32 %v7666, %v7961
  %v7963 = vpop.f32.mrb[0].mxu0
  %7964 = vmatprep.mubr.f32.mxu0 %v7693
  %7965 = vmatmul.mubr.f32.gmra.mrb[0].mxu0 %v7531
  %v7966 = vpop.f32.mrb[0].mxu0
  %v7967 = vadd.f32 %v7666, %v7966
  %v7968 = vpop.f32.mrb[0].mxu0
  %7969 = vmatprep.mubr.f32.mxu0 %v7696
  %7970 = vmatmul.mubr.f32.gmra.mrb[0].mxu0 %v7533
  %v7971 = vpop.f32.mrb[0].mxu0
  %v7972 = vadd.f32 %v7666, %v7971
  %v7973 = vpop.f32.mrb[0].mxu0
  %7974 = vmatprep.mubr.f32.mxu0 %v7699
  %7975 = vmatmul.mubr.f32.gmra.mrb[0].mxu0 %v7535
  %v7976 = vpop.f32.mrb[0].mxu0
  %v7977 = vadd.f32 %v7666, %v7976
  %v7978 = vpop.f32.mrb[0].mxu0
  %7979 = vmatprep.mubr.f32.mxu0 %v7702
  %7980 = vmatmul.mubr.f32.gmra.mrb[0].mxu0 %v7537
  %v7981 = vpop.f32.mrb[0].mxu0
  %v7982 = vadd.f32 %v7666, %v7981
  %v7983 = vpop.f32.mrb[0].mxu0
  %7984 = vmatprep.mubr.f32.mxu0 %v7705
  %7985 = vmatmul.mubr.f32.gmra.mrb[0].mxu0 %v7539
  %v7986 = vpop.f32.mrb[0].mxu0
  %v7987 = vadd.f32 %v7666, %v7986
  %v7988 = vpop.f32.mrb[0].mxu0
  %7989 = vmatprep.mubr.f32.mxu0 %v7708
  %7990 = vmatmul.mubr.f32.gmra.mrb[0].mxu0 %v7541
  %v7991 = vpop.f32.mrb[0].mxu0
  %v7992 = vadd.f32 %v7666, %v7991
  %v7993 = vpop.f32.mrb[0].mxu0
  %7994 = vmatprep.mubr.f32.mxu0 %v7711
  %7995 = vmatmul.mubr.f32.gmra.mrb[0].mxu0 %v7543
  %v7996 = vpop.f32.mrb[0].mxu0
  %v7997 = vadd.f32 %v7666, %v7996
  %v7998 = vpop.f32.mrb[0].mxu0
  %7999 = vmatprep.mubr.f32.mxu0 %v7714
  %8000 = vmatmul.mubr.f32.gmra.mrb[0].mxu0 %v7545
  %v8001 = vpop.f32.mrb[0].mxu0
  %v8002 = vadd.f32 %v7666, %v8001
  %v8003 = vpop.f32.mrb[0].mxu0
  %8004 = vmatprep.mubr.f32.mxu0 %v7717
  %8005 = vmatmul.mubr.f32.gmra.mrb[0].mxu0 %v7547
  %v8006 = vpop.f32.mrb[0].mxu0
  %v8007 = vadd.f32 %v7666, %v8006
  %v8008 = vpop.f32.mrb[0].mxu0
  %8009 = vmatprep.mubr.f32.mxu0 %v7720
  %8010 = vmatmul.mubr.f32.gmra.mrb[0].mxu0 %v7549
  %v8011 = vpop.f32.mrb[0].mxu0
  %v8012 = vadd.f32 %v7666, %v8011
  %v8013 = vpop.f32.mrb[0].mxu0
  %8014 = vmatprep.mubr.f32.mxu0 %v7723
  %8015 = vmatmul.mubr.f32.gmra.mrb[0].mxu0 %v7551
  %v8016 = vpop.f32.mrb[0].mxu0
  %v8017 = vadd.f32 %v7666, %v8016
  %v8018 = vpop.f32.mrb[0].mxu0
  %8019 = vmatprep.mubr.f32.mxu0 %v7726
  %8020 = vmatmul.mubr.f32.gmra.mrb[0].mxu0 %v7553
  %v8021 = vpop.f32.mrb[0].mxu0
  %v8022 = vadd.f32 %v7666, %v8021
  %v8023 = vpop.f32.mrb[0].mxu0
  %8024 = vmatprep.mubr.f32.mxu0 %v7729
  %8025 = vmatmul.mubr.f32.gmra.mrb[0].mxu0 %v7555
  %v8026 = vpop.f32.mrb[0].mxu0
  %v8027 = vadd.f32 %v7666, %v8026
  %v8028 = vpop.f32.mrb[0].mxu0
  %8029 = vmatprep.mubr.f32.mxu0 %v7732
  %8030 = vmatmul.mubr.f32.gmra.mrb[0].mxu0 %v7557
  %v8031 = vpop.f32.mrb[0].mxu0
  %v8032 = vadd.f32 %v7666, %v8031
  %v8033 = vpop.f32.mrb[0].mxu0
  %8034 = vmatprep.mubr.f32.mxu0 %v7735
  %8035 = vmatmul.mubr.f32.gmra.mrb[0].mxu0 %v7559
  %v8036 = vpop.f32.mrb[0].mxu0
  %v8037 = vadd.f32 %v7666, %v8036
  %v8038 = vpop.f32.mrb[0].mxu0
  %8039 = vmatprep.mubr.f32.mxu0 %v7738
  %8040 = vmatmul.mubr.f32.gmra.mrb[0].mxu0 %v7561
  %v8041 = vpop.f32.mrb[0].mxu0
  %v8042 = vadd.f32 %v7666, %v8041
  %v8043 = vpop.f32.mrb[0].mxu0
  %8044 = vmatprep.mubr.f32.mxu0 %v7741
  %8045 = vmatmul.mubr.f32.gmra.mrb[0].mxu0 %v7563
  %v8046 = vpop.f32.mrb[0].mxu0
  %v8047 = vadd.f32 %v7666, %v8046
  %v8048 = vpop.f32.mrb[0].mxu0
  %8049 = vmatprep.mubr.f32.mxu0 %v7744
  %8050 = vmatmul.mubr.f32.gmra.mrb[0].mxu0 %v7565
  %v8051 = vpop.f32.mrb[0].mxu0
  %v8052 = vadd.f32 %v7666, %v8051
  %v8053 = vpop.f32.mrb[0].mxu0
  %8054 = vmatprep.mubr.f32.mxu0 %v7747
  %8055 = vmatmul.mubr.f32.gmra.mrb[0].mxu0 %v7567
  %v8056 = vpop.f32.mrb[0].mxu0
  %v8057 = vadd.f32 %v7666, %v8056
  %v8058 = vpop.f32.mrb[0].mxu0
  %8059 = vmatprep.mubr.f32.mxu0 %v7750
  %8060 = vmatmul.mubr.f32.gmra.mrb[0].mxu0 %v7569
  %v8061 = vpop.f32.mrb[0].mxu0
  %v8062 = vadd.f32 %v7666, %v8061
  %v8063 = vpop.f32.mrb[0].mxu0
  %8064 = vmatprep.mubr.f32.mxu0 %v7753
  %8065 = vmatmul.mubr.f32.gmra.mrb[0].mxu0 %v7571
  %v8066 = vpop.f32.mrb[0].mxu0
  %v8067 = vadd.f32 %v7666, %v8066
  %v8068 = vpop.f32.mrb[0].mxu0
  %8069 = vmatprep.mubr.f32.mxu0 %v7756
  %8070 = vmatmul.mubr.f32.gmra.mrb[0].mxu0 %v7573
  %v8071 = vpop.f32.mrb[0].mxu0
  %v8072 = vadd.f32 %v7666, %v8071
  %v8073 = vpop.f32.mrb[0].mxu0
  %8074 = vmatprep.mubr.f32.mxu0 %v7759
  %8075 = vmatmul.mubr.f32.gmra.mrb[0].mxu0 %v7575
  %v8076 = vpop.f32.mrb[0].mxu0
  %v8077 = vadd.f32 %v7666, %v8076
  %v8078 = vpop.f32.mrb[0].mxu0
  %8079 = vmatprep.mubr.f32.mxu0 %v7762
  %8080 = vmatmul.mubr.f32.gmra.mrb[0].mxu0 %v7577
  %v8081 = vpop.f32.mrb[0].mxu0
  %v8082 = vadd.f32 %v7666, %v8081
  %v8083 = vpop.f32.mrb[0].mxu0
  %8084 = vmatprep.mubr.f32.mxu0 %v7765
  %8085 = vmatmul.mubr.f32.gmra.mrb[0].mxu0 %v7579
  %v8086 = vpop.f32.mrb[0].mxu0
  %v8087 = vadd.f32 %v7666, %v8086
  %v8088 = vpop.f32.mrb[0].mxu0
  %8089 = vmatprep.mubr.f32.mxu0 %v7768
  %8090 = vmatmul.mubr.f32.gmra.mrb[0].mxu0 %v7581
  %v8091 = vpop.f32.mrb[0].mxu0
  %v8092 = vadd.f32 %v7666, %v8091
  %v8093 = vpop.f32.mrb[0].mxu0
  %8094 = vmatprep.mubr.f32.mxu0 %v7771
  %8095 = vmatmul.mubr.f32.gmra.mrb[0].mxu0 %v7583
  %v8096 = vpop.f32.mrb[0].mxu0
  %v8097 = vadd.f32 %v7666, %v8096
  %v8098 = vpop.f32.mrb[0].mxu0
  %8099 = vmatprep.mubr.f32.mxu0 %v7774
  %8100 = vmatmul.mubr.f32.gmra.mrb[0].mxu0 %v7585
  %v8101 = vpop.f32.mrb[0].mxu0
  %v8102 = vadd.f32 %v7666, %v8101
  %v8103 = vpop.f32.mrb[0].mxu0
  %8104 = vmatprep.mubr.f32.mxu0 %v7777
  %8105 = vmatmul.mubr.f32.gmra.mrb[0].mxu0 %v7587
  %v8106 = vpop.f32.mrb[0].mxu0
  %v8107 = vadd.f32 %v7666, %v8106
  %v8108 = vpop.f32.mrb[0].mxu0
  %8109 = vmatprep.mubr.f32.mxu0 %v7780
  %8110 = vmatmul.mubr.f32.gmra.mrb[0].mxu0 %v7589
  %v8111 = vpop.f32.mrb[0].mxu0
  %v8112 = vadd.f32 %v7666, %v8111
  %v8113 = vpop.f32.mrb[0].mxu0
  %8114 = vmatprep.mubr.f32.mxu0 %v7783
  %8115 = vmatmul.mubr.f32.gmra.mrb[0].mxu0 %v7591
  %v8116 = vpop.f32.mrb[0].mxu0
  %v8117 = vadd.f32 %v7666, %v8116
  %v8118 = vpop.f32.mrb[0].mxu0
  %8119 = vmatprep.mubr.f32.mxu0 %v7786
  %8120 = vmatmul.mubr.f32.gmra.mrb[0].mxu0 %v7593
  %v8121 = vpop.f32.mrb[0].mxu0
  %v8122 = vadd.f32 %v7666, %v8121
  %v8123 = vpop.f32.mrb[0].mxu0
  %8124 = vmatprep.mubr.f32.mxu0 %v7789
  %8125 = vmatmul.mubr.f32.gmra.mrb[0].mxu0 %v7595
  %v8126 = vpop.f32.mrb[0].mxu0
  %v8127 = vadd.f32 %v7666, %v8126
  %v8128 = vpop.f32.mrb[0].mxu0
  %8129 = vmatprep.mubr.f32.mxu0 %v7792
  %8130 = vmatmul.mubr.f32.gmra.mrb[0].mxu0 %v7597
  %v8131 = vpop.f32.mrb[0].mxu0
  %v8132 = vadd.f32 %v7666, %v8131
  %v8133 = vpop.f32.mrb[0].mxu0
  %8134 = vmatprep.mubr.f32.mxu0 %v7795
  %8135 = vmatmul.mubr.f32.gmra.mrb[0].mxu0 %v7599
  %v8136 = vpop.f32.mrb[0].mxu0
  %v8137 = vadd.f32 %v7666, %v8136
  %v8138 = vpop.f32.mrb[0].mxu0
  %8139 = vmatprep.mubr.f32.mxu0 %v7798
  %8140 = vmatmul.mubr.f32.gmra.mrb[0].mxu0 %v7601
  %v8141 = vpop.f32.mrb[0].mxu0
  %v8142 = vadd.f32 %v7666, %v8141
  %v8143 = vpop.f32.mrb[0].mxu0
  %8144 = vmatprep.mubr.f32.mxu0 %v7801
  %8145 = vmatmul.mubr.f32.gmra.mrb[0].mxu0 %v7603
  %v8146 = vpop.f32.mrb[0].mxu0
  %v8147 = vadd.f32 %v7666, %v8146
  %v8148 = vpop.f32.mrb[0].mxu0
  %8149 = vmatprep.mubr.f32.mxu0 %v7804
  %8150 = vmatmul.mubr.f32.gmra.mrb[0].mxu0 %v7605
  %v8151 = vpop.f32.mrb[0].mxu0
  %v8152 = vadd.f32 %v7666, %v8151
  %v8153 = vpop.f32.mrb[0].mxu0
  %8154 = vmatprep.mubr.f32.mxu0 %v7807
  %8155 = vmatmul.mubr.f32.gmra.mrb[0].mxu0 %v7607
  %v8156 = vpop.f32.mrb[0].mxu0
  %v8157 = vadd.f32 %v7666, %v8156
  %v8158 = vpop.f32.mrb[0].mxu0
  %8159 = vmatprep.mubr.f32.mxu0 %v7810
  %8160 = vmatmul.mubr.f32.gmra.mrb[0].mxu0 %v7609
  %v8161 = vpop.f32.mrb[0].mxu0
  %v8162 = vadd.f32 %v7666, %v8161
  %v8163 = vpop.f32.mrb[0].mxu0
  %8164 = vmatprep.mubr.f32.mxu0 %v7813
  %8165 = vmatmul.mubr.f32.gmra.mrb[0].mxu0 %v7611
  %v8166 = vpop.f32.mrb[0].mxu0
  %v8167 = vadd.f32 %v7666, %v8166
  %v8168 = vpop.f32.mrb[0].mxu0
  %8169 = vmatprep.mubr.f32.mxu0 %v7816
  %8170 = vmatmul.mubr.f32.gmra.mrb[0].mxu0 %v7613
  %v8171 = vpop.f32.mrb[0].mxu0
  %v8172 = vadd.f32 %v7666, %v8171
  %v8173 = vpop.f32.mrb[0].mxu0
  %8174 = vmatprep.mubr.f32.mxu0 %v7819
  %8175 = vmatmul.mubr.f32.gmra.mrb[0].mxu0 %v7615
  %v8176 = vpop.f32.mrb[0].mxu0
  %v8177 = vadd.f32 %v7666, %v8176
  %v8178 = vpop.f32.mrb[0].mxu0
  %8179 = vmatprep.mubr.f32.mxu0 %v7822
  %8180 = vmatmul.mubr.f32.gmra.mrb[0].mxu0 %v7617
  %v8181 = vpop.f32.mrb[0].mxu0
  %v8182 = vadd.f32 %v7666, %v8181
  %v8183 = vpop.f32.mrb[0].mxu0
  %8184 = vmatprep.mubr.f32.mxu0 %v7825
  %8185 = vmatmul.mubr.f32.gmra.mrb[0].mxu0 %v7619
  %v8186 = vpop.f32.mrb[0].mxu0
  %v8187 = vadd.f32 %v7666, %v8186
  %v8188 = vpop.f32.mrb[0].mxu0
  %8189 = vmatprep.mubr.f32.mxu0 %v7828
  %8190 = vmatmul.mubr.f32.gmra.mrb[0].mxu0 %v7621
  %v8191 = vpop.f32.mrb[0].mxu0
  %v8192 = vadd.f32 %v7666, %v8191
  %v8193 = vpop.f32.mrb[0].mxu0
  %8194 = vmatprep.mubr.f32.mxu0 %v7831
  %8195 = vmatmul.mubr.f32.gmra.mrb[0].mxu0 %v7623
  %v8196 = vpop.f32.mrb[0].mxu0
  %v8197 = vadd.f32 %v7666, %v8196
  %v8198 = vpop.f32.mrb[0].mxu0
  %8199 = vmatprep.mubr.f32.mxu0 %v7834
  %8200 = vmatmul.mubr.f32.gmra.mrb[0].mxu0 %v7625
  %v8201 = vpop.f32.mrb[0].mxu0
  %v8202 = vadd.f32 %v7666, %v8201
  %v8203 = vpop.f32.mrb[0].mxu0
  %8204 = vmatprep.mubr.f32.mxu0 %v7837
  %8205 = vmatmul.mubr.f32.gmra.mrb[0].mxu0 %v7627
  %v8206 = vpop.f32.mrb[0].mxu0
  %v8207 = vadd.f32 %v7666, %v8206
  %v8208 = vpop.f32.mrb[0].mxu0
  %8209 = vmatprep.mubr.f32.mxu0 %v7840
  %8210 = vmatmul.mubr.f32.gmra.mrb[0].mxu0 %v7629
  %v8211 = vpop.f32.mrb[0].mxu0
  %v8212 = vadd.f32 %v7666, %v8211
  %v8213 = vpop.f32.mrb[0].mxu0
  %8214 = vmatprep.mubr.f32.mxu0 %v7843
  %8215 = vmatmul.mubr.f32.gmra.mrb[0].mxu0 %v7631
  %v8216 = vpop.f32.mrb[0].mxu0
  %v8217 = vadd.f32 %v7666, %v8216
  %v8218 = vpop.f32.mrb[0].mxu0
  %8219 = vmatprep.mubr.f32.mxu0 %v7846
  %8220 = vmatmul.mubr.f32.gmra.mrb[0].mxu0 %v7633
  %v8221 = vpop.f32.mrb[0].mxu0
  %v8222 = vadd.f32 %v7666, %v8221
  %v8223 = vpop.f32.mrb[0].mxu0
  %8224 = vmatprep.mubr.f32.mxu0 %v7849
  %8225 = vmatmul.mubr.f32.gmra.mrb[0].mxu0 %v7635
  %v8226 = vpop.f32.mrb[0].mxu0
  %v8227 = vadd.f32 %v7666, %v8226
  %v8228 = vpop.f32.mrb[0].mxu0
  %8229 = vmatprep.mubr.f32.mxu0 %v7852
  %8230 = vmatmul.mubr.f32.gmra.mrb[0].mxu0 %v7637
  %v8231 = vpop.f32.mrb[0].mxu0
  %v8232 = vadd.f32 %v7666, %v8231
  %v8233 = vpop.f32.mrb[0].mxu0
  %8234 = vmatprep.mubr.f32.mxu0 %v7855
  %8235 = vmatmul.mubr.f32.gmra.mrb[0].mxu0 %v7639
  %v8236 = vpop.f32.mrb[0].mxu0
  %v8237 = vadd.f32 %v7666, %v8236
  %v8238 = vpop.f32.mrb[0].mxu0
  %8239 = vmatprep.mubr.f32.mxu0 %v7858
  %8240 = vmatmul.mubr.f32.gmra.mrb[0].mxu0 %v7641
  %v8241 = vpop.f32.mrb[0].mxu0
  %v8242 = vadd.f32 %v7666, %v8241
  %v8243 = vpop.f32.mrb[0].mxu0
  %8244 = vdwg.mxu0
  %8245 = vmatprep.subr.mxu0 0.0
  %8246 = vmatpush1.msra.mxu0 %v7927
  %8247 = vmatprep.subr.mxu0 0.0
  %8248 = vmatpush1.msra.mxu0 %v7932
  %8249 = vmatprep.subr.mxu0 0.0
  %8250 = vmatpush1.msra.mxu0 %v7937
  %8251 = vmatprep.subr.mxu0 0.0
  %8252 = vmatpush1.msra.mxu0 %v7942
  %8253 = vmatprep.subr.mxu0 0.0
  %8254 = vmatpush1.msra.mxu0 %v7947
  %8255 = vmatprep.subr.mxu0 0.0
  %8256 = vmatpush1.msra.mxu0 %v7952
  %8257 = vmatprep.subr.mxu0 0.0
  %8258 = vmatpush1.msra.mxu0 %v7957
  %8259 = vmatprep.subr.mxu0 0.0
  %8260 = vmatpush1.msra.mxu0 %v7962
  %8261 = vmatprep.subr.mxu0 0.0
  %8262 = vmatpush1.msra.mxu0 %v7967
  %8263 = vmatprep.subr.mxu0 0.0
  %8264 = vmatpush1.msra.mxu0 %v7972
  %8265 = vmatprep.subr.mxu0 0.0
  %8266 = vmatpush1.msra.mxu0 %v7977
  %8267 = vmatprep.subr.mxu0 0.0
  %8268 = vmatpush1.msra.mxu0 %v7982
  %8269 = vmatprep.subr.mxu0 0.0
  %8270 = vmatpush1.msra.mxu0 %v7987
  %8271 = vmatprep.subr.mxu0 0.0
  %8272 = vmatpush1.msra.mxu0 %v7992
  %8273 = vmatprep.subr.mxu0 0.0
  %8274 = vmatpush1.msra.mxu0 %v7997
  %8275 = vmatprep.subr.mxu0 0.0
  %8276 = vmatpush1.msra.mxu0 %v8002
  %8277 = vmatprep.subr.mxu0 0.0
  %8278 = vmatpush1.msra.mxu0 %v8007
  %8279 = vmatprep.subr.mxu0 0.0
  %8280 = vmatpush1.msra.mxu0 %v8012
  %8281 = vmatprep.subr.mxu0 0.0
  %8282 = vmatpush1.msra.mxu0 %v8017
  %8283 = vmatprep.subr.mxu0 0.0
  %8284 = vmatpush1.msra.mxu0 %v8022
  %8285 = vmatprep.subr.mxu0 0.0
  %8286 = vmatpush1.msra.mxu0 %v8027
  %8287 = vmatprep.subr.mxu0 0.0
  %8288 = vmatpush1.msra.mxu0 %v8032
  %8289 = vmatprep.subr.mxu0 0.0
  %8290 = vmatpush1.msra.mxu0 %v8037
  %8291 = vmatprep.subr.mxu0 0.0
  %8292 = vmatpush1.msra.mxu0 %v8042
  %8293 = vmatprep.subr.mxu0 0.0
  %8294 = vmatpush1.msra.mxu0 %v8047
  %8295 = vmatprep.subr.mxu0 0.0
  %8296 = vmatpush1.msra.mxu0 %v8052
  %8297 = vmatprep.subr.mxu0 0.0
  %8298 = vmatpush1.msra.mxu0 %v8057
  %8299 = vmatprep.subr.mxu0 0.0
  %8300 = vmatpush1.msra.mxu0 %v8062
  %8301 = vmatprep.subr.mxu0 0.0
  %8302 = vmatpush1.msra.mxu0 %v8067
  %8303 = vmatprep.subr.mxu0 0.0
  %8304 = vmatpush1.msra.mxu0 %v8072
  %8305 = vmatprep.subr.mxu0 0.0
  %8306 = vmatpush1.msra.mxu0 %v8077
  %8307 = vmatprep.subr.mxu0 0.0
  %8308 = vmatpush1.msra.mxu0 %v8082
  %8309 = vmatprep.mubr.f32.mxu0 0.001953125
  %8310 = vmatmul.mubr.f32.gmra.mrb[0].mxu0 0.001953125
  %v8311 = vpop.f32.mrb[0].mxu0
  %v8312 = vadd.f32 0.0, %v8311
  %v8313 = vpop.f32.mrb[0].mxu0
  %8314 = vdwg.mxu0
  %8315 = vmatprep.subr.mxu0 0.0
  %8316 = vmatpush1.msra.mxu0 %v8087
  %8317 = vmatprep.subr.mxu0 0.0
  %8318 = vmatpush1.msra.mxu0 %v8092
  %8319 = vmatprep.subr.mxu0 0.0
  %8320 = vmatpush1.msra.mxu0 %v8097
  %8321 = vmatprep.subr.mxu0 0.0
  %8322 = vmatpush1.msra.mxu0 %v8102
  %8323 = vmatprep.subr.mxu0 0.0
  %8324 = vmatpush1.msra.mxu0 %v8107
  %8325 = vmatprep.subr.mxu0 0.0
  %8326 = vmatpush1.msra.mxu0 %v8112
  %8327 = vmatprep.subr.mxu0 0.0
  %8328 = vmatpush1.msra.mxu0 %v8117
  %8329 = vmatprep.subr.mxu0 0.0
  %8330 = vmatpush1.msra.mxu0 %v8122
  %8331 = vmatprep.subr.mxu0 0.0
  %8332 = vmatpush1.msra.mxu0 %v8127
  %8333 = vmatprep.subr.mxu0 0.0
  %8334 = vmatpush1.msra.mxu0 %v8132
  %8335 = vmatprep.subr.mxu0 0.0
  %8336 = vmatpush1.msra.mxu0 %v8137
  %8337 = vmatprep.subr.mxu0 0.0
  %8338 = vmatpush1.msra.mxu0 %v8142
  %8339 = vmatprep.subr.mxu0 0.0
  %8340 = vmatpush1.msra.mxu0 %v8147
  %8341 = vmatprep.subr.mxu0 0.0
  %8342 = vmatpush1.msra.mxu0 %v8152
  %8343 = vmatprep.subr.mxu0 0.0
  %8344 = vmatpush1.msra.mxu0 %v8157
  %8345 = vmatprep.subr.mxu0 0.0
  %8346 = vmatpush1.msra.mxu0 %v8162
  %8347 = vmatprep.subr.mxu0 0.0
  %8348 = vmatpush1.msra.mxu0 %v8167
  %8349 = vmatprep.subr.mxu0 0.0
  %8350 = vmatpush1.msra.mxu0 %v8172
  %8351 = vmatprep.subr.mxu0 0.0
  %8352 = vmatpush1.msra.mxu0 %v8177
  %8353 = vmatprep.subr.mxu0 0.0
  %8354 = vmatpush1.msra.mxu0 %v8182
  %8355 = vmatprep.subr.mxu0 0.0
  %8356 = vmatpush1.msra.mxu0 %v8187
  %8357 = vmatprep.subr.mxu0 0.0
  %8358 = vmatpush1.msra.mxu0 %v8192
  %8359 = vmatprep.subr.mxu0 0.0
  %8360 = vmatpush1.msra.mxu0 %v8197
  %8361 = vmatprep.subr.mxu0 0.0
  %8362 = vmatpush1.msra.mxu0 %v8202
  %8363 = vmatprep.subr.mxu0 0.0
  %8364 = vmatpush1.msra.mxu0 %v8207
  %8365 = vmatprep.subr.mxu0 0.0
  %8366 = vmatpush1.msra.mxu0 %v8212
  %8367 = vmatprep.subr.mxu0 0.0
  %8368 = vmatpush1.msra.mxu0 %v8217
  %8369 = vmatprep.subr.mxu0 0.0
  %8370 = vmatpush1.msra.mxu0 %v8222
  %8371 = vmatprep.subr.mxu0 0.0
  %8372 = vmatpush1.msra.mxu0 %v8227
  %8373 = vmatprep.subr.mxu0 0.0
  %8374 = vmatpush1.msra.mxu0 %v8232
  %8375 = vmatprep.subr.mxu0 0.0
  %8376 = vmatpush1.msra.mxu0 %v8237
  %8377 = vmatprep.subr.mxu0 0.0
  %8378 = vmatpush1.msra.mxu0 %v8242
  %8379 = vmatprep.mubr.f32.mxu0 0.001953125
  %8380 = vmatmul.mubr.f32.gmra.mrb[0].mxu0 0.001953125
  %v8381 = vpop.f32.mrb[0].mxu0
  %v8382 = vadd.f32 %v8312, %v8381
  %v8383 = vpop.f32.mrb[0].mxu0
  %8384 = vdwg.mxu0
  %v8385 = vlaneseq
  %v8386 = vshrl.u32 %v8385, 7
  %v8387 = vsub.s32 0, %v8386
  %v8388 = vrot.slane %v8382, %v8387
  %v8389 = vsub.f32 %v7927, %v8388
  %v8390 = vsub.f32 %v7932, %v8388
  %v8391 = vsub.f32 %v7937, %v8388
  %v8392 = vsub.f32 %v7942, %v8388
  %v8393 = vsub.f32 %v7947, %v8388
  %v8394 = vsub.f32 %v7952, %v8388
  %v8395 = vsub.f32 %v7957, %v8388
  %v8396 = vsub.f32 %v7962, %v8388
  %v8397 = vsub.f32 %v7967, %v8388
  %v8398 = vsub.f32 %v7972, %v8388
  %v8399 = vsub.f32 %v7977, %v8388
  %v8400 = vsub.f32 %v7982, %v8388
  %v8401 = vsub.f32 %v7987, %v8388
  %v8402 = vsub.f32 %v7992, %v8388
  %v8403 = vsub.f32 %v7997, %v8388
  %v8404 = vsub.f32 %v8002, %v8388
  %v8405 = vsub.f32 %v8007, %v8388
  %v8406 = vsub.f32 %v8012, %v8388
  %v8407 = vsub.f32 %v8017, %v8388
  %v8408 = vsub.f32 %v8022, %v8388
  %v8409 = vsub.f32 %v8027, %v8388
  %v8410 = vsub.f32 %v8032, %v8388
  %v8411 = vsub.f32 %v8037, %v8388
  %v8412 = vsub.f32 %v8042, %v8388
  %v8413 = vsub.f32 %v8047, %v8388
  %v8414 = vsub.f32 %v8052, %v8388
  %v8415 = vsub.f32 %v8057, %v8388
  %v8416 = vsub.f32 %v8062, %v8388
  %v8417 = vsub.f32 %v8067, %v8388
  %v8418 = vsub.f32 %v8072, %v8388
  %v8419 = vsub.f32 %v8077, %v8388
  %v8420 = vsub.f32 %v8082, %v8388
  %v8421 = vsub.f32 %v8087, %v8388
  %v8422 = vsub.f32 %v8092, %v8388
  %v8423 = vsub.f32 %v8097, %v8388
  %v8424 = vsub.f32 %v8102, %v8388
  %v8425 = vsub.f32 %v8107, %v8388
  %v8426 = vsub.f32 %v8112, %v8388
  %v8427 = vsub.f32 %v8117, %v8388
  %v8428 = vsub.f32 %v8122, %v8388
  %v8429 = vsub.f32 %v8127, %v8388
  %v8430 = vsub.f32 %v8132, %v8388
  %v8431 = vsub.f32 %v8137, %v8388
  %v8432 = vsub.f32 %v8142, %v8388
  %v8433 = vsub.f32 %v8147, %v8388
  %v8434 = vsub.f32 %v8152, %v8388
  %v8435 = vsub.f32 %v8157, %v8388
  %v8436 = vsub.f32 %v8162, %v8388
  %v8437 = vsub.f32 %v8167, %v8388
  %v8438 = vsub.f32 %v8172, %v8388
  %v8439 = vsub.f32 %v8177, %v8388
  %v8440 = vsub.f32 %v8182, %v8388
  %v8441 = vsub.f32 %v8187, %v8388
  %v8442 = vsub.f32 %v8192, %v8388
  %v8443 = vsub.f32 %v8197, %v8388
  %v8444 = vsub.f32 %v8202, %v8388
  %v8445 = vsub.f32 %v8207, %v8388
  %v8446 = vsub.f32 %v8212, %v8388
  %v8447 = vsub.f32 %v8217, %v8388
  %v8448 = vsub.f32 %v8222, %v8388
  %v8449 = vsub.f32 %v8227, %v8388
  %v8450 = vsub.f32 %v8232, %v8388
  %v8451 = vsub.f32 %v8237, %v8388
  %v8452 = vsub.f32 %v8242, %v8388
  %v8453 = vmul.f32 %v8389, %v8389
  %v8454 = vmul.f32 %v8390, %v8390
  %v8455 = vmul.f32 %v8391, %v8391
  %v8456 = vmul.f32 %v8392, %v8392
  %v8457 = vmul.f32 %v8393, %v8393
  %v8458 = vmul.f32 %v8394, %v8394
  %v8459 = vmul.f32 %v8395, %v8395
  %v8460 = vmul.f32 %v8396, %v8396
  %v8461 = vmul.f32 %v8397, %v8397
  %v8462 = vmul.f32 %v8398, %v8398
  %v8463 = vmul.f32 %v8399, %v8399
  %v8464 = vmul.f32 %v8400, %v8400
  %v8465 = vmul.f32 %v8401, %v8401
  %v8466 = vmul.f32 %v8402, %v8402
  %v8467 = vmul.f32 %v8403, %v8403
  %v8468 = vmul.f32 %v8404, %v8404
  %v8469 = vmul.f32 %v8405, %v8405
  %v8470 = vmul.f32 %v8406, %v8406
  %v8471 = vmul.f32 %v8407, %v8407
  %v8472 = vmul.f32 %v8408, %v8408
  %v8473 = vmul.f32 %v8409, %v8409
  %v8474 = vmul.f32 %v8410, %v8410
  %v8475 = vmul.f32 %v8411, %v8411
  %v8476 = vmul.f32 %v8412, %v8412
  %v8477 = vmul.f32 %v8413, %v8413
  %v8478 = vmul.f32 %v8414, %v8414
  %v8479 = vmul.f32 %v8415, %v8415
  %v8480 = vmul.f32 %v8416, %v8416
  %v8481 = vmul.f32 %v8417, %v8417
  %v8482 = vmul.f32 %v8418, %v8418
  %v8483 = vmul.f32 %v8419, %v8419
  %v8484 = vmul.f32 %v8420, %v8420
  %v8485 = vmul.f32 %v8421, %v8421
  %v8486 = vmul.f32 %v8422, %v8422
  %v8487 = vmul.f32 %v8423, %v8423
  %v8488 = vmul.f32 %v8424, %v8424
  %v8489 = vmul.f32 %v8425, %v8425
  %v8490 = vmul.f32 %v8426, %v8426
  %v8491 = vmul.f32 %v8427, %v8427
  %v8492 = vmul.f32 %v8428, %v8428
  %v8493 = vmul.f32 %v8429, %v8429
  %v8494 = vmul.f32 %v8430, %v8430
  %v8495 = vmul.f32 %v8431, %v8431
  %v8496 = vmul.f32 %v8432, %v8432
  %v8497 = vmul.f32 %v8433, %v8433
  %v8498 = vmul.f32 %v8434, %v8434
  %v8499 = vmul.f32 %v8435, %v8435
  %v8500 = vmul.f32 %v8436, %v8436
  %v8501 = vmul.f32 %v8437, %v8437
  %v8502 = vmul.f32 %v8438, %v8438
  %v8503 = vmul.f32 %v8439, %v8439
  %v8504 = vmul.f32 %v8440, %v8440
  %v8505 = vmul.f32 %v8441, %v8441
  %v8506 = vmul.f32 %v8442, %v8442
  %v8507 = vmul.f32 %v8443, %v8443
  %v8508 = vmul.f32 %v8444, %v8444
  %v8509 = vmul.f32 %v8445, %v8445
  %v8510 = vmul.f32 %v8446, %v8446
  %v8511 = vmul.f32 %v8447, %v8447
  %v8512 = vmul.f32 %v8448, %v8448
  %v8513 = vmul.f32 %v8449, %v8449
  %v8514 = vmul.f32 %v8450, %v8450
  %v8515 = vmul.f32 %v8451, %v8451
  %v8516 = vmul.f32 %v8452, %v8452
  %8517 = vmatprep.subr.mxu0 0.0
  %8518 = vmatpush1.msra.mxu0 %v8453
  %8519 = vmatprep.subr.mxu0 0.0
  %8520 = vmatpush1.msra.mxu0 %v8454
  %8521 = vmatprep.subr.mxu0 0.0
  %8522 = vmatpush1.msra.mxu0 %v8455
  %8523 = vmatprep.subr.mxu0 0.0
  %8524 = vmatpush1.msra.mxu0 %v8456
  %8525 = vmatprep.subr.mxu0 0.0
  %8526 = vmatpush1.msra.mxu0 %v8457
  %8527 = vmatprep.subr.mxu0 0.0
  %8528 = vmatpush1.msra.mxu0 %v8458
  %8529 = vmatprep.subr.mxu0 0.0
  %8530 = vmatpush1.msra.mxu0 %v8459
  %8531 = vmatprep.subr.mxu0 0.0
  %8532 = vmatpush1.msra.mxu0 %v8460
  %8533 = vmatprep.subr.mxu0 0.0
  %8534 = vmatpush1.msra.mxu0 %v8461
  %8535 = vmatprep.subr.mxu0 0.0
  %8536 = vmatpush1.msra.mxu0 %v8462
  %8537 = vmatprep.subr.mxu0 0.0
  %8538 = vmatpush1.msra.mxu0 %v8463
  %8539 = vmatprep.subr.mxu0 0.0
  %8540 = vmatpush1.msra.mxu0 %v8464
  %8541 = vmatprep.subr.mxu0 0.0
  %8542 = vmatpush1.msra.mxu0 %v8465
  %8543 = vmatprep.subr.mxu0 0.0
  %8544 = vmatpush1.msra.mxu0 %v8466
  %8545 = vmatprep.subr.mxu0 0.0
  %8546 = vmatpush1.msra.mxu0 %v8467
  %8547 = vmatprep.subr.mxu0 0.0
  %8548 = vmatpush1.msra.mxu0 %v8468
  %8549 = vmatprep.subr.mxu0 0.0
  %8550 = vmatpush1.msra.mxu0 %v8469
  %8551 = vmatprep.subr.mxu0 0.0
  %8552 = vmatpush1.msra.mxu0 %v8470
  %8553 = vmatprep.subr.mxu0 0.0
  %8554 = vmatpush1.msra.mxu0 %v8471
  %8555 = vmatprep.subr.mxu0 0.0
  %8556 = vmatpush1.msra.mxu0 %v8472
  %8557 = vmatprep.subr.mxu0 0.0
  %8558 = vmatpush1.msra.mxu0 %v8473
  %8559 = vmatprep.subr.mxu0 0.0
  %8560 = vmatpush1.msra.mxu0 %v8474
  %8561 = vmatprep.subr.mxu0 0.0
  %8562 = vmatpush1.msra.mxu0 %v8475
  %8563 = vmatprep.subr.mxu0 0.0
  %8564 = vmatpush1.msra.mxu0 %v8476
  %8565 = vmatprep.subr.mxu0 0.0
  %8566 = vmatpush1.msra.mxu0 %v8477
  %8567 = vmatprep.subr.mxu0 0.0
  %8568 = vmatpush1.msra.mxu0 %v8478
  %8569 = vmatprep.subr.mxu0 0.0
  %8570 = vmatpush1.msra.mxu0 %v8479
  %8571 = vmatprep.subr.mxu0 0.0
  %8572 = vmatpush1.msra.mxu0 %v8480
  %8573 = vmatprep.subr.mxu0 0.0
  %8574 = vmatpush1.msra.mxu0 %v8481
  %8575 = vmatprep.subr.mxu0 0.0
  %8576 = vmatpush1.msra.mxu0 %v8482
  %8577 = vmatprep.subr.mxu0 0.0
  %8578 = vmatpush1.msra.mxu0 %v8483
  %8579 = vmatprep.subr.mxu0 0.0
  %8580 = vmatpush1.msra.mxu0 %v8484
  %8581 = vmatprep.mubr.f32.mxu0 0.001953125
  %8582 = vmatmul.mubr.f32.gmra.mrb[0].mxu0 0.001953125
  %v8583 = vpop.f32.mrb[0].mxu0
  %v8584 = vadd.f32 1e-05, %v8583
  %v8585 = vpop.f32.mrb[0].mxu0
  %8586 = vdwg.mxu0
  %8587 = vmatprep.subr.mxu0 0.0
  %8588 = vmatpush1.msra.mxu0 %v8485
  %8589 = vmatprep.subr.mxu0 0.0
  %8590 = vmatpush1.msra.mxu0 %v8486
  %8591 = vmatprep.subr.mxu0 0.0
  %8592 = vmatpush1.msra.mxu0 %v8487
  %8593 = vmatprep.subr.mxu0 0.0
  %8594 = vmatpush1.msra.mxu0 %v8488
  %8595 = vmatprep.subr.mxu0 0.0
  %8596 = vmatpush1.msra.mxu0 %v8489
  %8597 = vmatprep.subr.mxu0 0.0
  %8598 = vmatpush1.msra.mxu0 %v8490
  %8599 = vmatprep.subr.mxu0 0.0
  %8600 = vmatpush1.msra.mxu0 %v8491
  %8601 = vmatprep.subr.mxu0 0.0
  %8602 = vmatpush1.msra.mxu0 %v8492
  %8603 = vmatprep.subr.mxu0 0.0
  %8604 = vmatpush1.msra.mxu0 %v8493
  %8605 = vmatprep.subr.mxu0 0.0
  %8606 = vmatpush1.msra.mxu0 %v8494
  %8607 = vmatprep.subr.mxu0 0.0
  %8608 = vmatpush1.msra.mxu0 %v8495
  %8609 = vmatprep.subr.mxu0 0.0
  %8610 = vmatpush1.msra.mxu0 %v8496
  %8611 = vmatprep.subr.mxu0 0.0
  %8612 = vmatpush1.msra.mxu0 %v8497
  %8613 = vmatprep.subr.mxu0 0.0
  %8614 = vmatpush1.msra.mxu0 %v8498
  %8615 = vmatprep.subr.mxu0 0.0
  %8616 = vmatpush1.msra.mxu0 %v8499
  %8617 = vmatprep.subr.mxu0 0.0
  %8618 = vmatpush1.msra.mxu0 %v8500
  %8619 = vmatprep.subr.mxu0 0.0
  %8620 = vmatpush1.msra.mxu0 %v8501
  %8621 = vmatprep.subr.mxu0 0.0
  %8622 = vmatpush1.msra.mxu0 %v8502
  %8623 = vmatprep.subr.mxu0 0.0
  %8624 = vmatpush1.msra.mxu0 %v8503
  %8625 = vmatprep.subr.mxu0 0.0
  %8626 = vmatpush1.msra.mxu0 %v8504
  %8627 = vmatprep.subr.mxu0 0.0
  %8628 = vmatpush1.msra.mxu0 %v8505
  %8629 = vmatprep.subr.mxu0 0.0
  %8630 = vmatpush1.msra.mxu0 %v8506
  %8631 = vmatprep.subr.mxu0 0.0
  %8632 = vmatpush1.msra.mxu0 %v8507
  %8633 = vmatprep.subr.mxu0 0.0
  %8634 = vmatpush1.msra.mxu0 %v8508
  %8635 = vmatprep.subr.mxu0 0.0
  %8636 = vmatpush1.msra.mxu0 %v8509
  %8637 = vmatprep.subr.mxu0 0.0
  %8638 = vmatpush1.msra.mxu0 %v8510
  %8639 = vmatprep.subr.mxu0 0.0
  %8640 = vmatpush1.msra.mxu0 %v8511
  %8641 = vmatprep.subr.mxu0 0.0
  %8642 = vmatpush1.msra.mxu0 %v8512
  %8643 = vmatprep.subr.mxu0 0.0
  %8644 = vmatpush1.msra.mxu0 %v8513
  %8645 = vmatprep.subr.mxu0 0.0
  %8646 = vmatpush1.msra.mxu0 %v8514
  %8647 = vmatprep.subr.mxu0 0.0
  %8648 = vmatpush1.msra.mxu0 %v8515
  %8649 = vmatprep.subr.mxu0 0.0
  %8650 = vmatpush1.msra.mxu0 %v8516
  %8651 = vmatprep.mubr.f32.mxu0 0.001953125
  %8652 = vmatmul.mubr.f32.gmra.mrb[0].mxu0 0.001953125
  %v8653 = vpop.f32.mrb[0].mxu0
  %v8654 = vadd.f32 %v8584, %v8653
  %v8655 = vpop.f32.mrb[0].mxu0
  %8656 = vdwg.mxu0
  %v8657 = vrsqrt.pop %v8654
  %v8658 = vlaneseq
  %v8659 = vshrl.u32 %v8658, 7
  %v8660 = vsub.s32 0, %v8659
  %v8661 = vrot.slane %v8657, %v8660
  %v8662 = vmul.f32 %v8389, %v8661
  %v8663 = vmul.f32 %v8390, %v8661
  %v8664 = vmul.f32 %v8391, %v8661
  %v8665 = vmul.f32 %v8392, %v8661
  %v8666 = vmul.f32 %v8393, %v8661
  %v8667 = vmul.f32 %v8394, %v8661
  %v8668 = vmul.f32 %v8395, %v8661
  %v8669 = vmul.f32 %v8396, %v8661
  %v8670 = vmul.f32 %v8397, %v8661
  %v8671 = vmul.f32 %v8398, %v8661
  %v8672 = vmul.f32 %v8399, %v8661
  %v8673 = vmul.f32 %v8400, %v8661
  %v8674 = vmul.f32 %v8401, %v8661
  %v8675 = vmul.f32 %v8402, %v8661
  %v8676 = vmul.f32 %v8403, %v8661
  %v8677 = vmul.f32 %v8404, %v8661
  %v8678 = vmul.f32 %v8405, %v8661
  %v8679 = vmul.f32 %v8406, %v8661
  %v8680 = vmul.f32 %v8407, %v8661
  %v8681 = vmul.f32 %v8408, %v8661
  %v8682 = vmul.f32 %v8409, %v8661
  %v8683 = vmul.f32 %v8410, %v8661
  %v8684 = vmul.f32 %v8411, %v8661
  %v8685 = vmul.f32 %v8412, %v8661
  %v8686 = vmul.f32 %v8413, %v8661
  %v8687 = vmul.f32 %v8414, %v8661
  %v8688 = vmul.f32 %v8415, %v8661
  %v8689 = vmul.f32 %v8416, %v8661
  %v8690 = vmul.f32 %v8417, %v8661
  %v8691 = vmul.f32 %v8418, %v8661
  %v8692 = vmul.f32 %v8419, %v8661
  %v8693 = vmul.f32 %v8420, %v8661
  %v8694 = vmul.f32 %v8421, %v8661
  %v8695 = vmul.f32 %v8422, %v8661
  %v8696 = vmul.f32 %v8423, %v8661
  %v8697 = vmul.f32 %v8424, %v8661
  %v8698 = vmul.f32 %v8425, %v8661
  %v8699 = vmul.f32 %v8426, %v8661
  %v8700 = vmul.f32 %v8427, %v8661
  %v8701 = vmul.f32 %v8428, %v8661
  %v8702 = vmul.f32 %v8429, %v8661
  %v8703 = vmul.f32 %v8430, %v8661
  %v8704 = vmul.f32 %v8431, %v8661
  %v8705 = vmul.f32 %v8432, %v8661
  %v8706 = vmul.f32 %v8433, %v8661
  %v8707 = vmul.f32 %v8434, %v8661
  %v8708 = vmul.f32 %v8435, %v8661
  %v8709 = vmul.f32 %v8436, %v8661
  %v8710 = vmul.f32 %v8437, %v8661
  %v8711 = vmul.f32 %v8438, %v8661
  %v8712 = vmul.f32 %v8439, %v8661
  %v8713 = vmul.f32 %v8440, %v8661
  %v8714 = vmul.f32 %v8441, %v8661
  %v8715 = vmul.f32 %v8442, %v8661
  %v8716 = vmul.f32 %v8443, %v8661
  %v8717 = vmul.f32 %v8444, %v8661
  %v8718 = vmul.f32 %v8445, %v8661
  %v8719 = vmul.f32 %v8446, %v8661
  %v8720 = vmul.f32 %v8447, %v8661
  %v8721 = vmul.f32 %v8448, %v8661
  %v8722 = vmul.f32 %v8449, %v8661
  %v8723 = vmul.f32 %v8450, %v8661
  %v8724 = vmul.f32 %v8451, %v8661
  %v8725 = vmul.f32 %v8452, %v8661
  %v8726 = vld [vmem:[%s5] sm:$0x1]
  %v8728 = vlaneseq
  %v8729 = vshrl.u32 %v8728, 7
  %v8730 = vsub.s32 0, %v8729
  %v8731 = vrot.slane %v8726, %v8730
  %v8733 = vmul.f32 %v8662, %v8731
  %v8734 = vmul.f32 %v8663, %v8731
  %v8735 = vmul.f32 %v8664, %v8731
  %v8736 = vmul.f32 %v8665, %v8731
  %v8737 = vmul.f32 %v8666, %v8731
  %v8738 = vmul.f32 %v8667, %v8731
  %v8739 = vmul.f32 %v8668, %v8731
  %v8740 = vmul.f32 %v8669, %v8731
  %v8741 = vmul.f32 %v8670, %v8731
  %v8742 = vmul.f32 %v8671, %v8731
  %v8743 = vmul.f32 %v8672, %v8731
  %v8744 = vmul.f32 %v8673, %v8731
  %v8745 = vmul.f32 %v8674, %v8731
  %v8746 = vmul.f32 %v8675, %v8731
  %v8747 = vmul.f32 %v8676, %v8731
  %v8748 = vmul.f32 %v8677, %v8731
  %v8749 = vmul.f32 %v8678, %v8731
  %v8750 = vmul.f32 %v8679, %v8731
  %v8751 = vmul.f32 %v8680, %v8731
  %v8752 = vmul.f32 %v8681, %v8731
  %v8753 = vmul.f32 %v8682, %v8731
  %v8754 = vmul.f32 %v8683, %v8731
  %v8755 = vmul.f32 %v8684, %v8731
  %v8756 = vmul.f32 %v8685, %v8731
  %v8757 = vmul.f32 %v8686, %v8731
  %v8758 = vmul.f32 %v8687, %v8731
  %v8759 = vmul.f32 %v8688, %v8731
  %v8760 = vmul.f32 %v8689, %v8731
  %v8761 = vmul.f32 %v8690, %v8731
  %v8762 = vmul.f32 %v8691, %v8731
  %v8763 = vmul.f32 %v8692, %v8731
  %v8764 = vmul.f32 %v8693, %v8731
  %v8765 = vmul.f32 %v8694, %v8731
  %v8766 = vmul.f32 %v8695, %v8731
  %v8767 = vmul.f32 %v8696, %v8731
  %v8768 = vmul.f32 %v8697, %v8731
  %v8769 = vmul.f32 %v8698, %v8731
  %v8770 = vmul.f32 %v8699, %v8731
  %v8771 = vmul.f32 %v8700, %v8731
  %v8772 = vmul.f32 %v8701, %v8731
  %v8773 = vmul.f32 %v8702, %v8731
  %v8774 = vmul.f32 %v8703, %v8731
  %v8775 = vmul.f32 %v8704, %v8731
  %v8776 = vmul.f32 %v8705, %v8731
  %v8777 = vmul.f32 %v8706, %v8731
  %v8778 = vmul.f32 %v8707, %v8731
  %v8779 = vmul.f32 %v8708, %v8731
  %v8780 = vmul.f32 %v8709, %v8731
  %v8781 = vmul.f32 %v8710, %v8731
  %v8782 = vmul.f32 %v8711, %v8731
  %v8783 = vmul.f32 %v8712, %v8731
  %v8784 = vmul.f32 %v8713, %v8731
  %v8785 = vmul.f32 %v8714, %v8731
  %v8786 = vmul.f32 %v8715, %v8731
  %v8787 = vmul.f32 %v8716, %v8731
  %v8788 = vmul.f32 %v8717, %v8731
  %v8789 = vmul.f32 %v8718, %v8731
  %v8790 = vmul.f32 %v8719, %v8731
  %v8791 = vmul.f32 %v8720, %v8731
  %v8792 = vmul.f32 %v8721, %v8731
  %v8793 = vmul.f32 %v8722, %v8731
  %v8794 = vmul.f32 %v8723, %v8731
  %v8795 = vmul.f32 %v8724, %v8731
  %v8796 = vmul.f32 %v8725, %v8731
  %v8797 = vld [vmem:[%s6] sm:$0x1]
  %v8799 = vlaneseq
  %v8800 = vshrl.u32 %v8799, 7
  %v8801 = vsub.s32 0, %v8800
  %v8802 = vrot.slane %v8797, %v8801
  %v8804 = vadd.f32 %v8733, %v8802
  %v8805 = vadd.f32 %v8734, %v8802
  %v8806 = vadd.f32 %v8735, %v8802
  %v8807 = vadd.f32 %v8736, %v8802
  %v8808 = vadd.f32 %v8737, %v8802
  %v8809 = vadd.f32 %v8738, %v8802
  %v8810 = vadd.f32 %v8739, %v8802
  %v8811 = vadd.f32 %v8740, %v8802
  %v8812 = vadd.f32 %v8741, %v8802
  %v8813 = vadd.f32 %v8742, %v8802
  %v8814 = vadd.f32 %v8743, %v8802
  %v8815 = vadd.f32 %v8744, %v8802
  %v8816 = vadd.f32 %v8745, %v8802
  %v8817 = vadd.f32 %v8746, %v8802
  %v8818 = vadd.f32 %v8747, %v8802
  %v8819 = vadd.f32 %v8748, %v8802
  %v8820 = vadd.f32 %v8749, %v8802
  %v8821 = vadd.f32 %v8750, %v8802
  %v8822 = vadd.f32 %v8751, %v8802
  %v8823 = vadd.f32 %v8752, %v8802
  %v8824 = vadd.f32 %v8753, %v8802
  %v8825 = vadd.f32 %v8754, %v8802
  %v8826 = vadd.f32 %v8755, %v8802
  %v8827 = vadd.f32 %v8756, %v8802
  %v8828 = vadd.f32 %v8757, %v8802
  %v8829 = vadd.f32 %v8758, %v8802
  %v8830 = vadd.f32 %v8759, %v8802
  %v8831 = vadd.f32 %v8760, %v8802
  %v8832 = vadd.f32 %v8761, %v8802
  %v8833 = vadd.f32 %v8762, %v8802
  %v8834 = vadd.f32 %v8763, %v8802
  %v8835 = vadd.f32 %v8764, %v8802
  %v8836 = vadd.f32 %v8765, %v8802
  %v8837 = vadd.f32 %v8766, %v8802
  %v8838 = vadd.f32 %v8767, %v8802
  %v8839 = vadd.f32 %v8768, %v8802
  %v8840 = vadd.f32 %v8769, %v8802
  %v8841 = vadd.f32 %v8770, %v8802
  %v8842 = vadd.f32 %v8771, %v8802
  %v8843 = vadd.f32 %v8772, %v8802
  %v8844 = vadd.f32 %v8773, %v8802
  %v8845 = vadd.f32 %v8774, %v8802
  %v8846 = vadd.f32 %v8775, %v8802
  %v8847 = vadd.f32 %v8776, %v8802
  %v8848 = vadd.f32 %v8777, %v8802
  %v8849 = vadd.f32 %v8778, %v8802
  %v8850 = vadd.f32 %v8779, %v8802
  %v8851 = vadd.f32 %v8780, %v8802
  %v8852 = vadd.f32 %v8781, %v8802
  %v8853 = vadd.f32 %v8782, %v8802
  %v8854 = vadd.f32 %v8783, %v8802
  %v8855 = vadd.f32 %v8784, %v8802
  %v8856 = vadd.f32 %v8785, %v8802
  %v8857 = vadd.f32 %v8786, %v8802
  %v8858 = vadd.f32 %v8787, %v8802
  %v8859 = vadd.f32 %v8788, %v8802
  %v8860 = vadd.f32 %v8789, %v8802
  %v8861 = vadd.f32 %v8790, %v8802
  %v8862 = vadd.f32 %v8791, %v8802
  %v8863 = vadd.f32 %v8792, %v8802
  %v8864 = vadd.f32 %v8793, %v8802
  %v8865 = vadd.f32 %v8794, %v8802
  %v8866 = vadd.f32 %v8795, %v8802
  %v8867 = vadd.f32 %v8796, %v8802
  %vm8868 = vcmp.ge.f32.partialorder %v8804, 0.0
  %vm8869 = vcmp.ge.f32.partialorder %v8805, 0.0
  %vm8870 = vcmp.ge.f32.partialorder %v8806, 0.0
  %vm8871 = vcmp.ge.f32.partialorder %v8807, 0.0
  %vm8872 = vcmp.ge.f32.partialorder %v8808, 0.0
  %vm8873 = vcmp.ge.f32.partialorder %v8809, 0.0
  %vm8874 = vcmp.ge.f32.partialorder %v8810, 0.0
  %vm8875 = vcmp.ge.f32.partialorder %v8811, 0.0
  %vm8876 = vcmp.ge.f32.partialorder %v8812, 0.0
  %vm8877 = vcmp.ge.f32.partialorder %v8813, 0.0
  %vm8878 = vcmp.ge.f32.partialorder %v8814, 0.0
  %vm8879 = vcmp.ge.f32.partialorder %v8815, 0.0
  %vm8880 = vcmp.ge.f32.partialorder %v8816, 0.0
  %vm8881 = vcmp.ge.f32.partialorder %v8817, 0.0
  %vm8882 = vcmp.ge.f32.partialorder %v8818, 0.0
  %vm8883 = vcmp.ge.f32.partialorder %v8819, 0.0
  %vm8884 = vcmp.ge.f32.partialorder %v8820, 0.0
  %vm8885 = vcmp.ge.f32.partialorder %v8821, 0.0
  %vm8886 = vcmp.ge.f32.partialorder %v8822, 0.0
  %vm8887 = vcmp.ge.f32.partialorder %v8823, 0.0
  %vm8888 = vcmp.ge.f32.partialorder %v8824, 0.0
  %vm8889 = vcmp.ge.f32.partialorder %v8825, 0.0
  %vm8890 = vcmp.ge.f32.partialorder %v8826, 0.0
  %vm8891 = vcmp.ge.f32.partialorder %v8827, 0.0
  %vm8892 = vcmp.ge.f32.partialorder %v8828, 0.0
  %vm8893 = vcmp.ge.f32.partialorder %v8829, 0.0
  %vm8894 = vcmp.ge.f32.partialorder %v8830, 0.0
  %vm8895 = vcmp.ge.f32.partialorder %v8831, 0.0
  %vm8896 = vcmp.ge.f32.partialorder %v8832, 0.0
  %vm8897 = vcmp.ge.f32.partialorder %v8833, 0.0
  %vm8898 = vcmp.ge.f32.partialorder %v8834, 0.0
  %vm8899 = vcmp.ge.f32.partialorder %v8835, 0.0
  %vm8900 = vcmp.ge.f32.partialorder %v8836, 0.0
  %vm8901 = vcmp.ge.f32.partialorder %v8837, 0.0
  %vm8902 = vcmp.ge.f32.partialorder %v8838, 0.0
  %vm8903 = vcmp.ge.f32.partialorder %v8839, 0.0
  %vm8904 = vcmp.ge.f32.partialorder %v8840, 0.0
  %vm8905 = vcmp.ge.f32.partialorder %v8841, 0.0
  %vm8906 = vcmp.ge.f32.partialorder %v8842, 0.0
  %vm8907 = vcmp.ge.f32.partialorder %v8843, 0.0
  %vm8908 = vcmp.ge.f32.partialorder %v8844, 0.0
  %vm8909 = vcmp.ge.f32.partialorder %v8845, 0.0
  %vm8910 = vcmp.ge.f32.partialorder %v8846, 0.0
  %vm8911 = vcmp.ge.f32.partialorder %v8847, 0.0
  %vm8912 = vcmp.ge.f32.partialorder %v8848, 0.0
  %vm8913 = vcmp.ge.f32.partialorder %v8849, 0.0
  %vm8914 = vcmp.ge.f32.partialorder %v8850, 0.0
  %vm8915 = vcmp.ge.f32.partialorder %v8851, 0.0
  %vm8916 = vcmp.ge.f32.partialorder %v8852, 0.0
  %vm8917 = vcmp.ge.f32.partialorder %v8853, 0.0
  %vm8918 = vcmp.ge.f32.partialorder %v8854, 0.0
  %vm8919 = vcmp.ge.f32.partialorder %v8855, 0.0
  %vm8920 = vcmp.ge.f32.partialorder %v8856, 0.0
  %vm8921 = vcmp.ge.f32.partialorder %v8857, 0.0
  %vm8922 = vcmp.ge.f32.partialorder %v8858, 0.0
  %vm8923 = vcmp.ge.f32.partialorder %v8859, 0.0
  %vm8924 = vcmp.ge.f32.partialorder %v8860, 0.0
  %vm8925 = vcmp.ge.f32.partialorder %v8861, 0.0
  %vm8926 = vcmp.ge.f32.partialorder %v8862, 0.0
  %vm8927 = vcmp.ge.f32.partialorder %v8863, 0.0
  %vm8928 = vcmp.ge.f32.partialorder %v8864, 0.0
  %vm8929 = vcmp.ge.f32.partialorder %v8865, 0.0
  %vm8930 = vcmp.ge.f32.partialorder %v8866, 0.0
  %vm8931 = vcmp.ge.f32.partialorder %v8867, 0.0
  %v8932 = vmul.f32 %v8804, 0.2
  %v8933 = vmul.f32 %v8805, 0.2
  %v8934 = vmul.f32 %v8806, 0.2
  %v8935 = vmul.f32 %v8807, 0.2
  %v8936 = vmul.f32 %v8808, 0.2
  %v8937 = vmul.f32 %v8809, 0.2
  %v8938 = vmul.f32 %v8810, 0.2
  %v8939 = vmul.f32 %v8811, 0.2
  %v8940 = vmul.f32 %v8812, 0.2
  %v8941 = vmul.f32 %v8813, 0.2
  %v8942 = vmul.f32 %v8814, 0.2
  %v8943 = vmul.f32 %v8815, 0.2
  %v8944 = vmul.f32 %v8816, 0.2
  %v8945 = vmul.f32 %v8817, 0.2
  %v8946 = vmul.f32 %v8818, 0.2
  %v8947 = vmul.f32 %v8819, 0.2
  %v8948 = vmul.f32 %v8820, 0.2
  %v8949 = vmul.f32 %v8821, 0.2
  %v8950 = vmul.f32 %v8822, 0.2
  %v8951 = vmul.f32 %v8823, 0.2
  %v8952 = vmul.f32 %v8824, 0.2
  %v8953 = vmul.f32 %v8825, 0.2
  %v8954 = vmul.f32 %v8826, 0.2
  %v8955 = vmul.f32 %v8827, 0.2
  %v8956 = vmul.f32 %v8828, 0.2
  %v8957 = vmul.f32 %v8829, 0.2
  %v8958 = vmul.f32 %v8830, 0.2
  %v8959 = vmul.f32 %v8831, 0.2
  %v8960 = vmul.f32 %v8832, 0.2
  %v8961 = vmul.f32 %v8833, 0.2
  %v8962 = vmul.f32 %v8834, 0.2
  %v8963 = vmul.f32 %v8835, 0.2
  %v8964 = vmul.f32 %v8836, 0.2
  %v8965 = vmul.f32 %v8837, 0.2
  %v8966 = vmul.f32 %v8838, 0.2
  %v8967 = vmul.f32 %v8839, 0.2
  %v8968 = vmul.f32 %v8840, 0.2
  %v8969 = vmul.f32 %v8841, 0.2
  %v8970 = vmul.f32 %v8842, 0.2
  %v8971 = vmul.f32 %v8843, 0.2
  %v8972 = vmul.f32 %v8844, 0.2
  %v8973 = vmul.f32 %v8845, 0.2
  %v8974 = vmul.f32 %v8846, 0.2
  %v8975 = vmul.f32 %v8847, 0.2
  %v8976 = vmul.f32 %v8848, 0.2
  %v8977 = vmul.f32 %v8849, 0.2
  %v8978 = vmul.f32 %v8850, 0.2
  %v8979 = vmul.f32 %v8851, 0.2
  %v8980 = vmul.f32 %v8852, 0.2
  %v8981 = vmul.f32 %v8853, 0.2
  %v8982 = vmul.f32 %v8854, 0.2
  %v8983 = vmul.f32 %v8855, 0.2
  %v8984 = vmul.f32 %v8856, 0.2
  %v8985 = vmul.f32 %v8857, 0.2
  %v8986 = vmul.f32 %v8858, 0.2
  %v8987 = vmul.f32 %v8859, 0.2
  %v8988 = vmul.f32 %v8860, 0.2
  %v8989 = vmul.f32 %v8861, 0.2
  %v8990 = vmul.f32 %v8862, 0.2
  %v8991 = vmul.f32 %v8863, 0.2
  %v8992 = vmul.f32 %v8864, 0.2
  %v8993 = vmul.f32 %v8865, 0.2
  %v8994 = vmul.f32 %v8866, 0.2
  %v8995 = vmul.f32 %v8867, 0.2
  %v8996 = vsel %vm8868, %v8804, %v8932
  %v8997 = vsel %vm8869, %v8805, %v8933
  %v8998 = vsel %vm8870, %v8806, %v8934
  %v8999 = vsel %vm8871, %v8807, %v8935
  %v9000 = vsel %vm8872, %v8808, %v8936
  %v9001 = vsel %vm8873, %v8809, %v8937
  %v9002 = vsel %vm8874, %v8810, %v8938
  %v9003 = vsel %vm8875, %v8811, %v8939
  %v9004 = vsel %vm8876, %v8812, %v8940
  %v9005 = vsel %vm8877, %v8813, %v8941
  %v9006 = vsel %vm8878, %v8814, %v8942
  %v9007 = vsel %vm8879, %v8815, %v8943
  %v9008 = vsel %vm8880, %v8816, %v8944
  %v9009 = vsel %vm8881, %v8817, %v8945
  %v9010 = vsel %vm8882, %v8818, %v8946
  %v9011 = vsel %vm8883, %v8819, %v8947
  %v9012 = vsel %vm8884, %v8820, %v8948
  %v9013 = vsel %vm8885, %v8821, %v8949
  %v9014 = vsel %vm8886, %v8822, %v8950
  %v9015 = vsel %vm8887, %v8823, %v8951
  %v9016 = vsel %vm8888, %v8824, %v8952
  %v9017 = vsel %vm8889, %v8825, %v8953
  %v9018 = vsel %vm8890, %v8826, %v8954
  %v9019 = vsel %vm8891, %v8827, %v8955
  %v9020 = vsel %vm8892, %v8828, %v8956
  %v9021 = vsel %vm8893, %v8829, %v8957
  %v9022 = vsel %vm8894, %v8830, %v8958
  %v9023 = vsel %vm8895, %v8831, %v8959
  %v9024 = vsel %vm8896, %v8832, %v8960
  %v9025 = vsel %vm8897, %v8833, %v8961
  %v9026 = vsel %vm8898, %v8834, %v8962
  %v9027 = vsel %vm8899, %v8835, %v8963
  %v9028 = vsel %vm8900, %v8836, %v8964
  %v9029 = vsel %vm8901, %v8837, %v8965
  %v9030 = vsel %vm8902, %v8838, %v8966
  %v9031 = vsel %vm8903, %v8839, %v8967
  %v9032 = vsel %vm8904, %v8840, %v8968
  %v9033 = vsel %vm8905, %v8841, %v8969
  %v9034 = vsel %vm8906, %v8842, %v8970
  %v9035 = vsel %vm8907, %v8843, %v8971
  %v9036 = vsel %vm8908, %v8844, %v8972
  %v9037 = vsel %vm8909, %v8845, %v8973
  %v9038 = vsel %vm8910, %v8846, %v8974
  %v9039 = vsel %vm8911, %v8847, %v8975
  %v9040 = vsel %vm8912, %v8848, %v8976
  %v9041 = vsel %vm8913, %v8849, %v8977
  %v9042 = vsel %vm8914, %v8850, %v8978
  %v9043 = vsel %vm8915, %v8851, %v8979
  %v9044 = vsel %vm8916, %v8852, %v8980
  %v9045 = vsel %vm8917, %v8853, %v8981
  %v9046 = vsel %vm8918, %v8854, %v8982
  %v9047 = vsel %vm8919, %v8855, %v8983
  %v9048 = vsel %vm8920, %v8856, %v8984
  %v9049 = vsel %vm8921, %v8857, %v8985
  %v9050 = vsel %vm8922, %v8858, %v8986
  %v9051 = vsel %vm8923, %v8859, %v8987
  %v9052 = vsel %vm8924, %v8860, %v8988
  %v9053 = vsel %vm8925, %v8861, %v8989
  %v9054 = vsel %vm8926, %v8862, %v8990
  %v9055 = vsel %vm8927, %v8863, %v8991
  %v9056 = vsel %vm8928, %v8864, %v8992
  %v9057 = vsel %vm8929, %v8865, %v8993
  %v9058 = vsel %vm8930, %v8866, %v8994
  %v9059 = vsel %vm8931, %v8867, %v8995
  %v9060 = vsel %vm273, %v8996, -inf
  %v9061 = vsel %vm273, %v8997, -inf
  %v9062 = vsel %vm273, %v8998, -inf
  %v9063 = vmax.f32 %v9060, %v9062
  %v9064 = vsel %vm273, %v8999, -inf
  %v9065 = vmax.f32 %v9061, %v9064
  %v9066 = vsel %vm273, %v9000, -inf
  %v9067 = vmax.f32 %v9063, %v9066
  %v9068 = vsel %vm273, %v9001, -inf
  %v9069 = vmax.f32 %v9065, %v9068
  %v9070 = vsel %vm273, %v9002, -inf
  %v9071 = vmax.f32 %v9067, %v9070
  %v9072 = vsel %vm273, %v9003, -inf
  %v9073 = vmax.f32 %v9069, %v9072
  %v9074 = vsel %vm273, %v9004, -inf
  %v9075 = vmax.f32 %v9071, %v9074
  %v9076 = vsel %vm273, %v9005, -inf
  %v9077 = vmax.f32 %v9073, %v9076
  %v9078 = vsel %vm273, %v9006, -inf
  %v9079 = vmax.f32 %v9075, %v9078
  %v9080 = vsel %vm273, %v9007, -inf
  %v9081 = vmax.f32 %v9077, %v9080
  %v9082 = vsel %vm273, %v9008, -inf
  %v9083 = vmax.f32 %v9079, %v9082
  %v9084 = vsel %vm273, %v9009, -inf
  %v9085 = vmax.f32 %v9081, %v9084
  %v9086 = vsel %vm273, %v9010, -inf
  %v9087 = vmax.f32 %v9083, %v9086
  %v9088 = vsel %vm273, %v9011, -inf
  %v9089 = vmax.f32 %v9085, %v9088
  %v9090 = vsel %vm273, %v9012, -inf
  %v9091 = vmax.f32 %v9087, %v9090
  %v9092 = vsel %vm273, %v9013, -inf
  %v9093 = vmax.f32 %v9089, %v9092
  %v9094 = vsel %vm273, %v9014, -inf
  %v9095 = vmax.f32 %v9091, %v9094
  %v9096 = vsel %vm273, %v9015, -inf
  %v9097 = vmax.f32 %v9093, %v9096
  %v9098 = vsel %vm273, %v9016, -inf
  %v9099 = vmax.f32 %v9095, %v9098
  %v9100 = vsel %vm273, %v9017, -inf
  %v9101 = vmax.f32 %v9097, %v9100
  %v9102 = vsel %vm273, %v9018, -inf
  %v9103 = vmax.f32 %v9099, %v9102
  %v9104 = vsel %vm273, %v9019, -inf
  %v9105 = vmax.f32 %v9101, %v9104
  %v9106 = vsel %vm273, %v9020, -inf
  %v9107 = vmax.f32 %v9103, %v9106
  %v9108 = vsel %vm273, %v9021, -inf
  %v9109 = vmax.f32 %v9105, %v9108
  %v9110 = vsel %vm273, %v9022, -inf
  %v9111 = vmax.f32 %v9107, %v9110
  %v9112 = vsel %vm273, %v9023, -inf
  %v9113 = vmax.f32 %v9109, %v9112
  %v9114 = vsel %vm273, %v9024, -inf
  %v9115 = vmax.f32 %v9111, %v9114
  %v9116 = vsel %vm273, %v9025, -inf
  %v9117 = vmax.f32 %v9113, %v9116
  %v9118 = vsel %vm273, %v9026, -inf
  %v9119 = vmax.f32 %v9115, %v9118
  %v9120 = vsel %vm273, %v9027, -inf
  %v9121 = vmax.f32 %v9117, %v9120
  %v9122 = vmax.f32 %v9119, %v9121
  %v9123 = vrot.slane %v9122, 4
  %v9124 = vmax.f32 %v9122, %v9123
  %v9125 = vrot.slane %v9124, 2
  %v9126 = vmax.f32 %v9124, %v9125
  %v9127 = vrot.slane %v9126, 1
  %v9128 = vmax.f32 %v9126, %v9127
  %v9129 = vsel %vm273, %v9028, -inf
  %v9130 = vsel %vm273, %v9029, -inf
  %v9131 = vsel %vm273, %v9030, -inf
  %v9132 = vmax.f32 %v9129, %v9131
  %v9133 = vsel %vm273, %v9031, -inf
  %v9134 = vmax.f32 %v9130, %v9133
  %v9135 = vsel %vm273, %v9032, -inf
  %v9136 = vmax.f32 %v9132, %v9135
  %v9137 = vsel %vm273, %v9033, -inf
  %v9138 = vmax.f32 %v9134, %v9137
  %v9139 = vsel %vm273, %v9034, -inf
  %v9140 = vmax.f32 %v9136, %v9139
  %v9141 = vsel %vm273, %v9035, -inf
  %v9142 = vmax.f32 %v9138, %v9141
  %v9143 = vsel %vm273, %v9036, -inf
  %v9144 = vmax.f32 %v9140, %v9143
  %v9145 = vsel %vm273, %v9037, -inf
  %v9146 = vmax.f32 %v9142, %v9145
  %v9147 = vsel %vm273, %v9038, -inf
  %v9148 = vmax.f32 %v9144, %v9147
  %v9149 = vsel %vm273, %v9039, -inf
  %v9150 = vmax.f32 %v9146, %v9149
  %v9151 = vsel %vm273, %v9040, -inf
  %v9152 = vmax.f32 %v9148, %v9151
  %v9153 = vsel %vm273, %v9041, -inf
  %v9154 = vmax.f32 %v9150, %v9153
  %v9155 = vsel %vm273, %v9042, -inf
  %v9156 = vmax.f32 %v9152, %v9155
  %v9157 = vsel %vm273, %v9043, -inf
  %v9158 = vmax.f32 %v9154, %v9157
  %v9159 = vsel %vm273, %v9044, -inf
  %v9160 = vmax.f32 %v9156, %v9159
  %v9161 = vsel %vm273, %v9045, -inf
  %v9162 = vmax.f32 %v9158, %v9161
  %v9163 = vsel %vm273, %v9046, -inf
  %v9164 = vmax.f32 %v9160, %v9163
  %v9165 = vsel %vm273, %v9047, -inf
  %v9166 = vmax.f32 %v9162, %v9165
  %v9167 = vsel %vm273, %v9048, -inf
  %v9168 = vmax.f32 %v9164, %v9167
  %v9169 = vsel %vm273, %v9049, -inf
  %v9170 = vmax.f32 %v9166, %v9169
  %v9171 = vsel %vm273, %v9050, -inf
  %v9172 = vmax.f32 %v9168, %v9171
  %v9173 = vsel %vm273, %v9051, -inf
  %v9174 = vmax.f32 %v9170, %v9173
  %v9175 = vsel %vm273, %v9052, -inf
  %v9176 = vmax.f32 %v9172, %v9175
  %v9177 = vsel %vm273, %v9053, -inf
  %v9178 = vmax.f32 %v9174, %v9177
  %v9179 = vsel %vm273, %v9054, -inf
  %v9180 = vmax.f32 %v9176, %v9179
  %v9181 = vsel %vm273, %v9055, -inf
  %v9182 = vmax.f32 %v9178, %v9181
  %v9183 = vsel %vm273, %v9056, -inf
  %v9184 = vmax.f32 %v9180, %v9183
  %v9185 = vsel %vm273, %v9057, -inf
  %v9186 = vmax.f32 %v9182, %v9185
  %v9187 = vsel %vm273, %v9058, -inf
  %v9188 = vmax.f32 %v9184, %v9187
  %v9189 = vsel %vm273, %v9059, -inf
  %v9190 = vmax.f32 %v9186, %v9189
  %v9191 = vmax.f32 %v9188, %v9190
  %v9192 = vrot.slane %v9191, 4
  %v9193 = vmax.f32 %v9191, %v9192
  %v9194 = vrot.slane %v9193, 2
  %v9195 = vmax.f32 %v9193, %v9194
  %v9196 = vrot.slane %v9195, 1
  %v9197 = vmax.f32 %v9195, %v9196
  %v9198 = vld [vmem:[%s7] sm:$0xff]
  %v9199 = vld [vmem:[%s7 + $0x8] sm:$0xff]
  %v9200 = vld [vmem:[#allocation6] sm:$0x1]
  %v9202 = vlaneseq
  %v9203 = vshrl.u32 %v9202, 7
  %v9204 = vsub.s32 0, %v9203
  %v9205 = vrot.slane %v9200, %v9204
  %vm9209 = vcmask 1041409
  %v9210 = vsel %vm9209, %v9197, %v9128
  %v9211 = vsel %vm273, %v9210, 0
  %9213 = vmatprep.subr.mxu0 0.0
  %9214 = vmatpush1.msra.mxu0 %v9198
  %9215 = vmatprep.subr.mxu0 0.0
  %9216 = vmatpush1.msra.mxu0 %v9199
  %9217 = vmatprep.subr.mxu0 0.0
  %9218 = vmatpush1.msra.mxu0 0.0
  %9219 = vmatprep.subr.mxu0 0.0
  %9220 = vmatpush1.msra.mxu0 0.0
  %9221 = vmatprep.subr.mxu0 0.0
  %9222 = vmatpush1.msra.mxu0 0.0
  %9223 = vmatprep.subr.mxu0 0.0
  %9224 = vmatpush1.msra.mxu0 0.0
  %9225 = vmatprep.subr.mxu0 0.0
  %9226 = vmatpush1.msra.mxu0 0.0
  %9227 = vmatprep.subr.mxu0 0.0
  %9228 = vmatpush1.msra.mxu0 0.0
  %9229 = vmatprep.subr.mxu0 0.0
  %9230 = vmatpush1.msra.mxu0 0.0
  %9231 = vmatprep.subr.mxu0 0.0
  %9232 = vmatpush1.msra.mxu0 0.0
  %9233 = vmatprep.subr.mxu0 0.0
  %9234 = vmatpush1.msra.mxu0 0.0
  %9235 = vmatprep.subr.mxu0 0.0
  %9236 = vmatpush1.msra.mxu0 0.0
  %9237 = vmatprep.subr.mxu0 0.0
  %9238 = vmatpush1.msra.mxu0 0.0
  %9239 = vmatprep.subr.mxu0 0.0
  %9240 = vmatpush1.msra.mxu0 0.0
  %9241 = vmatprep.subr.mxu0 0.0
  %9242 = vmatpush1.msra.mxu0 0.0
  %9243 = vmatprep.subr.mxu0 0.0
  %9244 = vmatpush1.msra.mxu0 0.0
  %9245 = vmatprep.subr.mxu0 0.0
  %9246 = vmatpush1.msra.mxu0 0.0
  %9247 = vmatprep.subr.mxu0 0.0
  %9248 = vmatpush1.msra.mxu0 0.0
  %9249 = vmatprep.subr.mxu0 0.0
  %9250 = vmatpush1.msra.mxu0 0.0
  %9251 = vmatprep.subr.mxu0 0.0
  %9252 = vmatpush1.msra.mxu0 0.0
  %9253 = vmatprep.subr.mxu0 0.0
  %9254 = vmatpush1.msra.mxu0 0.0
  %9255 = vmatprep.subr.mxu0 0.0
  %9256 = vmatpush1.msra.mxu0 0.0
  %9257 = vmatprep.subr.mxu0 0.0
  %9258 = vmatpush1.msra.mxu0 0.0
  %9259 = vmatprep.subr.mxu0 0.0
  %9260 = vmatpush1.msra.mxu0 0.0
  %9261 = vmatprep.subr.mxu0 0.0
  %9262 = vmatpush1.msra.mxu0 0.0
  %9263 = vmatprep.subr.mxu0 0.0
  %9264 = vmatpush1.msra.mxu0 0.0
  %9265 = vmatprep.subr.mxu0 0.0
  %9266 = vmatpush1.msra.mxu0 0.0
  %9267 = vmatprep.subr.mxu0 0.0
  %9268 = vmatpush1.msra.mxu0 0.0
  %9269 = vmatprep.subr.mxu0 0.0
  %9270 = vmatpush1.msra.mxu0 0.0
  %9271 = vmatprep.subr.mxu0 0.0
  %9272 = vmatpush1.msra.mxu0 0.0
  %9273 = vmatprep.subr.mxu0 0.0
  %9274 = vmatpush1.msra.mxu0 0.0
  %9275 = vmatprep.subr.mxu0 0.0
  %9276 = vmatpush1.msra.mxu0 0.0
  %9277 = vmatprep.mubr.f32.mxu0 0.0
  %9278 = vmatmul.mubr.f32.gmra.mrb[0].mxu0 %v9211
  %v9279 = vpop.f32.mrb[0].mxu0
  %v9280 = vadd.f32 %v9205, %v9279
  %v9281 = vpop.f32.mrb[0].mxu0
  %9282 = vdwg.mxu0
  %9283 = vst.msk [vmem:[%s9] sm:$0x3] %vm37, %v9280
  // Predicated region
  $region38: #{discriminator_forward.1} parent=0 // pred_check
    _
  $region39: #{discriminator_forward.1} parent=0 // pred_check_branch
    %9285 = sbr.rel (0) target = $region41
  $region40: #{discriminator_forward.1} parent=0 // pred_region
    _
  $region41: #{discriminator_forward.1} parent=0 // pred_fallthru
    _
  // Predicated region
  $region42: #{discriminator_forward.1} parent=0 // pred_check
    _
  $region43: #{discriminator_forward.1} parent=0 // pred_check_branch
    %9287 = sbr.rel (0) target = $region45
  $region44: #{discriminator_forward.1} parent=0 // pred_region
    _
  $region45: #{discriminator_forward.1} parent=0 // pred_fallthru
    _

</llo_original>
